<compile_context>
chip_gen: v7x
topology: tpu7x:2x2x1
jax: 0.10.0
libtpu: 0.0.40
codegen_flags: <defaults>
</compile_context>

<pallas_src>
import numpy as np

import jax
import jax.numpy as jnp
from jax.experimental import pallas as pl
from jax.experimental.pallas import tpu as pltpu


_MAX_B_TILE = 64          # samples per grid step (cap; always a multiple of 8)


# ----------------------------- fused kernel --------------------------------
def _decoder_kernel(z_ref, w1_ref, b1_ref, w2_ref, b2_ref,
                    wc1_ref, bc1_ref, m2_ref, bc2_ref,
                    out_ref, x_scr, y_scr):
    f32 = jnp.float32
    bt = z_ref.shape[0]                 # samples in this grid step
    nv = 7 * bt                         # valid block rows (m = 0..6)

    # Zero the out-of-range block row (m == 7) that the +1 block-row shifted
    # GEMMs read below.  Done every step (a few full-width stores) so it is
    # also correct when the grid is sharded across TensorCores ("parallel").
    x_scr[nv:nv + bt, :] = jnp.zeros((bt, 256), f32)
    y_scr[nv:nv + bt, :] = jnp.zeros((bt, 512), f32)

    # ---- Linear(16, 128) + ReLU --------------------------------------------
    h1 = jnp.maximum(
        jnp.dot(z_ref[...], w1_ref[...], preferred_element_type=f32)
        + b1_ref[...], 0.0)                                      # (bt, 128)

    # ---- Linear(128, 7*7*32) + ReLU ----------------------------------------
    # Emitted straight into the conv layout: rows (m, b), lanes n*32 + c
    # (n == 7 lane columns of w2/b2 are zero padding).  One aligned,
    # full-width 256-lane block-row store per m — no scatter bridge.
    for m in range(7):
        lo, hi = m * 256, (m + 1) * 256
        x_scr[m * bt:(m + 1) * bt, :] = jnp.maximum(
            jnp.dot(h1, w2_ref[:, lo:hi], preferred_element_type=f32)
            + b2_ref[:, lo:hi], 0.0)

    # ---- ConvTranspose2d(32,16,3,s2,p1,op1) + ReLU --------------------------
    # Split-stride GEMM form: y rows (m, b), lanes n*64 + (py*2+px)*16 + co.
    # Row-block shift dy in {0,1} -> two GEMMs; the n/dx structure is folded
    # into the (256, 512) banded weights.  All operands are lane-dense and the
    # +bt row shift is sublane-tile aligned, so there are no masks/selects.
    for m in range(7):
        r0, r1 = m * bt, (m + 1) * bt
        y_scr[r0:r1, :] = jnp.maximum(
            jnp.dot(x_scr[r0:r1, :], wc1_ref[0, :, :], preferred_element_type=f32)
            + jnp.dot(x_scr[r1:r1 + bt, :], wc1_ref[1, :, :],
                      preferred_element_type=f32)
            + bc1_ref[...], 0.0)

    # ---- ConvTranspose2d(16,1,3,s2,p1,op1) + Tanh ---------------------------
    # o rows (m, b), lanes n*16 + u*4 + v  (n == 7 lanes are dead padding) —
    # exactly 128 lanes, single clean unmasked store per block row.
    for m in range(7):
        r0, r1 = m * bt, (m + 1) * bt
        out_ref[r0:r1, :] = jnp.tanh(
            jnp.dot(y_scr[r0:r1, :], m2_ref[0, :, :], preferred_element_type=f32)
            + jnp.dot(y_scr[r1:r1 + bt, :], m2_ref[1, :, :],
                      preferred_element_type=f32)
            + bc2_ref[...])


# ----------------------- one-time parameter folding ------------------------
def prepare_params(params):
    """Host-side, one-time: permute/fold weights into the kernel's layouts."""
    w1 = np.asarray(params["w1"], np.float32)                    # (16, 128)
    b1 = np.asarray(params["b1"], np.float32)                    # (128,)
    w2 = np.asarray(params["w2"], np.float32)                    # (128, 1568)
    b2 = np.asarray(params["b2"], np.float32)                    # (1568,)
    wt1 = np.asarray(params["wct1"], np.float32)                 # (32, 16, 3, 3)
    bt1 = np.asarray(params["bct1"], np.float32)                 # (16,)
    wt2 = np.asarray(params["wct2"], np.float32)                 # (16, 1, 3, 3)
    bt2 = np.asarray(params["bct2"], np.float32)                 # (1,)

    # Linear2 columns: PyTorch Unflatten order c*49 + m*7 + n  ->
    # m*256 + n*32 + c  (m < 7; n padded to 8 with zero columns).
    w2_t = w2.reshape(128, 32, 7, 7).transpose(0, 2, 3, 1)       # (128, m, n, c)
    w2p = np.zeros((128, 7, 8, 32), np.float32)
    w2p[:, :, :7, :] = w2_t
    w2p = w2p.reshape(128, 7 * 256)
    b2p = np.zeros((7, 8, 32), np.float32)
    b2p[:, :7, :] = b2.reshape(32, 7, 7).transpose(1, 2, 0)
    b2p = b2p.reshape(1, 7 * 256)

    # ConvT1 sub-pixel (split-stride) fold:
    #   output pixel (2m+py, 2n+px) reads input (m+dy, n+dx) via tap (kh,kw)
    #   where py = 2*dy + kh - 1 and px = 2*dx + kw - 1 must lie in {0,1}.
    wc1f = np.zeros((4, 32, 64), np.float32)     # [dy*2+dx, ci, (py*2+px)*16+co]
    for kh in range(3):
        for dy in range(2):
            py = 2 * dy + kh - 1
            if py not in (0, 1):
                continue
            for kw in range(3):
                for dx in range(2):
                    px = 2 * dx + kw - 1
                    if px not in (0, 1):
                        continue
                    p = py * 2 + px
                    wc1f[dy * 2 + dx, :, p * 16:(p + 1) * 16] += wt1[:, :, kh, kw]

    # Densify the n (block-column) structure into the lanes: (2, 256, 512)
    # banded weight, rows (n_in*32 + ci), cols (n*64 + p*16 + co).
    wc1 = np.zeros((2, 256, 512), np.float32)
    for dy in range(2):
        for dx in range(2):
            for n in range(7):
                wc1[dy, (n + dx) * 32:(n + dx + 1) * 32,
                    n * 64:(n + 1) * 64] += wc1f[dy * 2 + dx]
    bc1 = np.zeros((1, 512), np.float32)
    for n in range(7):
        bc1[0, n * 64:(n + 1) * 64] = np.tile(bt1, 4)            # lanes p*16+co

    # ConvT2 parity/phase fold on the block grid (same derivation, validated
    # against the reference), then n-densified to (2, 512, 128):
    # rows (n_in*64 + p2*16 + ci), cols (n*16 + u*4 + v); n == 7 cols zero.
    m2f = np.zeros((4, 64, 16), np.float32)      # [Dy*2+Dx, p2*16+ci, u*4+v]
    for py in range(2):
        for px in range(2):
            for kh in range(3):
                for ey in range(2):
                    qy = 2 * ey + kh - 1
                    if qy not in (0, 1):
                        continue
                    for kw in range(3):
                        for ex in range(2):
                            qx = 2 * ex + kw - 1
                            if qx not in (0, 1):
                                continue
                            u = 2 * py + qy
                            v = 2 * px + qx
                            dyb, py2 = divmod(py + ey, 2)
                            dxb, px2 = divmod(px + ex, 2)
                            p2 = py2 * 2 + px2
                            m2f[dyb * 2 + dxb,
                                p2 * 16:(p2 + 1) * 16,
                                u * 4 + v] += wt2[:, 0, kh, kw]
    m2 = np.zeros((2, 512, 128), np.float32)
    for dyb in range(2):
        for dxb in range(2):
            for n in range(7):
                m2[dyb, (n + dxb) * 64:(n + dxb + 1) * 64,
                   n * 16:(n + 1) * 16] += m2f[dyb * 2 + dxb]
    bc2 = bt2.reshape(1, 1)

    return dict(
        w1=jnp.asarray(w1),
        b1=jnp.asarray(b1.reshape(1, 128)),
        w2p=jnp.asarray(w2p),
        b2p=jnp.asarray(b2p),
        wc1=jnp.asarray(wc1),
        bc1=jnp.asarray(bc1),
        m2=jnp.asarray(m2),
        bc2=jnp.asarray(bc2),
    )


# ------------------------------ forward pass --------------------------------
def _round_up(x, m):
    return ((x + m - 1) // m) * m


@jax.jit
def decoder_forward(z, prep):
    if z.ndim == 1:                                   # z.unsqueeze(0)
        z = z[None, :]
    z = z.astype(jnp.float32)
    B = z.shape[0]

    b_tile = min(_MAX_B_TILE, _round_up(B, 8))        # samples per grid step
    b_pad = _round_up(B, b_tile)
    grid_len = b_pad // b_tile
    if b_pad != B:
        z = jnp.pad(z, ((0, b_pad - B), (0, 0)))
    nv = 7 * b_tile

    weight_elems = (16 * 128 + 128 + 128 * 1792 + 1792
                    + 2 * 256 * 512 + 512 + 2 * 512 * 128 + 1)
    flops = 2 * b_pad * (16 * 128 + 7 * 128 * 256
                         + 14 * 256 * 512 + 14 * 512 * 128)
    transcendentals = b_pad * 7 * 128
    bytes_accessed = 4 * (b_pad * 16 + weight_elems + b_pad * 7 * 128)

    out = pl.pallas_call(
        _decoder_kernel,
        out_shape=jax.ShapeDtypeStruct((grid_len * nv, 128), jnp.float32),
        grid=(grid_len,),
        in_specs=[
            pl.BlockSpec((b_tile, 16), lambda g: (g, 0)),         # z
            pl.BlockSpec((16, 128), lambda g: (0, 0)),            # w1
            pl.BlockSpec((1, 128), lambda g: (0, 0)),             # b1
            pl.BlockSpec((128, 1792), lambda g: (0, 0)),          # w2 (padded layout)
            pl.BlockSpec((1, 1792), lambda g: (0, 0)),            # b2 (padded layout)
            pl.BlockSpec((2, 256, 512), lambda g: (0, 0, 0)),     # conv1 folded taps
            pl.BlockSpec((1, 512), lambda g: (0, 0)),             # conv1 bias (n,p,co)
            pl.BlockSpec((2, 512, 128), lambda g: (0, 0, 0)),     # conv2 folded taps
            pl.BlockSpec((1, 1), lambda g: (0, 0)),               # conv2 bias
        ],
        out_specs=pl.BlockSpec((nv, 128), lambda g: (g, 0)),
        scratch_shapes=[pltpu.VMEM((8 * b_tile, 256), jnp.float32),   # x (incl. m==7 zero row)
                        pltpu.VMEM((8 * b_tile, 512), jnp.float32)],  # y (incl. m==7 zero row)
        compiler_params=pltpu.CompilerParams(
            dimension_semantics=("parallel",)),
        cost_estimate=pl.CostEstimate(flops=flops,
                                      transcendentals=transcendentals,
                                      bytes_accessed=bytes_accessed),
    )(z, prep["w1"], prep["b1"], prep["w2p"], prep["b2p"],
      prep["wc1"], prep["bc1"], prep["m2"], prep["bc2"])

    # Depth-to-space outside the kernel (784 floats/sample — XLA-trivial):
    # row = (g*7 + m)*b_tile + b ; lane = n*16 + u*4 + v ; pixel = (4m+u, 4n+v).
    out = out.reshape(grid_len, 7, b_tile, 8, 4, 4)[:, :, :, :7]
    out = out.transpose(0, 2, 1, 4, 3, 5).reshape(b_pad, 28, 28)[:B]
    return out[:, None, :, :]


# ---------------------------- parameter init --------------------------------
def init_params(latent_dim=16):
    key = jax.random.PRNGKey(0)
    ks = jax.random.split(key, 8)

    def u(k, shape, fan_in):
        bound = 1.0 / np.sqrt(float(fan_in))
        return jax.random.uniform(k, shape, jnp.float32, -bound, bound)

    return dict(
        w1=u(ks[0], (latent_dim, 128), latent_dim),     # Linear(16, 128) (in, out)
        b1=u(ks[1], (128,), latent_dim),
        w2=u(ks[2], (128, 7 * 7 * 32), 128),            # Linear(128, 1568)
        b2=u(ks[3], (7 * 7 * 32,), 128),
        wct1=u(ks[4], (32, 16, 3, 3), 32 * 9),          # ConvTranspose2d(32, 16)
        bct1=u(ks[5], (16,), 32 * 9),
        wct2=u(ks[6], (16, 1, 3, 3), 16 * 9),           # ConvTranspose2d(16, 1)
        bct2=u(ks[7], (1,), 16 * 9),
    )


# --------------------- pure-JAX reference (correctness) ---------------------
def _ref_conv_transpose(x_nhwc, w_t, b):
    """PyTorch ConvTranspose2d(k=3, s=2, p=1, op=1) via zero-insert + flipped conv."""
    B, H, W, Cin = x_nhwc.shape
    Ho, Wo = 2 * H, 2 * W
    x_up = jnp.zeros((B, 2 * H - 1, 2 * W - 1, Cin), jnp.float32)
    x_up = x_up.at[:, ::2, ::2, :].set(x_nhwc)
    x_pad = jnp.pad(x_up, ((0, 0), (1, 2), (1, 2), (0, 0)))
    w_conv = jnp.transpose(w_t[:, :, ::-1, ::-1], (2, 3, 0, 1))     # (K, K, Cin, Cout)
    acc = jnp.zeros((B, Ho, Wo, w_t.shape[1]), jnp.float32) + b
    for kh in range(3):
        for kw in range(3):
            acc = acc + jnp.einsum("bhwc,cd->bhwd",
                                   x_pad[:, kh:kh + Ho, kw:kw + Wo, :],
                                   w_conv[kh, kw])
    return acc


def reference_forward(z, params):
    if z.ndim == 1:
        z = z[None, :]
    B = z.shape[0]
    h = jnp.maximum(z @ params["w1"] + params["b1"], 0.0)
    h = jnp.maximum(h @ params["w2"] + params["b2"], 0.0)
    x = h.reshape(B, 32, 7, 7).transpose(0, 2, 3, 1)                # NCHW -> NHWC
    x = jnp.maximum(_ref_conv_transpose(x, params["wct1"], params["bct1"]), 0.0)
    x = jnp.tanh(_ref_conv_transpose(x, params["wct2"], params["bct2"]))
    return x.transpose(0, 3, 1, 2)                                  # (B, 1, 28, 28)


if __name__ == "__main__":
    latent_dim = 16
    batch = 2
    params = init_params(latent_dim)
    prep = prepare_params(params)                    # one-time weight folding
    z = jax.random.normal(jax.random.PRNGKey(0), (batch, latent_dim), jnp.float32)

    out = decoder_forward(z, prep)
    out = jax.block_until_ready(out)

    assert out.shape == (batch, 1, 28, 28), out.shape
    assert out.dtype == jnp.float32
    assert bool(jnp.all(jnp.isfinite(out)))
    assert bool(jnp.all(jnp.abs(out) <= 1.0 + 1e-6))    # final Tanh range

    ref = reference_forward(z, params)
    max_err = float(jnp.max(jnp.abs(out - ref)))
    assert max_err < 2e-3, f"kernel vs reference mismatch: {max_err}"

    print("KERNEL_OK")
</pallas_src>

<mosaic_0001>
module attributes {stable_mosaic.version = 11 : i64} {
  func.func @_decoder_kernel(%arg0: i32, %arg1: memref<8x16xf32, #tpu.memory_space<vmem>>, %arg2: memref<16x128xf32, #tpu.memory_space<vmem>>, %arg3: memref<1x128xf32, #tpu.memory_space<vmem>>, %arg4: memref<128x1792xf32, #tpu.memory_space<vmem>>, %arg5: memref<1x1792xf32, #tpu.memory_space<vmem>>, %arg6: memref<2x256x512xf32, #tpu.memory_space<vmem>>, %arg7: memref<1x512xf32, #tpu.memory_space<vmem>>, %arg8: memref<2x512x128xf32, #tpu.memory_space<vmem>>, %arg9: memref<1x1xf32, #tpu.memory_space<vmem>>, %arg10: memref<56x128xf32, #tpu.memory_space<vmem>>, %arg11: memref<64x256xf32, #tpu.memory_space<vmem>>, %arg12: memref<64x512xf32, #tpu.memory_space<vmem>>) attributes {dimension_semantics = [#tpu.dimension_semantics<parallel>], iteration_bounds = array<i64: 1>, scalar_prefetch = 0 : i64, scratch_operands = 2 : i64, tpu.core_type = #tpu.core_type<tc>, window_params = [{transform_indices = @transform_0, window_bounds = array<i64: 8, 16>}, {pipeline_mode = #tpu.pipeline_mode<synchronous>, transform_indices = @transform_1, window_bounds = array<i64: 16, 128>}, {pipeline_mode = #tpu.pipeline_mode<synchronous>, transform_indices = @transform_2, window_bounds = array<i64: 1, 128>}, {pipeline_mode = #tpu.pipeline_mode<synchronous>, transform_indices = @transform_3, window_bounds = array<i64: 128, 1792>}, {pipeline_mode = #tpu.pipeline_mode<synchronous>, transform_indices = @transform_4, window_bounds = array<i64: 1, 1792>}, {pipeline_mode = #tpu.pipeline_mode<synchronous>, transform_indices = @transform_5, window_bounds = array<i64: 2, 256, 512>}, {pipeline_mode = #tpu.pipeline_mode<synchronous>, transform_indices = @transform_6, window_bounds = array<i64: 1, 512>}, {pipeline_mode = #tpu.pipeline_mode<synchronous>, transform_indices = @transform_7, window_bounds = array<i64: 2, 512, 128>}, {pipeline_mode = #tpu.pipeline_mode<synchronous>, transform_indices = @transform_8, window_bounds = array<i64: 1, 1>}, {transform_indices = @transform_9, window_bounds = array<i64: 56, 128>}]} {
    %cst = arith.constant 0.000000e+00 : f32
    %0 = vector.broadcast %cst : f32 to vector<8x256xf32>
    %c56 = arith.constant 56 : index
    %c0 = arith.constant 0 : index
    %1 = vector.load %arg11[%c56, %c0] : memref<64x256xf32, #tpu.memory_space<vmem>>, vector<8x256xf32>
    tpu.vector_store %arg11[%c56, %c0], %0 {strides = array<i32>} : memref<64x256xf32, #tpu.memory_space<vmem>>, vector<8x256xf32>,
    %cst_0 = arith.constant 0.000000e+00 : f32
    %2 = vector.broadcast %cst_0 : f32 to vector<8x512xf32>
    %c56_1 = arith.constant 56 : index
    %c0_2 = arith.constant 0 : index
    %3 = vector.load %arg12[%c56_1, %c0_2] : memref<64x512xf32, #tpu.memory_space<vmem>>, vector<8x512xf32>
    tpu.vector_store %arg12[%c56_1, %c0_2], %2 {strides = array<i32>} : memref<64x512xf32, #tpu.memory_space<vmem>>, vector<8x512xf32>,
    %c0_3 = arith.constant 0 : index
    %c0_4 = arith.constant 0 : index
    %4 = vector.load %arg1[%c0_3, %c0_4] : memref<8x16xf32, #tpu.memory_space<vmem>>, vector<8x16xf32>
    %c0_5 = arith.constant 0 : index
    %c0_6 = arith.constant 0 : index
    %5 = vector.load %arg2[%c0_5, %c0_6] : memref<16x128xf32, #tpu.memory_space<vmem>>, vector<16x128xf32>
    %cst_7 = arith.constant dense<0.000000e+00> : vector<8x128xf32>
    %6 = tpu.matmul %4, %5, %cst_7 {dimension_numbers = #tpu.dot_dimension_numbers<[1], [0], [0], [1], [0, 0, 1, 1], [], []>} : vector<8x16xf32>, vector<16x128xf32>, vector<8x128xf32> -> vector<8x128xf32>
    %c0_8 = arith.constant 0 : index
    %c0_9 = arith.constant 0 : index
    %7 = vector.load %arg3[%c0_8, %c0_9] : memref<1x128xf32, #tpu.memory_space<vmem>>, vector<1x128xf32>
    %8 = vector.broadcast %7 : vector<1x128xf32> to vector<8x128xf32>
    %9 = arith.addf %6, %8 : vector<8x128xf32>
    %cst_10 = arith.constant 0.000000e+00 : f32
    %10 = vector.broadcast %cst_10 : f32 to vector<8x128xf32>
    %11 = arith.maximumf %9, %10 : vector<8x128xf32>
    %c0_11 = arith.constant 0 : index
    %c0_12 = arith.constant 0 : index
    %12 = vector.load %arg4[%c0_11, %c0_12] : memref<128x1792xf32, #tpu.memory_space<vmem>>, vector<128x256xf32>
    %cst_13 = arith.constant dense<0.000000e+00> : vector<8x256xf32>
    %13 = tpu.matmul %11, %12, %cst_13 {dimension_numbers = #tpu.dot_dimension_numbers<[1], [0], [0], [1], [0, 0, 1, 1], [], []>} : vector<8x128xf32>, vector<128x256xf32>, vector<8x256xf32> -> vector<8x256xf32>
    %c0_14 = arith.constant 0 : index
    %c0_15 = arith.constant 0 : index
    %14 = vector.load %arg5[%c0_14, %c0_15] : memref<1x1792xf32, #tpu.memory_space<vmem>>, vector<1x256xf32>
    %15 = vector.broadcast %14 : vector<1x256xf32> to vector<8x256xf32>
    %16 = arith.addf %13, %15 : vector<8x256xf32>
    %cst_16 = arith.constant 0.000000e+00 : f32
    %17 = vector.broadcast %cst_16 : f32 to vector<8x256xf32>
    %18 = arith.maximumf %16, %17 : vector<8x256xf32>
    %c0_17 = arith.constant 0 : index
    %c0_18 = arith.constant 0 : index
    %19 = vector.load %arg11[%c0_17, %c0_18] : memref<64x256xf32, #tpu.memory_space<vmem>>, vector<8x256xf32>
    tpu.vector_store %arg11[%c0_17, %c0_18], %18 {strides = array<i32>} : memref<64x256xf32, #tpu.memory_space<vmem>>, vector<8x256xf32>,
    %c0_19 = arith.constant 0 : index
    %c256 = arith.constant 256 : index
    %20 = vector.load %arg4[%c0_19, %c256] : memref<128x1792xf32, #tpu.memory_space<vmem>>, vector<128x256xf32>
    %cst_20 = arith.constant dense<0.000000e+00> : vector<8x256xf32>
    %21 = tpu.matmul %11, %20, %cst_20 {dimension_numbers = #tpu.dot_dimension_numbers<[1], [0], [0], [1], [0, 0, 1, 1], [], []>} : vector<8x128xf32>, vector<128x256xf32>, vector<8x256xf32> -> vector<8x256xf32>
    %c0_21 = arith.constant 0 : index
    %c256_22 = arith.constant 256 : index
    %22 = vector.load %arg5[%c0_21, %c256_22] : memref<1x1792xf32, #tpu.memory_space<vmem>>, vector<1x256xf32>
    %23 = vector.broadcast %22 : vector<1x256xf32> to vector<8x256xf32>
    %24 = arith.addf %21, %23 : vector<8x256xf32>
    %cst_23 = arith.constant 0.000000e+00 : f32
    %25 = vector.broadcast %cst_23 : f32 to vector<8x256xf32>
    %26 = arith.maximumf %24, %25 : vector<8x256xf32>
    %c8 = arith.constant 8 : index
    %c0_24 = arith.constant 0 : index
    %27 = vector.load %arg11[%c8, %c0_24] : memref<64x256xf32, #tpu.memory_space<vmem>>, vector<8x256xf32>
    tpu.vector_store %arg11[%c8, %c0_24], %26 {strides = array<i32>} : memref<64x256xf32, #tpu.memory_space<vmem>>, vector<8x256xf32>,
    %c0_25 = arith.constant 0 : index
    %c512 = arith.constant 512 : index
    %28 = vector.load %arg4[%c0_25, %c512] : memref<128x1792xf32, #tpu.memory_space<vmem>>, vector<128x256xf32>
    %cst_26 = arith.constant dense<0.000000e+00> : vector<8x256xf32>
    %29 = tpu.matmul %11, %28, %cst_26 {dimension_numbers = #tpu.dot_dimension_numbers<[1], [0], [0], [1], [0, 0, 1, 1], [], []>} : vector<8x128xf32>, vector<128x256xf32>, vector<8x256xf32> -> vector<8x256xf32>
    %c0_27 = arith.constant 0 : index
    %c512_28 = arith.constant 512 : index
    %30 = vector.load %arg5[%c0_27, %c512_28] : memref<1x1792xf32, #tpu.memory_space<vmem>>, vector<1x256xf32>
    %31 = vector.broadcast %30 : vector<1x256xf32> to vector<8x256xf32>
    %32 = arith.addf %29, %31 : vector<8x256xf32>
    %cst_29 = arith.constant 0.000000e+00 : f32
    %33 = vector.broadcast %cst_29 : f32 to vector<8x256xf32>
    %34 = arith.maximumf %32, %33 : vector<8x256xf32>
    %c16 = arith.constant 16 : index
    %c0_30 = arith.constant 0 : index
    %35 = vector.load %arg11[%c16, %c0_30] : memref<64x256xf32, #tpu.memory_space<vmem>>, vector<8x256xf32>
    tpu.vector_store %arg11[%c16, %c0_30], %34 {strides = array<i32>} : memref<64x256xf32, #tpu.memory_space<vmem>>, vector<8x256xf32>,
    %c0_31 = arith.constant 0 : index
    %c768 = arith.constant 768 : index
    %36 = vector.load %arg4[%c0_31, %c768] : memref<128x1792xf32, #tpu.memory_space<vmem>>, vector<128x256xf32>
    %cst_32 = arith.constant dense<0.000000e+00> : vector<8x256xf32>
    %37 = tpu.matmul %11, %36, %cst_32 {dimension_numbers = #tpu.dot_dimension_numbers<[1], [0], [0], [1], [0, 0, 1, 1], [], []>} : vector<8x128xf32>, vector<128x256xf32>, vector<8x256xf32> -> vector<8x256xf32>
    %c0_33 = arith.constant 0 : index
    %c768_34 = arith.constant 768 : index
    %38 = vector.load %arg5[%c0_33, %c768_34] : memref<1x1792xf32, #tpu.memory_space<vmem>>, vector<1x256xf32>
    %39 = vector.broadcast %38 : vector<1x256xf32> to vector<8x256xf32>
    %40 = arith.addf %37, %39 : vector<8x256xf32>
    %cst_35 = arith.constant 0.000000e+00 : f32
    %41 = vector.broadcast %cst_35 : f32 to vector<8x256xf32>
    %42 = arith.maximumf %40, %41 : vector<8x256xf32>
    %c24 = arith.constant 24 : index
    %c0_36 = arith.constant 0 : index
    %43 = vector.load %arg11[%c24, %c0_36] : memref<64x256xf32, #tpu.memory_space<vmem>>, vector<8x256xf32>
    tpu.vector_store %arg11[%c24, %c0_36], %42 {strides = array<i32>} : memref<64x256xf32, #tpu.memory_space<vmem>>, vector<8x256xf32>,
    %c0_37 = arith.constant 0 : index
    %c1024 = arith.constant 1024 : index
    %44 = vector.load %arg4[%c0_37, %c1024] : memref<128x1792xf32, #tpu.memory_space<vmem>>, vector<128x256xf32>
    %cst_38 = arith.constant dense<0.000000e+00> : vector<8x256xf32>
    %45 = tpu.matmul %11, %44, %cst_38 {dimension_numbers = #tpu.dot_dimension_numbers<[1], [0], [0], [1], [0, 0, 1, 1], [], []>} : vector<8x128xf32>, vector<128x256xf32>, vector<8x256xf32> -> vector<8x256xf32>
    %c0_39 = arith.constant 0 : index
    %c1024_40 = arith.constant 1024 : index
    %46 = vector.load %arg5[%c0_39, %c1024_40] : memref<1x1792xf32, #tpu.memory_space<vmem>>, vector<1x256xf32>
    %47 = vector.broadcast %46 : vector<1x256xf32> to vector<8x256xf32>
    %48 = arith.addf %45, %47 : vector<8x256xf32>
    %cst_41 = arith.constant 0.000000e+00 : f32
    %49 = vector.broadcast %cst_41 : f32 to vector<8x256xf32>
    %50 = arith.maximumf %48, %49 : vector<8x256xf32>
    %c32 = arith.constant 32 : index
    %c0_42 = arith.constant 0 : index
    %51 = vector.load %arg11[%c32, %c0_42] : memref<64x256xf32, #tpu.memory_space<vmem>>, vector<8x256xf32>
    tpu.vector_store %arg11[%c32, %c0_42], %50 {strides = array<i32>} : memref<64x256xf32, #tpu.memory_space<vmem>>, vector<8x256xf32>,
    %c0_43 = arith.constant 0 : index
    %c1280 = arith.constant 1280 : index
    %52 = vector.load %arg4[%c0_43, %c1280] : memref<128x1792xf32, #tpu.memory_space<vmem>>, vector<128x256xf32>
    %cst_44 = arith.constant dense<0.000000e+00> : vector<8x256xf32>
    %53 = tpu.matmul %11, %52, %cst_44 {dimension_numbers = #tpu.dot_dimension_numbers<[1], [0], [0], [1], [0, 0, 1, 1], [], []>} : vector<8x128xf32>, vector<128x256xf32>, vector<8x256xf32> -> vector<8x256xf32>
    %c0_45 = arith.constant 0 : index
    %c1280_46 = arith.constant 1280 : index
    %54 = vector.load %arg5[%c0_45, %c1280_46] : memref<1x1792xf32, #tpu.memory_space<vmem>>, vector<1x256xf32>
    %55 = vector.broadcast %54 : vector<1x256xf32> to vector<8x256xf32>
    %56 = arith.addf %53, %55 : vector<8x256xf32>
    %cst_47 = arith.constant 0.000000e+00 : f32
    %57 = vector.broadcast %cst_47 : f32 to vector<8x256xf32>
    %58 = arith.maximumf %56, %57 : vector<8x256xf32>
    %c40 = arith.constant 40 : index
    %c0_48 = arith.constant 0 : index
    %59 = vector.load %arg11[%c40, %c0_48] : memref<64x256xf32, #tpu.memory_space<vmem>>, vector<8x256xf32>
    tpu.vector_store %arg11[%c40, %c0_48], %58 {strides = array<i32>} : memref<64x256xf32, #tpu.memory_space<vmem>>, vector<8x256xf32>,
    %c0_49 = arith.constant 0 : index
    %c1536 = arith.constant 1536 : index
    %60 = vector.load %arg4[%c0_49, %c1536] : memref<128x1792xf32, #tpu.memory_space<vmem>>, vector<128x256xf32>
    %cst_50 = arith.constant dense<0.000000e+00> : vector<8x256xf32>
    %61 = tpu.matmul %11, %60, %cst_50 {dimension_numbers = #tpu.dot_dimension_numbers<[1], [0], [0], [1], [0, 0, 1, 1], [], []>} : vector<8x128xf32>, vector<128x256xf32>, vector<8x256xf32> -> vector<8x256xf32>
    %c0_51 = arith.constant 0 : index
    %c1536_52 = arith.constant 1536 : index
    %62 = vector.load %arg5[%c0_51, %c1536_52] : memref<1x1792xf32, #tpu.memory_space<vmem>>, vector<1x256xf32>
    %63 = vector.broadcast %62 : vector<1x256xf32> to vector<8x256xf32>
    %64 = arith.addf %61, %63 : vector<8x256xf32>
    %cst_53 = arith.constant 0.000000e+00 : f32
    %65 = vector.broadcast %cst_53 : f32 to vector<8x256xf32>
    %66 = arith.maximumf %64, %65 : vector<8x256xf32>
    %c48 = arith.constant 48 : index
    %c0_54 = arith.constant 0 : index
    %67 = vector.load %arg11[%c48, %c0_54] : memref<64x256xf32, #tpu.memory_space<vmem>>, vector<8x256xf32>
    tpu.vector_store %arg11[%c48, %c0_54], %66 {strides = array<i32>} : memref<64x256xf32, #tpu.memory_space<vmem>>, vector<8x256xf32>,
    %c0_55 = arith.constant 0 : index
    %c0_56 = arith.constant 0 : index
    %68 = vector.load %arg11[%c0_55, %c0_56] : memref<64x256xf32, #tpu.memory_space<vmem>>, vector<8x256xf32>
    %c0_57 = arith.constant 0 : index
    %c0_58 = arith.constant 0 : index
    %c0_59 = arith.constant 0 : index
    %69 = vector.load %arg6[%c0_57, %c0_58, %c0_59] : memref<2x256x512xf32, #tpu.memory_space<vmem>>, vector<1x256x512xf32>
    %70 = vector.shape_cast %69 : vector<1x256x512xf32> to vector<256x512xf32>
    %cst_60 = arith.constant dense<0.000000e+00> : vector<8x512xf32>
    %71 = tpu.matmul %68, %70, %cst_60 {dimension_numbers = #tpu.dot_dimension_numbers<[1], [0], [0], [1], [0, 0, 1, 1], [], []>} : vector<8x256xf32>, vector<256x512xf32>, vector<8x512xf32> -> vector<8x512xf32>
    %c8_61 = arith.constant 8 : index
    %c0_62 = arith.constant 0 : index
    %72 = vector.load %arg11[%c8_61, %c0_62] : memref<64x256xf32, #tpu.memory_space<vmem>>, vector<8x256xf32>
    %c1 = arith.constant 1 : index
    %c0_63 = arith.constant 0 : index
    %c0_64 = arith.constant 0 : index
    %73 = vector.load %arg6[%c1, %c0_63, %c0_64] : memref<2x256x512xf32, #tpu.memory_space<vmem>>, vector<1x256x512xf32>
    %74 = vector.shape_cast %73 : vector<1x256x512xf32> to vector<256x512xf32>
    %cst_65 = arith.constant dense<0.000000e+00> : vector<8x512xf32>
    %75 = tpu.matmul %72, %74, %cst_65 {dimension_numbers = #tpu.dot_dimension_numbers<[1], [0], [0], [1], [0, 0, 1, 1], [], []>} : vector<8x256xf32>, vector<256x512xf32>, vector<8x512xf32> -> vector<8x512xf32>
    %76 = arith.addf %71, %75 : vector<8x512xf32>
    %c0_66 = arith.constant 0 : index
    %c0_67 = arith.constant 0 : index
    %77 = vector.load %arg7[%c0_66, %c0_67] : memref<1x512xf32, #tpu.memory_space<vmem>>, vector<1x512xf32>
    %78 = vector.broadcast %77 : vector<1x512xf32> to vector<8x512xf32>
    %79 = arith.addf %76, %78 : vector<8x512xf32>
    %cst_68 = arith.constant 0.000000e+00 : f32
    %80 = vector.broadcast %cst_68 : f32 to vector<8x512xf32>
    %81 = arith.maximumf %79, %80 : vector<8x512xf32>
    %c0_69 = arith.constant 0 : index
    %c0_70 = arith.constant 0 : index
    %82 = vector.load %arg12[%c0_69, %c0_70] : memref<64x512xf32, #tpu.memory_space<vmem>>, vector<8x512xf32>
    tpu.vector_store %arg12[%c0_69, %c0_70], %81 {strides = array<i32>} : memref<64x512xf32, #tpu.memory_space<vmem>>, vector<8x512xf32>,
    %c8_71 = arith.constant 8 : index
    %c0_72 = arith.constant 0 : index
    %83 = vector.load %arg11[%c8_71, %c0_72] : memref<64x256xf32, #tpu.memory_space<vmem>>, vector<8x256xf32>
    %c0_73 = arith.constant 0 : index
    %c0_74 = arith.constant 0 : index
    %c0_75 = arith.constant 0 : index
    %84 = vector.load %arg6[%c0_73, %c0_74, %c0_75] : memref<2x256x512xf32, #tpu.memory_space<vmem>>, vector<1x256x512xf32>
    %85 = vector.shape_cast %84 : vector<1x256x512xf32> to vector<256x512xf32>
    %cst_76 = arith.constant dense<0.000000e+00> : vector<8x512xf32>
    %86 = tpu.matmul %83, %85, %cst_76 {dimension_numbers = #tpu.dot_dimension_numbers<[1], [0], [0], [1], [0, 0, 1, 1], [], []>} : vector<8x256xf32>, vector<256x512xf32>, vector<8x512xf32> -> vector<8x512xf32>
    %c16_77 = arith.constant 16 : index
    %c0_78 = arith.constant 0 : index
    %87 = vector.load %arg11[%c16_77, %c0_78] : memref<64x256xf32, #tpu.memory_space<vmem>>, vector<8x256xf32>
    %c1_79 = arith.constant 1 : index
    %c0_80 = arith.constant 0 : index
    %c0_81 = arith.constant 0 : index
    %88 = vector.load %arg6[%c1_79, %c0_80, %c0_81] : memref<2x256x512xf32, #tpu.memory_space<vmem>>, vector<1x256x512xf32>
    %89 = vector.shape_cast %88 : vector<1x256x512xf32> to vector<256x512xf32>
    %cst_82 = arith.constant dense<0.000000e+00> : vector<8x512xf32>
    %90 = tpu.matmul %87, %89, %cst_82 {dimension_numbers = #tpu.dot_dimension_numbers<[1], [0], [0], [1], [0, 0, 1, 1], [], []>} : vector<8x256xf32>, vector<256x512xf32>, vector<8x512xf32> -> vector<8x512xf32>
    %91 = arith.addf %86, %90 : vector<8x512xf32>
    %c0_83 = arith.constant 0 : index
    %c0_84 = arith.constant 0 : index
    %92 = vector.load %arg7[%c0_83, %c0_84] : memref<1x512xf32, #tpu.memory_space<vmem>>, vector<1x512xf32>
    %93 = vector.broadcast %92 : vector<1x512xf32> to vector<8x512xf32>
    %94 = arith.addf %91, %93 : vector<8x512xf32>
    %cst_85 = arith.constant 0.000000e+00 : f32
    %95 = vector.broadcast %cst_85 : f32 to vector<8x512xf32>
    %96 = arith.maximumf %94, %95 : vector<8x512xf32>
    %c8_86 = arith.constant 8 : index
    %c0_87 = arith.constant 0 : index
    %97 = vector.load %arg12[%c8_86, %c0_87] : memref<64x512xf32, #tpu.memory_space<vmem>>, vector<8x512xf32>
    tpu.vector_store %arg12[%c8_86, %c0_87], %96 {strides = array<i32>} : memref<64x512xf32, #tpu.memory_space<vmem>>, vector<8x512xf32>,
    %c16_88 = arith.constant 16 : index
    %c0_89 = arith.constant 0 : index
    %98 = vector.load %arg11[%c16_88, %c0_89] : memref<64x256xf32, #tpu.memory_space<vmem>>, vector<8x256xf32>
    %c0_90 = arith.constant 0 : index
    %c0_91 = arith.constant 0 : index
    %c0_92 = arith.constant 0 : index
    %99 = vector.load %arg6[%c0_90, %c0_91, %c0_92] : memref<2x256x512xf32, #tpu.memory_space<vmem>>, vector<1x256x512xf32>
    %100 = vector.shape_cast %99 : vector<1x256x512xf32> to vector<256x512xf32>
    %cst_93 = arith.constant dense<0.000000e+00> : vector<8x512xf32>
    %101 = tpu.matmul %98, %100, %cst_93 {dimension_numbers = #tpu.dot_dimension_numbers<[1], [0], [0], [1], [0, 0, 1, 1], [], []>} : vector<8x256xf32>, vector<256x512xf32>, vector<8x512xf32> -> vector<8x512xf32>
    %c24_94 = arith.constant 24 : index
    %c0_95 = arith.constant 0 : index
    %102 = vector.load %arg11[%c24_94, %c0_95] : memref<64x256xf32, #tpu.memory_space<vmem>>, vector<8x256xf32>
    %c1_96 = arith.constant 1 : index
    %c0_97 = arith.constant 0 : index
    %c0_98 = arith.constant 0 : index
    %103 = vector.load %arg6[%c1_96, %c0_97, %c0_98] : memref<2x256x512xf32, #tpu.memory_space<vmem>>, vector<1x256x512xf32>
    %104 = vector.shape_cast %103 : vector<1x256x512xf32> to vector<256x512xf32>
    %cst_99 = arith.constant dense<0.000000e+00> : vector<8x512xf32>
    %105 = tpu.matmul %102, %104, %cst_99 {dimension_numbers = #tpu.dot_dimension_numbers<[1], [0], [0], [1], [0, 0, 1, 1], [], []>} : vector<8x256xf32>, vector<256x512xf32>, vector<8x512xf32> -> vector<8x512xf32>
    %106 = arith.addf %101, %105 : vector<8x512xf32>
    %c0_100 = arith.constant 0 : index
    %c0_101 = arith.constant 0 : index
    %107 = vector.load %arg7[%c0_100, %c0_101] : memref<1x512xf32, #tpu.memory_space<vmem>>, vector<1x512xf32>
    %108 = vector.broadcast %107 : vector<1x512xf32> to vector<8x512xf32>
    %109 = arith.addf %106, %108 : vector<8x512xf32>
    %cst_102 = arith.constant 0.000000e+00 : f32
    %110 = vector.broadcast %cst_102 : f32 to vector<8x512xf32>
    %111 = arith.maximumf %109, %110 : vector<8x512xf32>
    %c16_103 = arith.constant 16 : index
    %c0_104 = arith.constant 0 : index
    %112 = vector.load %arg12[%c16_103, %c0_104] : memref<64x512xf32, #tpu.memory_space<vmem>>, vector<8x512xf32>
    tpu.vector_store %arg12[%c16_103, %c0_104], %111 {strides = array<i32>} : memref<64x512xf32, #tpu.memory_space<vmem>>, vector<8x512xf32>,
    %c24_105 = arith.constant 24 : index
    %c0_106 = arith.constant 0 : index
    %113 = vector.load %arg11[%c24_105, %c0_106] : memref<64x256xf32, #tpu.memory_space<vmem>>, vector<8x256xf32>
    %c0_107 = arith.constant 0 : index
    %c0_108 = arith.constant 0 : index
    %c0_109 = arith.constant 0 : index
    %114 = vector.load %arg6[%c0_107, %c0_108, %c0_109] : memref<2x256x512xf32, #tpu.memory_space<vmem>>, vector<1x256x512xf32>
    %115 = vector.shape_cast %114 : vector<1x256x512xf32> to vector<256x512xf32>
    %cst_110 = arith.constant dense<0.000000e+00> : vector<8x512xf32>
    %116 = tpu.matmul %113, %115, %cst_110 {dimension_numbers = #tpu.dot_dimension_numbers<[1], [0], [0], [1], [0, 0, 1, 1], [], []>} : vector<8x256xf32>, vector<256x512xf32>, vector<8x512xf32> -> vector<8x512xf32>
    %c32_111 = arith.constant 32 : index
    %c0_112 = arith.constant 0 : index
    %117 = vector.load %arg11[%c32_111, %c0_112] : memref<64x256xf32, #tpu.memory_space<vmem>>, vector<8x256xf32>
    %c1_113 = arith.constant 1 : index
    %c0_114 = arith.constant 0 : index
    %c0_115 = arith.constant 0 : index
    %118 = vector.load %arg6[%c1_113, %c0_114, %c0_115] : memref<2x256x512xf32, #tpu.memory_space<vmem>>, vector<1x256x512xf32>
    %119 = vector.shape_cast %118 : vector<1x256x512xf32> to vector<256x512xf32>
    %cst_116 = arith.constant dense<0.000000e+00> : vector<8x512xf32>
    %120 = tpu.matmul %117, %119, %cst_116 {dimension_numbers = #tpu.dot_dimension_numbers<[1], [0], [0], [1], [0, 0, 1, 1], [], []>} : vector<8x256xf32>, vector<256x512xf32>, vector<8x512xf32> -> vector<8x512xf32>
    %121 = arith.addf %116, %120 : vector<8x512xf32>
    %c0_117 = arith.constant 0 : index
    %c0_118 = arith.constant 0 : index
    %122 = vector.load %arg7[%c0_117, %c0_118] : memref<1x512xf32, #tpu.memory_space<vmem>>, vector<1x512xf32>
    %123 = vector.broadcast %122 : vector<1x512xf32> to vector<8x512xf32>
    %124 = arith.addf %121, %123 : vector<8x512xf32>
    %cst_119 = arith.constant 0.000000e+00 : f32
    %125 = vector.broadcast %cst_119 : f32 to vector<8x512xf32>
    %126 = arith.maximumf %124, %125 : vector<8x512xf32>
    %c24_120 = arith.constant 24 : index
    %c0_121 = arith.constant 0 : index
    %127 = vector.load %arg12[%c24_120, %c0_121] : memref<64x512xf32, #tpu.memory_space<vmem>>, vector<8x512xf32>
    tpu.vector_store %arg12[%c24_120, %c0_121], %126 {strides = array<i32>} : memref<64x512xf32, #tpu.memory_space<vmem>>, vector<8x512xf32>,
    %c32_122 = arith.constant 32 : index
    %c0_123 = arith.constant 0 : index
    %128 = vector.load %arg11[%c32_122, %c0_123] : memref<64x256xf32, #tpu.memory_space<vmem>>, vector<8x256xf32>
    %c0_124 = arith.constant 0 : index
    %c0_125 = arith.constant 0 : index
    %c0_126 = arith.constant 0 : index
    %129 = vector.load %arg6[%c0_124, %c0_125, %c0_126] : memref<2x256x512xf32, #tpu.memory_space<vmem>>, vector<1x256x512xf32>
    %130 = vector.shape_cast %129 : vector<1x256x512xf32> to vector<256x512xf32>
    %cst_127 = arith.constant dense<0.000000e+00> : vector<8x512xf32>
    %131 = tpu.matmul %128, %130, %cst_127 {dimension_numbers = #tpu.dot_dimension_numbers<[1], [0], [0], [1], [0, 0, 1, 1], [], []>} : vector<8x256xf32>, vector<256x512xf32>, vector<8x512xf32> -> vector<8x512xf32>
    %c40_128 = arith.constant 40 : index
    %c0_129 = arith.constant 0 : index
    %132 = vector.load %arg11[%c40_128, %c0_129] : memref<64x256xf32, #tpu.memory_space<vmem>>, vector<8x256xf32>
    %c1_130 = arith.constant 1 : index
    %c0_131 = arith.constant 0 : index
    %c0_132 = arith.constant 0 : index
    %133 = vector.load %arg6[%c1_130, %c0_131, %c0_132] : memref<2x256x512xf32, #tpu.memory_space<vmem>>, vector<1x256x512xf32>
    %134 = vector.shape_cast %133 : vector<1x256x512xf32> to vector<256x512xf32>
    %cst_133 = arith.constant dense<0.000000e+00> : vector<8x512xf32>
    %135 = tpu.matmul %132, %134, %cst_133 {dimension_numbers = #tpu.dot_dimension_numbers<[1], [0], [0], [1], [0, 0, 1, 1], [], []>} : vector<8x256xf32>, vector<256x512xf32>, vector<8x512xf32> -> vector<8x512xf32>
    %136 = arith.addf %131, %135 : vector<8x512xf32>
    %c0_134 = arith.constant 0 : index
    %c0_135 = arith.constant 0 : index
    %137 = vector.load %arg7[%c0_134, %c0_135] : memref<1x512xf32, #tpu.memory_space<vmem>>, vector<1x512xf32>
    %138 = vector.broadcast %137 : vector<1x512xf32> to vector<8x512xf32>
    %139 = arith.addf %136, %138 : vector<8x512xf32>
    %cst_136 = arith.constant 0.000000e+00 : f32
    %140 = vector.broadcast %cst_136 : f32 to vector<8x512xf32>
    %141 = arith.maximumf %139, %140 : vector<8x512xf32>
    %c32_137 = arith.constant 32 : index
    %c0_138 = arith.constant 0 : index
    %142 = vector.load %arg12[%c32_137, %c0_138] : memref<64x512xf32, #tpu.memory_space<vmem>>, vector<8x512xf32>
    tpu.vector_store %arg12[%c32_137, %c0_138], %141 {strides = array<i32>} : memref<64x512xf32, #tpu.memory_space<vmem>>, vector<8x512xf32>,
    %c40_139 = arith.constant 40 : index
    %c0_140 = arith.constant 0 : index
    %143 = vector.load %arg11[%c40_139, %c0_140] : memref<64x256xf32, #tpu.memory_space<vmem>>, vector<8x256xf32>
    %c0_141 = arith.constant 0 : index
    %c0_142 = arith.constant 0 : index
    %c0_143 = arith.constant 0 : index
    %144 = vector.load %arg6[%c0_141, %c0_142, %c0_143] : memref<2x256x512xf32, #tpu.memory_space<vmem>>, vector<1x256x512xf32>
    %145 = vector.shape_cast %144 : vector<1x256x512xf32> to vector<256x512xf32>
    %cst_144 = arith.constant dense<0.000000e+00> : vector<8x512xf32>
    %146 = tpu.matmul %143, %145, %cst_144 {dimension_numbers = #tpu.dot_dimension_numbers<[1], [0], [0], [1], [0, 0, 1, 1], [], []>} : vector<8x256xf32>, vector<256x512xf32>, vector<8x512xf32> -> vector<8x512xf32>
    %c48_145 = arith.constant 48 : index
    %c0_146 = arith.constant 0 : index
    %147 = vector.load %arg11[%c48_145, %c0_146] : memref<64x256xf32, #tpu.memory_space<vmem>>, vector<8x256xf32>
    %c1_147 = arith.constant 1 : index
    %c0_148 = arith.constant 0 : index
    %c0_149 = arith.constant 0 : index
    %148 = vector.load %arg6[%c1_147, %c0_148, %c0_149] : memref<2x256x512xf32, #tpu.memory_space<vmem>>, vector<1x256x512xf32>
    %149 = vector.shape_cast %148 : vector<1x256x512xf32> to vector<256x512xf32>
    %cst_150 = arith.constant dense<0.000000e+00> : vector<8x512xf32>
    %150 = tpu.matmul %147, %149, %cst_150 {dimension_numbers = #tpu.dot_dimension_numbers<[1], [0], [0], [1], [0, 0, 1, 1], [], []>} : vector<8x256xf32>, vector<256x512xf32>, vector<8x512xf32> -> vector<8x512xf32>
    %151 = arith.addf %146, %150 : vector<8x512xf32>
    %c0_151 = arith.constant 0 : index
    %c0_152 = arith.constant 0 : index
    %152 = vector.load %arg7[%c0_151, %c0_152] : memref<1x512xf32, #tpu.memory_space<vmem>>, vector<1x512xf32>
    %153 = vector.broadcast %152 : vector<1x512xf32> to vector<8x512xf32>
    %154 = arith.addf %151, %153 : vector<8x512xf32>
    %cst_153 = arith.constant 0.000000e+00 : f32
    %155 = vector.broadcast %cst_153 : f32 to vector<8x512xf32>
    %156 = arith.maximumf %154, %155 : vector<8x512xf32>
    %c40_154 = arith.constant 40 : index
    %c0_155 = arith.constant 0 : index
    %157 = vector.load %arg12[%c40_154, %c0_155] : memref<64x512xf32, #tpu.memory_space<vmem>>, vector<8x512xf32>
    tpu.vector_store %arg12[%c40_154, %c0_155], %156 {strides = array<i32>} : memref<64x512xf32, #tpu.memory_space<vmem>>, vector<8x512xf32>,
    %c48_156 = arith.constant 48 : index
    %c0_157 = arith.constant 0 : index
    %158 = vector.load %arg11[%c48_156, %c0_157] : memref<64x256xf32, #tpu.memory_space<vmem>>, vector<8x256xf32>
    %c0_158 = arith.constant 0 : index
    %c0_159 = arith.constant 0 : index
    %c0_160 = arith.constant 0 : index
    %159 = vector.load %arg6[%c0_158, %c0_159, %c0_160] : memref<2x256x512xf32, #tpu.memory_space<vmem>>, vector<1x256x512xf32>
    %160 = vector.shape_cast %159 : vector<1x256x512xf32> to vector<256x512xf32>
    %cst_161 = arith.constant dense<0.000000e+00> : vector<8x512xf32>
    %161 = tpu.matmul %158, %160, %cst_161 {dimension_numbers = #tpu.dot_dimension_numbers<[1], [0], [0], [1], [0, 0, 1, 1], [], []>} : vector<8x256xf32>, vector<256x512xf32>, vector<8x512xf32> -> vector<8x512xf32>
    %c56_162 = arith.constant 56 : index
    %c0_163 = arith.constant 0 : index
    %162 = vector.load %arg11[%c56_162, %c0_163] : memref<64x256xf32, #tpu.memory_space<vmem>>, vector<8x256xf32>
    %c1_164 = arith.constant 1 : index
    %c0_165 = arith.constant 0 : index
    %c0_166 = arith.constant 0 : index
    %163 = vector.load %arg6[%c1_164, %c0_165, %c0_166] : memref<2x256x512xf32, #tpu.memory_space<vmem>>, vector<1x256x512xf32>
    %164 = vector.shape_cast %163 : vector<1x256x512xf32> to vector<256x512xf32>
    %cst_167 = arith.constant dense<0.000000e+00> : vector<8x512xf32>
    %165 = tpu.matmul %162, %164, %cst_167 {dimension_numbers = #tpu.dot_dimension_numbers<[1], [0], [0], [1], [0, 0, 1, 1], [], []>} : vector<8x256xf32>, vector<256x512xf32>, vector<8x512xf32> -> vector<8x512xf32>
    %166 = arith.addf %161, %165 : vector<8x512xf32>
    %c0_168 = arith.constant 0 : index
    %c0_169 = arith.constant 0 : index
    %167 = vector.load %arg7[%c0_168, %c0_169] : memref<1x512xf32, #tpu.memory_space<vmem>>, vector<1x512xf32>
    %168 = vector.broadcast %167 : vector<1x512xf32> to vector<8x512xf32>
    %169 = arith.addf %166, %168 : vector<8x512xf32>
    %cst_170 = arith.constant 0.000000e+00 : f32
    %170 = vector.broadcast %cst_170 : f32 to vector<8x512xf32>
    %171 = arith.maximumf %169, %170 : vector<8x512xf32>
    %c48_171 = arith.constant 48 : index
    %c0_172 = arith.constant 0 : index
    %172 = vector.load %arg12[%c48_171, %c0_172] : memref<64x512xf32, #tpu.memory_space<vmem>>, vector<8x512xf32>
    tpu.vector_store %arg12[%c48_171, %c0_172], %171 {strides = array<i32>} : memref<64x512xf32, #tpu.memory_space<vmem>>, vector<8x512xf32>,
    %c0_173 = arith.constant 0 : index
    %c0_174 = arith.constant 0 : index
    %173 = vector.load %arg12[%c0_173, %c0_174] : memref<64x512xf32, #tpu.memory_space<vmem>>, vector<8x512xf32>
    %c0_175 = arith.constant 0 : index
    %c0_176 = arith.constant 0 : index
    %c0_177 = arith.constant 0 : index
    %174 = vector.load %arg8[%c0_175, %c0_176, %c0_177] : memref<2x512x128xf32, #tpu.memory_space<vmem>>, vector<1x512x128xf32>
    %175 = vector.shape_cast %174 : vector<1x512x128xf32> to vector<512x128xf32>
    %cst_178 = arith.constant dense<0.000000e+00> : vector<8x128xf32>
    %176 = tpu.matmul %173, %175, %cst_178 {dimension_numbers = #tpu.dot_dimension_numbers<[1], [0], [0], [1], [0, 0, 1, 1], [], []>} : vector<8x512xf32>, vector<512x128xf32>, vector<8x128xf32> -> vector<8x128xf32>
    %c8_179 = arith.constant 8 : index
    %c0_180 = arith.constant 0 : index
    %177 = vector.load %arg12[%c8_179, %c0_180] : memref<64x512xf32, #tpu.memory_space<vmem>>, vector<8x512xf32>
    %c1_181 = arith.constant 1 : index
    %c0_182 = arith.constant 0 : index
    %c0_183 = arith.constant 0 : index
    %178 = vector.load %arg8[%c1_181, %c0_182, %c0_183] : memref<2x512x128xf32, #tpu.memory_space<vmem>>, vector<1x512x128xf32>
    %179 = vector.shape_cast %178 : vector<1x512x128xf32> to vector<512x128xf32>
    %cst_184 = arith.constant dense<0.000000e+00> : vector<8x128xf32>
    %180 = tpu.matmul %177, %179, %cst_184 {dimension_numbers = #tpu.dot_dimension_numbers<[1], [0], [0], [1], [0, 0, 1, 1], [], []>} : vector<8x512xf32>, vector<512x128xf32>, vector<8x128xf32> -> vector<8x128xf32>
    %181 = arith.addf %176, %180 : vector<8x128xf32>
    %c0_185 = arith.constant 0 : index
    %c0_186 = arith.constant 0 : index
    %182 = vector.load %arg9[%c0_185, %c0_186] : memref<1x1xf32, #tpu.memory_space<vmem>>, vector<1x1xf32>
    %183 = vector.broadcast %182 : vector<1x1xf32> to vector<8x128xf32>
    %184 = arith.addf %181, %183 : vector<8x128xf32>
    %185 = math.tanh %184 : vector<8x128xf32>
    %c0_187 = arith.constant 0 : index
    %c0_188 = arith.constant 0 : index
    %186 = vector.load %arg10[%c0_187, %c0_188] : memref<56x128xf32, #tpu.memory_space<vmem>>, vector<8x128xf32>
    tpu.vector_store %arg10[%c0_187, %c0_188], %185 {strides = array<i32>} : memref<56x128xf32, #tpu.memory_space<vmem>>, vector<8x128xf32>,
    %c8_189 = arith.constant 8 : index
    %c0_190 = arith.constant 0 : index
    %187 = vector.load %arg12[%c8_189, %c0_190] : memref<64x512xf32, #tpu.memory_space<vmem>>, vector<8x512xf32>
    %c0_191 = arith.constant 0 : index
    %c0_192 = arith.constant 0 : index
    %c0_193 = arith.constant 0 : index
    %188 = vector.load %arg8[%c0_191, %c0_192, %c0_193] : memref<2x512x128xf32, #tpu.memory_space<vmem>>, vector<1x512x128xf32>
    %189 = vector.shape_cast %188 : vector<1x512x128xf32> to vector<512x128xf32>
    %cst_194 = arith.constant dense<0.000000e+00> : vector<8x128xf32>
    %190 = tpu.matmul %187, %189, %cst_194 {dimension_numbers = #tpu.dot_dimension_numbers<[1], [0], [0], [1], [0, 0, 1, 1], [], []>} : vector<8x512xf32>, vector<512x128xf32>, vector<8x128xf32> -> vector<8x128xf32>
    %c16_195 = arith.constant 16 : index
    %c0_196 = arith.constant 0 : index
    %191 = vector.load %arg12[%c16_195, %c0_196] : memref<64x512xf32, #tpu.memory_space<vmem>>, vector<8x512xf32>
    %c1_197 = arith.constant 1 : index
    %c0_198 = arith.constant 0 : index
    %c0_199 = arith.constant 0 : index
    %192 = vector.load %arg8[%c1_197, %c0_198, %c0_199] : memref<2x512x128xf32, #tpu.memory_space<vmem>>, vector<1x512x128xf32>
    %193 = vector.shape_cast %192 : vector<1x512x128xf32> to vector<512x128xf32>
    %cst_200 = arith.constant dense<0.000000e+00> : vector<8x128xf32>
    %194 = tpu.matmul %191, %193, %cst_200 {dimension_numbers = #tpu.dot_dimension_numbers<[1], [0], [0], [1], [0, 0, 1, 1], [], []>} : vector<8x512xf32>, vector<512x128xf32>, vector<8x128xf32> -> vector<8x128xf32>
    %195 = arith.addf %190, %194 : vector<8x128xf32>
    %c0_201 = arith.constant 0 : index
    %c0_202 = arith.constant 0 : index
    %196 = vector.load %arg9[%c0_201, %c0_202] : memref<1x1xf32, #tpu.memory_space<vmem>>, vector<1x1xf32>
    %197 = vector.broadcast %196 : vector<1x1xf32> to vector<8x128xf32>
    %198 = arith.addf %195, %197 : vector<8x128xf32>
    %199 = math.tanh %198 : vector<8x128xf32>
    %c8_203 = arith.constant 8 : index
    %c0_204 = arith.constant 0 : index
    %200 = vector.load %arg10[%c8_203, %c0_204] : memref<56x128xf32, #tpu.memory_space<vmem>>, vector<8x128xf32>
    tpu.vector_store %arg10[%c8_203, %c0_204], %199 {strides = array<i32>} : memref<56x128xf32, #tpu.memory_space<vmem>>, vector<8x128xf32>,
    %c16_205 = arith.constant 16 : index
    %c0_206 = arith.constant 0 : index
    %201 = vector.load %arg12[%c16_205, %c0_206] : memref<64x512xf32, #tpu.memory_space<vmem>>, vector<8x512xf32>
    %c0_207 = arith.constant 0 : index
    %c0_208 = arith.constant 0 : index
    %c0_209 = arith.constant 0 : index
    %202 = vector.load %arg8[%c0_207, %c0_208, %c0_209] : memref<2x512x128xf32, #tpu.memory_space<vmem>>, vector<1x512x128xf32>
    %203 = vector.shape_cast %202 : vector<1x512x128xf32> to vector<512x128xf32>
    %cst_210 = arith.constant dense<0.000000e+00> : vector<8x128xf32>
    %204 = tpu.matmul %201, %203, %cst_210 {dimension_numbers = #tpu.dot_dimension_numbers<[1], [0], [0], [1], [0, 0, 1, 1], [], []>} : vector<8x512xf32>, vector<512x128xf32>, vector<8x128xf32> -> vector<8x128xf32>
    %c24_211 = arith.constant 24 : index
    %c0_212 = arith.constant 0 : index
    %205 = vector.load %arg12[%c24_211, %c0_212] : memref<64x512xf32, #tpu.memory_space<vmem>>, vector<8x512xf32>
    %c1_213 = arith.constant 1 : index
    %c0_214 = arith.constant 0 : index
    %c0_215 = arith.constant 0 : index
    %206 = vector.load %arg8[%c1_213, %c0_214, %c0_215] : memref<2x512x128xf32, #tpu.memory_space<vmem>>, vector<1x512x128xf32>
    %207 = vector.shape_cast %206 : vector<1x512x128xf32> to vector<512x128xf32>
    %cst_216 = arith.constant dense<0.000000e+00> : vector<8x128xf32>
    %208 = tpu.matmul %205, %207, %cst_216 {dimension_numbers = #tpu.dot_dimension_numbers<[1], [0], [0], [1], [0, 0, 1, 1], [], []>} : vector<8x512xf32>, vector<512x128xf32>, vector<8x128xf32> -> vector<8x128xf32>
    %209 = arith.addf %204, %208 : vector<8x128xf32>
    %c0_217 = arith.constant 0 : index
    %c0_218 = arith.constant 0 : index
    %210 = vector.load %arg9[%c0_217, %c0_218] : memref<1x1xf32, #tpu.memory_space<vmem>>, vector<1x1xf32>
    %211 = vector.broadcast %210 : vector<1x1xf32> to vector<8x128xf32>
    %212 = arith.addf %209, %211 : vector<8x128xf32>
    %213 = math.tanh %212 : vector<8x128xf32>
    %c16_219 = arith.constant 16 : index
    %c0_220 = arith.constant 0 : index
    %214 = vector.load %arg10[%c16_219, %c0_220] : memref<56x128xf32, #tpu.memory_space<vmem>>, vector<8x128xf32>
    tpu.vector_store %arg10[%c16_219, %c0_220], %213 {strides = array<i32>} : memref<56x128xf32, #tpu.memory_space<vmem>>, vector<8x128xf32>,
    %c24_221 = arith.constant 24 : index
    %c0_222 = arith.constant 0 : index
    %215 = vector.load %arg12[%c24_221, %c0_222] : memref<64x512xf32, #tpu.memory_space<vmem>>, vector<8x512xf32>
    %c0_223 = arith.constant 0 : index
    %c0_224 = arith.constant 0 : index
    %c0_225 = arith.constant 0 : index
    %216 = vector.load %arg8[%c0_223, %c0_224, %c0_225] : memref<2x512x128xf32, #tpu.memory_space<vmem>>, vector<1x512x128xf32>
    %217 = vector.shape_cast %216 : vector<1x512x128xf32> to vector<512x128xf32>
    %cst_226 = arith.constant dense<0.000000e+00> : vector<8x128xf32>
    %218 = tpu.matmul %215, %217, %cst_226 {dimension_numbers = #tpu.dot_dimension_numbers<[1], [0], [0], [1], [0, 0, 1, 1], [], []>} : vector<8x512xf32>, vector<512x128xf32>, vector<8x128xf32> -> vector<8x128xf32>
    %c32_227 = arith.constant 32 : index
    %c0_228 = arith.constant 0 : index
    %219 = vector.load %arg12[%c32_227, %c0_228] : memref<64x512xf32, #tpu.memory_space<vmem>>, vector<8x512xf32>
    %c1_229 = arith.constant 1 : index
    %c0_230 = arith.constant 0 : index
    %c0_231 = arith.constant 0 : index
    %220 = vector.load %arg8[%c1_229, %c0_230, %c0_231] : memref<2x512x128xf32, #tpu.memory_space<vmem>>, vector<1x512x128xf32>
    %221 = vector.shape_cast %220 : vector<1x512x128xf32> to vector<512x128xf32>
    %cst_232 = arith.constant dense<0.000000e+00> : vector<8x128xf32>
    %222 = tpu.matmul %219, %221, %cst_232 {dimension_numbers = #tpu.dot_dimension_numbers<[1], [0], [0], [1], [0, 0, 1, 1], [], []>} : vector<8x512xf32>, vector<512x128xf32>, vector<8x128xf32> -> vector<8x128xf32>
    %223 = arith.addf %218, %222 : vector<8x128xf32>
    %c0_233 = arith.constant 0 : index
    %c0_234 = arith.constant 0 : index
    %224 = vector.load %arg9[%c0_233, %c0_234] : memref<1x1xf32, #tpu.memory_space<vmem>>, vector<1x1xf32>
    %225 = vector.broadcast %224 : vector<1x1xf32> to vector<8x128xf32>
    %226 = arith.addf %223, %225 : vector<8x128xf32>
    %227 = math.tanh %226 : vector<8x128xf32>
    %c24_235 = arith.constant 24 : index
    %c0_236 = arith.constant 0 : index
    %228 = vector.load %arg10[%c24_235, %c0_236] : memref<56x128xf32, #tpu.memory_space<vmem>>, vector<8x128xf32>
    tpu.vector_store %arg10[%c24_235, %c0_236], %227 {strides = array<i32>} : memref<56x128xf32, #tpu.memory_space<vmem>>, vector<8x128xf32>,
    %c32_237 = arith.constant 32 : index
    %c0_238 = arith.constant 0 : index
    %229 = vector.load %arg12[%c32_237, %c0_238] : memref<64x512xf32, #tpu.memory_space<vmem>>, vector<8x512xf32>
    %c0_239 = arith.constant 0 : index
    %c0_240 = arith.constant 0 : index
    %c0_241 = arith.constant 0 : index
    %230 = vector.load %arg8[%c0_239, %c0_240, %c0_241] : memref<2x512x128xf32, #tpu.memory_space<vmem>>, vector<1x512x128xf32>
    %231 = vector.shape_cast %230 : vector<1x512x128xf32> to vector<512x128xf32>
    %cst_242 = arith.constant dense<0.000000e+00> : vector<8x128xf32>
    %232 = tpu.matmul %229, %231, %cst_242 {dimension_numbers = #tpu.dot_dimension_numbers<[1], [0], [0], [1], [0, 0, 1, 1], [], []>} : vector<8x512xf32>, vector<512x128xf32>, vector<8x128xf32> -> vector<8x128xf32>
    %c40_243 = arith.constant 40 : index
    %c0_244 = arith.constant 0 : index
    %233 = vector.load %arg12[%c40_243, %c0_244] : memref<64x512xf32, #tpu.memory_space<vmem>>, vector<8x512xf32>
    %c1_245 = arith.constant 1 : index
    %c0_246 = arith.constant 0 : index
    %c0_247 = arith.constant 0 : index
    %234 = vector.load %arg8[%c1_245, %c0_246, %c0_247] : memref<2x512x128xf32, #tpu.memory_space<vmem>>, vector<1x512x128xf32>
    %235 = vector.shape_cast %234 : vector<1x512x128xf32> to vector<512x128xf32>
    %cst_248 = arith.constant dense<0.000000e+00> : vector<8x128xf32>
    %236 = tpu.matmul %233, %235, %cst_248 {dimension_numbers = #tpu.dot_dimension_numbers<[1], [0], [0], [1], [0, 0, 1, 1], [], []>} : vector<8x512xf32>, vector<512x128xf32>, vector<8x128xf32> -> vector<8x128xf32>
    %237 = arith.addf %232, %236 : vector<8x128xf32>
    %c0_249 = arith.constant 0 : index
    %c0_250 = arith.constant 0 : index
    %238 = vector.load %arg9[%c0_249, %c0_250] : memref<1x1xf32, #tpu.memory_space<vmem>>, vector<1x1xf32>
    %239 = vector.broadcast %238 : vector<1x1xf32> to vector<8x128xf32>
    %240 = arith.addf %237, %239 : vector<8x128xf32>
    %241 = math.tanh %240 : vector<8x128xf32>
    %c32_251 = arith.constant 32 : index
    %c0_252 = arith.constant 0 : index
    %242 = vector.load %arg10[%c32_251, %c0_252] : memref<56x128xf32, #tpu.memory_space<vmem>>, vector<8x128xf32>
    tpu.vector_store %arg10[%c32_251, %c0_252], %241 {strides = array<i32>} : memref<56x128xf32, #tpu.memory_space<vmem>>, vector<8x128xf32>,
    %c40_253 = arith.constant 40 : index
    %c0_254 = arith.constant 0 : index
    %243 = vector.load %arg12[%c40_253, %c0_254] : memref<64x512xf32, #tpu.memory_space<vmem>>, vector<8x512xf32>
    %c0_255 = arith.constant 0 : index
    %c0_256 = arith.constant 0 : index
    %c0_257 = arith.constant 0 : index
    %244 = vector.load %arg8[%c0_255, %c0_256, %c0_257] : memref<2x512x128xf32, #tpu.memory_space<vmem>>, vector<1x512x128xf32>
    %245 = vector.shape_cast %244 : vector<1x512x128xf32> to vector<512x128xf32>
    %cst_258 = arith.constant dense<0.000000e+00> : vector<8x128xf32>
    %246 = tpu.matmul %243, %245, %cst_258 {dimension_numbers = #tpu.dot_dimension_numbers<[1], [0], [0], [1], [0, 0, 1, 1], [], []>} : vector<8x512xf32>, vector<512x128xf32>, vector<8x128xf32> -> vector<8x128xf32>
    %c48_259 = arith.constant 48 : index
    %c0_260 = arith.constant 0 : index
    %247 = vector.load %arg12[%c48_259, %c0_260] : memref<64x512xf32, #tpu.memory_space<vmem>>, vector<8x512xf32>
    %c1_261 = arith.constant 1 : index
    %c0_262 = arith.constant 0 : index
    %c0_263 = arith.constant 0 : index
    %248 = vector.load %arg8[%c1_261, %c0_262, %c0_263] : memref<2x512x128xf32, #tpu.memory_space<vmem>>, vector<1x512x128xf32>
    %249 = vector.shape_cast %248 : vector<1x512x128xf32> to vector<512x128xf32>
    %cst_264 = arith.constant dense<0.000000e+00> : vector<8x128xf32>
    %250 = tpu.matmul %247, %249, %cst_264 {dimension_numbers = #tpu.dot_dimension_numbers<[1], [0], [0], [1], [0, 0, 1, 1], [], []>} : vector<8x512xf32>, vector<512x128xf32>, vector<8x128xf32> -> vector<8x128xf32>
    %251 = arith.addf %246, %250 : vector<8x128xf32>
    %c0_265 = arith.constant 0 : index
    %c0_266 = arith.constant 0 : index
    %252 = vector.load %arg9[%c0_265, %c0_266] : memref<1x1xf32, #tpu.memory_space<vmem>>, vector<1x1xf32>
    %253 = vector.broadcast %252 : vector<1x1xf32> to vector<8x128xf32>
    %254 = arith.addf %251, %253 : vector<8x128xf32>
    %255 = math.tanh %254 : vector<8x128xf32>
    %c40_267 = arith.constant 40 : index
    %c0_268 = arith.constant 0 : index
    %256 = vector.load %arg10[%c40_267, %c0_268] : memref<56x128xf32, #tpu.memory_space<vmem>>, vector<8x128xf32>
    tpu.vector_store %arg10[%c40_267, %c0_268], %255 {strides = array<i32>} : memref<56x128xf32, #tpu.memory_space<vmem>>, vector<8x128xf32>,
    %c48_269 = arith.constant 48 : index
    %c0_270 = arith.constant 0 : index
    %257 = vector.load %arg12[%c48_269, %c0_270] : memref<64x512xf32, #tpu.memory_space<vmem>>, vector<8x512xf32>
    %c0_271 = arith.constant 0 : index
    %c0_272 = arith.constant 0 : index
    %c0_273 = arith.constant 0 : index
    %258 = vector.load %arg8[%c0_271, %c0_272, %c0_273] : memref<2x512x128xf32, #tpu.memory_space<vmem>>, vector<1x512x128xf32>
    %259 = vector.shape_cast %258 : vector<1x512x128xf32> to vector<512x128xf32>
    %cst_274 = arith.constant dense<0.000000e+00> : vector<8x128xf32>
    %260 = tpu.matmul %257, %259, %cst_274 {dimension_numbers = #tpu.dot_dimension_numbers<[1], [0], [0], [1], [0, 0, 1, 1], [], []>} : vector<8x512xf32>, vector<512x128xf32>, vector<8x128xf32> -> vector<8x128xf32>
    %c56_275 = arith.constant 56 : index
    %c0_276 = arith.constant 0 : index
    %261 = vector.load %arg12[%c56_275, %c0_276] : memref<64x512xf32, #tpu.memory_space<vmem>>, vector<8x512xf32>
    %c1_277 = arith.constant 1 : index
    %c0_278 = arith.constant 0 : index
    %c0_279 = arith.constant 0 : index
    %262 = vector.load %arg8[%c1_277, %c0_278, %c0_279] : memref<2x512x128xf32, #tpu.memory_space<vmem>>, vector<1x512x128xf32>
    %263 = vector.shape_cast %262 : vector<1x512x128xf32> to vector<512x128xf32>
    %cst_280 = arith.constant dense<0.000000e+00> : vector<8x128xf32>
    %264 = tpu.matmul %261, %263, %cst_280 {dimension_numbers = #tpu.dot_dimension_numbers<[1], [0], [0], [1], [0, 0, 1, 1], [], []>} : vector<8x512xf32>, vector<512x128xf32>, vector<8x128xf32> -> vector<8x128xf32>
    %265 = arith.addf %260, %264 : vector<8x128xf32>
    %c0_281 = arith.constant 0 : index
    %c0_282 = arith.constant 0 : index
    %266 = vector.load %arg9[%c0_281, %c0_282] : memref<1x1xf32, #tpu.memory_space<vmem>>, vector<1x1xf32>
    %267 = vector.broadcast %266 : vector<1x1xf32> to vector<8x128xf32>
    %268 = arith.addf %265, %267 : vector<8x128xf32>
    %269 = math.tanh %268 : vector<8x128xf32>
    %c48_283 = arith.constant 48 : index
    %c0_284 = arith.constant 0 : index
    %270 = vector.load %arg10[%c48_283, %c0_284] : memref<56x128xf32, #tpu.memory_space<vmem>>, vector<8x128xf32>
    tpu.vector_store %arg10[%c48_283, %c0_284], %269 {strides = array<i32>} : memref<56x128xf32, #tpu.memory_space<vmem>>, vector<8x128xf32>,
    return
  }
  func.func @transform_0(%arg0: i32) -> (i32, i32) {
    %c0_i32 = arith.constant 0 : i32
    %c0_i32_0 = arith.constant 0 : i32
    return %arg0, %c0_i32 : i32, i32
  }
  func.func @transform_1(%arg0: i32) -> (i32, i32) {
    %c0_i32 = arith.constant 0 : i32
    %c0_i32_0 = arith.constant 0 : i32
    %c0_i32_1 = arith.constant 0 : i32
    return %c0_i32, %c0_i32_0 : i32, i32
  }
  func.func @transform_2(%arg0: i32) -> (i32, i32) {
    %c0_i32 = arith.constant 0 : i32
    %c0_i32_0 = arith.constant 0 : i32
    %c0_i32_1 = arith.constant 0 : i32
    return %c0_i32, %c0_i32_0 : i32, i32
  }
  func.func @transform_3(%arg0: i32) -> (i32, i32) {
    %c0_i32 = arith.constant 0 : i32
    %c0_i32_0 = arith.constant 0 : i32
    %c0_i32_1 = arith.constant 0 : i32
    return %c0_i32, %c0_i32_0 : i32, i32
  }
  func.func @transform_4(%arg0: i32) -> (i32, i32) {
    %c0_i32 = arith.constant 0 : i32
    %c0_i32_0 = arith.constant 0 : i32
    %c0_i32_1 = arith.constant 0 : i32
    return %c0_i32, %c0_i32_0 : i32, i32
  }
  func.func @transform_5(%arg0: i32) -> (i32, i32, i32) {
    %c0_i32 = arith.constant 0 : i32
    %c0_i32_0 = arith.constant 0 : i32
    %c0_i32_1 = arith.constant 0 : i32
    %c0_i32_2 = arith.constant 0 : i32
    return %c0_i32, %c0_i32_0, %c0_i32_1 : i32, i32, i32
  }
  func.func @transform_6(%arg0: i32) -> (i32, i32) {
    %c0_i32 = arith.constant 0 : i32
    %c0_i32_0 = arith.constant 0 : i32
    %c0_i32_1 = arith.constant 0 : i32
    return %c0_i32, %c0_i32_0 : i32, i32
  }
  func.func @transform_7(%arg0: i32) -> (i32, i32, i32) {
    %c0_i32 = arith.constant 0 : i32
    %c0_i32_0 = arith.constant 0 : i32
    %c0_i32_1 = arith.constant 0 : i32
    %c0_i32_2 = arith.constant 0 : i32
    return %c0_i32, %c0_i32_0, %c0_i32_1 : i32, i32, i32
  }
  func.func @transform_8(%arg0: i32) -> (i32, i32) {
    %c0_i32 = arith.constant 0 : i32
    %c0_i32_0 = arith.constant 0 : i32
    %c0_i32_1 = arith.constant 0 : i32
    return %c0_i32, %c0_i32_0 : i32, i32
  }
  func.func @transform_9(%arg0: i32) -> (i32, i32) {
    %c0_i32 = arith.constant 0 : i32
    %c0_i32_0 = arith.constant 0 : i32
    return %arg0, %c0_i32 : i32, i32
  }
}

</mosaic_0001>

<llo_original>
// kernel: decoder_forward.1
$region0: #{decoder_forward.1}
  #allocation0 [shape = 'u32[]', space=smem, size = 0x4, offset = 0x4, fixed_abs, tag = 'smem constant byte address 0x4 - core index']
  #allocation1 [shape = 'u32[144,128]{1,0:T(1,128)}', space=vmem, size = 0x12000, scoped, tag = 'internal scratch']
  #allocation2 [shape = 'f32[64,256]{1,0:T(8,128)}', space=vmem, size = 0x10000, scoped, tag = 'scratch operand']
  #allocation3 [shape = 'f32[64,512]{1,0:T(8,128)}', space=vmem, size = 0x20000, scoped, tag = 'scratch operand']
  #allocation4 [shape = 'f32[1,1]{1,0:T(1,128)S(1)}', space=vmem, size = 0x200, scoped, tag = 'scoped memory for decoder_forward.1']
  %s0 = inlined_call_operand.vmem [shape: f32[8,16], index: 0, kind: input, shape index: {}]
  %s1 = inlined_call_operand.vmem [shape: f32[16,128], index: 1, kind: input, shape index: {}]
  %s2 = inlined_call_operand.vmem [shape: f32[1,128], index: 2, kind: input, shape index: {}]
  %s3 = inlined_call_operand.hbm [shape: f32[128,1792], index: 3, kind: input, shape index: {}]
  %s4 = inlined_call_operand.vmem [shape: f32[1,1792], index: 4, kind: input, shape index: {}]
  %s5 = inlined_call_operand.hbm [shape: f32[2,256,512], index: 5, kind: input, shape index: {}]
  %s6 = inlined_call_operand.hbm [shape: f32[1,512], index: 6, kind: input, shape index: {}]
  %s7 = inlined_call_operand.hbm [shape: f32[2,512,128], index: 7, kind: input, shape index: {}]
  %s8 = inlined_call_operand.<no memory space> [shape: f32[1,1], index: 8, kind: input, shape index: {}]
  %s9 = inlined_call_operand.vmem [shape: f32[56,128], index: 9, kind: output, shape index: {}]
  %s10 = sld [smem:[#allocation0]]
  $region62: #{decoder_forward.1} parent=0
    _
  %s12 = ssub.s32 1, %s10
  %s13 = scalar_select 0, %s12, %s10
  %v14 = vstv %s8
  %15 = vst [vmem:[#allocation4] sm:$0x1] %v14
  $region1: #{decoder_forward.1} parent=0
    #allocation5 [shape = 'u8[917504]{0}', space=vmem, size = 0xe0000, scoped, tag = 'input window, operand 3, single buffered']
    #allocation6 [shape = 's32[1]{0}', space=sflag, size = 0x4, scoped, tag = 'scoped memory for decoder_forward.1']
    #allocation7 [shape = 'u8[1048576]{0}', space=vmem, size = 0x100000, scoped, tag = 'input window, operand 5, single buffered']
    #allocation8 [shape = 's32[1]{0}', space=sflag, size = 0x4, scoped, tag = 'scoped memory for decoder_forward.1']
    #allocation9 [shape = 'u8[2048]{0}', space=vmem, size = 0x800, scoped, tag = 'input window, operand 6, single buffered']
    #allocation10 [shape = 'u8[524288]{0}', space=vmem, size = 0x80000, scoped, tag = 'input window, operand 7, single buffered']
    #allocation11 [shape = 's32[1]{0}', space=sflag, size = 0x4, scoped, tag = 'scoped memory for decoder_forward.1']
    %16 = vsyncpa [#allocation6], 0
    %17 = vsyncpa [#allocation8], 0
    %18 = vsyncpa [#allocation11], 0
    // Predicated region
    $region2: #{decoder_forward.1} parent=1 // pred_check
      _
    $region3: #{decoder_forward.1} parent=1 // pred_check_branch
      %20 = sbr.rel (0) target = $region5
    $region4: #{decoder_forward.1} parent=1 // pred_region
      _
    $region5: #{decoder_forward.1} parent=1 // pred_fallthru
      _
    // Predicated region
    $region6: #{decoder_forward.1} parent=1 // pred_check
      _
    $region7: #{decoder_forward.1} parent=1 // pred_check_branch
      %22 = sbr.rel (0) target = $region9
    $region8: #{decoder_forward.1} parent=1 // pred_region
      _
    $region9: #{decoder_forward.1} parent=1 // pred_fallthru
      _
    // Predicated region
    $region10: #{decoder_forward.1} parent=1 // pred_check
      _
    $region11: #{decoder_forward.1} parent=1 // pred_check_branch
      %24 = sbr.rel (0) target = $region13
    $region12: #{decoder_forward.1} parent=1 // pred_region
      _
    $region13: #{decoder_forward.1} parent=1 // pred_fallthru
      _
    // Predicated region
    $region14: #{decoder_forward.1} parent=1 // pred_check
      _
    $region15: #{decoder_forward.1} parent=1 // pred_check_branch
      %26 = sbr.rel (0) target = $region17
    $region16: #{decoder_forward.1} parent=1 // pred_region
      %s28 = ssub.s32 28672, 28672
      %29 = vsyncadd [#allocation6], %s28
      %s30 = sshll.u32 [#allocation5], 4
      %s31 = int_to_ptr.vmem [resolvable:$true] %s30
      %36 = dma.hbm_to_vmem [thread:$0]  %s3, 28672, %s31, [#allocation6], 1792, 1792, 112
    $region17: #{decoder_forward.1} parent=1 // pred_fallthru
      _
    // Predicated region
    $region18: #{decoder_forward.1} parent=1 // pred_check
      _
    $region19: #{decoder_forward.1} parent=1 // pred_check_branch
      %38 = sbr.rel (0) target = $region21
    $region20: #{decoder_forward.1} parent=1 // pred_region
      _
    $region21: #{decoder_forward.1} parent=1 // pred_fallthru
      _
    // Predicated region
    $region22: #{decoder_forward.1} parent=1 // pred_check
      _
    $region23: #{decoder_forward.1} parent=1 // pred_check_branch
      %40 = sbr.rel (0) target = $region25
    $region24: #{decoder_forward.1} parent=1 // pred_region
      %s42 = ssub.s32 32768, 32768
      %43 = vsyncadd [#allocation8], %s42
      %s44 = sshll.u32 [#allocation7], 4
      %s45 = int_to_ptr.vmem [resolvable:$true] %s44
      %50 = dma.hbm_to_vmem [thread:$0]  %s5, 32768, %s45, [#allocation8], 512, 512, 32
    $region25: #{decoder_forward.1} parent=1 // pred_fallthru
      _
    // Predicated region
    $region26: #{decoder_forward.1} parent=1 // pred_check
      _
    $region27: #{decoder_forward.1} parent=1 // pred_check_branch
      %52 = sbr.rel (0) target = $region29
    $region28: #{decoder_forward.1} parent=1 // pred_region
      %s54 = ssub.s32 64, 64
      %55 = vsyncadd [#allocation8], %s54
      %s57 = sshll.u32 [#allocation9], 4
      %s58 = int_to_ptr.vmem [resolvable:$true] %s57
      %60 = dma.hbm_to_vmem [thread:$0]  %s6, 64, %s58, [#allocation8]
    $region29: #{decoder_forward.1} parent=1 // pred_fallthru
      _
    // Predicated region
    $region30: #{decoder_forward.1} parent=1 // pred_check
      _
    $region31: #{decoder_forward.1} parent=1 // pred_check_branch
      %62 = sbr.rel (0) target = $region33
    $region32: #{decoder_forward.1} parent=1 // pred_region
      %s64 = ssub.s32 16384, 16384
      %65 = vsyncadd [#allocation11], %s64
      %s66 = sshll.u32 [#allocation10], 4
      %s67 = int_to_ptr.vmem [resolvable:$true] %s66
      %72 = dma.hbm_to_vmem [thread:$0]  %s7, 16384, %s67, [#allocation11], 128, 128, 8
    $region33: #{decoder_forward.1} parent=1 // pred_fallthru
      _
    // Predicated region
    $region34: #{decoder_forward.1} parent=1 // pred_check
      _
    $region35: #{decoder_forward.1} parent=1 // pred_check_branch
      %74 = sbr.rel (0) target = $region37
    $region36: #{decoder_forward.1} parent=1 // pred_region
      _
    $region37: #{decoder_forward.1} parent=1 // pred_fallthru
      _
    // Predicated region
    $region38: #{decoder_forward.1} parent=1 // pred_check
      _
    $region39: #{decoder_forward.1} parent=1 // pred_check_branch
      %76 = sbr.rel (0) target = $region41
    $region40: #{decoder_forward.1} parent=1 // pred_region
      %77 = dma.done [#allocation6], 28672
    $region41: #{decoder_forward.1} parent=1 // pred_fallthru
      _
    // Predicated region
    $region42: #{decoder_forward.1} parent=1 // pred_check
      _
    $region43: #{decoder_forward.1} parent=1 // pred_check_branch
      %79 = sbr.rel (0) target = $region45
    $region44: #{decoder_forward.1} parent=1 // pred_region
      %80 = dma.done [#allocation8], 32768
    $region45: #{decoder_forward.1} parent=1 // pred_fallthru
      _
    // Predicated region
    $region46: #{decoder_forward.1} parent=1 // pred_check
      _
    $region47: #{decoder_forward.1} parent=1 // pred_check_branch
      %82 = sbr.rel (0) target = $region49
    $region48: #{decoder_forward.1} parent=1 // pred_region
      %83 = dma.done [#allocation8], 64
    $region49: #{decoder_forward.1} parent=1 // pred_fallthru
      _
    // Predicated region
    $region50: #{decoder_forward.1} parent=1 // pred_check
      _
    $region51: #{decoder_forward.1} parent=1 // pred_check_branch
      %85 = sbr.rel (0) target = $region53
    $region52: #{decoder_forward.1} parent=1 // pred_region
      %86 = dma.done [#allocation11], 16384
    $region53: #{decoder_forward.1} parent=1 // pred_fallthru
      _
    %87 = vst [vmem:[#allocation2 + $0x70] sm:$0xff] 0.0
    %88 = vst [vmem:[#allocation2 + $0x78] sm:$0xff] 0.0
    %89 = vst [vmem:[#allocation3 + $0xe0] sm:$0xff] 0.0
    %90 = vst [vmem:[#allocation3 + $0xe8] sm:$0xff] 0.0
    %91 = vst [vmem:[#allocation3 + $0xf0] sm:$0xff] 0.0
    %92 = vst [vmem:[#allocation3 + $0xf8] sm:$0xff] 0.0
    %v93 = vld [vmem:[%s0] sm:$0xff]
    %v94 = vld [vmem:[%s1] sm:$0xff]
    %v95 = vld [vmem:[%s1 + $0x8] sm:$0xff]
    %v96 = vld [vmem:[%s2] sm:$0x1]
    %v98 = vlaneseq
    %v99 = vshrl.u32 %v98, 7
    %v100 = vsub.s32 0, %v99
    %v101 = vrot.slane %v96, %v100
    %vm103 = vcmask 130048
    %v105 = vsel %vm103, %v93, 0
    %107 = vmatprep.subr.mxu0 0.0
    %108 = vmatpush1.msra.mxu0 %v94
    %109 = vmatprep.subr.mxu0 0.0
    %110 = vmatpush1.msra.mxu0 %v95
    %111 = vmatprep.subr.mxu0 0.0
    %112 = vmatpush1.msra.mxu0 0.0
    %113 = vmatprep.subr.mxu0 0.0
    %114 = vmatpush1.msra.mxu0 0.0
    %115 = vmatprep.subr.mxu0 0.0
    %116 = vmatpush1.msra.mxu0 0.0
    %117 = vmatprep.subr.mxu0 0.0
    %118 = vmatpush1.msra.mxu0 0.0
    %119 = vmatprep.subr.mxu0 0.0
    %120 = vmatpush1.msra.mxu0 0.0
    %121 = vmatprep.subr.mxu0 0.0
    %122 = vmatpush1.msra.mxu0 0.0
    %123 = vmatprep.subr.mxu0 0.0
    %124 = vmatpush1.msra.mxu0 0.0
    %125 = vmatprep.subr.mxu0 0.0
    %126 = vmatpush1.msra.mxu0 0.0
    %127 = vmatprep.subr.mxu0 0.0
    %128 = vmatpush1.msra.mxu0 0.0
    %129 = vmatprep.subr.mxu0 0.0
    %130 = vmatpush1.msra.mxu0 0.0
    %131 = vmatprep.subr.mxu0 0.0
    %132 = vmatpush1.msra.mxu0 0.0
    %133 = vmatprep.subr.mxu0 0.0
    %134 = vmatpush1.msra.mxu0 0.0
    %135 = vmatprep.subr.mxu0 0.0
    %136 = vmatpush1.msra.mxu0 0.0
    %137 = vmatprep.subr.mxu0 0.0
    %138 = vmatpush1.msra.mxu0 0.0
    %139 = vmatprep.subr.mxu0 0.0
    %140 = vmatpush1.msra.mxu0 0.0
    %141 = vmatprep.subr.mxu0 0.0
    %142 = vmatpush1.msra.mxu0 0.0
    %143 = vmatprep.subr.mxu0 0.0
    %144 = vmatpush1.msra.mxu0 0.0
    %145 = vmatprep.subr.mxu0 0.0
    %146 = vmatpush1.msra.mxu0 0.0
    %147 = vmatprep.subr.mxu0 0.0
    %148 = vmatpush1.msra.mxu0 0.0
    %149 = vmatprep.subr.mxu0 0.0
    %150 = vmatpush1.msra.mxu0 0.0
    %151 = vmatprep.subr.mxu0 0.0
    %152 = vmatpush1.msra.mxu0 0.0
    %153 = vmatprep.subr.mxu0 0.0
    %154 = vmatpush1.msra.mxu0 0.0
    %155 = vmatprep.subr.mxu0 0.0
    %156 = vmatpush1.msra.mxu0 0.0
    %157 = vmatprep.subr.mxu0 0.0
    %158 = vmatpush1.msra.mxu0 0.0
    %159 = vmatprep.subr.mxu0 0.0
    %160 = vmatpush1.msra.mxu0 0.0
    %161 = vmatprep.subr.mxu0 0.0
    %162 = vmatpush1.msra.mxu0 0.0
    %163 = vmatprep.subr.mxu0 0.0
    %164 = vmatpush1.msra.mxu0 0.0
    %165 = vmatprep.subr.mxu0 0.0
    %166 = vmatpush1.msra.mxu0 0.0
    %167 = vmatprep.subr.mxu0 0.0
    %168 = vmatpush1.msra.mxu0 0.0
    %169 = vmatprep.subr.mxu0 0.0
    %170 = vmatpush1.msra.mxu0 0.0
    %171 = vmatprep.mubr.f32.mxu0 0.0
    %172 = vmatmul.mubr.f32.gmra.mrb[0].mxu0 %v105
    %v173 = vpop.f32.mrb[0].mxu0
    %v174 = vadd.f32 %v101, %v173
    %v175 = vpop.f32.mrb[0].mxu0
    %176 = vdwg.mxu0
    %v177 = vmax.f32 %v174, 0.0
    %v178 = vld [vmem:[#allocation5] sm:$0xff]
    %v179 = vld [vmem:[#allocation5 + $0x8] sm:$0xff]
    %v180 = vld [vmem:[#allocation5 + $0x70] sm:$0xff]
    %v181 = vld [vmem:[#allocation5 + $0x78] sm:$0xff]
    %v182 = vld [vmem:[#allocation5 + $0xe0] sm:$0xff]
    %v183 = vld [vmem:[#allocation5 + $0xe8] sm:$0xff]
    %v184 = vld [vmem:[#allocation5 + $0x150] sm:$0xff]
    %v185 = vld [vmem:[#allocation5 + $0x158] sm:$0xff]
    %v186 = vld [vmem:[#allocation5 + $0x1c0] sm:$0xff]
    %v187 = vld [vmem:[#allocation5 + $0x1c8] sm:$0xff]
    %v188 = vld [vmem:[#allocation5 + $0x230] sm:$0xff]
    %v189 = vld [vmem:[#allocation5 + $0x238] sm:$0xff]
    %v190 = vld [vmem:[#allocation5 + $0x2a0] sm:$0xff]
    %v191 = vld [vmem:[#allocation5 + $0x2a8] sm:$0xff]
    %v192 = vld [vmem:[#allocation5 + $0x310] sm:$0xff]
    %v193 = vld [vmem:[#allocation5 + $0x318] sm:$0xff]
    %v194 = vld [vmem:[#allocation5 + $0x380] sm:$0xff]
    %v195 = vld [vmem:[#allocation5 + $0x388] sm:$0xff]
    %v196 = vld [vmem:[#allocation5 + $0x3f0] sm:$0xff]
    %v197 = vld [vmem:[#allocation5 + $0x3f8] sm:$0xff]
    %v198 = vld [vmem:[#allocation5 + $0x460] sm:$0xff]
    %v199 = vld [vmem:[#allocation5 + $0x468] sm:$0xff]
    %v200 = vld [vmem:[#allocation5 + $0x4d0] sm:$0xff]
    %v201 = vld [vmem:[#allocation5 + $0x4d8] sm:$0xff]
    %v202 = vld [vmem:[#allocation5 + $0x540] sm:$0xff]
    %v203 = vld [vmem:[#allocation5 + $0x548] sm:$0xff]
    %v204 = vld [vmem:[#allocation5 + $0x5b0] sm:$0xff]
    %v205 = vld [vmem:[#allocation5 + $0x5b8] sm:$0xff]
    %v206 = vld [vmem:[#allocation5 + $0x620] sm:$0xff]
    %v207 = vld [vmem:[#allocation5 + $0x628] sm:$0xff]
    %v208 = vld [vmem:[#allocation5 + $0x690] sm:$0xff]
    %v209 = vld [vmem:[#allocation5 + $0x698] sm:$0xff]
    %v210 = vld [vmem:[%s4] sm:$0x3]
    %v212 = vlaneseq
    %v213 = vshrl.u32 %v212, 7
    %v214 = vsub.s32 0, %v213
    %v215 = vrot.slane %v210, %v214
    %v216 = vlaneseq
    %v217 = vshrl.u32 %v216, 7
    %v218 = vsub.s32 1, %v217
    %v219 = vrot.slane %v210, %v218
    %222 = vmatprep.subr.mxu0 %v179
    %223 = vmatpush1.msra.mxu0 %v178
    %224 = vmatprep.subr.mxu0 %v181
    %225 = vmatpush1.msra.mxu0 %v180
    %226 = vmatprep.subr.mxu0 %v183
    %227 = vmatpush1.msra.mxu0 %v182
    %228 = vmatprep.subr.mxu0 %v185
    %229 = vmatpush1.msra.mxu0 %v184
    %230 = vmatprep.subr.mxu0 %v187
    %231 = vmatpush1.msra.mxu0 %v186
    %232 = vmatprep.subr.mxu0 %v189
    %233 = vmatpush1.msra.mxu0 %v188
    %234 = vmatprep.subr.mxu0 %v191
    %235 = vmatpush1.msra.mxu0 %v190
    %236 = vmatprep.subr.mxu0 %v193
    %237 = vmatpush1.msra.mxu0 %v192
    %238 = vmatprep.subr.mxu0 %v195
    %239 = vmatpush1.msra.mxu0 %v194
    %240 = vmatprep.subr.mxu0 %v197
    %241 = vmatpush1.msra.mxu0 %v196
    %242 = vmatprep.subr.mxu0 %v199
    %243 = vmatpush1.msra.mxu0 %v198
    %244 = vmatprep.subr.mxu0 %v201
    %245 = vmatpush1.msra.mxu0 %v200
    %246 = vmatprep.subr.mxu0 %v203
    %247 = vmatpush1.msra.mxu0 %v202
    %248 = vmatprep.subr.mxu0 %v205
    %249 = vmatpush1.msra.mxu0 %v204
    %250 = vmatprep.subr.mxu0 %v207
    %251 = vmatpush1.msra.mxu0 %v206
    %252 = vmatprep.subr.mxu0 %v209
    %253 = vmatpush1.msra.mxu0 %v208
    %254 = vmatprep.subr.mxu0 0.0
    %255 = vmatpush1.msra.mxu0 0.0
    %256 = vmatprep.subr.mxu0 0.0
    %257 = vmatpush1.msra.mxu0 0.0
    %258 = vmatprep.subr.mxu0 0.0
    %259 = vmatpush1.msra.mxu0 0.0
    %260 = vmatprep.subr.mxu0 0.0
    %261 = vmatpush1.msra.mxu0 0.0
    %262 = vmatprep.subr.mxu0 0.0
    %263 = vmatpush1.msra.mxu0 0.0
    %264 = vmatprep.subr.mxu0 0.0
    %265 = vmatpush1.msra.mxu0 0.0
    %266 = vmatprep.subr.mxu0 0.0
    %267 = vmatpush1.msra.mxu0 0.0
    %268 = vmatprep.subr.mxu0 0.0
    %269 = vmatpush1.msra.mxu0 0.0
    %270 = vmatprep.subr.mxu0 0.0
    %271 = vmatpush1.msra.mxu0 0.0
    %272 = vmatprep.subr.mxu0 0.0
    %273 = vmatpush1.msra.mxu0 0.0
    %274 = vmatprep.subr.mxu0 0.0
    %275 = vmatpush1.msra.mxu0 0.0
    %276 = vmatprep.subr.mxu0 0.0
    %277 = vmatpush1.msra.mxu0 0.0
    %278 = vmatprep.subr.mxu0 0.0
    %279 = vmatpush1.msra.mxu0 0.0
    %280 = vmatprep.subr.mxu0 0.0
    %281 = vmatpush1.msra.mxu0 0.0
    %282 = vmatprep.subr.mxu0 0.0
    %283 = vmatpush1.msra.mxu0 0.0
    %284 = vmatprep.subr.mxu0 0.0
    %285 = vmatpush1.msra.mxu0 0.0
    %286 = vmatprep.mubr.f32.mxu0 0.0
    %287 = vmatmul.mubr.f32.gmra.mrb[0].mxu0 %v177
    %v288 = vpop.f32.mrb[0].mxu0
    %v289 = vadd.f32 %v215, %v288
    %v290 = vpop.f32.mrb[0].mxu0
    %v291 = vadd.f32 %v219, %v290
    %292 = vdwg.mxu0
    %v293 = vmax.f32 %v289, 0.0
    %v294 = vmax.f32 %v291, 0.0
    %295 = vst [vmem:[#allocation2] sm:$0xff] %v293
    %296 = vst [vmem:[#allocation2 + $0x8] sm:$0xff] %v294
    %v297 = vld [vmem:[#allocation5 + $0x10] sm:$0xff]
    %v298 = vld [vmem:[#allocation5 + $0x18] sm:$0xff]
    %v299 = vld [vmem:[#allocation5 + $0x80] sm:$0xff]
    %v300 = vld [vmem:[#allocation5 + $0x88] sm:$0xff]
    %v301 = vld [vmem:[#allocation5 + $0xf0] sm:$0xff]
    %v302 = vld [vmem:[#allocation5 + $0xf8] sm:$0xff]
    %v303 = vld [vmem:[#allocation5 + $0x160] sm:$0xff]
    %v304 = vld [vmem:[#allocation5 + $0x168] sm:$0xff]
    %v305 = vld [vmem:[#allocation5 + $0x1d0] sm:$0xff]
    %v306 = vld [vmem:[#allocation5 + $0x1d8] sm:$0xff]
    %v307 = vld [vmem:[#allocation5 + $0x240] sm:$0xff]
    %v308 = vld [vmem:[#allocation5 + $0x248] sm:$0xff]
    %v309 = vld [vmem:[#allocation5 + $0x2b0] sm:$0xff]
    %v310 = vld [vmem:[#allocation5 + $0x2b8] sm:$0xff]
    %v311 = vld [vmem:[#allocation5 + $0x320] sm:$0xff]
    %v312 = vld [vmem:[#allocation5 + $0x328] sm:$0xff]
    %v313 = vld [vmem:[#allocation5 + $0x390] sm:$0xff]
    %v314 = vld [vmem:[#allocation5 + $0x398] sm:$0xff]
    %v315 = vld [vmem:[#allocation5 + $0x400] sm:$0xff]
    %v316 = vld [vmem:[#allocation5 + $0x408] sm:$0xff]
    %v317 = vld [vmem:[#allocation5 + $0x470] sm:$0xff]
    %v318 = vld [vmem:[#allocation5 + $0x478] sm:$0xff]
    %v319 = vld [vmem:[#allocation5 + $0x4e0] sm:$0xff]
    %v320 = vld [vmem:[#allocation5 + $0x4e8] sm:$0xff]
    %v321 = vld [vmem:[#allocation5 + $0x550] sm:$0xff]
    %v322 = vld [vmem:[#allocation5 + $0x558] sm:$0xff]
    %v323 = vld [vmem:[#allocation5 + $0x5c0] sm:$0xff]
    %v324 = vld [vmem:[#allocation5 + $0x5c8] sm:$0xff]
    %v325 = vld [vmem:[#allocation5 + $0x630] sm:$0xff]
    %v326 = vld [vmem:[#allocation5 + $0x638] sm:$0xff]
    %v327 = vld [vmem:[#allocation5 + $0x6a0] sm:$0xff]
    %v328 = vld [vmem:[#allocation5 + $0x6a8] sm:$0xff]
    %v329 = vld [vmem:[%s4 + $0x2] sm:$0x3]
    %v331 = vlaneseq
    %v332 = vshrl.u32 %v331, 7
    %v333 = vsub.s32 0, %v332
    %v334 = vrot.slane %v329, %v333
    %v335 = vlaneseq
    %v336 = vshrl.u32 %v335, 7
    %v337 = vsub.s32 1, %v336
    %v338 = vrot.slane %v329, %v337
    %341 = vmatprep.subr.mxu0 %v298
    %342 = vmatpush1.msra.mxu0 %v297
    %343 = vmatprep.subr.mxu0 %v300
    %344 = vmatpush1.msra.mxu0 %v299
    %345 = vmatprep.subr.mxu0 %v302
    %346 = vmatpush1.msra.mxu0 %v301
    %347 = vmatprep.subr.mxu0 %v304
    %348 = vmatpush1.msra.mxu0 %v303
    %349 = vmatprep.subr.mxu0 %v306
    %350 = vmatpush1.msra.mxu0 %v305
    %351 = vmatprep.subr.mxu0 %v308
    %352 = vmatpush1.msra.mxu0 %v307
    %353 = vmatprep.subr.mxu0 %v310
    %354 = vmatpush1.msra.mxu0 %v309
    %355 = vmatprep.subr.mxu0 %v312
    %356 = vmatpush1.msra.mxu0 %v311
    %357 = vmatprep.subr.mxu0 %v314
    %358 = vmatpush1.msra.mxu0 %v313
    %359 = vmatprep.subr.mxu0 %v316
    %360 = vmatpush1.msra.mxu0 %v315
    %361 = vmatprep.subr.mxu0 %v318
    %362 = vmatpush1.msra.mxu0 %v317
    %363 = vmatprep.subr.mxu0 %v320
    %364 = vmatpush1.msra.mxu0 %v319
    %365 = vmatprep.subr.mxu0 %v322
    %366 = vmatpush1.msra.mxu0 %v321
    %367 = vmatprep.subr.mxu0 %v324
    %368 = vmatpush1.msra.mxu0 %v323
    %369 = vmatprep.subr.mxu0 %v326
    %370 = vmatpush1.msra.mxu0 %v325
    %371 = vmatprep.subr.mxu0 %v328
    %372 = vmatpush1.msra.mxu0 %v327
    %373 = vmatprep.subr.mxu0 0.0
    %374 = vmatpush1.msra.mxu0 0.0
    %375 = vmatprep.subr.mxu0 0.0
    %376 = vmatpush1.msra.mxu0 0.0
    %377 = vmatprep.subr.mxu0 0.0
    %378 = vmatpush1.msra.mxu0 0.0
    %379 = vmatprep.subr.mxu0 0.0
    %380 = vmatpush1.msra.mxu0 0.0
    %381 = vmatprep.subr.mxu0 0.0
    %382 = vmatpush1.msra.mxu0 0.0
    %383 = vmatprep.subr.mxu0 0.0
    %384 = vmatpush1.msra.mxu0 0.0
    %385 = vmatprep.subr.mxu0 0.0
    %386 = vmatpush1.msra.mxu0 0.0
    %387 = vmatprep.subr.mxu0 0.0
    %388 = vmatpush1.msra.mxu0 0.0
    %389 = vmatprep.subr.mxu0 0.0
    %390 = vmatpush1.msra.mxu0 0.0
    %391 = vmatprep.subr.mxu0 0.0
    %392 = vmatpush1.msra.mxu0 0.0
    %393 = vmatprep.subr.mxu0 0.0
    %394 = vmatpush1.msra.mxu0 0.0
    %395 = vmatprep.subr.mxu0 0.0
    %396 = vmatpush1.msra.mxu0 0.0
    %397 = vmatprep.subr.mxu0 0.0
    %398 = vmatpush1.msra.mxu0 0.0
    %399 = vmatprep.subr.mxu0 0.0
    %400 = vmatpush1.msra.mxu0 0.0
    %401 = vmatprep.subr.mxu0 0.0
    %402 = vmatpush1.msra.mxu0 0.0
    %403 = vmatprep.subr.mxu0 0.0
    %404 = vmatpush1.msra.mxu0 0.0
    %405 = vmatprep.mubr.f32.mxu0 0.0
    %406 = vmatmul.mubr.f32.gmra.mrb[0].mxu0 %v177
    %v407 = vpop.f32.mrb[0].mxu0
    %v408 = vadd.f32 %v334, %v407
    %v409 = vpop.f32.mrb[0].mxu0
    %v410 = vadd.f32 %v338, %v409
    %411 = vdwg.mxu0
    %v412 = vmax.f32 %v408, 0.0
    %v413 = vmax.f32 %v410, 0.0
    %414 = vst [vmem:[#allocation2 + $0x10] sm:$0xff] %v412
    %415 = vst [vmem:[#allocation2 + $0x18] sm:$0xff] %v413
    %v416 = vld [vmem:[#allocation5 + $0x20] sm:$0xff]
    %v417 = vld [vmem:[#allocation5 + $0x28] sm:$0xff]
    %v418 = vld [vmem:[#allocation5 + $0x90] sm:$0xff]
    %v419 = vld [vmem:[#allocation5 + $0x98] sm:$0xff]
    %v420 = vld [vmem:[#allocation5 + $0x100] sm:$0xff]
    %v421 = vld [vmem:[#allocation5 + $0x108] sm:$0xff]
    %v422 = vld [vmem:[#allocation5 + $0x170] sm:$0xff]
    %v423 = vld [vmem:[#allocation5 + $0x178] sm:$0xff]
    %v424 = vld [vmem:[#allocation5 + $0x1e0] sm:$0xff]
    %v425 = vld [vmem:[#allocation5 + $0x1e8] sm:$0xff]
    %v426 = vld [vmem:[#allocation5 + $0x250] sm:$0xff]
    %v427 = vld [vmem:[#allocation5 + $0x258] sm:$0xff]
    %v428 = vld [vmem:[#allocation5 + $0x2c0] sm:$0xff]
    %v429 = vld [vmem:[#allocation5 + $0x2c8] sm:$0xff]
    %v430 = vld [vmem:[#allocation5 + $0x330] sm:$0xff]
    %v431 = vld [vmem:[#allocation5 + $0x338] sm:$0xff]
    %v432 = vld [vmem:[#allocation5 + $0x3a0] sm:$0xff]
    %v433 = vld [vmem:[#allocation5 + $0x3a8] sm:$0xff]
    %v434 = vld [vmem:[#allocation5 + $0x410] sm:$0xff]
    %v435 = vld [vmem:[#allocation5 + $0x418] sm:$0xff]
    %v436 = vld [vmem:[#allocation5 + $0x480] sm:$0xff]
    %v437 = vld [vmem:[#allocation5 + $0x488] sm:$0xff]
    %v438 = vld [vmem:[#allocation5 + $0x4f0] sm:$0xff]
    %v439 = vld [vmem:[#allocation5 + $0x4f8] sm:$0xff]
    %v440 = vld [vmem:[#allocation5 + $0x560] sm:$0xff]
    %v441 = vld [vmem:[#allocation5 + $0x568] sm:$0xff]
    %v442 = vld [vmem:[#allocation5 + $0x5d0] sm:$0xff]
    %v443 = vld [vmem:[#allocation5 + $0x5d8] sm:$0xff]
    %v444 = vld [vmem:[#allocation5 + $0x640] sm:$0xff]
    %v445 = vld [vmem:[#allocation5 + $0x648] sm:$0xff]
    %v446 = vld [vmem:[#allocation5 + $0x6b0] sm:$0xff]
    %v447 = vld [vmem:[#allocation5 + $0x6b8] sm:$0xff]
    %v448 = vld [vmem:[%s4 + $0x4] sm:$0x3]
    %v450 = vlaneseq
    %v451 = vshrl.u32 %v450, 7
    %v452 = vsub.s32 0, %v451
    %v453 = vrot.slane %v448, %v452
    %v454 = vlaneseq
    %v455 = vshrl.u32 %v454, 7
    %v456 = vsub.s32 1, %v455
    %v457 = vrot.slane %v448, %v456
    %460 = vmatprep.subr.mxu0 %v417
    %461 = vmatpush1.msra.mxu0 %v416
    %462 = vmatprep.subr.mxu0 %v419
    %463 = vmatpush1.msra.mxu0 %v418
    %464 = vmatprep.subr.mxu0 %v421
    %465 = vmatpush1.msra.mxu0 %v420
    %466 = vmatprep.subr.mxu0 %v423
    %467 = vmatpush1.msra.mxu0 %v422
    %468 = vmatprep.subr.mxu0 %v425
    %469 = vmatpush1.msra.mxu0 %v424
    %470 = vmatprep.subr.mxu0 %v427
    %471 = vmatpush1.msra.mxu0 %v426
    %472 = vmatprep.subr.mxu0 %v429
    %473 = vmatpush1.msra.mxu0 %v428
    %474 = vmatprep.subr.mxu0 %v431
    %475 = vmatpush1.msra.mxu0 %v430
    %476 = vmatprep.subr.mxu0 %v433
    %477 = vmatpush1.msra.mxu0 %v432
    %478 = vmatprep.subr.mxu0 %v435
    %479 = vmatpush1.msra.mxu0 %v434
    %480 = vmatprep.subr.mxu0 %v437
    %481 = vmatpush1.msra.mxu0 %v436
    %482 = vmatprep.subr.mxu0 %v439
    %483 = vmatpush1.msra.mxu0 %v438
    %484 = vmatprep.subr.mxu0 %v441
    %485 = vmatpush1.msra.mxu0 %v440
    %486 = vmatprep.subr.mxu0 %v443
    %487 = vmatpush1.msra.mxu0 %v442
    %488 = vmatprep.subr.mxu0 %v445
    %489 = vmatpush1.msra.mxu0 %v444
    %490 = vmatprep.subr.mxu0 %v447
    %491 = vmatpush1.msra.mxu0 %v446
    %492 = vmatprep.subr.mxu0 0.0
    %493 = vmatpush1.msra.mxu0 0.0
    %494 = vmatprep.subr.mxu0 0.0
    %495 = vmatpush1.msra.mxu0 0.0
    %496 = vmatprep.subr.mxu0 0.0
    %497 = vmatpush1.msra.mxu0 0.0
    %498 = vmatprep.subr.mxu0 0.0
    %499 = vmatpush1.msra.mxu0 0.0
    %500 = vmatprep.subr.mxu0 0.0
    %501 = vmatpush1.msra.mxu0 0.0
    %502 = vmatprep.subr.mxu0 0.0
    %503 = vmatpush1.msra.mxu0 0.0
    %504 = vmatprep.subr.mxu0 0.0
    %505 = vmatpush1.msra.mxu0 0.0
    %506 = vmatprep.subr.mxu0 0.0
    %507 = vmatpush1.msra.mxu0 0.0
    %508 = vmatprep.subr.mxu0 0.0
    %509 = vmatpush1.msra.mxu0 0.0
    %510 = vmatprep.subr.mxu0 0.0
    %511 = vmatpush1.msra.mxu0 0.0
    %512 = vmatprep.subr.mxu0 0.0
    %513 = vmatpush1.msra.mxu0 0.0
    %514 = vmatprep.subr.mxu0 0.0
    %515 = vmatpush1.msra.mxu0 0.0
    %516 = vmatprep.subr.mxu0 0.0
    %517 = vmatpush1.msra.mxu0 0.0
    %518 = vmatprep.subr.mxu0 0.0
    %519 = vmatpush1.msra.mxu0 0.0
    %520 = vmatprep.subr.mxu0 0.0
    %521 = vmatpush1.msra.mxu0 0.0
    %522 = vmatprep.subr.mxu0 0.0
    %523 = vmatpush1.msra.mxu0 0.0
    %524 = vmatprep.mubr.f32.mxu0 0.0
    %525 = vmatmul.mubr.f32.gmra.mrb[0].mxu0 %v177
    %v526 = vpop.f32.mrb[0].mxu0
    %v527 = vadd.f32 %v453, %v526
    %v528 = vpop.f32.mrb[0].mxu0
    %v529 = vadd.f32 %v457, %v528
    %530 = vdwg.mxu0
    %v531 = vmax.f32 %v527, 0.0
    %v532 = vmax.f32 %v529, 0.0
    %533 = vst [vmem:[#allocation2 + $0x20] sm:$0xff] %v531
    %534 = vst [vmem:[#allocation2 + $0x28] sm:$0xff] %v532
    %v535 = vld [vmem:[#allocation5 + $0x30] sm:$0xff]
    %v536 = vld [vmem:[#allocation5 + $0x38] sm:$0xff]
    %v537 = vld [vmem:[#allocation5 + $0xa0] sm:$0xff]
    %v538 = vld [vmem:[#allocation5 + $0xa8] sm:$0xff]
    %v539 = vld [vmem:[#allocation5 + $0x110] sm:$0xff]
    %v540 = vld [vmem:[#allocation5 + $0x118] sm:$0xff]
    %v541 = vld [vmem:[#allocation5 + $0x180] sm:$0xff]
    %v542 = vld [vmem:[#allocation5 + $0x188] sm:$0xff]
    %v543 = vld [vmem:[#allocation5 + $0x1f0] sm:$0xff]
    %v544 = vld [vmem:[#allocation5 + $0x1f8] sm:$0xff]
    %v545 = vld [vmem:[#allocation5 + $0x260] sm:$0xff]
    %v546 = vld [vmem:[#allocation5 + $0x268] sm:$0xff]
    %v547 = vld [vmem:[#allocation5 + $0x2d0] sm:$0xff]
    %v548 = vld [vmem:[#allocation5 + $0x2d8] sm:$0xff]
    %v549 = vld [vmem:[#allocation5 + $0x340] sm:$0xff]
    %v550 = vld [vmem:[#allocation5 + $0x348] sm:$0xff]
    %v551 = vld [vmem:[#allocation5 + $0x3b0] sm:$0xff]
    %v552 = vld [vmem:[#allocation5 + $0x3b8] sm:$0xff]
    %v553 = vld [vmem:[#allocation5 + $0x420] sm:$0xff]
    %v554 = vld [vmem:[#allocation5 + $0x428] sm:$0xff]
    %v555 = vld [vmem:[#allocation5 + $0x490] sm:$0xff]
    %v556 = vld [vmem:[#allocation5 + $0x498] sm:$0xff]
    %v557 = vld [vmem:[#allocation5 + $0x500] sm:$0xff]
    %v558 = vld [vmem:[#allocation5 + $0x508] sm:$0xff]
    %v559 = vld [vmem:[#allocation5 + $0x570] sm:$0xff]
    %v560 = vld [vmem:[#allocation5 + $0x578] sm:$0xff]
    %v561 = vld [vmem:[#allocation5 + $0x5e0] sm:$0xff]
    %v562 = vld [vmem:[#allocation5 + $0x5e8] sm:$0xff]
    %v563 = vld [vmem:[#allocation5 + $0x650] sm:$0xff]
    %v564 = vld [vmem:[#allocation5 + $0x658] sm:$0xff]
    %v565 = vld [vmem:[#allocation5 + $0x6c0] sm:$0xff]
    %v566 = vld [vmem:[#allocation5 + $0x6c8] sm:$0xff]
    %v567 = vld [vmem:[%s4 + $0x6] sm:$0x3]
    %v569 = vlaneseq
    %v570 = vshrl.u32 %v569, 7
    %v571 = vsub.s32 0, %v570
    %v572 = vrot.slane %v567, %v571
    %v573 = vlaneseq
    %v574 = vshrl.u32 %v573, 7
    %v575 = vsub.s32 1, %v574
    %v576 = vrot.slane %v567, %v575
    %579 = vmatprep.subr.mxu0 %v536
    %580 = vmatpush1.msra.mxu0 %v535
    %581 = vmatprep.subr.mxu0 %v538
    %582 = vmatpush1.msra.mxu0 %v537
    %583 = vmatprep.subr.mxu0 %v540
    %584 = vmatpush1.msra.mxu0 %v539
    %585 = vmatprep.subr.mxu0 %v542
    %586 = vmatpush1.msra.mxu0 %v541
    %587 = vmatprep.subr.mxu0 %v544
    %588 = vmatpush1.msra.mxu0 %v543
    %589 = vmatprep.subr.mxu0 %v546
    %590 = vmatpush1.msra.mxu0 %v545
    %591 = vmatprep.subr.mxu0 %v548
    %592 = vmatpush1.msra.mxu0 %v547
    %593 = vmatprep.subr.mxu0 %v550
    %594 = vmatpush1.msra.mxu0 %v549
    %595 = vmatprep.subr.mxu0 %v552
    %596 = vmatpush1.msra.mxu0 %v551
    %597 = vmatprep.subr.mxu0 %v554
    %598 = vmatpush1.msra.mxu0 %v553
    %599 = vmatprep.subr.mxu0 %v556
    %600 = vmatpush1.msra.mxu0 %v555
    %601 = vmatprep.subr.mxu0 %v558
    %602 = vmatpush1.msra.mxu0 %v557
    %603 = vmatprep.subr.mxu0 %v560
    %604 = vmatpush1.msra.mxu0 %v559
    %605 = vmatprep.subr.mxu0 %v562
    %606 = vmatpush1.msra.mxu0 %v561
    %607 = vmatprep.subr.mxu0 %v564
    %608 = vmatpush1.msra.mxu0 %v563
    %609 = vmatprep.subr.mxu0 %v566
    %610 = vmatpush1.msra.mxu0 %v565
    %611 = vmatprep.subr.mxu0 0.0
    %612 = vmatpush1.msra.mxu0 0.0
    %613 = vmatprep.subr.mxu0 0.0
    %614 = vmatpush1.msra.mxu0 0.0
    %615 = vmatprep.subr.mxu0 0.0
    %616 = vmatpush1.msra.mxu0 0.0
    %617 = vmatprep.subr.mxu0 0.0
    %618 = vmatpush1.msra.mxu0 0.0
    %619 = vmatprep.subr.mxu0 0.0
    %620 = vmatpush1.msra.mxu0 0.0
    %621 = vmatprep.subr.mxu0 0.0
    %622 = vmatpush1.msra.mxu0 0.0
    %623 = vmatprep.subr.mxu0 0.0
    %624 = vmatpush1.msra.mxu0 0.0
    %625 = vmatprep.subr.mxu0 0.0
    %626 = vmatpush1.msra.mxu0 0.0
    %627 = vmatprep.subr.mxu0 0.0
    %628 = vmatpush1.msra.mxu0 0.0
    %629 = vmatprep.subr.mxu0 0.0
    %630 = vmatpush1.msra.mxu0 0.0
    %631 = vmatprep.subr.mxu0 0.0
    %632 = vmatpush1.msra.mxu0 0.0
    %633 = vmatprep.subr.mxu0 0.0
    %634 = vmatpush1.msra.mxu0 0.0
    %635 = vmatprep.subr.mxu0 0.0
    %636 = vmatpush1.msra.mxu0 0.0
    %637 = vmatprep.subr.mxu0 0.0
    %638 = vmatpush1.msra.mxu0 0.0
    %639 = vmatprep.subr.mxu0 0.0
    %640 = vmatpush1.msra.mxu0 0.0
    %641 = vmatprep.subr.mxu0 0.0
    %642 = vmatpush1.msra.mxu0 0.0
    %643 = vmatprep.mubr.f32.mxu0 0.0
    %644 = vmatmul.mubr.f32.gmra.mrb[0].mxu0 %v177
    %v645 = vpop.f32.mrb[0].mxu0
    %v646 = vadd.f32 %v572, %v645
    %v647 = vpop.f32.mrb[0].mxu0
    %v648 = vadd.f32 %v576, %v647
    %649 = vdwg.mxu0
    %v650 = vmax.f32 %v646, 0.0
    %v651 = vmax.f32 %v648, 0.0
    %652 = vst [vmem:[#allocation2 + $0x30] sm:$0xff] %v650
    %653 = vst [vmem:[#allocation2 + $0x38] sm:$0xff] %v651
    %v654 = vld [vmem:[#allocation5 + $0x40] sm:$0xff]
    %v655 = vld [vmem:[#allocation5 + $0x48] sm:$0xff]
    %v656 = vld [vmem:[#allocation5 + $0xb0] sm:$0xff]
    %v657 = vld [vmem:[#allocation5 + $0xb8] sm:$0xff]
    %v658 = vld [vmem:[#allocation5 + $0x120] sm:$0xff]
    %v659 = vld [vmem:[#allocation5 + $0x128] sm:$0xff]
    %v660 = vld [vmem:[#allocation5 + $0x190] sm:$0xff]
    %v661 = vld [vmem:[#allocation5 + $0x198] sm:$0xff]
    %v662 = vld [vmem:[#allocation5 + $0x200] sm:$0xff]
    %v663 = vld [vmem:[#allocation5 + $0x208] sm:$0xff]
    %v664 = vld [vmem:[#allocation5 + $0x270] sm:$0xff]
    %v665 = vld [vmem:[#allocation5 + $0x278] sm:$0xff]
    %v666 = vld [vmem:[#allocation5 + $0x2e0] sm:$0xff]
    %v667 = vld [vmem:[#allocation5 + $0x2e8] sm:$0xff]
    %v668 = vld [vmem:[#allocation5 + $0x350] sm:$0xff]
    %v669 = vld [vmem:[#allocation5 + $0x358] sm:$0xff]
    %v670 = vld [vmem:[#allocation5 + $0x3c0] sm:$0xff]
    %v671 = vld [vmem:[#allocation5 + $0x3c8] sm:$0xff]
    %v672 = vld [vmem:[#allocation5 + $0x430] sm:$0xff]
    %v673 = vld [vmem:[#allocation5 + $0x438] sm:$0xff]
    %v674 = vld [vmem:[#allocation5 + $0x4a0] sm:$0xff]
    %v675 = vld [vmem:[#allocation5 + $0x4a8] sm:$0xff]
    %v676 = vld [vmem:[#allocation5 + $0x510] sm:$0xff]
    %v677 = vld [vmem:[#allocation5 + $0x518] sm:$0xff]
    %v678 = vld [vmem:[#allocation5 + $0x580] sm:$0xff]
    %v679 = vld [vmem:[#allocation5 + $0x588] sm:$0xff]
    %v680 = vld [vmem:[#allocation5 + $0x5f0] sm:$0xff]
    %v681 = vld [vmem:[#allocation5 + $0x5f8] sm:$0xff]
    %v682 = vld [vmem:[#allocation5 + $0x660] sm:$0xff]
    %v683 = vld [vmem:[#allocation5 + $0x668] sm:$0xff]
    %v684 = vld [vmem:[#allocation5 + $0x6d0] sm:$0xff]
    %v685 = vld [vmem:[#allocation5 + $0x6d8] sm:$0xff]
    %v686 = vld [vmem:[%s4 + $0x8] sm:$0x3]
    %v688 = vlaneseq
    %v689 = vshrl.u32 %v688, 7
    %v690 = vsub.s32 0, %v689
    %v691 = vrot.slane %v686, %v690
    %v692 = vlaneseq
    %v693 = vshrl.u32 %v692, 7
    %v694 = vsub.s32 1, %v693
    %v695 = vrot.slane %v686, %v694
    %698 = vmatprep.subr.mxu0 %v655
    %699 = vmatpush1.msra.mxu0 %v654
    %700 = vmatprep.subr.mxu0 %v657
    %701 = vmatpush1.msra.mxu0 %v656
    %702 = vmatprep.subr.mxu0 %v659
    %703 = vmatpush1.msra.mxu0 %v658
    %704 = vmatprep.subr.mxu0 %v661
    %705 = vmatpush1.msra.mxu0 %v660
    %706 = vmatprep.subr.mxu0 %v663
    %707 = vmatpush1.msra.mxu0 %v662
    %708 = vmatprep.subr.mxu0 %v665
    %709 = vmatpush1.msra.mxu0 %v664
    %710 = vmatprep.subr.mxu0 %v667
    %711 = vmatpush1.msra.mxu0 %v666
    %712 = vmatprep.subr.mxu0 %v669
    %713 = vmatpush1.msra.mxu0 %v668
    %714 = vmatprep.subr.mxu0 %v671
    %715 = vmatpush1.msra.mxu0 %v670
    %716 = vmatprep.subr.mxu0 %v673
    %717 = vmatpush1.msra.mxu0 %v672
    %718 = vmatprep.subr.mxu0 %v675
    %719 = vmatpush1.msra.mxu0 %v674
    %720 = vmatprep.subr.mxu0 %v677
    %721 = vmatpush1.msra.mxu0 %v676
    %722 = vmatprep.subr.mxu0 %v679
    %723 = vmatpush1.msra.mxu0 %v678
    %724 = vmatprep.subr.mxu0 %v681
    %725 = vmatpush1.msra.mxu0 %v680
    %726 = vmatprep.subr.mxu0 %v683
    %727 = vmatpush1.msra.mxu0 %v682
    %728 = vmatprep.subr.mxu0 %v685
    %729 = vmatpush1.msra.mxu0 %v684
    %730 = vmatprep.subr.mxu0 0.0
    %731 = vmatpush1.msra.mxu0 0.0
    %732 = vmatprep.subr.mxu0 0.0
    %733 = vmatpush1.msra.mxu0 0.0
    %734 = vmatprep.subr.mxu0 0.0
    %735 = vmatpush1.msra.mxu0 0.0
    %736 = vmatprep.subr.mxu0 0.0
    %737 = vmatpush1.msra.mxu0 0.0
    %738 = vmatprep.subr.mxu0 0.0
    %739 = vmatpush1.msra.mxu0 0.0
    %740 = vmatprep.subr.mxu0 0.0
    %741 = vmatpush1.msra.mxu0 0.0
    %742 = vmatprep.subr.mxu0 0.0
    %743 = vmatpush1.msra.mxu0 0.0
    %744 = vmatprep.subr.mxu0 0.0
    %745 = vmatpush1.msra.mxu0 0.0
    %746 = vmatprep.subr.mxu0 0.0
    %747 = vmatpush1.msra.mxu0 0.0
    %748 = vmatprep.subr.mxu0 0.0
    %749 = vmatpush1.msra.mxu0 0.0
    %750 = vmatprep.subr.mxu0 0.0
    %751 = vmatpush1.msra.mxu0 0.0
    %752 = vmatprep.subr.mxu0 0.0
    %753 = vmatpush1.msra.mxu0 0.0
    %754 = vmatprep.subr.mxu0 0.0
    %755 = vmatpush1.msra.mxu0 0.0
    %756 = vmatprep.subr.mxu0 0.0
    %757 = vmatpush1.msra.mxu0 0.0
    %758 = vmatprep.subr.mxu0 0.0
    %759 = vmatpush1.msra.mxu0 0.0
    %760 = vmatprep.subr.mxu0 0.0
    %761 = vmatpush1.msra.mxu0 0.0
    %762 = vmatprep.mubr.f32.mxu0 0.0
    %763 = vmatmul.mubr.f32.gmra.mrb[0].mxu0 %v177
    %v764 = vpop.f32.mrb[0].mxu0
    %v765 = vadd.f32 %v691, %v764
    %v766 = vpop.f32.mrb[0].mxu0
    %v767 = vadd.f32 %v695, %v766
    %768 = vdwg.mxu0
    %v769 = vmax.f32 %v765, 0.0
    %v770 = vmax.f32 %v767, 0.0
    %771 = vst [vmem:[#allocation2 + $0x40] sm:$0xff] %v769
    %772 = vst [vmem:[#allocation2 + $0x48] sm:$0xff] %v770
    %v773 = vld [vmem:[#allocation5 + $0x50] sm:$0xff]
    %v774 = vld [vmem:[#allocation5 + $0x58] sm:$0xff]
    %v775 = vld [vmem:[#allocation5 + $0xc0] sm:$0xff]
    %v776 = vld [vmem:[#allocation5 + $0xc8] sm:$0xff]
    %v777 = vld [vmem:[#allocation5 + $0x130] sm:$0xff]
    %v778 = vld [vmem:[#allocation5 + $0x138] sm:$0xff]
    %v779 = vld [vmem:[#allocation5 + $0x1a0] sm:$0xff]
    %v780 = vld [vmem:[#allocation5 + $0x1a8] sm:$0xff]
    %v781 = vld [vmem:[#allocation5 + $0x210] sm:$0xff]
    %v782 = vld [vmem:[#allocation5 + $0x218] sm:$0xff]
    %v783 = vld [vmem:[#allocation5 + $0x280] sm:$0xff]
    %v784 = vld [vmem:[#allocation5 + $0x288] sm:$0xff]
    %v785 = vld [vmem:[#allocation5 + $0x2f0] sm:$0xff]
    %v786 = vld [vmem:[#allocation5 + $0x2f8] sm:$0xff]
    %v787 = vld [vmem:[#allocation5 + $0x360] sm:$0xff]
    %v788 = vld [vmem:[#allocation5 + $0x368] sm:$0xff]
    %v789 = vld [vmem:[#allocation5 + $0x3d0] sm:$0xff]
    %v790 = vld [vmem:[#allocation5 + $0x3d8] sm:$0xff]
    %v791 = vld [vmem:[#allocation5 + $0x440] sm:$0xff]
    %v792 = vld [vmem:[#allocation5 + $0x448] sm:$0xff]
    %v793 = vld [vmem:[#allocation5 + $0x4b0] sm:$0xff]
    %v794 = vld [vmem:[#allocation5 + $0x4b8] sm:$0xff]
    %v795 = vld [vmem:[#allocation5 + $0x520] sm:$0xff]
    %v796 = vld [vmem:[#allocation5 + $0x528] sm:$0xff]
    %v797 = vld [vmem:[#allocation5 + $0x590] sm:$0xff]
    %v798 = vld [vmem:[#allocation5 + $0x598] sm:$0xff]
    %v799 = vld [vmem:[#allocation5 + $0x600] sm:$0xff]
    %v800 = vld [vmem:[#allocation5 + $0x608] sm:$0xff]
    %v801 = vld [vmem:[#allocation5 + $0x670] sm:$0xff]
    %v802 = vld [vmem:[#allocation5 + $0x678] sm:$0xff]
    %v803 = vld [vmem:[#allocation5 + $0x6e0] sm:$0xff]
    %v804 = vld [vmem:[#allocation5 + $0x6e8] sm:$0xff]
    %v805 = vld [vmem:[%s4 + $0xa] sm:$0x3]
    %v807 = vlaneseq
    %v808 = vshrl.u32 %v807, 7
    %v809 = vsub.s32 0, %v808
    %v810 = vrot.slane %v805, %v809
    %v811 = vlaneseq
    %v812 = vshrl.u32 %v811, 7
    %v813 = vsub.s32 1, %v812
    %v814 = vrot.slane %v805, %v813
    %817 = vmatprep.subr.mxu0 %v774
    %818 = vmatpush1.msra.mxu0 %v773
    %819 = vmatprep.subr.mxu0 %v776
    %820 = vmatpush1.msra.mxu0 %v775
    %821 = vmatprep.subr.mxu0 %v778
    %822 = vmatpush1.msra.mxu0 %v777
    %823 = vmatprep.subr.mxu0 %v780
    %824 = vmatpush1.msra.mxu0 %v779
    %825 = vmatprep.subr.mxu0 %v782
    %826 = vmatpush1.msra.mxu0 %v781
    %827 = vmatprep.subr.mxu0 %v784
    %828 = vmatpush1.msra.mxu0 %v783
    %829 = vmatprep.subr.mxu0 %v786
    %830 = vmatpush1.msra.mxu0 %v785
    %831 = vmatprep.subr.mxu0 %v788
    %832 = vmatpush1.msra.mxu0 %v787
    %833 = vmatprep.subr.mxu0 %v790
    %834 = vmatpush1.msra.mxu0 %v789
    %835 = vmatprep.subr.mxu0 %v792
    %836 = vmatpush1.msra.mxu0 %v791
    %837 = vmatprep.subr.mxu0 %v794
    %838 = vmatpush1.msra.mxu0 %v793
    %839 = vmatprep.subr.mxu0 %v796
    %840 = vmatpush1.msra.mxu0 %v795
    %841 = vmatprep.subr.mxu0 %v798
    %842 = vmatpush1.msra.mxu0 %v797
    %843 = vmatprep.subr.mxu0 %v800
    %844 = vmatpush1.msra.mxu0 %v799
    %845 = vmatprep.subr.mxu0 %v802
    %846 = vmatpush1.msra.mxu0 %v801
    %847 = vmatprep.subr.mxu0 %v804
    %848 = vmatpush1.msra.mxu0 %v803
    %849 = vmatprep.subr.mxu0 0.0
    %850 = vmatpush1.msra.mxu0 0.0
    %851 = vmatprep.subr.mxu0 0.0
    %852 = vmatpush1.msra.mxu0 0.0
    %853 = vmatprep.subr.mxu0 0.0
    %854 = vmatpush1.msra.mxu0 0.0
    %855 = vmatprep.subr.mxu0 0.0
    %856 = vmatpush1.msra.mxu0 0.0
    %857 = vmatprep.subr.mxu0 0.0
    %858 = vmatpush1.msra.mxu0 0.0
    %859 = vmatprep.subr.mxu0 0.0
    %860 = vmatpush1.msra.mxu0 0.0
    %861 = vmatprep.subr.mxu0 0.0
    %862 = vmatpush1.msra.mxu0 0.0
    %863 = vmatprep.subr.mxu0 0.0
    %864 = vmatpush1.msra.mxu0 0.0
    %865 = vmatprep.subr.mxu0 0.0
    %866 = vmatpush1.msra.mxu0 0.0
    %867 = vmatprep.subr.mxu0 0.0
    %868 = vmatpush1.msra.mxu0 0.0
    %869 = vmatprep.subr.mxu0 0.0
    %870 = vmatpush1.msra.mxu0 0.0
    %871 = vmatprep.subr.mxu0 0.0
    %872 = vmatpush1.msra.mxu0 0.0
    %873 = vmatprep.subr.mxu0 0.0
    %874 = vmatpush1.msra.mxu0 0.0
    %875 = vmatprep.subr.mxu0 0.0
    %876 = vmatpush1.msra.mxu0 0.0
    %877 = vmatprep.subr.mxu0 0.0
    %878 = vmatpush1.msra.mxu0 0.0
    %879 = vmatprep.subr.mxu0 0.0
    %880 = vmatpush1.msra.mxu0 0.0
    %881 = vmatprep.mubr.f32.mxu0 0.0
    %882 = vmatmul.mubr.f32.gmra.mrb[0].mxu0 %v177
    %v883 = vpop.f32.mrb[0].mxu0
    %v884 = vadd.f32 %v810, %v883
    %v885 = vpop.f32.mrb[0].mxu0
    %v886 = vadd.f32 %v814, %v885
    %887 = vdwg.mxu0
    %v888 = vmax.f32 %v884, 0.0
    %v889 = vmax.f32 %v886, 0.0
    %890 = vst [vmem:[#allocation2 + $0x50] sm:$0xff] %v888
    %891 = vst [vmem:[#allocation2 + $0x58] sm:$0xff] %v889
    %v892 = vld [vmem:[#allocation5 + $0x60] sm:$0xff]
    %v893 = vld [vmem:[#allocation5 + $0x68] sm:$0xff]
    %v894 = vld [vmem:[#allocation5 + $0xd0] sm:$0xff]
    %v895 = vld [vmem:[#allocation5 + $0xd8] sm:$0xff]
    %v896 = vld [vmem:[#allocation5 + $0x140] sm:$0xff]
    %v897 = vld [vmem:[#allocation5 + $0x148] sm:$0xff]
    %v898 = vld [vmem:[#allocation5 + $0x1b0] sm:$0xff]
    %v899 = vld [vmem:[#allocation5 + $0x1b8] sm:$0xff]
    %v900 = vld [vmem:[#allocation5 + $0x220] sm:$0xff]
    %v901 = vld [vmem:[#allocation5 + $0x228] sm:$0xff]
    %v902 = vld [vmem:[#allocation5 + $0x290] sm:$0xff]
    %v903 = vld [vmem:[#allocation5 + $0x298] sm:$0xff]
    %v904 = vld [vmem:[#allocation5 + $0x300] sm:$0xff]
    %v905 = vld [vmem:[#allocation5 + $0x308] sm:$0xff]
    %v906 = vld [vmem:[#allocation5 + $0x370] sm:$0xff]
    %v907 = vld [vmem:[#allocation5 + $0x378] sm:$0xff]
    %v908 = vld [vmem:[#allocation5 + $0x3e0] sm:$0xff]
    %v909 = vld [vmem:[#allocation5 + $0x3e8] sm:$0xff]
    %v910 = vld [vmem:[#allocation5 + $0x450] sm:$0xff]
    %v911 = vld [vmem:[#allocation5 + $0x458] sm:$0xff]
    %v912 = vld [vmem:[#allocation5 + $0x4c0] sm:$0xff]
    %v913 = vld [vmem:[#allocation5 + $0x4c8] sm:$0xff]
    %v914 = vld [vmem:[#allocation5 + $0x530] sm:$0xff]
    %v915 = vld [vmem:[#allocation5 + $0x538] sm:$0xff]
    %v916 = vld [vmem:[#allocation5 + $0x5a0] sm:$0xff]
    %v917 = vld [vmem:[#allocation5 + $0x5a8] sm:$0xff]
    %v918 = vld [vmem:[#allocation5 + $0x610] sm:$0xff]
    %v919 = vld [vmem:[#allocation5 + $0x618] sm:$0xff]
    %v920 = vld [vmem:[#allocation5 + $0x680] sm:$0xff]
    %v921 = vld [vmem:[#allocation5 + $0x688] sm:$0xff]
    %v922 = vld [vmem:[#allocation5 + $0x6f0] sm:$0xff]
    %v923 = vld [vmem:[#allocation5 + $0x6f8] sm:$0xff]
    %v924 = vld [vmem:[%s4 + $0xc] sm:$0x3]
    %v926 = vlaneseq
    %v927 = vshrl.u32 %v926, 7
    %v928 = vsub.s32 0, %v927
    %v929 = vrot.slane %v924, %v928
    %v930 = vlaneseq
    %v931 = vshrl.u32 %v930, 7
    %v932 = vsub.s32 1, %v931
    %v933 = vrot.slane %v924, %v932
    %936 = vmatprep.subr.mxu0 %v893
    %937 = vmatpush1.msra.mxu0 %v892
    %938 = vmatprep.subr.mxu0 %v895
    %939 = vmatpush1.msra.mxu0 %v894
    %940 = vmatprep.subr.mxu0 %v897
    %941 = vmatpush1.msra.mxu0 %v896
    %942 = vmatprep.subr.mxu0 %v899
    %943 = vmatpush1.msra.mxu0 %v898
    %944 = vmatprep.subr.mxu0 %v901
    %945 = vmatpush1.msra.mxu0 %v900
    %946 = vmatprep.subr.mxu0 %v903
    %947 = vmatpush1.msra.mxu0 %v902
    %948 = vmatprep.subr.mxu0 %v905
    %949 = vmatpush1.msra.mxu0 %v904
    %950 = vmatprep.subr.mxu0 %v907
    %951 = vmatpush1.msra.mxu0 %v906
    %952 = vmatprep.subr.mxu0 %v909
    %953 = vmatpush1.msra.mxu0 %v908
    %954 = vmatprep.subr.mxu0 %v911
    %955 = vmatpush1.msra.mxu0 %v910
    %956 = vmatprep.subr.mxu0 %v913
    %957 = vmatpush1.msra.mxu0 %v912
    %958 = vmatprep.subr.mxu0 %v915
    %959 = vmatpush1.msra.mxu0 %v914
    %960 = vmatprep.subr.mxu0 %v917
    %961 = vmatpush1.msra.mxu0 %v916
    %962 = vmatprep.subr.mxu0 %v919
    %963 = vmatpush1.msra.mxu0 %v918
    %964 = vmatprep.subr.mxu0 %v921
    %965 = vmatpush1.msra.mxu0 %v920
    %966 = vmatprep.subr.mxu0 %v923
    %967 = vmatpush1.msra.mxu0 %v922
    %968 = vmatprep.subr.mxu0 0.0
    %969 = vmatpush1.msra.mxu0 0.0
    %970 = vmatprep.subr.mxu0 0.0
    %971 = vmatpush1.msra.mxu0 0.0
    %972 = vmatprep.subr.mxu0 0.0
    %973 = vmatpush1.msra.mxu0 0.0
    %974 = vmatprep.subr.mxu0 0.0
    %975 = vmatpush1.msra.mxu0 0.0
    %976 = vmatprep.subr.mxu0 0.0
    %977 = vmatpush1.msra.mxu0 0.0
    %978 = vmatprep.subr.mxu0 0.0
    %979 = vmatpush1.msra.mxu0 0.0
    %980 = vmatprep.subr.mxu0 0.0
    %981 = vmatpush1.msra.mxu0 0.0
    %982 = vmatprep.subr.mxu0 0.0
    %983 = vmatpush1.msra.mxu0 0.0
    %984 = vmatprep.subr.mxu0 0.0
    %985 = vmatpush1.msra.mxu0 0.0
    %986 = vmatprep.subr.mxu0 0.0
    %987 = vmatpush1.msra.mxu0 0.0
    %988 = vmatprep.subr.mxu0 0.0
    %989 = vmatpush1.msra.mxu0 0.0
    %990 = vmatprep.subr.mxu0 0.0
    %991 = vmatpush1.msra.mxu0 0.0
    %992 = vmatprep.subr.mxu0 0.0
    %993 = vmatpush1.msra.mxu0 0.0
    %994 = vmatprep.subr.mxu0 0.0
    %995 = vmatpush1.msra.mxu0 0.0
    %996 = vmatprep.subr.mxu0 0.0
    %997 = vmatpush1.msra.mxu0 0.0
    %998 = vmatprep.subr.mxu0 0.0
    %999 = vmatpush1.msra.mxu0 0.0
    %1000 = vmatprep.mubr.f32.mxu0 0.0
    %1001 = vmatmul.mubr.f32.gmra.mrb[0].mxu0 %v177
    %v1002 = vpop.f32.mrb[0].mxu0
    %v1003 = vadd.f32 %v929, %v1002
    %v1004 = vpop.f32.mrb[0].mxu0
    %v1005 = vadd.f32 %v933, %v1004
    %1006 = vdwg.mxu0
    %v1007 = vmax.f32 %v1003, 0.0
    %v1008 = vmax.f32 %v1005, 0.0
    %1009 = vst [vmem:[#allocation2 + $0x60] sm:$0xff] %v1007
    %1010 = vst [vmem:[#allocation2 + $0x68] sm:$0xff] %v1008
    %v1011 = vld [vmem:[#allocation2] sm:$0xff]
    %v1012 = vld [vmem:[#allocation2 + $0x8] sm:$0xff]
    %v1013 = vld [vmem:[#allocation7] sm:$0xff]
    %v1014 = vld [vmem:[#allocation7 + $0x8] sm:$0xff]
    %v1015 = vld [vmem:[#allocation7 + $0x10] sm:$0xff]
    %v1016 = vld [vmem:[#allocation7 + $0x18] sm:$0xff]
    %v1017 = vld [vmem:[#allocation7 + $0x20] sm:$0xff]
    %v1018 = vld [vmem:[#allocation7 + $0x28] sm:$0xff]
    %v1019 = vld [vmem:[#allocation7 + $0x30] sm:$0xff]
    %v1020 = vld [vmem:[#allocation7 + $0x38] sm:$0xff]
    %v1021 = vld [vmem:[#allocation7 + $0x40] sm:$0xff]
    %v1022 = vld [vmem:[#allocation7 + $0x48] sm:$0xff]
    %v1023 = vld [vmem:[#allocation7 + $0x50] sm:$0xff]
    %v1024 = vld [vmem:[#allocation7 + $0x58] sm:$0xff]
    %v1025 = vld [vmem:[#allocation7 + $0x60] sm:$0xff]
    %v1026 = vld [vmem:[#allocation7 + $0x68] sm:$0xff]
    %v1027 = vld [vmem:[#allocation7 + $0x70] sm:$0xff]
    %v1028 = vld [vmem:[#allocation7 + $0x78] sm:$0xff]
    %v1029 = vld [vmem:[#allocation7 + $0x80] sm:$0xff]
    %v1030 = vld [vmem:[#allocation7 + $0x88] sm:$0xff]
    %v1031 = vld [vmem:[#allocation7 + $0x90] sm:$0xff]
    %v1032 = vld [vmem:[#allocation7 + $0x98] sm:$0xff]
    %v1033 = vld [vmem:[#allocation7 + $0xa0] sm:$0xff]
    %v1034 = vld [vmem:[#allocation7 + $0xa8] sm:$0xff]
    %v1035 = vld [vmem:[#allocation7 + $0xb0] sm:$0xff]
    %v1036 = vld [vmem:[#allocation7 + $0xb8] sm:$0xff]
    %v1037 = vld [vmem:[#allocation7 + $0xc0] sm:$0xff]
    %v1038 = vld [vmem:[#allocation7 + $0xc8] sm:$0xff]
    %v1039 = vld [vmem:[#allocation7 + $0xd0] sm:$0xff]
    %v1040 = vld [vmem:[#allocation7 + $0xd8] sm:$0xff]
    %v1041 = vld [vmem:[#allocation7 + $0xe0] sm:$0xff]
    %v1042 = vld [vmem:[#allocation7 + $0xe8] sm:$0xff]
    %v1043 = vld [vmem:[#allocation7 + $0xf0] sm:$0xff]
    %v1044 = vld [vmem:[#allocation7 + $0xf8] sm:$0xff]
    %v1045 = vld [vmem:[#allocation7 + $0x100] sm:$0xff]
    %v1046 = vld [vmem:[#allocation7 + $0x108] sm:$0xff]
    %v1047 = vld [vmem:[#allocation7 + $0x110] sm:$0xff]
    %v1048 = vld [vmem:[#allocation7 + $0x118] sm:$0xff]
    %v1049 = vld [vmem:[#allocation7 + $0x120] sm:$0xff]
    %v1050 = vld [vmem:[#allocation7 + $0x128] sm:$0xff]
    %v1051 = vld [vmem:[#allocation7 + $0x130] sm:$0xff]
    %v1052 = vld [vmem:[#allocation7 + $0x138] sm:$0xff]
    %v1053 = vld [vmem:[#allocation7 + $0x140] sm:$0xff]
    %v1054 = vld [vmem:[#allocation7 + $0x148] sm:$0xff]
    %v1055 = vld [vmem:[#allocation7 + $0x150] sm:$0xff]
    %v1056 = vld [vmem:[#allocation7 + $0x158] sm:$0xff]
    %v1057 = vld [vmem:[#allocation7 + $0x160] sm:$0xff]
    %v1058 = vld [vmem:[#allocation7 + $0x168] sm:$0xff]
    %v1059 = vld [vmem:[#allocation7 + $0x170] sm:$0xff]
    %v1060 = vld [vmem:[#allocation7 + $0x178] sm:$0xff]
    %v1061 = vld [vmem:[#allocation7 + $0x180] sm:$0xff]
    %v1062 = vld [vmem:[#allocation7 + $0x188] sm:$0xff]
    %v1063 = vld [vmem:[#allocation7 + $0x190] sm:$0xff]
    %v1064 = vld [vmem:[#allocation7 + $0x198] sm:$0xff]
    %v1065 = vld [vmem:[#allocation7 + $0x1a0] sm:$0xff]
    %v1066 = vld [vmem:[#allocation7 + $0x1a8] sm:$0xff]
    %v1067 = vld [vmem:[#allocation7 + $0x1b0] sm:$0xff]
    %v1068 = vld [vmem:[#allocation7 + $0x1b8] sm:$0xff]
    %v1069 = vld [vmem:[#allocation7 + $0x1c0] sm:$0xff]
    %v1070 = vld [vmem:[#allocation7 + $0x1c8] sm:$0xff]
    %v1071 = vld [vmem:[#allocation7 + $0x1d0] sm:$0xff]
    %v1072 = vld [vmem:[#allocation7 + $0x1d8] sm:$0xff]
    %v1073 = vld [vmem:[#allocation7 + $0x1e0] sm:$0xff]
    %v1074 = vld [vmem:[#allocation7 + $0x1e8] sm:$0xff]
    %v1075 = vld [vmem:[#allocation7 + $0x1f0] sm:$0xff]
    %v1076 = vld [vmem:[#allocation7 + $0x1f8] sm:$0xff]
    %v1077 = vld [vmem:[#allocation7 + $0x200] sm:$0xff]
    %v1078 = vld [vmem:[#allocation7 + $0x208] sm:$0xff]
    %v1079 = vld [vmem:[#allocation7 + $0x210] sm:$0xff]
    %v1080 = vld [vmem:[#allocation7 + $0x218] sm:$0xff]
    %v1081 = vld [vmem:[#allocation7 + $0x220] sm:$0xff]
    %v1082 = vld [vmem:[#allocation7 + $0x228] sm:$0xff]
    %v1083 = vld [vmem:[#allocation7 + $0x230] sm:$0xff]
    %v1084 = vld [vmem:[#allocation7 + $0x238] sm:$0xff]
    %v1085 = vld [vmem:[#allocation7 + $0x240] sm:$0xff]
    %v1086 = vld [vmem:[#allocation7 + $0x248] sm:$0xff]
    %v1087 = vld [vmem:[#allocation7 + $0x250] sm:$0xff]
    %v1088 = vld [vmem:[#allocation7 + $0x258] sm:$0xff]
    %v1089 = vld [vmem:[#allocation7 + $0x260] sm:$0xff]
    %v1090 = vld [vmem:[#allocation7 + $0x268] sm:$0xff]
    %v1091 = vld [vmem:[#allocation7 + $0x270] sm:$0xff]
    %v1092 = vld [vmem:[#allocation7 + $0x278] sm:$0xff]
    %v1093 = vld [vmem:[#allocation7 + $0x280] sm:$0xff]
    %v1094 = vld [vmem:[#allocation7 + $0x288] sm:$0xff]
    %v1095 = vld [vmem:[#allocation7 + $0x290] sm:$0xff]
    %v1096 = vld [vmem:[#allocation7 + $0x298] sm:$0xff]
    %v1097 = vld [vmem:[#allocation7 + $0x2a0] sm:$0xff]
    %v1098 = vld [vmem:[#allocation7 + $0x2a8] sm:$0xff]
    %v1099 = vld [vmem:[#allocation7 + $0x2b0] sm:$0xff]
    %v1100 = vld [vmem:[#allocation7 + $0x2b8] sm:$0xff]
    %v1101 = vld [vmem:[#allocation7 + $0x2c0] sm:$0xff]
    %v1102 = vld [vmem:[#allocation7 + $0x2c8] sm:$0xff]
    %v1103 = vld [vmem:[#allocation7 + $0x2d0] sm:$0xff]
    %v1104 = vld [vmem:[#allocation7 + $0x2d8] sm:$0xff]
    %v1105 = vld [vmem:[#allocation7 + $0x2e0] sm:$0xff]
    %v1106 = vld [vmem:[#allocation7 + $0x2e8] sm:$0xff]
    %v1107 = vld [vmem:[#allocation7 + $0x2f0] sm:$0xff]
    %v1108 = vld [vmem:[#allocation7 + $0x2f8] sm:$0xff]
    %v1109 = vld [vmem:[#allocation7 + $0x300] sm:$0xff]
    %v1110 = vld [vmem:[#allocation7 + $0x308] sm:$0xff]
    %v1111 = vld [vmem:[#allocation7 + $0x310] sm:$0xff]
    %v1112 = vld [vmem:[#allocation7 + $0x318] sm:$0xff]
    %v1113 = vld [vmem:[#allocation7 + $0x320] sm:$0xff]
    %v1114 = vld [vmem:[#allocation7 + $0x328] sm:$0xff]
    %v1115 = vld [vmem:[#allocation7 + $0x330] sm:$0xff]
    %v1116 = vld [vmem:[#allocation7 + $0x338] sm:$0xff]
    %v1117 = vld [vmem:[#allocation7 + $0x340] sm:$0xff]
    %v1118 = vld [vmem:[#allocation7 + $0x348] sm:$0xff]
    %v1119 = vld [vmem:[#allocation7 + $0x350] sm:$0xff]
    %v1120 = vld [vmem:[#allocation7 + $0x358] sm:$0xff]
    %v1121 = vld [vmem:[#allocation7 + $0x360] sm:$0xff]
    %v1122 = vld [vmem:[#allocation7 + $0x368] sm:$0xff]
    %v1123 = vld [vmem:[#allocation7 + $0x370] sm:$0xff]
    %v1124 = vld [vmem:[#allocation7 + $0x378] sm:$0xff]
    %v1125 = vld [vmem:[#allocation7 + $0x380] sm:$0xff]
    %v1126 = vld [vmem:[#allocation7 + $0x388] sm:$0xff]
    %v1127 = vld [vmem:[#allocation7 + $0x390] sm:$0xff]
    %v1128 = vld [vmem:[#allocation7 + $0x398] sm:$0xff]
    %v1129 = vld [vmem:[#allocation7 + $0x3a0] sm:$0xff]
    %v1130 = vld [vmem:[#allocation7 + $0x3a8] sm:$0xff]
    %v1131 = vld [vmem:[#allocation7 + $0x3b0] sm:$0xff]
    %v1132 = vld [vmem:[#allocation7 + $0x3b8] sm:$0xff]
    %v1133 = vld [vmem:[#allocation7 + $0x3c0] sm:$0xff]
    %v1134 = vld [vmem:[#allocation7 + $0x3c8] sm:$0xff]
    %v1135 = vld [vmem:[#allocation7 + $0x3d0] sm:$0xff]
    %v1136 = vld [vmem:[#allocation7 + $0x3d8] sm:$0xff]
    %v1137 = vld [vmem:[#allocation7 + $0x3e0] sm:$0xff]
    %v1138 = vld [vmem:[#allocation7 + $0x3e8] sm:$0xff]
    %v1139 = vld [vmem:[#allocation7 + $0x3f0] sm:$0xff]
    %v1140 = vld [vmem:[#allocation7 + $0x3f8] sm:$0xff]
    %v1141 = vld [vmem:[#allocation2 + $0x10] sm:$0xff]
    %v1142 = vld [vmem:[#allocation2 + $0x18] sm:$0xff]
    %s1143 = scalar_lea.vmem [#allocation7], 1024
    %v1144 = vld [vmem:[%s1143] sm:$0xff]
    %v1145 = vld [vmem:[%s1143 + $0x8] sm:$0xff]
    %v1146 = vld [vmem:[%s1143 + $0x10] sm:$0xff]
    %v1147 = vld [vmem:[%s1143 + $0x18] sm:$0xff]
    %v1148 = vld [vmem:[%s1143 + $0x20] sm:$0xff]
    %v1149 = vld [vmem:[%s1143 + $0x28] sm:$0xff]
    %v1150 = vld [vmem:[%s1143 + $0x30] sm:$0xff]
    %v1151 = vld [vmem:[%s1143 + $0x38] sm:$0xff]
    %v1152 = vld [vmem:[%s1143 + $0x40] sm:$0xff]
    %v1153 = vld [vmem:[%s1143 + $0x48] sm:$0xff]
    %v1154 = vld [vmem:[%s1143 + $0x50] sm:$0xff]
    %v1155 = vld [vmem:[%s1143 + $0x58] sm:$0xff]
    %v1156 = vld [vmem:[%s1143 + $0x60] sm:$0xff]
    %v1157 = vld [vmem:[%s1143 + $0x68] sm:$0xff]
    %v1158 = vld [vmem:[%s1143 + $0x70] sm:$0xff]
    %v1159 = vld [vmem:[%s1143 + $0x78] sm:$0xff]
    %v1160 = vld [vmem:[%s1143 + $0x80] sm:$0xff]
    %v1161 = vld [vmem:[%s1143 + $0x88] sm:$0xff]
    %v1162 = vld [vmem:[%s1143 + $0x90] sm:$0xff]
    %v1163 = vld [vmem:[%s1143 + $0x98] sm:$0xff]
    %v1164 = vld [vmem:[%s1143 + $0xa0] sm:$0xff]
    %v1165 = vld [vmem:[%s1143 + $0xa8] sm:$0xff]
    %v1166 = vld [vmem:[%s1143 + $0xb0] sm:$0xff]
    %v1167 = vld [vmem:[%s1143 + $0xb8] sm:$0xff]
    %v1168 = vld [vmem:[%s1143 + $0xc0] sm:$0xff]
    %v1169 = vld [vmem:[%s1143 + $0xc8] sm:$0xff]
    %v1170 = vld [vmem:[%s1143 + $0xd0] sm:$0xff]
    %v1171 = vld [vmem:[%s1143 + $0xd8] sm:$0xff]
    %v1172 = vld [vmem:[%s1143 + $0xe0] sm:$0xff]
    %v1173 = vld [vmem:[%s1143 + $0xe8] sm:$0xff]
    %v1174 = vld [vmem:[%s1143 + $0xf0] sm:$0xff]
    %v1175 = vld [vmem:[%s1143 + $0xf8] sm:$0xff]
    %v1176 = vld [vmem:[%s1143 + $0x100] sm:$0xff]
    %v1177 = vld [vmem:[%s1143 + $0x108] sm:$0xff]
    %v1178 = vld [vmem:[%s1143 + $0x110] sm:$0xff]
    %v1179 = vld [vmem:[%s1143 + $0x118] sm:$0xff]
    %v1180 = vld [vmem:[%s1143 + $0x120] sm:$0xff]
    %v1181 = vld [vmem:[%s1143 + $0x128] sm:$0xff]
    %v1182 = vld [vmem:[%s1143 + $0x130] sm:$0xff]
    %v1183 = vld [vmem:[%s1143 + $0x138] sm:$0xff]
    %v1184 = vld [vmem:[%s1143 + $0x140] sm:$0xff]
    %v1185 = vld [vmem:[%s1143 + $0x148] sm:$0xff]
    %v1186 = vld [vmem:[%s1143 + $0x150] sm:$0xff]
    %v1187 = vld [vmem:[%s1143 + $0x158] sm:$0xff]
    %v1188 = vld [vmem:[%s1143 + $0x160] sm:$0xff]
    %v1189 = vld [vmem:[%s1143 + $0x168] sm:$0xff]
    %v1190 = vld [vmem:[%s1143 + $0x170] sm:$0xff]
    %v1191 = vld [vmem:[%s1143 + $0x178] sm:$0xff]
    %v1192 = vld [vmem:[%s1143 + $0x180] sm:$0xff]
    %v1193 = vld [vmem:[%s1143 + $0x188] sm:$0xff]
    %v1194 = vld [vmem:[%s1143 + $0x190] sm:$0xff]
    %v1195 = vld [vmem:[%s1143 + $0x198] sm:$0xff]
    %v1196 = vld [vmem:[%s1143 + $0x1a0] sm:$0xff]
    %v1197 = vld [vmem:[%s1143 + $0x1a8] sm:$0xff]
    %v1198 = vld [vmem:[%s1143 + $0x1b0] sm:$0xff]
    %v1199 = vld [vmem:[%s1143 + $0x1b8] sm:$0xff]
    %v1200 = vld [vmem:[%s1143 + $0x1c0] sm:$0xff]
    %v1201 = vld [vmem:[%s1143 + $0x1c8] sm:$0xff]
    %v1202 = vld [vmem:[%s1143 + $0x1d0] sm:$0xff]
    %v1203 = vld [vmem:[%s1143 + $0x1d8] sm:$0xff]
    %v1204 = vld [vmem:[%s1143 + $0x1e0] sm:$0xff]
    %v1205 = vld [vmem:[%s1143 + $0x1e8] sm:$0xff]
    %v1206 = vld [vmem:[%s1143 + $0x1f0] sm:$0xff]
    %v1207 = vld [vmem:[%s1143 + $0x1f8] sm:$0xff]
    %v1208 = vld [vmem:[%s1143 + $0x200] sm:$0xff]
    %v1209 = vld [vmem:[%s1143 + $0x208] sm:$0xff]
    %v1210 = vld [vmem:[%s1143 + $0x210] sm:$0xff]
    %v1211 = vld [vmem:[%s1143 + $0x218] sm:$0xff]
    %v1212 = vld [vmem:[%s1143 + $0x220] sm:$0xff]
    %v1213 = vld [vmem:[%s1143 + $0x228] sm:$0xff]
    %v1214 = vld [vmem:[%s1143 + $0x230] sm:$0xff]
    %v1215 = vld [vmem:[%s1143 + $0x238] sm:$0xff]
    %v1216 = vld [vmem:[%s1143 + $0x240] sm:$0xff]
    %v1217 = vld [vmem:[%s1143 + $0x248] sm:$0xff]
    %v1218 = vld [vmem:[%s1143 + $0x250] sm:$0xff]
    %v1219 = vld [vmem:[%s1143 + $0x258] sm:$0xff]
    %v1220 = vld [vmem:[%s1143 + $0x260] sm:$0xff]
    %v1221 = vld [vmem:[%s1143 + $0x268] sm:$0xff]
    %v1222 = vld [vmem:[%s1143 + $0x270] sm:$0xff]
    %v1223 = vld [vmem:[%s1143 + $0x278] sm:$0xff]
    %v1224 = vld [vmem:[%s1143 + $0x280] sm:$0xff]
    %v1225 = vld [vmem:[%s1143 + $0x288] sm:$0xff]
    %v1226 = vld [vmem:[%s1143 + $0x290] sm:$0xff]
    %v1227 = vld [vmem:[%s1143 + $0x298] sm:$0xff]
    %v1228 = vld [vmem:[%s1143 + $0x2a0] sm:$0xff]
    %v1229 = vld [vmem:[%s1143 + $0x2a8] sm:$0xff]
    %v1230 = vld [vmem:[%s1143 + $0x2b0] sm:$0xff]
    %v1231 = vld [vmem:[%s1143 + $0x2b8] sm:$0xff]
    %v1232 = vld [vmem:[%s1143 + $0x2c0] sm:$0xff]
    %v1233 = vld [vmem:[%s1143 + $0x2c8] sm:$0xff]
    %v1234 = vld [vmem:[%s1143 + $0x2d0] sm:$0xff]
    %v1235 = vld [vmem:[%s1143 + $0x2d8] sm:$0xff]
    %v1236 = vld [vmem:[%s1143 + $0x2e0] sm:$0xff]
    %v1237 = vld [vmem:[%s1143 + $0x2e8] sm:$0xff]
    %v1238 = vld [vmem:[%s1143 + $0x2f0] sm:$0xff]
    %v1239 = vld [vmem:[%s1143 + $0x2f8] sm:$0xff]
    %v1240 = vld [vmem:[%s1143 + $0x300] sm:$0xff]
    %v1241 = vld [vmem:[%s1143 + $0x308] sm:$0xff]
    %v1242 = vld [vmem:[%s1143 + $0x310] sm:$0xff]
    %v1243 = vld [vmem:[%s1143 + $0x318] sm:$0xff]
    %v1244 = vld [vmem:[%s1143 + $0x320] sm:$0xff]
    %v1245 = vld [vmem:[%s1143 + $0x328] sm:$0xff]
    %v1246 = vld [vmem:[%s1143 + $0x330] sm:$0xff]
    %v1247 = vld [vmem:[%s1143 + $0x338] sm:$0xff]
    %v1248 = vld [vmem:[%s1143 + $0x340] sm:$0xff]
    %v1249 = vld [vmem:[%s1143 + $0x348] sm:$0xff]
    %v1250 = vld [vmem:[%s1143 + $0x350] sm:$0xff]
    %v1251 = vld [vmem:[%s1143 + $0x358] sm:$0xff]
    %v1252 = vld [vmem:[%s1143 + $0x360] sm:$0xff]
    %v1253 = vld [vmem:[%s1143 + $0x368] sm:$0xff]
    %v1254 = vld [vmem:[%s1143 + $0x370] sm:$0xff]
    %v1255 = vld [vmem:[%s1143 + $0x378] sm:$0xff]
    %v1256 = vld [vmem:[%s1143 + $0x380] sm:$0xff]
    %v1257 = vld [vmem:[%s1143 + $0x388] sm:$0xff]
    %v1258 = vld [vmem:[%s1143 + $0x390] sm:$0xff]
    %v1259 = vld [vmem:[%s1143 + $0x398] sm:$0xff]
    %v1260 = vld [vmem:[%s1143 + $0x3a0] sm:$0xff]
    %v1261 = vld [vmem:[%s1143 + $0x3a8] sm:$0xff]
    %v1262 = vld [vmem:[%s1143 + $0x3b0] sm:$0xff]
    %v1263 = vld [vmem:[%s1143 + $0x3b8] sm:$0xff]
    %v1264 = vld [vmem:[%s1143 + $0x3c0] sm:$0xff]
    %v1265 = vld [vmem:[%s1143 + $0x3c8] sm:$0xff]
    %v1266 = vld [vmem:[%s1143 + $0x3d0] sm:$0xff]
    %v1267 = vld [vmem:[%s1143 + $0x3d8] sm:$0xff]
    %v1268 = vld [vmem:[%s1143 + $0x3e0] sm:$0xff]
    %v1269 = vld [vmem:[%s1143 + $0x3e8] sm:$0xff]
    %v1270 = vld [vmem:[%s1143 + $0x3f0] sm:$0xff]
    %v1271 = vld [vmem:[%s1143 + $0x3f8] sm:$0xff]
    %1272 = vmatprep.subr.mxu0 %v1145
    %1273 = vmatpush1.msra.mxu0 %v1144
    %1274 = vmatprep.subr.mxu0 %v1149
    %1275 = vmatpush1.msra.mxu0 %v1148
    %1276 = vmatprep.subr.mxu0 %v1153
    %1277 = vmatpush1.msra.mxu0 %v1152
    %1278 = vmatprep.subr.mxu0 %v1157
    %1279 = vmatpush1.msra.mxu0 %v1156
    %1280 = vmatprep.subr.mxu0 %v1161
    %1281 = vmatpush1.msra.mxu0 %v1160
    %1282 = vmatprep.subr.mxu0 %v1165
    %1283 = vmatpush1.msra.mxu0 %v1164
    %1284 = vmatprep.subr.mxu0 %v1169
    %1285 = vmatpush1.msra.mxu0 %v1168
    %1286 = vmatprep.subr.mxu0 %v1173
    %1287 = vmatpush1.msra.mxu0 %v1172
    %1288 = vmatprep.subr.mxu0 %v1177
    %1289 = vmatpush1.msra.mxu0 %v1176
    %1290 = vmatprep.subr.mxu0 %v1181
    %1291 = vmatpush1.msra.mxu0 %v1180
    %1292 = vmatprep.subr.mxu0 %v1185
    %1293 = vmatpush1.msra.mxu0 %v1184
    %1294 = vmatprep.subr.mxu0 %v1189
    %1295 = vmatpush1.msra.mxu0 %v1188
    %1296 = vmatprep.subr.mxu0 %v1193
    %1297 = vmatpush1.msra.mxu0 %v1192
    %1298 = vmatprep.subr.mxu0 %v1197
    %1299 = vmatpush1.msra.mxu0 %v1196
    %1300 = vmatprep.subr.mxu0 %v1201
    %1301 = vmatpush1.msra.mxu0 %v1200
    %1302 = vmatprep.subr.mxu0 %v1205
    %1303 = vmatpush1.msra.mxu0 %v1204
    %1304 = vmatprep.subr.mxu0 %v1209
    %1305 = vmatpush1.msra.mxu0 %v1208
    %1306 = vmatprep.subr.mxu0 %v1213
    %1307 = vmatpush1.msra.mxu0 %v1212
    %1308 = vmatprep.subr.mxu0 %v1217
    %1309 = vmatpush1.msra.mxu0 %v1216
    %1310 = vmatprep.subr.mxu0 %v1221
    %1311 = vmatpush1.msra.mxu0 %v1220
    %1312 = vmatprep.subr.mxu0 %v1225
    %1313 = vmatpush1.msra.mxu0 %v1224
    %1314 = vmatprep.subr.mxu0 %v1229
    %1315 = vmatpush1.msra.mxu0 %v1228
    %1316 = vmatprep.subr.mxu0 %v1233
    %1317 = vmatpush1.msra.mxu0 %v1232
    %1318 = vmatprep.subr.mxu0 %v1237
    %1319 = vmatpush1.msra.mxu0 %v1236
    %1320 = vmatprep.subr.mxu0 %v1241
    %1321 = vmatpush1.msra.mxu0 %v1240
    %1322 = vmatprep.subr.mxu0 %v1245
    %1323 = vmatpush1.msra.mxu0 %v1244
    %1324 = vmatprep.subr.mxu0 %v1249
    %1325 = vmatpush1.msra.mxu0 %v1248
    %1326 = vmatprep.subr.mxu0 %v1253
    %1327 = vmatpush1.msra.mxu0 %v1252
    %1328 = vmatprep.subr.mxu0 %v1257
    %1329 = vmatpush1.msra.mxu0 %v1256
    %1330 = vmatprep.subr.mxu0 %v1261
    %1331 = vmatpush1.msra.mxu0 %v1260
    %1332 = vmatprep.subr.mxu0 %v1265
    %1333 = vmatpush1.msra.mxu0 %v1264
    %1334 = vmatprep.subr.mxu0 %v1269
    %1335 = vmatpush1.msra.mxu0 %v1268
    %1336 = vmatprep.mubr.f32.mxu0 %v1142
    %1337 = vmatmul.mubr.f32.gmra.mrb[0].mxu0 %v1141
    %v1338 = vpop.f32.mrb[0].mxu0
    %v1339 = vadd.f32 0.0, %v1338
    %v1340 = vpop.f32.mrb[0].mxu0
    %v1341 = vadd.f32 0.0, %v1340
    %1342 = vdwg.mxu0
    %1343 = vmatprep.subr.mxu0 %v1147
    %1344 = vmatpush1.msra.mxu0 %v1146
    %1345 = vmatprep.subr.mxu0 %v1151
    %1346 = vmatpush1.msra.mxu0 %v1150
    %1347 = vmatprep.subr.mxu0 %v1155
    %1348 = vmatpush1.msra.mxu0 %v1154
    %1349 = vmatprep.subr.mxu0 %v1159
    %1350 = vmatpush1.msra.mxu0 %v1158
    %1351 = vmatprep.subr.mxu0 %v1163
    %1352 = vmatpush1.msra.mxu0 %v1162
    %1353 = vmatprep.subr.mxu0 %v1167
    %1354 = vmatpush1.msra.mxu0 %v1166
    %1355 = vmatprep.subr.mxu0 %v1171
    %1356 = vmatpush1.msra.mxu0 %v1170
    %1357 = vmatprep.subr.mxu0 %v1175
    %1358 = vmatpush1.msra.mxu0 %v1174
    %1359 = vmatprep.subr.mxu0 %v1179
    %1360 = vmatpush1.msra.mxu0 %v1178
    %1361 = vmatprep.subr.mxu0 %v1183
    %1362 = vmatpush1.msra.mxu0 %v1182
    %1363 = vmatprep.subr.mxu0 %v1187
    %1364 = vmatpush1.msra.mxu0 %v1186
    %1365 = vmatprep.subr.mxu0 %v1191
    %1366 = vmatpush1.msra.mxu0 %v1190
    %1367 = vmatprep.subr.mxu0 %v1195
    %1368 = vmatpush1.msra.mxu0 %v1194
    %1369 = vmatprep.subr.mxu0 %v1199
    %1370 = vmatpush1.msra.mxu0 %v1198
    %1371 = vmatprep.subr.mxu0 %v1203
    %1372 = vmatpush1.msra.mxu0 %v1202
    %1373 = vmatprep.subr.mxu0 %v1207
    %1374 = vmatpush1.msra.mxu0 %v1206
    %1375 = vmatprep.subr.mxu0 %v1211
    %1376 = vmatpush1.msra.mxu0 %v1210
    %1377 = vmatprep.subr.mxu0 %v1215
    %1378 = vmatpush1.msra.mxu0 %v1214
    %1379 = vmatprep.subr.mxu0 %v1219
    %1380 = vmatpush1.msra.mxu0 %v1218
    %1381 = vmatprep.subr.mxu0 %v1223
    %1382 = vmatpush1.msra.mxu0 %v1222
    %1383 = vmatprep.subr.mxu0 %v1227
    %1384 = vmatpush1.msra.mxu0 %v1226
    %1385 = vmatprep.subr.mxu0 %v1231
    %1386 = vmatpush1.msra.mxu0 %v1230
    %1387 = vmatprep.subr.mxu0 %v1235
    %1388 = vmatpush1.msra.mxu0 %v1234
    %1389 = vmatprep.subr.mxu0 %v1239
    %1390 = vmatpush1.msra.mxu0 %v1238
    %1391 = vmatprep.subr.mxu0 %v1243
    %1392 = vmatpush1.msra.mxu0 %v1242
    %1393 = vmatprep.subr.mxu0 %v1247
    %1394 = vmatpush1.msra.mxu0 %v1246
    %1395 = vmatprep.subr.mxu0 %v1251
    %1396 = vmatpush1.msra.mxu0 %v1250
    %1397 = vmatprep.subr.mxu0 %v1255
    %1398 = vmatpush1.msra.mxu0 %v1254
    %1399 = vmatprep.subr.mxu0 %v1259
    %1400 = vmatpush1.msra.mxu0 %v1258
    %1401 = vmatprep.subr.mxu0 %v1263
    %1402 = vmatpush1.msra.mxu0 %v1262
    %1403 = vmatprep.subr.mxu0 %v1267
    %1404 = vmatpush1.msra.mxu0 %v1266
    %1405 = vmatprep.subr.mxu0 %v1271
    %1406 = vmatpush1.msra.mxu0 %v1270
    %1407 = vmatprep.mubr.f32.mxu0 %v1142
    %1408 = vmatmul.mubr.f32.gmra.mrb[0].mxu0 %v1141
    %v1409 = vpop.f32.mrb[0].mxu0
    %v1410 = vadd.f32 0.0, %v1409
    %v1411 = vpop.f32.mrb[0].mxu0
    %v1412 = vadd.f32 0.0, %v1411
    %1413 = vdwg.mxu0
    %1414 = vmatprep.subr.mxu0 %v1014
    %1415 = vmatpush1.msra.mxu0 %v1013
    %1416 = vmatprep.subr.mxu0 %v1018
    %1417 = vmatpush1.msra.mxu0 %v1017
    %1418 = vmatprep.subr.mxu0 %v1022
    %1419 = vmatpush1.msra.mxu0 %v1021
    %1420 = vmatprep.subr.mxu0 %v1026
    %1421 = vmatpush1.msra.mxu0 %v1025
    %1422 = vmatprep.subr.mxu0 %v1030
    %1423 = vmatpush1.msra.mxu0 %v1029
    %1424 = vmatprep.subr.mxu0 %v1034
    %1425 = vmatpush1.msra.mxu0 %v1033
    %1426 = vmatprep.subr.mxu0 %v1038
    %1427 = vmatpush1.msra.mxu0 %v1037
    %1428 = vmatprep.subr.mxu0 %v1042
    %1429 = vmatpush1.msra.mxu0 %v1041
    %1430 = vmatprep.subr.mxu0 %v1046
    %1431 = vmatpush1.msra.mxu0 %v1045
    %1432 = vmatprep.subr.mxu0 %v1050
    %1433 = vmatpush1.msra.mxu0 %v1049
    %1434 = vmatprep.subr.mxu0 %v1054
    %1435 = vmatpush1.msra.mxu0 %v1053
    %1436 = vmatprep.subr.mxu0 %v1058
    %1437 = vmatpush1.msra.mxu0 %v1057
    %1438 = vmatprep.subr.mxu0 %v1062
    %1439 = vmatpush1.msra.mxu0 %v1061
    %1440 = vmatprep.subr.mxu0 %v1066
    %1441 = vmatpush1.msra.mxu0 %v1065
    %1442 = vmatprep.subr.mxu0 %v1070
    %1443 = vmatpush1.msra.mxu0 %v1069
    %1444 = vmatprep.subr.mxu0 %v1074
    %1445 = vmatpush1.msra.mxu0 %v1073
    %1446 = vmatprep.subr.mxu0 %v1078
    %1447 = vmatpush1.msra.mxu0 %v1077
    %1448 = vmatprep.subr.mxu0 %v1082
    %1449 = vmatpush1.msra.mxu0 %v1081
    %1450 = vmatprep.subr.mxu0 %v1086
    %1451 = vmatpush1.msra.mxu0 %v1085
    %1452 = vmatprep.subr.mxu0 %v1090
    %1453 = vmatpush1.msra.mxu0 %v1089
    %1454 = vmatprep.subr.mxu0 %v1094
    %1455 = vmatpush1.msra.mxu0 %v1093
    %1456 = vmatprep.subr.mxu0 %v1098
    %1457 = vmatpush1.msra.mxu0 %v1097
    %1458 = vmatprep.subr.mxu0 %v1102
    %1459 = vmatpush1.msra.mxu0 %v1101
    %1460 = vmatprep.subr.mxu0 %v1106
    %1461 = vmatpush1.msra.mxu0 %v1105
    %1462 = vmatprep.subr.mxu0 %v1110
    %1463 = vmatpush1.msra.mxu0 %v1109
    %1464 = vmatprep.subr.mxu0 %v1114
    %1465 = vmatpush1.msra.mxu0 %v1113
    %1466 = vmatprep.subr.mxu0 %v1118
    %1467 = vmatpush1.msra.mxu0 %v1117
    %1468 = vmatprep.subr.mxu0 %v1122
    %1469 = vmatpush1.msra.mxu0 %v1121
    %1470 = vmatprep.subr.mxu0 %v1126
    %1471 = vmatpush1.msra.mxu0 %v1125
    %1472 = vmatprep.subr.mxu0 %v1130
    %1473 = vmatpush1.msra.mxu0 %v1129
    %1474 = vmatprep.subr.mxu0 %v1134
    %1475 = vmatpush1.msra.mxu0 %v1133
    %1476 = vmatprep.subr.mxu0 %v1138
    %1477 = vmatpush1.msra.mxu0 %v1137
    %1478 = vmatprep.mubr.f32.mxu0 %v1012
    %1479 = vmatmul.mubr.f32.gmra.mrb[0].mxu0 %v1011
    %v1480 = vpop.f32.mrb[0].mxu0
    %v1481 = vadd.f32 %v1339, %v1480
    %v1482 = vpop.f32.mrb[0].mxu0
    %v1483 = vadd.f32 %v1341, %v1482
    %1484 = vdwg.mxu0
    %1485 = vmatprep.subr.mxu0 %v1016
    %1486 = vmatpush1.msra.mxu0 %v1015
    %1487 = vmatprep.subr.mxu0 %v1020
    %1488 = vmatpush1.msra.mxu0 %v1019
    %1489 = vmatprep.subr.mxu0 %v1024
    %1490 = vmatpush1.msra.mxu0 %v1023
    %1491 = vmatprep.subr.mxu0 %v1028
    %1492 = vmatpush1.msra.mxu0 %v1027
    %1493 = vmatprep.subr.mxu0 %v1032
    %1494 = vmatpush1.msra.mxu0 %v1031
    %1495 = vmatprep.subr.mxu0 %v1036
    %1496 = vmatpush1.msra.mxu0 %v1035
    %1497 = vmatprep.subr.mxu0 %v1040
    %1498 = vmatpush1.msra.mxu0 %v1039
    %1499 = vmatprep.subr.mxu0 %v1044
    %1500 = vmatpush1.msra.mxu0 %v1043
    %1501 = vmatprep.subr.mxu0 %v1048
    %1502 = vmatpush1.msra.mxu0 %v1047
    %1503 = vmatprep.subr.mxu0 %v1052
    %1504 = vmatpush1.msra.mxu0 %v1051
    %1505 = vmatprep.subr.mxu0 %v1056
    %1506 = vmatpush1.msra.mxu0 %v1055
    %1507 = vmatprep.subr.mxu0 %v1060
    %1508 = vmatpush1.msra.mxu0 %v1059
    %1509 = vmatprep.subr.mxu0 %v1064
    %1510 = vmatpush1.msra.mxu0 %v1063
    %1511 = vmatprep.subr.mxu0 %v1068
    %1512 = vmatpush1.msra.mxu0 %v1067
    %1513 = vmatprep.subr.mxu0 %v1072
    %1514 = vmatpush1.msra.mxu0 %v1071
    %1515 = vmatprep.subr.mxu0 %v1076
    %1516 = vmatpush1.msra.mxu0 %v1075
    %1517 = vmatprep.subr.mxu0 %v1080
    %1518 = vmatpush1.msra.mxu0 %v1079
    %1519 = vmatprep.subr.mxu0 %v1084
    %1520 = vmatpush1.msra.mxu0 %v1083
    %1521 = vmatprep.subr.mxu0 %v1088
    %1522 = vmatpush1.msra.mxu0 %v1087
    %1523 = vmatprep.subr.mxu0 %v1092
    %1524 = vmatpush1.msra.mxu0 %v1091
    %1525 = vmatprep.subr.mxu0 %v1096
    %1526 = vmatpush1.msra.mxu0 %v1095
    %1527 = vmatprep.subr.mxu0 %v1100
    %1528 = vmatpush1.msra.mxu0 %v1099
    %1529 = vmatprep.subr.mxu0 %v1104
    %1530 = vmatpush1.msra.mxu0 %v1103
    %1531 = vmatprep.subr.mxu0 %v1108
    %1532 = vmatpush1.msra.mxu0 %v1107
    %1533 = vmatprep.subr.mxu0 %v1112
    %1534 = vmatpush1.msra.mxu0 %v1111
    %1535 = vmatprep.subr.mxu0 %v1116
    %1536 = vmatpush1.msra.mxu0 %v1115
    %1537 = vmatprep.subr.mxu0 %v1120
    %1538 = vmatpush1.msra.mxu0 %v1119
    %1539 = vmatprep.subr.mxu0 %v1124
    %1540 = vmatpush1.msra.mxu0 %v1123
    %1541 = vmatprep.subr.mxu0 %v1128
    %1542 = vmatpush1.msra.mxu0 %v1127
    %1543 = vmatprep.subr.mxu0 %v1132
    %1544 = vmatpush1.msra.mxu0 %v1131
    %1545 = vmatprep.subr.mxu0 %v1136
    %1546 = vmatpush1.msra.mxu0 %v1135
    %1547 = vmatprep.subr.mxu0 %v1140
    %1548 = vmatpush1.msra.mxu0 %v1139
    %1549 = vmatprep.mubr.f32.mxu0 %v1012
    %1550 = vmatmul.mubr.f32.gmra.mrb[0].mxu0 %v1011
    %v1551 = vpop.f32.mrb[0].mxu0
    %v1552 = vadd.f32 %v1410, %v1551
    %v1553 = vpop.f32.mrb[0].mxu0
    %v1554 = vadd.f32 %v1412, %v1553
    %1555 = vdwg.mxu0
    %v1556 = vld [vmem:[#allocation9] sm:$0xf]
    %v1558 = vlaneseq
    %v1559 = vshrl.u32 %v1558, 7
    %v1560 = vsub.s32 0, %v1559
    %v1561 = vrot.slane %v1556, %v1560
    %v1562 = vlaneseq
    %v1563 = vshrl.u32 %v1562, 7
    %v1564 = vsub.s32 1, %v1563
    %v1565 = vrot.slane %v1556, %v1564
    %v1566 = vlaneseq
    %v1567 = vshrl.u32 %v1566, 7
    %v1568 = vsub.s32 2, %v1567
    %v1569 = vrot.slane %v1556, %v1568
    %v1570 = vlaneseq
    %v1571 = vshrl.u32 %v1570, 7
    %v1572 = vsub.s32 3, %v1571
    %v1573 = vrot.slane %v1556, %v1572
    %v1578 = vadd.f32 %v1481, %v1561
    %v1579 = vadd.f32 %v1483, %v1565
    %v1580 = vadd.f32 %v1552, %v1569
    %v1581 = vadd.f32 %v1554, %v1573
    %v1582 = vmax.f32 %v1578, 0.0
    %v1583 = vmax.f32 %v1579, 0.0
    %v1584 = vmax.f32 %v1580, 0.0
    %v1585 = vmax.f32 %v1581, 0.0
    %1586 = vst [vmem:[#allocation3] sm:$0xff] %v1582
    %1587 = vst [vmem:[#allocation3 + $0x8] sm:$0xff] %v1583
    %1588 = vst [vmem:[#allocation3 + $0x10] sm:$0xff] %v1584
    %1589 = vst [vmem:[#allocation3 + $0x18] sm:$0xff] %v1585
    %v1590 = vld [vmem:[#allocation2 + $0x10] sm:$0xff]
    %v1591 = vld [vmem:[#allocation2 + $0x18] sm:$0xff]
    %v1592 = vld [vmem:[#allocation7] sm:$0xff]
    %v1593 = vld [vmem:[#allocation7 + $0x8] sm:$0xff]
    %v1594 = vld [vmem:[#allocation7 + $0x10] sm:$0xff]
    %v1595 = vld [vmem:[#allocation7 + $0x18] sm:$0xff]
    %v1596 = vld [vmem:[#allocation7 + $0x20] sm:$0xff]
    %v1597 = vld [vmem:[#allocation7 + $0x28] sm:$0xff]
    %v1598 = vld [vmem:[#allocation7 + $0x30] sm:$0xff]
    %v1599 = vld [vmem:[#allocation7 + $0x38] sm:$0xff]
    %v1600 = vld [vmem:[#allocation7 + $0x40] sm:$0xff]
    %v1601 = vld [vmem:[#allocation7 + $0x48] sm:$0xff]
    %v1602 = vld [vmem:[#allocation7 + $0x50] sm:$0xff]
    %v1603 = vld [vmem:[#allocation7 + $0x58] sm:$0xff]
    %v1604 = vld [vmem:[#allocation7 + $0x60] sm:$0xff]
    %v1605 = vld [vmem:[#allocation7 + $0x68] sm:$0xff]
    %v1606 = vld [vmem:[#allocation7 + $0x70] sm:$0xff]
    %v1607 = vld [vmem:[#allocation7 + $0x78] sm:$0xff]
    %v1608 = vld [vmem:[#allocation7 + $0x80] sm:$0xff]
    %v1609 = vld [vmem:[#allocation7 + $0x88] sm:$0xff]
    %v1610 = vld [vmem:[#allocation7 + $0x90] sm:$0xff]
    %v1611 = vld [vmem:[#allocation7 + $0x98] sm:$0xff]
    %v1612 = vld [vmem:[#allocation7 + $0xa0] sm:$0xff]
    %v1613 = vld [vmem:[#allocation7 + $0xa8] sm:$0xff]
    %v1614 = vld [vmem:[#allocation7 + $0xb0] sm:$0xff]
    %v1615 = vld [vmem:[#allocation7 + $0xb8] sm:$0xff]
    %v1616 = vld [vmem:[#allocation7 + $0xc0] sm:$0xff]
    %v1617 = vld [vmem:[#allocation7 + $0xc8] sm:$0xff]
    %v1618 = vld [vmem:[#allocation7 + $0xd0] sm:$0xff]
    %v1619 = vld [vmem:[#allocation7 + $0xd8] sm:$0xff]
    %v1620 = vld [vmem:[#allocation7 + $0xe0] sm:$0xff]
    %v1621 = vld [vmem:[#allocation7 + $0xe8] sm:$0xff]
    %v1622 = vld [vmem:[#allocation7 + $0xf0] sm:$0xff]
    %v1623 = vld [vmem:[#allocation7 + $0xf8] sm:$0xff]
    %v1624 = vld [vmem:[#allocation7 + $0x100] sm:$0xff]
    %v1625 = vld [vmem:[#allocation7 + $0x108] sm:$0xff]
    %v1626 = vld [vmem:[#allocation7 + $0x110] sm:$0xff]
    %v1627 = vld [vmem:[#allocation7 + $0x118] sm:$0xff]
    %v1628 = vld [vmem:[#allocation7 + $0x120] sm:$0xff]
    %v1629 = vld [vmem:[#allocation7 + $0x128] sm:$0xff]
    %v1630 = vld [vmem:[#allocation7 + $0x130] sm:$0xff]
    %v1631 = vld [vmem:[#allocation7 + $0x138] sm:$0xff]
    %v1632 = vld [vmem:[#allocation7 + $0x140] sm:$0xff]
    %v1633 = vld [vmem:[#allocation7 + $0x148] sm:$0xff]
    %v1634 = vld [vmem:[#allocation7 + $0x150] sm:$0xff]
    %v1635 = vld [vmem:[#allocation7 + $0x158] sm:$0xff]
    %v1636 = vld [vmem:[#allocation7 + $0x160] sm:$0xff]
    %v1637 = vld [vmem:[#allocation7 + $0x168] sm:$0xff]
    %v1638 = vld [vmem:[#allocation7 + $0x170] sm:$0xff]
    %v1639 = vld [vmem:[#allocation7 + $0x178] sm:$0xff]
    %v1640 = vld [vmem:[#allocation7 + $0x180] sm:$0xff]
    %v1641 = vld [vmem:[#allocation7 + $0x188] sm:$0xff]
    %v1642 = vld [vmem:[#allocation7 + $0x190] sm:$0xff]
    %v1643 = vld [vmem:[#allocation7 + $0x198] sm:$0xff]
    %v1644 = vld [vmem:[#allocation7 + $0x1a0] sm:$0xff]
    %v1645 = vld [vmem:[#allocation7 + $0x1a8] sm:$0xff]
    %v1646 = vld [vmem:[#allocation7 + $0x1b0] sm:$0xff]
    %v1647 = vld [vmem:[#allocation7 + $0x1b8] sm:$0xff]
    %v1648 = vld [vmem:[#allocation7 + $0x1c0] sm:$0xff]
    %v1649 = vld [vmem:[#allocation7 + $0x1c8] sm:$0xff]
    %v1650 = vld [vmem:[#allocation7 + $0x1d0] sm:$0xff]
    %v1651 = vld [vmem:[#allocation7 + $0x1d8] sm:$0xff]
    %v1652 = vld [vmem:[#allocation7 + $0x1e0] sm:$0xff]
    %v1653 = vld [vmem:[#allocation7 + $0x1e8] sm:$0xff]
    %v1654 = vld [vmem:[#allocation7 + $0x1f0] sm:$0xff]
    %v1655 = vld [vmem:[#allocation7 + $0x1f8] sm:$0xff]
    %v1656 = vld [vmem:[#allocation7 + $0x200] sm:$0xff]
    %v1657 = vld [vmem:[#allocation7 + $0x208] sm:$0xff]
    %v1658 = vld [vmem:[#allocation7 + $0x210] sm:$0xff]
    %v1659 = vld [vmem:[#allocation7 + $0x218] sm:$0xff]
    %v1660 = vld [vmem:[#allocation7 + $0x220] sm:$0xff]
    %v1661 = vld [vmem:[#allocation7 + $0x228] sm:$0xff]
    %v1662 = vld [vmem:[#allocation7 + $0x230] sm:$0xff]
    %v1663 = vld [vmem:[#allocation7 + $0x238] sm:$0xff]
    %v1664 = vld [vmem:[#allocation7 + $0x240] sm:$0xff]
    %v1665 = vld [vmem:[#allocation7 + $0x248] sm:$0xff]
    %v1666 = vld [vmem:[#allocation7 + $0x250] sm:$0xff]
    %v1667 = vld [vmem:[#allocation7 + $0x258] sm:$0xff]
    %v1668 = vld [vmem:[#allocation7 + $0x260] sm:$0xff]
    %v1669 = vld [vmem:[#allocation7 + $0x268] sm:$0xff]
    %v1670 = vld [vmem:[#allocation7 + $0x270] sm:$0xff]
    %v1671 = vld [vmem:[#allocation7 + $0x278] sm:$0xff]
    %v1672 = vld [vmem:[#allocation7 + $0x280] sm:$0xff]
    %v1673 = vld [vmem:[#allocation7 + $0x288] sm:$0xff]
    %v1674 = vld [vmem:[#allocation7 + $0x290] sm:$0xff]
    %v1675 = vld [vmem:[#allocation7 + $0x298] sm:$0xff]
    %v1676 = vld [vmem:[#allocation7 + $0x2a0] sm:$0xff]
    %v1677 = vld [vmem:[#allocation7 + $0x2a8] sm:$0xff]
    %v1678 = vld [vmem:[#allocation7 + $0x2b0] sm:$0xff]
    %v1679 = vld [vmem:[#allocation7 + $0x2b8] sm:$0xff]
    %v1680 = vld [vmem:[#allocation7 + $0x2c0] sm:$0xff]
    %v1681 = vld [vmem:[#allocation7 + $0x2c8] sm:$0xff]
    %v1682 = vld [vmem:[#allocation7 + $0x2d0] sm:$0xff]
    %v1683 = vld [vmem:[#allocation7 + $0x2d8] sm:$0xff]
    %v1684 = vld [vmem:[#allocation7 + $0x2e0] sm:$0xff]
    %v1685 = vld [vmem:[#allocation7 + $0x2e8] sm:$0xff]
    %v1686 = vld [vmem:[#allocation7 + $0x2f0] sm:$0xff]
    %v1687 = vld [vmem:[#allocation7 + $0x2f8] sm:$0xff]
    %v1688 = vld [vmem:[#allocation7 + $0x300] sm:$0xff]
    %v1689 = vld [vmem:[#allocation7 + $0x308] sm:$0xff]
    %v1690 = vld [vmem:[#allocation7 + $0x310] sm:$0xff]
    %v1691 = vld [vmem:[#allocation7 + $0x318] sm:$0xff]
    %v1692 = vld [vmem:[#allocation7 + $0x320] sm:$0xff]
    %v1693 = vld [vmem:[#allocation7 + $0x328] sm:$0xff]
    %v1694 = vld [vmem:[#allocation7 + $0x330] sm:$0xff]
    %v1695 = vld [vmem:[#allocation7 + $0x338] sm:$0xff]
    %v1696 = vld [vmem:[#allocation7 + $0x340] sm:$0xff]
    %v1697 = vld [vmem:[#allocation7 + $0x348] sm:$0xff]
    %v1698 = vld [vmem:[#allocation7 + $0x350] sm:$0xff]
    %v1699 = vld [vmem:[#allocation7 + $0x358] sm:$0xff]
    %v1700 = vld [vmem:[#allocation7 + $0x360] sm:$0xff]
    %v1701 = vld [vmem:[#allocation7 + $0x368] sm:$0xff]
    %v1702 = vld [vmem:[#allocation7 + $0x370] sm:$0xff]
    %v1703 = vld [vmem:[#allocation7 + $0x378] sm:$0xff]
    %v1704 = vld [vmem:[#allocation7 + $0x380] sm:$0xff]
    %v1705 = vld [vmem:[#allocation7 + $0x388] sm:$0xff]
    %v1706 = vld [vmem:[#allocation7 + $0x390] sm:$0xff]
    %v1707 = vld [vmem:[#allocation7 + $0x398] sm:$0xff]
    %v1708 = vld [vmem:[#allocation7 + $0x3a0] sm:$0xff]
    %v1709 = vld [vmem:[#allocation7 + $0x3a8] sm:$0xff]
    %v1710 = vld [vmem:[#allocation7 + $0x3b0] sm:$0xff]
    %v1711 = vld [vmem:[#allocation7 + $0x3b8] sm:$0xff]
    %v1712 = vld [vmem:[#allocation7 + $0x3c0] sm:$0xff]
    %v1713 = vld [vmem:[#allocation7 + $0x3c8] sm:$0xff]
    %v1714 = vld [vmem:[#allocation7 + $0x3d0] sm:$0xff]
    %v1715 = vld [vmem:[#allocation7 + $0x3d8] sm:$0xff]
    %v1716 = vld [vmem:[#allocation7 + $0x3e0] sm:$0xff]
    %v1717 = vld [vmem:[#allocation7 + $0x3e8] sm:$0xff]
    %v1718 = vld [vmem:[#allocation7 + $0x3f0] sm:$0xff]
    %v1719 = vld [vmem:[#allocation7 + $0x3f8] sm:$0xff]
    %v1720 = vld [vmem:[#allocation2 + $0x20] sm:$0xff]
    %v1721 = vld [vmem:[#allocation2 + $0x28] sm:$0xff]
    %v1722 = vld [vmem:[%s1143] sm:$0xff]
    %v1723 = vld [vmem:[%s1143 + $0x8] sm:$0xff]
    %v1724 = vld [vmem:[%s1143 + $0x10] sm:$0xff]
    %v1725 = vld [vmem:[%s1143 + $0x18] sm:$0xff]
    %v1726 = vld [vmem:[%s1143 + $0x20] sm:$0xff]
    %v1727 = vld [vmem:[%s1143 + $0x28] sm:$0xff]
    %v1728 = vld [vmem:[%s1143 + $0x30] sm:$0xff]
    %v1729 = vld [vmem:[%s1143 + $0x38] sm:$0xff]
    %v1730 = vld [vmem:[%s1143 + $0x40] sm:$0xff]
    %v1731 = vld [vmem:[%s1143 + $0x48] sm:$0xff]
    %v1732 = vld [vmem:[%s1143 + $0x50] sm:$0xff]
    %v1733 = vld [vmem:[%s1143 + $0x58] sm:$0xff]
    %v1734 = vld [vmem:[%s1143 + $0x60] sm:$0xff]
    %v1735 = vld [vmem:[%s1143 + $0x68] sm:$0xff]
    %v1736 = vld [vmem:[%s1143 + $0x70] sm:$0xff]
    %v1737 = vld [vmem:[%s1143 + $0x78] sm:$0xff]
    %v1738 = vld [vmem:[%s1143 + $0x80] sm:$0xff]
    %v1739 = vld [vmem:[%s1143 + $0x88] sm:$0xff]
    %v1740 = vld [vmem:[%s1143 + $0x90] sm:$0xff]
    %v1741 = vld [vmem:[%s1143 + $0x98] sm:$0xff]
    %v1742 = vld [vmem:[%s1143 + $0xa0] sm:$0xff]
    %v1743 = vld [vmem:[%s1143 + $0xa8] sm:$0xff]
    %v1744 = vld [vmem:[%s1143 + $0xb0] sm:$0xff]
    %v1745 = vld [vmem:[%s1143 + $0xb8] sm:$0xff]
    %v1746 = vld [vmem:[%s1143 + $0xc0] sm:$0xff]
    %v1747 = vld [vmem:[%s1143 + $0xc8] sm:$0xff]
    %v1748 = vld [vmem:[%s1143 + $0xd0] sm:$0xff]
    %v1749 = vld [vmem:[%s1143 + $0xd8] sm:$0xff]
    %v1750 = vld [vmem:[%s1143 + $0xe0] sm:$0xff]
    %v1751 = vld [vmem:[%s1143 + $0xe8] sm:$0xff]
    %v1752 = vld [vmem:[%s1143 + $0xf0] sm:$0xff]
    %v1753 = vld [vmem:[%s1143 + $0xf8] sm:$0xff]
    %v1754 = vld [vmem:[%s1143 + $0x100] sm:$0xff]
    %v1755 = vld [vmem:[%s1143 + $0x108] sm:$0xff]
    %v1756 = vld [vmem:[%s1143 + $0x110] sm:$0xff]
    %v1757 = vld [vmem:[%s1143 + $0x118] sm:$0xff]
    %v1758 = vld [vmem:[%s1143 + $0x120] sm:$0xff]
    %v1759 = vld [vmem:[%s1143 + $0x128] sm:$0xff]
    %v1760 = vld [vmem:[%s1143 + $0x130] sm:$0xff]
    %v1761 = vld [vmem:[%s1143 + $0x138] sm:$0xff]
    %v1762 = vld [vmem:[%s1143 + $0x140] sm:$0xff]
    %v1763 = vld [vmem:[%s1143 + $0x148] sm:$0xff]
    %v1764 = vld [vmem:[%s1143 + $0x150] sm:$0xff]
    %v1765 = vld [vmem:[%s1143 + $0x158] sm:$0xff]
    %v1766 = vld [vmem:[%s1143 + $0x160] sm:$0xff]
    %v1767 = vld [vmem:[%s1143 + $0x168] sm:$0xff]
    %v1768 = vld [vmem:[%s1143 + $0x170] sm:$0xff]
    %v1769 = vld [vmem:[%s1143 + $0x178] sm:$0xff]
    %v1770 = vld [vmem:[%s1143 + $0x180] sm:$0xff]
    %v1771 = vld [vmem:[%s1143 + $0x188] sm:$0xff]
    %v1772 = vld [vmem:[%s1143 + $0x190] sm:$0xff]
    %v1773 = vld [vmem:[%s1143 + $0x198] sm:$0xff]
    %v1774 = vld [vmem:[%s1143 + $0x1a0] sm:$0xff]
    %v1775 = vld [vmem:[%s1143 + $0x1a8] sm:$0xff]
    %v1776 = vld [vmem:[%s1143 + $0x1b0] sm:$0xff]
    %v1777 = vld [vmem:[%s1143 + $0x1b8] sm:$0xff]
    %v1778 = vld [vmem:[%s1143 + $0x1c0] sm:$0xff]
    %v1779 = vld [vmem:[%s1143 + $0x1c8] sm:$0xff]
    %v1780 = vld [vmem:[%s1143 + $0x1d0] sm:$0xff]
    %v1781 = vld [vmem:[%s1143 + $0x1d8] sm:$0xff]
    %v1782 = vld [vmem:[%s1143 + $0x1e0] sm:$0xff]
    %v1783 = vld [vmem:[%s1143 + $0x1e8] sm:$0xff]
    %v1784 = vld [vmem:[%s1143 + $0x1f0] sm:$0xff]
    %v1785 = vld [vmem:[%s1143 + $0x1f8] sm:$0xff]
    %v1786 = vld [vmem:[%s1143 + $0x200] sm:$0xff]
    %v1787 = vld [vmem:[%s1143 + $0x208] sm:$0xff]
    %v1788 = vld [vmem:[%s1143 + $0x210] sm:$0xff]
    %v1789 = vld [vmem:[%s1143 + $0x218] sm:$0xff]
    %v1790 = vld [vmem:[%s1143 + $0x220] sm:$0xff]
    %v1791 = vld [vmem:[%s1143 + $0x228] sm:$0xff]
    %v1792 = vld [vmem:[%s1143 + $0x230] sm:$0xff]
    %v1793 = vld [vmem:[%s1143 + $0x238] sm:$0xff]
    %v1794 = vld [vmem:[%s1143 + $0x240] sm:$0xff]
    %v1795 = vld [vmem:[%s1143 + $0x248] sm:$0xff]
    %v1796 = vld [vmem:[%s1143 + $0x250] sm:$0xff]
    %v1797 = vld [vmem:[%s1143 + $0x258] sm:$0xff]
    %v1798 = vld [vmem:[%s1143 + $0x260] sm:$0xff]
    %v1799 = vld [vmem:[%s1143 + $0x268] sm:$0xff]
    %v1800 = vld [vmem:[%s1143 + $0x270] sm:$0xff]
    %v1801 = vld [vmem:[%s1143 + $0x278] sm:$0xff]
    %v1802 = vld [vmem:[%s1143 + $0x280] sm:$0xff]
    %v1803 = vld [vmem:[%s1143 + $0x288] sm:$0xff]
    %v1804 = vld [vmem:[%s1143 + $0x290] sm:$0xff]
    %v1805 = vld [vmem:[%s1143 + $0x298] sm:$0xff]
    %v1806 = vld [vmem:[%s1143 + $0x2a0] sm:$0xff]
    %v1807 = vld [vmem:[%s1143 + $0x2a8] sm:$0xff]
    %v1808 = vld [vmem:[%s1143 + $0x2b0] sm:$0xff]
    %v1809 = vld [vmem:[%s1143 + $0x2b8] sm:$0xff]
    %v1810 = vld [vmem:[%s1143 + $0x2c0] sm:$0xff]
    %v1811 = vld [vmem:[%s1143 + $0x2c8] sm:$0xff]
    %v1812 = vld [vmem:[%s1143 + $0x2d0] sm:$0xff]
    %v1813 = vld [vmem:[%s1143 + $0x2d8] sm:$0xff]
    %v1814 = vld [vmem:[%s1143 + $0x2e0] sm:$0xff]
    %v1815 = vld [vmem:[%s1143 + $0x2e8] sm:$0xff]
    %v1816 = vld [vmem:[%s1143 + $0x2f0] sm:$0xff]
    %v1817 = vld [vmem:[%s1143 + $0x2f8] sm:$0xff]
    %v1818 = vld [vmem:[%s1143 + $0x300] sm:$0xff]
    %v1819 = vld [vmem:[%s1143 + $0x308] sm:$0xff]
    %v1820 = vld [vmem:[%s1143 + $0x310] sm:$0xff]
    %v1821 = vld [vmem:[%s1143 + $0x318] sm:$0xff]
    %v1822 = vld [vmem:[%s1143 + $0x320] sm:$0xff]
    %v1823 = vld [vmem:[%s1143 + $0x328] sm:$0xff]
    %v1824 = vld [vmem:[%s1143 + $0x330] sm:$0xff]
    %v1825 = vld [vmem:[%s1143 + $0x338] sm:$0xff]
    %v1826 = vld [vmem:[%s1143 + $0x340] sm:$0xff]
    %v1827 = vld [vmem:[%s1143 + $0x348] sm:$0xff]
    %v1828 = vld [vmem:[%s1143 + $0x350] sm:$0xff]
    %v1829 = vld [vmem:[%s1143 + $0x358] sm:$0xff]
    %v1830 = vld [vmem:[%s1143 + $0x360] sm:$0xff]
    %v1831 = vld [vmem:[%s1143 + $0x368] sm:$0xff]
    %v1832 = vld [vmem:[%s1143 + $0x370] sm:$0xff]
    %v1833 = vld [vmem:[%s1143 + $0x378] sm:$0xff]
    %v1834 = vld [vmem:[%s1143 + $0x380] sm:$0xff]
    %v1835 = vld [vmem:[%s1143 + $0x388] sm:$0xff]
    %v1836 = vld [vmem:[%s1143 + $0x390] sm:$0xff]
    %v1837 = vld [vmem:[%s1143 + $0x398] sm:$0xff]
    %v1838 = vld [vmem:[%s1143 + $0x3a0] sm:$0xff]
    %v1839 = vld [vmem:[%s1143 + $0x3a8] sm:$0xff]
    %v1840 = vld [vmem:[%s1143 + $0x3b0] sm:$0xff]
    %v1841 = vld [vmem:[%s1143 + $0x3b8] sm:$0xff]
    %v1842 = vld [vmem:[%s1143 + $0x3c0] sm:$0xff]
    %v1843 = vld [vmem:[%s1143 + $0x3c8] sm:$0xff]
    %v1844 = vld [vmem:[%s1143 + $0x3d0] sm:$0xff]
    %v1845 = vld [vmem:[%s1143 + $0x3d8] sm:$0xff]
    %v1846 = vld [vmem:[%s1143 + $0x3e0] sm:$0xff]
    %v1847 = vld [vmem:[%s1143 + $0x3e8] sm:$0xff]
    %v1848 = vld [vmem:[%s1143 + $0x3f0] sm:$0xff]
    %v1849 = vld [vmem:[%s1143 + $0x3f8] sm:$0xff]
    %1850 = vmatprep.subr.mxu0 %v1723
    %1851 = vmatpush1.msra.mxu0 %v1722
    %1852 = vmatprep.subr.mxu0 %v1727
    %1853 = vmatpush1.msra.mxu0 %v1726
    %1854 = vmatprep.subr.mxu0 %v1731
    %1855 = vmatpush1.msra.mxu0 %v1730
    %1856 = vmatprep.subr.mxu0 %v1735
    %1857 = vmatpush1.msra.mxu0 %v1734
    %1858 = vmatprep.subr.mxu0 %v1739
    %1859 = vmatpush1.msra.mxu0 %v1738
    %1860 = vmatprep.subr.mxu0 %v1743
    %1861 = vmatpush1.msra.mxu0 %v1742
    %1862 = vmatprep.subr.mxu0 %v1747
    %1863 = vmatpush1.msra.mxu0 %v1746
    %1864 = vmatprep.subr.mxu0 %v1751
    %1865 = vmatpush1.msra.mxu0 %v1750
    %1866 = vmatprep.subr.mxu0 %v1755
    %1867 = vmatpush1.msra.mxu0 %v1754
    %1868 = vmatprep.subr.mxu0 %v1759
    %1869 = vmatpush1.msra.mxu0 %v1758
    %1870 = vmatprep.subr.mxu0 %v1763
    %1871 = vmatpush1.msra.mxu0 %v1762
    %1872 = vmatprep.subr.mxu0 %v1767
    %1873 = vmatpush1.msra.mxu0 %v1766
    %1874 = vmatprep.subr.mxu0 %v1771
    %1875 = vmatpush1.msra.mxu0 %v1770
    %1876 = vmatprep.subr.mxu0 %v1775
    %1877 = vmatpush1.msra.mxu0 %v1774
    %1878 = vmatprep.subr.mxu0 %v1779
    %1879 = vmatpush1.msra.mxu0 %v1778
    %1880 = vmatprep.subr.mxu0 %v1783
    %1881 = vmatpush1.msra.mxu0 %v1782
    %1882 = vmatprep.subr.mxu0 %v1787
    %1883 = vmatpush1.msra.mxu0 %v1786
    %1884 = vmatprep.subr.mxu0 %v1791
    %1885 = vmatpush1.msra.mxu0 %v1790
    %1886 = vmatprep.subr.mxu0 %v1795
    %1887 = vmatpush1.msra.mxu0 %v1794
    %1888 = vmatprep.subr.mxu0 %v1799
    %1889 = vmatpush1.msra.mxu0 %v1798
    %1890 = vmatprep.subr.mxu0 %v1803
    %1891 = vmatpush1.msra.mxu0 %v1802
    %1892 = vmatprep.subr.mxu0 %v1807
    %1893 = vmatpush1.msra.mxu0 %v1806
    %1894 = vmatprep.subr.mxu0 %v1811
    %1895 = vmatpush1.msra.mxu0 %v1810
    %1896 = vmatprep.subr.mxu0 %v1815
    %1897 = vmatpush1.msra.mxu0 %v1814
    %1898 = vmatprep.subr.mxu0 %v1819
    %1899 = vmatpush1.msra.mxu0 %v1818
    %1900 = vmatprep.subr.mxu0 %v1823
    %1901 = vmatpush1.msra.mxu0 %v1822
    %1902 = vmatprep.subr.mxu0 %v1827
    %1903 = vmatpush1.msra.mxu0 %v1826
    %1904 = vmatprep.subr.mxu0 %v1831
    %1905 = vmatpush1.msra.mxu0 %v1830
    %1906 = vmatprep.subr.mxu0 %v1835
    %1907 = vmatpush1.msra.mxu0 %v1834
    %1908 = vmatprep.subr.mxu0 %v1839
    %1909 = vmatpush1.msra.mxu0 %v1838
    %1910 = vmatprep.subr.mxu0 %v1843
    %1911 = vmatpush1.msra.mxu0 %v1842
    %1912 = vmatprep.subr.mxu0 %v1847
    %1913 = vmatpush1.msra.mxu0 %v1846
    %1914 = vmatprep.mubr.f32.mxu0 %v1721
    %1915 = vmatmul.mubr.f32.gmra.mrb[0].mxu0 %v1720
    %v1916 = vpop.f32.mrb[0].mxu0
    %v1917 = vadd.f32 0.0, %v1916
    %v1918 = vpop.f32.mrb[0].mxu0
    %v1919 = vadd.f32 0.0, %v1918
    %1920 = vdwg.mxu0
    %1921 = vmatprep.subr.mxu0 %v1725
    %1922 = vmatpush1.msra.mxu0 %v1724
    %1923 = vmatprep.subr.mxu0 %v1729
    %1924 = vmatpush1.msra.mxu0 %v1728
    %1925 = vmatprep.subr.mxu0 %v1733
    %1926 = vmatpush1.msra.mxu0 %v1732
    %1927 = vmatprep.subr.mxu0 %v1737
    %1928 = vmatpush1.msra.mxu0 %v1736
    %1929 = vmatprep.subr.mxu0 %v1741
    %1930 = vmatpush1.msra.mxu0 %v1740
    %1931 = vmatprep.subr.mxu0 %v1745
    %1932 = vmatpush1.msra.mxu0 %v1744
    %1933 = vmatprep.subr.mxu0 %v1749
    %1934 = vmatpush1.msra.mxu0 %v1748
    %1935 = vmatprep.subr.mxu0 %v1753
    %1936 = vmatpush1.msra.mxu0 %v1752
    %1937 = vmatprep.subr.mxu0 %v1757
    %1938 = vmatpush1.msra.mxu0 %v1756
    %1939 = vmatprep.subr.mxu0 %v1761
    %1940 = vmatpush1.msra.mxu0 %v1760
    %1941 = vmatprep.subr.mxu0 %v1765
    %1942 = vmatpush1.msra.mxu0 %v1764
    %1943 = vmatprep.subr.mxu0 %v1769
    %1944 = vmatpush1.msra.mxu0 %v1768
    %1945 = vmatprep.subr.mxu0 %v1773
    %1946 = vmatpush1.msra.mxu0 %v1772
    %1947 = vmatprep.subr.mxu0 %v1777
    %1948 = vmatpush1.msra.mxu0 %v1776
    %1949 = vmatprep.subr.mxu0 %v1781
    %1950 = vmatpush1.msra.mxu0 %v1780
    %1951 = vmatprep.subr.mxu0 %v1785
    %1952 = vmatpush1.msra.mxu0 %v1784
    %1953 = vmatprep.subr.mxu0 %v1789
    %1954 = vmatpush1.msra.mxu0 %v1788
    %1955 = vmatprep.subr.mxu0 %v1793
    %1956 = vmatpush1.msra.mxu0 %v1792
    %1957 = vmatprep.subr.mxu0 %v1797
    %1958 = vmatpush1.msra.mxu0 %v1796
    %1959 = vmatprep.subr.mxu0 %v1801
    %1960 = vmatpush1.msra.mxu0 %v1800
    %1961 = vmatprep.subr.mxu0 %v1805
    %1962 = vmatpush1.msra.mxu0 %v1804
    %1963 = vmatprep.subr.mxu0 %v1809
    %1964 = vmatpush1.msra.mxu0 %v1808
    %1965 = vmatprep.subr.mxu0 %v1813
    %1966 = vmatpush1.msra.mxu0 %v1812
    %1967 = vmatprep.subr.mxu0 %v1817
    %1968 = vmatpush1.msra.mxu0 %v1816
    %1969 = vmatprep.subr.mxu0 %v1821
    %1970 = vmatpush1.msra.mxu0 %v1820
    %1971 = vmatprep.subr.mxu0 %v1825
    %1972 = vmatpush1.msra.mxu0 %v1824
    %1973 = vmatprep.subr.mxu0 %v1829
    %1974 = vmatpush1.msra.mxu0 %v1828
    %1975 = vmatprep.subr.mxu0 %v1833
    %1976 = vmatpush1.msra.mxu0 %v1832
    %1977 = vmatprep.subr.mxu0 %v1837
    %1978 = vmatpush1.msra.mxu0 %v1836
    %1979 = vmatprep.subr.mxu0 %v1841
    %1980 = vmatpush1.msra.mxu0 %v1840
    %1981 = vmatprep.subr.mxu0 %v1845
    %1982 = vmatpush1.msra.mxu0 %v1844
    %1983 = vmatprep.subr.mxu0 %v1849
    %1984 = vmatpush1.msra.mxu0 %v1848
    %1985 = vmatprep.mubr.f32.mxu0 %v1721
    %1986 = vmatmul.mubr.f32.gmra.mrb[0].mxu0 %v1720
    %v1987 = vpop.f32.mrb[0].mxu0
    %v1988 = vadd.f32 0.0, %v1987
    %v1989 = vpop.f32.mrb[0].mxu0
    %v1990 = vadd.f32 0.0, %v1989
    %1991 = vdwg.mxu0
    %1992 = vmatprep.subr.mxu0 %v1593
    %1993 = vmatpush1.msra.mxu0 %v1592
    %1994 = vmatprep.subr.mxu0 %v1597
    %1995 = vmatpush1.msra.mxu0 %v1596
    %1996 = vmatprep.subr.mxu0 %v1601
    %1997 = vmatpush1.msra.mxu0 %v1600
    %1998 = vmatprep.subr.mxu0 %v1605
    %1999 = vmatpush1.msra.mxu0 %v1604
    %2000 = vmatprep.subr.mxu0 %v1609
    %2001 = vmatpush1.msra.mxu0 %v1608
    %2002 = vmatprep.subr.mxu0 %v1613
    %2003 = vmatpush1.msra.mxu0 %v1612
    %2004 = vmatprep.subr.mxu0 %v1617
    %2005 = vmatpush1.msra.mxu0 %v1616
    %2006 = vmatprep.subr.mxu0 %v1621
    %2007 = vmatpush1.msra.mxu0 %v1620
    %2008 = vmatprep.subr.mxu0 %v1625
    %2009 = vmatpush1.msra.mxu0 %v1624
    %2010 = vmatprep.subr.mxu0 %v1629
    %2011 = vmatpush1.msra.mxu0 %v1628
    %2012 = vmatprep.subr.mxu0 %v1633
    %2013 = vmatpush1.msra.mxu0 %v1632
    %2014 = vmatprep.subr.mxu0 %v1637
    %2015 = vmatpush1.msra.mxu0 %v1636
    %2016 = vmatprep.subr.mxu0 %v1641
    %2017 = vmatpush1.msra.mxu0 %v1640
    %2018 = vmatprep.subr.mxu0 %v1645
    %2019 = vmatpush1.msra.mxu0 %v1644
    %2020 = vmatprep.subr.mxu0 %v1649
    %2021 = vmatpush1.msra.mxu0 %v1648
    %2022 = vmatprep.subr.mxu0 %v1653
    %2023 = vmatpush1.msra.mxu0 %v1652
    %2024 = vmatprep.subr.mxu0 %v1657
    %2025 = vmatpush1.msra.mxu0 %v1656
    %2026 = vmatprep.subr.mxu0 %v1661
    %2027 = vmatpush1.msra.mxu0 %v1660
    %2028 = vmatprep.subr.mxu0 %v1665
    %2029 = vmatpush1.msra.mxu0 %v1664
    %2030 = vmatprep.subr.mxu0 %v1669
    %2031 = vmatpush1.msra.mxu0 %v1668
    %2032 = vmatprep.subr.mxu0 %v1673
    %2033 = vmatpush1.msra.mxu0 %v1672
    %2034 = vmatprep.subr.mxu0 %v1677
    %2035 = vmatpush1.msra.mxu0 %v1676
    %2036 = vmatprep.subr.mxu0 %v1681
    %2037 = vmatpush1.msra.mxu0 %v1680
    %2038 = vmatprep.subr.mxu0 %v1685
    %2039 = vmatpush1.msra.mxu0 %v1684
    %2040 = vmatprep.subr.mxu0 %v1689
    %2041 = vmatpush1.msra.mxu0 %v1688
    %2042 = vmatprep.subr.mxu0 %v1693
    %2043 = vmatpush1.msra.mxu0 %v1692
    %2044 = vmatprep.subr.mxu0 %v1697
    %2045 = vmatpush1.msra.mxu0 %v1696
    %2046 = vmatprep.subr.mxu0 %v1701
    %2047 = vmatpush1.msra.mxu0 %v1700
    %2048 = vmatprep.subr.mxu0 %v1705
    %2049 = vmatpush1.msra.mxu0 %v1704
    %2050 = vmatprep.subr.mxu0 %v1709
    %2051 = vmatpush1.msra.mxu0 %v1708
    %2052 = vmatprep.subr.mxu0 %v1713
    %2053 = vmatpush1.msra.mxu0 %v1712
    %2054 = vmatprep.subr.mxu0 %v1717
    %2055 = vmatpush1.msra.mxu0 %v1716
    %2056 = vmatprep.mubr.f32.mxu0 %v1591
    %2057 = vmatmul.mubr.f32.gmra.mrb[0].mxu0 %v1590
    %v2058 = vpop.f32.mrb[0].mxu0
    %v2059 = vadd.f32 %v1917, %v2058
    %v2060 = vpop.f32.mrb[0].mxu0
    %v2061 = vadd.f32 %v1919, %v2060
    %2062 = vdwg.mxu0
    %2063 = vmatprep.subr.mxu0 %v1595
    %2064 = vmatpush1.msra.mxu0 %v1594
    %2065 = vmatprep.subr.mxu0 %v1599
    %2066 = vmatpush1.msra.mxu0 %v1598
    %2067 = vmatprep.subr.mxu0 %v1603
    %2068 = vmatpush1.msra.mxu0 %v1602
    %2069 = vmatprep.subr.mxu0 %v1607
    %2070 = vmatpush1.msra.mxu0 %v1606
    %2071 = vmatprep.subr.mxu0 %v1611
    %2072 = vmatpush1.msra.mxu0 %v1610
    %2073 = vmatprep.subr.mxu0 %v1615
    %2074 = vmatpush1.msra.mxu0 %v1614
    %2075 = vmatprep.subr.mxu0 %v1619
    %2076 = vmatpush1.msra.mxu0 %v1618
    %2077 = vmatprep.subr.mxu0 %v1623
    %2078 = vmatpush1.msra.mxu0 %v1622
    %2079 = vmatprep.subr.mxu0 %v1627
    %2080 = vmatpush1.msra.mxu0 %v1626
    %2081 = vmatprep.subr.mxu0 %v1631
    %2082 = vmatpush1.msra.mxu0 %v1630
    %2083 = vmatprep.subr.mxu0 %v1635
    %2084 = vmatpush1.msra.mxu0 %v1634
    %2085 = vmatprep.subr.mxu0 %v1639
    %2086 = vmatpush1.msra.mxu0 %v1638
    %2087 = vmatprep.subr.mxu0 %v1643
    %2088 = vmatpush1.msra.mxu0 %v1642
    %2089 = vmatprep.subr.mxu0 %v1647
    %2090 = vmatpush1.msra.mxu0 %v1646
    %2091 = vmatprep.subr.mxu0 %v1651
    %2092 = vmatpush1.msra.mxu0 %v1650
    %2093 = vmatprep.subr.mxu0 %v1655
    %2094 = vmatpush1.msra.mxu0 %v1654
    %2095 = vmatprep.subr.mxu0 %v1659
    %2096 = vmatpush1.msra.mxu0 %v1658
    %2097 = vmatprep.subr.mxu0 %v1663
    %2098 = vmatpush1.msra.mxu0 %v1662
    %2099 = vmatprep.subr.mxu0 %v1667
    %2100 = vmatpush1.msra.mxu0 %v1666
    %2101 = vmatprep.subr.mxu0 %v1671
    %2102 = vmatpush1.msra.mxu0 %v1670
    %2103 = vmatprep.subr.mxu0 %v1675
    %2104 = vmatpush1.msra.mxu0 %v1674
    %2105 = vmatprep.subr.mxu0 %v1679
    %2106 = vmatpush1.msra.mxu0 %v1678
    %2107 = vmatprep.subr.mxu0 %v1683
    %2108 = vmatpush1.msra.mxu0 %v1682
    %2109 = vmatprep.subr.mxu0 %v1687
    %2110 = vmatpush1.msra.mxu0 %v1686
    %2111 = vmatprep.subr.mxu0 %v1691
    %2112 = vmatpush1.msra.mxu0 %v1690
    %2113 = vmatprep.subr.mxu0 %v1695
    %2114 = vmatpush1.msra.mxu0 %v1694
    %2115 = vmatprep.subr.mxu0 %v1699
    %2116 = vmatpush1.msra.mxu0 %v1698
    %2117 = vmatprep.subr.mxu0 %v1703
    %2118 = vmatpush1.msra.mxu0 %v1702
    %2119 = vmatprep.subr.mxu0 %v1707
    %2120 = vmatpush1.msra.mxu0 %v1706
    %2121 = vmatprep.subr.mxu0 %v1711
    %2122 = vmatpush1.msra.mxu0 %v1710
    %2123 = vmatprep.subr.mxu0 %v1715
    %2124 = vmatpush1.msra.mxu0 %v1714
    %2125 = vmatprep.subr.mxu0 %v1719
    %2126 = vmatpush1.msra.mxu0 %v1718
    %2127 = vmatprep.mubr.f32.mxu0 %v1591
    %2128 = vmatmul.mubr.f32.gmra.mrb[0].mxu0 %v1590
    %v2129 = vpop.f32.mrb[0].mxu0
    %v2130 = vadd.f32 %v1988, %v2129
    %v2131 = vpop.f32.mrb[0].mxu0
    %v2132 = vadd.f32 %v1990, %v2131
    %2133 = vdwg.mxu0
    %v2134 = vld [vmem:[#allocation9] sm:$0xf]
    %v2136 = vlaneseq
    %v2137 = vshrl.u32 %v2136, 7
    %v2138 = vsub.s32 0, %v2137
    %v2139 = vrot.slane %v2134, %v2138
    %v2140 = vlaneseq
    %v2141 = vshrl.u32 %v2140, 7
    %v2142 = vsub.s32 1, %v2141
    %v2143 = vrot.slane %v2134, %v2142
    %v2144 = vlaneseq
    %v2145 = vshrl.u32 %v2144, 7
    %v2146 = vsub.s32 2, %v2145
    %v2147 = vrot.slane %v2134, %v2146
    %v2148 = vlaneseq
    %v2149 = vshrl.u32 %v2148, 7
    %v2150 = vsub.s32 3, %v2149
    %v2151 = vrot.slane %v2134, %v2150
    %v2156 = vadd.f32 %v2059, %v2139
    %v2157 = vadd.f32 %v2061, %v2143
    %v2158 = vadd.f32 %v2130, %v2147
    %v2159 = vadd.f32 %v2132, %v2151
    %v2160 = vmax.f32 %v2156, 0.0
    %v2161 = vmax.f32 %v2157, 0.0
    %v2162 = vmax.f32 %v2158, 0.0
    %v2163 = vmax.f32 %v2159, 0.0
    %2164 = vst [vmem:[#allocation3 + $0x20] sm:$0xff] %v2160
    %2165 = vst [vmem:[#allocation3 + $0x28] sm:$0xff] %v2161
    %2166 = vst [vmem:[#allocation3 + $0x30] sm:$0xff] %v2162
    %2167 = vst [vmem:[#allocation3 + $0x38] sm:$0xff] %v2163
    %v2168 = vld [vmem:[#allocation2 + $0x20] sm:$0xff]
    %v2169 = vld [vmem:[#allocation2 + $0x28] sm:$0xff]
    %v2170 = vld [vmem:[#allocation7] sm:$0xff]
    %v2171 = vld [vmem:[#allocation7 + $0x8] sm:$0xff]
    %v2172 = vld [vmem:[#allocation7 + $0x10] sm:$0xff]
    %v2173 = vld [vmem:[#allocation7 + $0x18] sm:$0xff]
    %v2174 = vld [vmem:[#allocation7 + $0x20] sm:$0xff]
    %v2175 = vld [vmem:[#allocation7 + $0x28] sm:$0xff]
    %v2176 = vld [vmem:[#allocation7 + $0x30] sm:$0xff]
    %v2177 = vld [vmem:[#allocation7 + $0x38] sm:$0xff]
    %v2178 = vld [vmem:[#allocation7 + $0x40] sm:$0xff]
    %v2179 = vld [vmem:[#allocation7 + $0x48] sm:$0xff]
    %v2180 = vld [vmem:[#allocation7 + $0x50] sm:$0xff]
    %v2181 = vld [vmem:[#allocation7 + $0x58] sm:$0xff]
    %v2182 = vld [vmem:[#allocation7 + $0x60] sm:$0xff]
    %v2183 = vld [vmem:[#allocation7 + $0x68] sm:$0xff]
    %v2184 = vld [vmem:[#allocation7 + $0x70] sm:$0xff]
    %v2185 = vld [vmem:[#allocation7 + $0x78] sm:$0xff]
    %v2186 = vld [vmem:[#allocation7 + $0x80] sm:$0xff]
    %v2187 = vld [vmem:[#allocation7 + $0x88] sm:$0xff]
    %v2188 = vld [vmem:[#allocation7 + $0x90] sm:$0xff]
    %v2189 = vld [vmem:[#allocation7 + $0x98] sm:$0xff]
    %v2190 = vld [vmem:[#allocation7 + $0xa0] sm:$0xff]
    %v2191 = vld [vmem:[#allocation7 + $0xa8] sm:$0xff]
    %v2192 = vld [vmem:[#allocation7 + $0xb0] sm:$0xff]
    %v2193 = vld [vmem:[#allocation7 + $0xb8] sm:$0xff]
    %v2194 = vld [vmem:[#allocation7 + $0xc0] sm:$0xff]
    %v2195 = vld [vmem:[#allocation7 + $0xc8] sm:$0xff]
    %v2196 = vld [vmem:[#allocation7 + $0xd0] sm:$0xff]
    %v2197 = vld [vmem:[#allocation7 + $0xd8] sm:$0xff]
    %v2198 = vld [vmem:[#allocation7 + $0xe0] sm:$0xff]
    %v2199 = vld [vmem:[#allocation7 + $0xe8] sm:$0xff]
    %v2200 = vld [vmem:[#allocation7 + $0xf0] sm:$0xff]
    %v2201 = vld [vmem:[#allocation7 + $0xf8] sm:$0xff]
    %v2202 = vld [vmem:[#allocation7 + $0x100] sm:$0xff]
    %v2203 = vld [vmem:[#allocation7 + $0x108] sm:$0xff]
    %v2204 = vld [vmem:[#allocation7 + $0x110] sm:$0xff]
    %v2205 = vld [vmem:[#allocation7 + $0x118] sm:$0xff]
    %v2206 = vld [vmem:[#allocation7 + $0x120] sm:$0xff]
    %v2207 = vld [vmem:[#allocation7 + $0x128] sm:$0xff]
    %v2208 = vld [vmem:[#allocation7 + $0x130] sm:$0xff]
    %v2209 = vld [vmem:[#allocation7 + $0x138] sm:$0xff]
    %v2210 = vld [vmem:[#allocation7 + $0x140] sm:$0xff]
    %v2211 = vld [vmem:[#allocation7 + $0x148] sm:$0xff]
    %v2212 = vld [vmem:[#allocation7 + $0x150] sm:$0xff]
    %v2213 = vld [vmem:[#allocation7 + $0x158] sm:$0xff]
    %v2214 = vld [vmem:[#allocation7 + $0x160] sm:$0xff]
    %v2215 = vld [vmem:[#allocation7 + $0x168] sm:$0xff]
    %v2216 = vld [vmem:[#allocation7 + $0x170] sm:$0xff]
    %v2217 = vld [vmem:[#allocation7 + $0x178] sm:$0xff]
    %v2218 = vld [vmem:[#allocation7 + $0x180] sm:$0xff]
    %v2219 = vld [vmem:[#allocation7 + $0x188] sm:$0xff]
    %v2220 = vld [vmem:[#allocation7 + $0x190] sm:$0xff]
    %v2221 = vld [vmem:[#allocation7 + $0x198] sm:$0xff]
    %v2222 = vld [vmem:[#allocation7 + $0x1a0] sm:$0xff]
    %v2223 = vld [vmem:[#allocation7 + $0x1a8] sm:$0xff]
    %v2224 = vld [vmem:[#allocation7 + $0x1b0] sm:$0xff]
    %v2225 = vld [vmem:[#allocation7 + $0x1b8] sm:$0xff]
    %v2226 = vld [vmem:[#allocation7 + $0x1c0] sm:$0xff]
    %v2227 = vld [vmem:[#allocation7 + $0x1c8] sm:$0xff]
    %v2228 = vld [vmem:[#allocation7 + $0x1d0] sm:$0xff]
    %v2229 = vld [vmem:[#allocation7 + $0x1d8] sm:$0xff]
    %v2230 = vld [vmem:[#allocation7 + $0x1e0] sm:$0xff]
    %v2231 = vld [vmem:[#allocation7 + $0x1e8] sm:$0xff]
    %v2232 = vld [vmem:[#allocation7 + $0x1f0] sm:$0xff]
    %v2233 = vld [vmem:[#allocation7 + $0x1f8] sm:$0xff]
    %v2234 = vld [vmem:[#allocation7 + $0x200] sm:$0xff]
    %v2235 = vld [vmem:[#allocation7 + $0x208] sm:$0xff]
    %v2236 = vld [vmem:[#allocation7 + $0x210] sm:$0xff]
    %v2237 = vld [vmem:[#allocation7 + $0x218] sm:$0xff]
    %v2238 = vld [vmem:[#allocation7 + $0x220] sm:$0xff]
    %v2239 = vld [vmem:[#allocation7 + $0x228] sm:$0xff]
    %v2240 = vld [vmem:[#allocation7 + $0x230] sm:$0xff]
    %v2241 = vld [vmem:[#allocation7 + $0x238] sm:$0xff]
    %v2242 = vld [vmem:[#allocation7 + $0x240] sm:$0xff]
    %v2243 = vld [vmem:[#allocation7 + $0x248] sm:$0xff]
    %v2244 = vld [vmem:[#allocation7 + $0x250] sm:$0xff]
    %v2245 = vld [vmem:[#allocation7 + $0x258] sm:$0xff]
    %v2246 = vld [vmem:[#allocation7 + $0x260] sm:$0xff]
    %v2247 = vld [vmem:[#allocation7 + $0x268] sm:$0xff]
    %v2248 = vld [vmem:[#allocation7 + $0x270] sm:$0xff]
    %v2249 = vld [vmem:[#allocation7 + $0x278] sm:$0xff]
    %v2250 = vld [vmem:[#allocation7 + $0x280] sm:$0xff]
    %v2251 = vld [vmem:[#allocation7 + $0x288] sm:$0xff]
    %v2252 = vld [vmem:[#allocation7 + $0x290] sm:$0xff]
    %v2253 = vld [vmem:[#allocation7 + $0x298] sm:$0xff]
    %v2254 = vld [vmem:[#allocation7 + $0x2a0] sm:$0xff]
    %v2255 = vld [vmem:[#allocation7 + $0x2a8] sm:$0xff]
    %v2256 = vld [vmem:[#allocation7 + $0x2b0] sm:$0xff]
    %v2257 = vld [vmem:[#allocation7 + $0x2b8] sm:$0xff]
    %v2258 = vld [vmem:[#allocation7 + $0x2c0] sm:$0xff]
    %v2259 = vld [vmem:[#allocation7 + $0x2c8] sm:$0xff]
    %v2260 = vld [vmem:[#allocation7 + $0x2d0] sm:$0xff]
    %v2261 = vld [vmem:[#allocation7 + $0x2d8] sm:$0xff]
    %v2262 = vld [vmem:[#allocation7 + $0x2e0] sm:$0xff]
    %v2263 = vld [vmem:[#allocation7 + $0x2e8] sm:$0xff]
    %v2264 = vld [vmem:[#allocation7 + $0x2f0] sm:$0xff]
    %v2265 = vld [vmem:[#allocation7 + $0x2f8] sm:$0xff]
    %v2266 = vld [vmem:[#allocation7 + $0x300] sm:$0xff]
    %v2267 = vld [vmem:[#allocation7 + $0x308] sm:$0xff]
    %v2268 = vld [vmem:[#allocation7 + $0x310] sm:$0xff]
    %v2269 = vld [vmem:[#allocation7 + $0x318] sm:$0xff]
    %v2270 = vld [vmem:[#allocation7 + $0x320] sm:$0xff]
    %v2271 = vld [vmem:[#allocation7 + $0x328] sm:$0xff]
    %v2272 = vld [vmem:[#allocation7 + $0x330] sm:$0xff]
    %v2273 = vld [vmem:[#allocation7 + $0x338] sm:$0xff]
    %v2274 = vld [vmem:[#allocation7 + $0x340] sm:$0xff]
    %v2275 = vld [vmem:[#allocation7 + $0x348] sm:$0xff]
    %v2276 = vld [vmem:[#allocation7 + $0x350] sm:$0xff]
    %v2277 = vld [vmem:[#allocation7 + $0x358] sm:$0xff]
    %v2278 = vld [vmem:[#allocation7 + $0x360] sm:$0xff]
    %v2279 = vld [vmem:[#allocation7 + $0x368] sm:$0xff]
    %v2280 = vld [vmem:[#allocation7 + $0x370] sm:$0xff]
    %v2281 = vld [vmem:[#allocation7 + $0x378] sm:$0xff]
    %v2282 = vld [vmem:[#allocation7 + $0x380] sm:$0xff]
    %v2283 = vld [vmem:[#allocation7 + $0x388] sm:$0xff]
    %v2284 = vld [vmem:[#allocation7 + $0x390] sm:$0xff]
    %v2285 = vld [vmem:[#allocation7 + $0x398] sm:$0xff]
    %v2286 = vld [vmem:[#allocation7 + $0x3a0] sm:$0xff]
    %v2287 = vld [vmem:[#allocation7 + $0x3a8] sm:$0xff]
    %v2288 = vld [vmem:[#allocation7 + $0x3b0] sm:$0xff]
    %v2289 = vld [vmem:[#allocation7 + $0x3b8] sm:$0xff]
    %v2290 = vld [vmem:[#allocation7 + $0x3c0] sm:$0xff]
    %v2291 = vld [vmem:[#allocation7 + $0x3c8] sm:$0xff]
    %v2292 = vld [vmem:[#allocation7 + $0x3d0] sm:$0xff]
    %v2293 = vld [vmem:[#allocation7 + $0x3d8] sm:$0xff]
    %v2294 = vld [vmem:[#allocation7 + $0x3e0] sm:$0xff]
    %v2295 = vld [vmem:[#allocation7 + $0x3e8] sm:$0xff]
    %v2296 = vld [vmem:[#allocation7 + $0x3f0] sm:$0xff]
    %v2297 = vld [vmem:[#allocation7 + $0x3f8] sm:$0xff]
    %v2298 = vld [vmem:[#allocation2 + $0x30] sm:$0xff]
    %v2299 = vld [vmem:[#allocation2 + $0x38] sm:$0xff]
    %v2300 = vld [vmem:[%s1143] sm:$0xff]
    %v2301 = vld [vmem:[%s1143 + $0x8] sm:$0xff]
    %v2302 = vld [vmem:[%s1143 + $0x10] sm:$0xff]
    %v2303 = vld [vmem:[%s1143 + $0x18] sm:$0xff]
    %v2304 = vld [vmem:[%s1143 + $0x20] sm:$0xff]
    %v2305 = vld [vmem:[%s1143 + $0x28] sm:$0xff]
    %v2306 = vld [vmem:[%s1143 + $0x30] sm:$0xff]
    %v2307 = vld [vmem:[%s1143 + $0x38] sm:$0xff]
    %v2308 = vld [vmem:[%s1143 + $0x40] sm:$0xff]
    %v2309 = vld [vmem:[%s1143 + $0x48] sm:$0xff]
    %v2310 = vld [vmem:[%s1143 + $0x50] sm:$0xff]
    %v2311 = vld [vmem:[%s1143 + $0x58] sm:$0xff]
    %v2312 = vld [vmem:[%s1143 + $0x60] sm:$0xff]
    %v2313 = vld [vmem:[%s1143 + $0x68] sm:$0xff]
    %v2314 = vld [vmem:[%s1143 + $0x70] sm:$0xff]
    %v2315 = vld [vmem:[%s1143 + $0x78] sm:$0xff]
    %v2316 = vld [vmem:[%s1143 + $0x80] sm:$0xff]
    %v2317 = vld [vmem:[%s1143 + $0x88] sm:$0xff]
    %v2318 = vld [vmem:[%s1143 + $0x90] sm:$0xff]
    %v2319 = vld [vmem:[%s1143 + $0x98] sm:$0xff]
    %v2320 = vld [vmem:[%s1143 + $0xa0] sm:$0xff]
    %v2321 = vld [vmem:[%s1143 + $0xa8] sm:$0xff]
    %v2322 = vld [vmem:[%s1143 + $0xb0] sm:$0xff]
    %v2323 = vld [vmem:[%s1143 + $0xb8] sm:$0xff]
    %v2324 = vld [vmem:[%s1143 + $0xc0] sm:$0xff]
    %v2325 = vld [vmem:[%s1143 + $0xc8] sm:$0xff]
    %v2326 = vld [vmem:[%s1143 + $0xd0] sm:$0xff]
    %v2327 = vld [vmem:[%s1143 + $0xd8] sm:$0xff]
    %v2328 = vld [vmem:[%s1143 + $0xe0] sm:$0xff]
    %v2329 = vld [vmem:[%s1143 + $0xe8] sm:$0xff]
    %v2330 = vld [vmem:[%s1143 + $0xf0] sm:$0xff]
    %v2331 = vld [vmem:[%s1143 + $0xf8] sm:$0xff]
    %v2332 = vld [vmem:[%s1143 + $0x100] sm:$0xff]
    %v2333 = vld [vmem:[%s1143 + $0x108] sm:$0xff]
    %v2334 = vld [vmem:[%s1143 + $0x110] sm:$0xff]
    %v2335 = vld [vmem:[%s1143 + $0x118] sm:$0xff]
    %v2336 = vld [vmem:[%s1143 + $0x120] sm:$0xff]
    %v2337 = vld [vmem:[%s1143 + $0x128] sm:$0xff]
    %v2338 = vld [vmem:[%s1143 + $0x130] sm:$0xff]
    %v2339 = vld [vmem:[%s1143 + $0x138] sm:$0xff]
    %v2340 = vld [vmem:[%s1143 + $0x140] sm:$0xff]
    %v2341 = vld [vmem:[%s1143 + $0x148] sm:$0xff]
    %v2342 = vld [vmem:[%s1143 + $0x150] sm:$0xff]
    %v2343 = vld [vmem:[%s1143 + $0x158] sm:$0xff]
    %v2344 = vld [vmem:[%s1143 + $0x160] sm:$0xff]
    %v2345 = vld [vmem:[%s1143 + $0x168] sm:$0xff]
    %v2346 = vld [vmem:[%s1143 + $0x170] sm:$0xff]
    %v2347 = vld [vmem:[%s1143 + $0x178] sm:$0xff]
    %v2348 = vld [vmem:[%s1143 + $0x180] sm:$0xff]
    %v2349 = vld [vmem:[%s1143 + $0x188] sm:$0xff]
    %v2350 = vld [vmem:[%s1143 + $0x190] sm:$0xff]
    %v2351 = vld [vmem:[%s1143 + $0x198] sm:$0xff]
    %v2352 = vld [vmem:[%s1143 + $0x1a0] sm:$0xff]
    %v2353 = vld [vmem:[%s1143 + $0x1a8] sm:$0xff]
    %v2354 = vld [vmem:[%s1143 + $0x1b0] sm:$0xff]
    %v2355 = vld [vmem:[%s1143 + $0x1b8] sm:$0xff]
    %v2356 = vld [vmem:[%s1143 + $0x1c0] sm:$0xff]
    %v2357 = vld [vmem:[%s1143 + $0x1c8] sm:$0xff]
    %v2358 = vld [vmem:[%s1143 + $0x1d0] sm:$0xff]
    %v2359 = vld [vmem:[%s1143 + $0x1d8] sm:$0xff]
    %v2360 = vld [vmem:[%s1143 + $0x1e0] sm:$0xff]
    %v2361 = vld [vmem:[%s1143 + $0x1e8] sm:$0xff]
    %v2362 = vld [vmem:[%s1143 + $0x1f0] sm:$0xff]
    %v2363 = vld [vmem:[%s1143 + $0x1f8] sm:$0xff]
    %v2364 = vld [vmem:[%s1143 + $0x200] sm:$0xff]
    %v2365 = vld [vmem:[%s1143 + $0x208] sm:$0xff]
    %v2366 = vld [vmem:[%s1143 + $0x210] sm:$0xff]
    %v2367 = vld [vmem:[%s1143 + $0x218] sm:$0xff]
    %v2368 = vld [vmem:[%s1143 + $0x220] sm:$0xff]
    %v2369 = vld [vmem:[%s1143 + $0x228] sm:$0xff]
    %v2370 = vld [vmem:[%s1143 + $0x230] sm:$0xff]
    %v2371 = vld [vmem:[%s1143 + $0x238] sm:$0xff]
    %v2372 = vld [vmem:[%s1143 + $0x240] sm:$0xff]
    %v2373 = vld [vmem:[%s1143 + $0x248] sm:$0xff]
    %v2374 = vld [vmem:[%s1143 + $0x250] sm:$0xff]
    %v2375 = vld [vmem:[%s1143 + $0x258] sm:$0xff]
    %v2376 = vld [vmem:[%s1143 + $0x260] sm:$0xff]
    %v2377 = vld [vmem:[%s1143 + $0x268] sm:$0xff]
    %v2378 = vld [vmem:[%s1143 + $0x270] sm:$0xff]
    %v2379 = vld [vmem:[%s1143 + $0x278] sm:$0xff]
    %v2380 = vld [vmem:[%s1143 + $0x280] sm:$0xff]
    %v2381 = vld [vmem:[%s1143 + $0x288] sm:$0xff]
    %v2382 = vld [vmem:[%s1143 + $0x290] sm:$0xff]
    %v2383 = vld [vmem:[%s1143 + $0x298] sm:$0xff]
    %v2384 = vld [vmem:[%s1143 + $0x2a0] sm:$0xff]
    %v2385 = vld [vmem:[%s1143 + $0x2a8] sm:$0xff]
    %v2386 = vld [vmem:[%s1143 + $0x2b0] sm:$0xff]
    %v2387 = vld [vmem:[%s1143 + $0x2b8] sm:$0xff]
    %v2388 = vld [vmem:[%s1143 + $0x2c0] sm:$0xff]
    %v2389 = vld [vmem:[%s1143 + $0x2c8] sm:$0xff]
    %v2390 = vld [vmem:[%s1143 + $0x2d0] sm:$0xff]
    %v2391 = vld [vmem:[%s1143 + $0x2d8] sm:$0xff]
    %v2392 = vld [vmem:[%s1143 + $0x2e0] sm:$0xff]
    %v2393 = vld [vmem:[%s1143 + $0x2e8] sm:$0xff]
    %v2394 = vld [vmem:[%s1143 + $0x2f0] sm:$0xff]
    %v2395 = vld [vmem:[%s1143 + $0x2f8] sm:$0xff]
    %v2396 = vld [vmem:[%s1143 + $0x300] sm:$0xff]
    %v2397 = vld [vmem:[%s1143 + $0x308] sm:$0xff]
    %v2398 = vld [vmem:[%s1143 + $0x310] sm:$0xff]
    %v2399 = vld [vmem:[%s1143 + $0x318] sm:$0xff]
    %v2400 = vld [vmem:[%s1143 + $0x320] sm:$0xff]
    %v2401 = vld [vmem:[%s1143 + $0x328] sm:$0xff]
    %v2402 = vld [vmem:[%s1143 + $0x330] sm:$0xff]
    %v2403 = vld [vmem:[%s1143 + $0x338] sm:$0xff]
    %v2404 = vld [vmem:[%s1143 + $0x340] sm:$0xff]
    %v2405 = vld [vmem:[%s1143 + $0x348] sm:$0xff]
    %v2406 = vld [vmem:[%s1143 + $0x350] sm:$0xff]
    %v2407 = vld [vmem:[%s1143 + $0x358] sm:$0xff]
    %v2408 = vld [vmem:[%s1143 + $0x360] sm:$0xff]
    %v2409 = vld [vmem:[%s1143 + $0x368] sm:$0xff]
    %v2410 = vld [vmem:[%s1143 + $0x370] sm:$0xff]
    %v2411 = vld [vmem:[%s1143 + $0x378] sm:$0xff]
    %v2412 = vld [vmem:[%s1143 + $0x380] sm:$0xff]
    %v2413 = vld [vmem:[%s1143 + $0x388] sm:$0xff]
    %v2414 = vld [vmem:[%s1143 + $0x390] sm:$0xff]
    %v2415 = vld [vmem:[%s1143 + $0x398] sm:$0xff]
    %v2416 = vld [vmem:[%s1143 + $0x3a0] sm:$0xff]
    %v2417 = vld [vmem:[%s1143 + $0x3a8] sm:$0xff]
    %v2418 = vld [vmem:[%s1143 + $0x3b0] sm:$0xff]
    %v2419 = vld [vmem:[%s1143 + $0x3b8] sm:$0xff]
    %v2420 = vld [vmem:[%s1143 + $0x3c0] sm:$0xff]
    %v2421 = vld [vmem:[%s1143 + $0x3c8] sm:$0xff]
    %v2422 = vld [vmem:[%s1143 + $0x3d0] sm:$0xff]
    %v2423 = vld [vmem:[%s1143 + $0x3d8] sm:$0xff]
    %v2424 = vld [vmem:[%s1143 + $0x3e0] sm:$0xff]
    %v2425 = vld [vmem:[%s1143 + $0x3e8] sm:$0xff]
    %v2426 = vld [vmem:[%s1143 + $0x3f0] sm:$0xff]
    %v2427 = vld [vmem:[%s1143 + $0x3f8] sm:$0xff]
    %2428 = vmatprep.subr.mxu0 %v2301
    %2429 = vmatpush1.msra.mxu0 %v2300
    %2430 = vmatprep.subr.mxu0 %v2305
    %2431 = vmatpush1.msra.mxu0 %v2304
    %2432 = vmatprep.subr.mxu0 %v2309
    %2433 = vmatpush1.msra.mxu0 %v2308
    %2434 = vmatprep.subr.mxu0 %v2313
    %2435 = vmatpush1.msra.mxu0 %v2312
    %2436 = vmatprep.subr.mxu0 %v2317
    %2437 = vmatpush1.msra.mxu0 %v2316
    %2438 = vmatprep.subr.mxu0 %v2321
    %2439 = vmatpush1.msra.mxu0 %v2320
    %2440 = vmatprep.subr.mxu0 %v2325
    %2441 = vmatpush1.msra.mxu0 %v2324
    %2442 = vmatprep.subr.mxu0 %v2329
    %2443 = vmatpush1.msra.mxu0 %v2328
    %2444 = vmatprep.subr.mxu0 %v2333
    %2445 = vmatpush1.msra.mxu0 %v2332
    %2446 = vmatprep.subr.mxu0 %v2337
    %2447 = vmatpush1.msra.mxu0 %v2336
    %2448 = vmatprep.subr.mxu0 %v2341
    %2449 = vmatpush1.msra.mxu0 %v2340
    %2450 = vmatprep.subr.mxu0 %v2345
    %2451 = vmatpush1.msra.mxu0 %v2344
    %2452 = vmatprep.subr.mxu0 %v2349
    %2453 = vmatpush1.msra.mxu0 %v2348
    %2454 = vmatprep.subr.mxu0 %v2353
    %2455 = vmatpush1.msra.mxu0 %v2352
    %2456 = vmatprep.subr.mxu0 %v2357
    %2457 = vmatpush1.msra.mxu0 %v2356
    %2458 = vmatprep.subr.mxu0 %v2361
    %2459 = vmatpush1.msra.mxu0 %v2360
    %2460 = vmatprep.subr.mxu0 %v2365
    %2461 = vmatpush1.msra.mxu0 %v2364
    %2462 = vmatprep.subr.mxu0 %v2369
    %2463 = vmatpush1.msra.mxu0 %v2368
    %2464 = vmatprep.subr.mxu0 %v2373
    %2465 = vmatpush1.msra.mxu0 %v2372
    %2466 = vmatprep.subr.mxu0 %v2377
    %2467 = vmatpush1.msra.mxu0 %v2376
    %2468 = vmatprep.subr.mxu0 %v2381
    %2469 = vmatpush1.msra.mxu0 %v2380
    %2470 = vmatprep.subr.mxu0 %v2385
    %2471 = vmatpush1.msra.mxu0 %v2384
    %2472 = vmatprep.subr.mxu0 %v2389
    %2473 = vmatpush1.msra.mxu0 %v2388
    %2474 = vmatprep.subr.mxu0 %v2393
    %2475 = vmatpush1.msra.mxu0 %v2392
    %2476 = vmatprep.subr.mxu0 %v2397
    %2477 = vmatpush1.msra.mxu0 %v2396
    %2478 = vmatprep.subr.mxu0 %v2401
    %2479 = vmatpush1.msra.mxu0 %v2400
    %2480 = vmatprep.subr.mxu0 %v2405
    %2481 = vmatpush1.msra.mxu0 %v2404
    %2482 = vmatprep.subr.mxu0 %v2409
    %2483 = vmatpush1.msra.mxu0 %v2408
    %2484 = vmatprep.subr.mxu0 %v2413
    %2485 = vmatpush1.msra.mxu0 %v2412
    %2486 = vmatprep.subr.mxu0 %v2417
    %2487 = vmatpush1.msra.mxu0 %v2416
    %2488 = vmatprep.subr.mxu0 %v2421
    %2489 = vmatpush1.msra.mxu0 %v2420
    %2490 = vmatprep.subr.mxu0 %v2425
    %2491 = vmatpush1.msra.mxu0 %v2424
    %2492 = vmatprep.mubr.f32.mxu0 %v2299
    %2493 = vmatmul.mubr.f32.gmra.mrb[0].mxu0 %v2298
    %v2494 = vpop.f32.mrb[0].mxu0
    %v2495 = vadd.f32 0.0, %v2494
    %v2496 = vpop.f32.mrb[0].mxu0
    %v2497 = vadd.f32 0.0, %v2496
    %2498 = vdwg.mxu0
    %2499 = vmatprep.subr.mxu0 %v2303
    %2500 = vmatpush1.msra.mxu0 %v2302
    %2501 = vmatprep.subr.mxu0 %v2307
    %2502 = vmatpush1.msra.mxu0 %v2306
    %2503 = vmatprep.subr.mxu0 %v2311
    %2504 = vmatpush1.msra.mxu0 %v2310
    %2505 = vmatprep.subr.mxu0 %v2315
    %2506 = vmatpush1.msra.mxu0 %v2314
    %2507 = vmatprep.subr.mxu0 %v2319
    %2508 = vmatpush1.msra.mxu0 %v2318
    %2509 = vmatprep.subr.mxu0 %v2323
    %2510 = vmatpush1.msra.mxu0 %v2322
    %2511 = vmatprep.subr.mxu0 %v2327
    %2512 = vmatpush1.msra.mxu0 %v2326
    %2513 = vmatprep.subr.mxu0 %v2331
    %2514 = vmatpush1.msra.mxu0 %v2330
    %2515 = vmatprep.subr.mxu0 %v2335
    %2516 = vmatpush1.msra.mxu0 %v2334
    %2517 = vmatprep.subr.mxu0 %v2339
    %2518 = vmatpush1.msra.mxu0 %v2338
    %2519 = vmatprep.subr.mxu0 %v2343
    %2520 = vmatpush1.msra.mxu0 %v2342
    %2521 = vmatprep.subr.mxu0 %v2347
    %2522 = vmatpush1.msra.mxu0 %v2346
    %2523 = vmatprep.subr.mxu0 %v2351
    %2524 = vmatpush1.msra.mxu0 %v2350
    %2525 = vmatprep.subr.mxu0 %v2355
    %2526 = vmatpush1.msra.mxu0 %v2354
    %2527 = vmatprep.subr.mxu0 %v2359
    %2528 = vmatpush1.msra.mxu0 %v2358
    %2529 = vmatprep.subr.mxu0 %v2363
    %2530 = vmatpush1.msra.mxu0 %v2362
    %2531 = vmatprep.subr.mxu0 %v2367
    %2532 = vmatpush1.msra.mxu0 %v2366
    %2533 = vmatprep.subr.mxu0 %v2371
    %2534 = vmatpush1.msra.mxu0 %v2370
    %2535 = vmatprep.subr.mxu0 %v2375
    %2536 = vmatpush1.msra.mxu0 %v2374
    %2537 = vmatprep.subr.mxu0 %v2379
    %2538 = vmatpush1.msra.mxu0 %v2378
    %2539 = vmatprep.subr.mxu0 %v2383
    %2540 = vmatpush1.msra.mxu0 %v2382
    %2541 = vmatprep.subr.mxu0 %v2387
    %2542 = vmatpush1.msra.mxu0 %v2386
    %2543 = vmatprep.subr.mxu0 %v2391
    %2544 = vmatpush1.msra.mxu0 %v2390
    %2545 = vmatprep.subr.mxu0 %v2395
    %2546 = vmatpush1.msra.mxu0 %v2394
    %2547 = vmatprep.subr.mxu0 %v2399
    %2548 = vmatpush1.msra.mxu0 %v2398
    %2549 = vmatprep.subr.mxu0 %v2403
    %2550 = vmatpush1.msra.mxu0 %v2402
    %2551 = vmatprep.subr.mxu0 %v2407
    %2552 = vmatpush1.msra.mxu0 %v2406
    %2553 = vmatprep.subr.mxu0 %v2411
    %2554 = vmatpush1.msra.mxu0 %v2410
    %2555 = vmatprep.subr.mxu0 %v2415
    %2556 = vmatpush1.msra.mxu0 %v2414
    %2557 = vmatprep.subr.mxu0 %v2419
    %2558 = vmatpush1.msra.mxu0 %v2418
    %2559 = vmatprep.subr.mxu0 %v2423
    %2560 = vmatpush1.msra.mxu0 %v2422
    %2561 = vmatprep.subr.mxu0 %v2427
    %2562 = vmatpush1.msra.mxu0 %v2426
    %2563 = vmatprep.mubr.f32.mxu0 %v2299
    %2564 = vmatmul.mubr.f32.gmra.mrb[0].mxu0 %v2298
    %v2565 = vpop.f32.mrb[0].mxu0
    %v2566 = vadd.f32 0.0, %v2565
    %v2567 = vpop.f32.mrb[0].mxu0
    %v2568 = vadd.f32 0.0, %v2567
    %2569 = vdwg.mxu0
    %2570 = vmatprep.subr.mxu0 %v2171
    %2571 = vmatpush1.msra.mxu0 %v2170
    %2572 = vmatprep.subr.mxu0 %v2175
    %2573 = vmatpush1.msra.mxu0 %v2174
    %2574 = vmatprep.subr.mxu0 %v2179
    %2575 = vmatpush1.msra.mxu0 %v2178
    %2576 = vmatprep.subr.mxu0 %v2183
    %2577 = vmatpush1.msra.mxu0 %v2182
    %2578 = vmatprep.subr.mxu0 %v2187
    %2579 = vmatpush1.msra.mxu0 %v2186
    %2580 = vmatprep.subr.mxu0 %v2191
    %2581 = vmatpush1.msra.mxu0 %v2190
    %2582 = vmatprep.subr.mxu0 %v2195
    %2583 = vmatpush1.msra.mxu0 %v2194
    %2584 = vmatprep.subr.mxu0 %v2199
    %2585 = vmatpush1.msra.mxu0 %v2198
    %2586 = vmatprep.subr.mxu0 %v2203
    %2587 = vmatpush1.msra.mxu0 %v2202
    %2588 = vmatprep.subr.mxu0 %v2207
    %2589 = vmatpush1.msra.mxu0 %v2206
    %2590 = vmatprep.subr.mxu0 %v2211
    %2591 = vmatpush1.msra.mxu0 %v2210
    %2592 = vmatprep.subr.mxu0 %v2215
    %2593 = vmatpush1.msra.mxu0 %v2214
    %2594 = vmatprep.subr.mxu0 %v2219
    %2595 = vmatpush1.msra.mxu0 %v2218
    %2596 = vmatprep.subr.mxu0 %v2223
    %2597 = vmatpush1.msra.mxu0 %v2222
    %2598 = vmatprep.subr.mxu0 %v2227
    %2599 = vmatpush1.msra.mxu0 %v2226
    %2600 = vmatprep.subr.mxu0 %v2231
    %2601 = vmatpush1.msra.mxu0 %v2230
    %2602 = vmatprep.subr.mxu0 %v2235
    %2603 = vmatpush1.msra.mxu0 %v2234
    %2604 = vmatprep.subr.mxu0 %v2239
    %2605 = vmatpush1.msra.mxu0 %v2238
    %2606 = vmatprep.subr.mxu0 %v2243
    %2607 = vmatpush1.msra.mxu0 %v2242
    %2608 = vmatprep.subr.mxu0 %v2247
    %2609 = vmatpush1.msra.mxu0 %v2246
    %2610 = vmatprep.subr.mxu0 %v2251
    %2611 = vmatpush1.msra.mxu0 %v2250
    %2612 = vmatprep.subr.mxu0 %v2255
    %2613 = vmatpush1.msra.mxu0 %v2254
    %2614 = vmatprep.subr.mxu0 %v2259
    %2615 = vmatpush1.msra.mxu0 %v2258
    %2616 = vmatprep.subr.mxu0 %v2263
    %2617 = vmatpush1.msra.mxu0 %v2262
    %2618 = vmatprep.subr.mxu0 %v2267
    %2619 = vmatpush1.msra.mxu0 %v2266
    %2620 = vmatprep.subr.mxu0 %v2271
    %2621 = vmatpush1.msra.mxu0 %v2270
    %2622 = vmatprep.subr.mxu0 %v2275
    %2623 = vmatpush1.msra.mxu0 %v2274
    %2624 = vmatprep.subr.mxu0 %v2279
    %2625 = vmatpush1.msra.mxu0 %v2278
    %2626 = vmatprep.subr.mxu0 %v2283
    %2627 = vmatpush1.msra.mxu0 %v2282
    %2628 = vmatprep.subr.mxu0 %v2287
    %2629 = vmatpush1.msra.mxu0 %v2286
    %2630 = vmatprep.subr.mxu0 %v2291
    %2631 = vmatpush1.msra.mxu0 %v2290
    %2632 = vmatprep.subr.mxu0 %v2295
    %2633 = vmatpush1.msra.mxu0 %v2294
    %2634 = vmatprep.mubr.f32.mxu0 %v2169
    %2635 = vmatmul.mubr.f32.gmra.mrb[0].mxu0 %v2168
    %v2636 = vpop.f32.mrb[0].mxu0
    %v2637 = vadd.f32 %v2495, %v2636
    %v2638 = vpop.f32.mrb[0].mxu0
    %v2639 = vadd.f32 %v2497, %v2638
    %2640 = vdwg.mxu0
    %2641 = vmatprep.subr.mxu0 %v2173
    %2642 = vmatpush1.msra.mxu0 %v2172
    %2643 = vmatprep.subr.mxu0 %v2177
    %2644 = vmatpush1.msra.mxu0 %v2176
    %2645 = vmatprep.subr.mxu0 %v2181
    %2646 = vmatpush1.msra.mxu0 %v2180
    %2647 = vmatprep.subr.mxu0 %v2185
    %2648 = vmatpush1.msra.mxu0 %v2184
    %2649 = vmatprep.subr.mxu0 %v2189
    %2650 = vmatpush1.msra.mxu0 %v2188
    %2651 = vmatprep.subr.mxu0 %v2193
    %2652 = vmatpush1.msra.mxu0 %v2192
    %2653 = vmatprep.subr.mxu0 %v2197
    %2654 = vmatpush1.msra.mxu0 %v2196
    %2655 = vmatprep.subr.mxu0 %v2201
    %2656 = vmatpush1.msra.mxu0 %v2200
    %2657 = vmatprep.subr.mxu0 %v2205
    %2658 = vmatpush1.msra.mxu0 %v2204
    %2659 = vmatprep.subr.mxu0 %v2209
    %2660 = vmatpush1.msra.mxu0 %v2208
    %2661 = vmatprep.subr.mxu0 %v2213
    %2662 = vmatpush1.msra.mxu0 %v2212
    %2663 = vmatprep.subr.mxu0 %v2217
    %2664 = vmatpush1.msra.mxu0 %v2216
    %2665 = vmatprep.subr.mxu0 %v2221
    %2666 = vmatpush1.msra.mxu0 %v2220
    %2667 = vmatprep.subr.mxu0 %v2225
    %2668 = vmatpush1.msra.mxu0 %v2224
    %2669 = vmatprep.subr.mxu0 %v2229
    %2670 = vmatpush1.msra.mxu0 %v2228
    %2671 = vmatprep.subr.mxu0 %v2233
    %2672 = vmatpush1.msra.mxu0 %v2232
    %2673 = vmatprep.subr.mxu0 %v2237
    %2674 = vmatpush1.msra.mxu0 %v2236
    %2675 = vmatprep.subr.mxu0 %v2241
    %2676 = vmatpush1.msra.mxu0 %v2240
    %2677 = vmatprep.subr.mxu0 %v2245
    %2678 = vmatpush1.msra.mxu0 %v2244
    %2679 = vmatprep.subr.mxu0 %v2249
    %2680 = vmatpush1.msra.mxu0 %v2248
    %2681 = vmatprep.subr.mxu0 %v2253
    %2682 = vmatpush1.msra.mxu0 %v2252
    %2683 = vmatprep.subr.mxu0 %v2257
    %2684 = vmatpush1.msra.mxu0 %v2256
    %2685 = vmatprep.subr.mxu0 %v2261
    %2686 = vmatpush1.msra.mxu0 %v2260
    %2687 = vmatprep.subr.mxu0 %v2265
    %2688 = vmatpush1.msra.mxu0 %v2264
    %2689 = vmatprep.subr.mxu0 %v2269
    %2690 = vmatpush1.msra.mxu0 %v2268
    %2691 = vmatprep.subr.mxu0 %v2273
    %2692 = vmatpush1.msra.mxu0 %v2272
    %2693 = vmatprep.subr.mxu0 %v2277
    %2694 = vmatpush1.msra.mxu0 %v2276
    %2695 = vmatprep.subr.mxu0 %v2281
    %2696 = vmatpush1.msra.mxu0 %v2280
    %2697 = vmatprep.subr.mxu0 %v2285
    %2698 = vmatpush1.msra.mxu0 %v2284
    %2699 = vmatprep.subr.mxu0 %v2289
    %2700 = vmatpush1.msra.mxu0 %v2288
    %2701 = vmatprep.subr.mxu0 %v2293
    %2702 = vmatpush1.msra.mxu0 %v2292
    %2703 = vmatprep.subr.mxu0 %v2297
    %2704 = vmatpush1.msra.mxu0 %v2296
    %2705 = vmatprep.mubr.f32.mxu0 %v2169
    %2706 = vmatmul.mubr.f32.gmra.mrb[0].mxu0 %v2168
    %v2707 = vpop.f32.mrb[0].mxu0
    %v2708 = vadd.f32 %v2566, %v2707
    %v2709 = vpop.f32.mrb[0].mxu0
    %v2710 = vadd.f32 %v2568, %v2709
    %2711 = vdwg.mxu0
    %v2712 = vld [vmem:[#allocation9] sm:$0xf]
    %v2714 = vlaneseq
    %v2715 = vshrl.u32 %v2714, 7
    %v2716 = vsub.s32 0, %v2715
    %v2717 = vrot.slane %v2712, %v2716
    %v2718 = vlaneseq
    %v2719 = vshrl.u32 %v2718, 7
    %v2720 = vsub.s32 1, %v2719
    %v2721 = vrot.slane %v2712, %v2720
    %v2722 = vlaneseq
    %v2723 = vshrl.u32 %v2722, 7
    %v2724 = vsub.s32 2, %v2723
    %v2725 = vrot.slane %v2712, %v2724
    %v2726 = vlaneseq
    %v2727 = vshrl.u32 %v2726, 7
    %v2728 = vsub.s32 3, %v2727
    %v2729 = vrot.slane %v2712, %v2728
    %v2734 = vadd.f32 %v2637, %v2717
    %v2735 = vadd.f32 %v2639, %v2721
    %v2736 = vadd.f32 %v2708, %v2725
    %v2737 = vadd.f32 %v2710, %v2729
    %v2738 = vmax.f32 %v2734, 0.0
    %v2739 = vmax.f32 %v2735, 0.0
    %v2740 = vmax.f32 %v2736, 0.0
    %v2741 = vmax.f32 %v2737, 0.0
    %2742 = vst [vmem:[#allocation3 + $0x40] sm:$0xff] %v2738
    %2743 = vst [vmem:[#allocation3 + $0x48] sm:$0xff] %v2739
    %2744 = vst [vmem:[#allocation3 + $0x50] sm:$0xff] %v2740
    %2745 = vst [vmem:[#allocation3 + $0x58] sm:$0xff] %v2741
    %v2746 = vld [vmem:[#allocation2 + $0x30] sm:$0xff]
    %v2747 = vld [vmem:[#allocation2 + $0x38] sm:$0xff]
    %v2748 = vld [vmem:[#allocation7] sm:$0xff]
    %v2749 = vld [vmem:[#allocation7 + $0x8] sm:$0xff]
    %v2750 = vld [vmem:[#allocation7 + $0x10] sm:$0xff]
    %v2751 = vld [vmem:[#allocation7 + $0x18] sm:$0xff]
    %v2752 = vld [vmem:[#allocation7 + $0x20] sm:$0xff]
    %v2753 = vld [vmem:[#allocation7 + $0x28] sm:$0xff]
    %v2754 = vld [vmem:[#allocation7 + $0x30] sm:$0xff]
    %v2755 = vld [vmem:[#allocation7 + $0x38] sm:$0xff]
    %v2756 = vld [vmem:[#allocation7 + $0x40] sm:$0xff]
    %v2757 = vld [vmem:[#allocation7 + $0x48] sm:$0xff]
    %v2758 = vld [vmem:[#allocation7 + $0x50] sm:$0xff]
    %v2759 = vld [vmem:[#allocation7 + $0x58] sm:$0xff]
    %v2760 = vld [vmem:[#allocation7 + $0x60] sm:$0xff]
    %v2761 = vld [vmem:[#allocation7 + $0x68] sm:$0xff]
    %v2762 = vld [vmem:[#allocation7 + $0x70] sm:$0xff]
    %v2763 = vld [vmem:[#allocation7 + $0x78] sm:$0xff]
    %v2764 = vld [vmem:[#allocation7 + $0x80] sm:$0xff]
    %v2765 = vld [vmem:[#allocation7 + $0x88] sm:$0xff]
    %v2766 = vld [vmem:[#allocation7 + $0x90] sm:$0xff]
    %v2767 = vld [vmem:[#allocation7 + $0x98] sm:$0xff]
    %v2768 = vld [vmem:[#allocation7 + $0xa0] sm:$0xff]
    %v2769 = vld [vmem:[#allocation7 + $0xa8] sm:$0xff]
    %v2770 = vld [vmem:[#allocation7 + $0xb0] sm:$0xff]
    %v2771 = vld [vmem:[#allocation7 + $0xb8] sm:$0xff]
    %v2772 = vld [vmem:[#allocation7 + $0xc0] sm:$0xff]
    %v2773 = vld [vmem:[#allocation7 + $0xc8] sm:$0xff]
    %v2774 = vld [vmem:[#allocation7 + $0xd0] sm:$0xff]
    %v2775 = vld [vmem:[#allocation7 + $0xd8] sm:$0xff]
    %v2776 = vld [vmem:[#allocation7 + $0xe0] sm:$0xff]
    %v2777 = vld [vmem:[#allocation7 + $0xe8] sm:$0xff]
    %v2778 = vld [vmem:[#allocation7 + $0xf0] sm:$0xff]
    %v2779 = vld [vmem:[#allocation7 + $0xf8] sm:$0xff]
    %v2780 = vld [vmem:[#allocation7 + $0x100] sm:$0xff]
    %v2781 = vld [vmem:[#allocation7 + $0x108] sm:$0xff]
    %v2782 = vld [vmem:[#allocation7 + $0x110] sm:$0xff]
    %v2783 = vld [vmem:[#allocation7 + $0x118] sm:$0xff]
    %v2784 = vld [vmem:[#allocation7 + $0x120] sm:$0xff]
    %v2785 = vld [vmem:[#allocation7 + $0x128] sm:$0xff]
    %v2786 = vld [vmem:[#allocation7 + $0x130] sm:$0xff]
    %v2787 = vld [vmem:[#allocation7 + $0x138] sm:$0xff]
    %v2788 = vld [vmem:[#allocation7 + $0x140] sm:$0xff]
    %v2789 = vld [vmem:[#allocation7 + $0x148] sm:$0xff]
    %v2790 = vld [vmem:[#allocation7 + $0x150] sm:$0xff]
    %v2791 = vld [vmem:[#allocation7 + $0x158] sm:$0xff]
    %v2792 = vld [vmem:[#allocation7 + $0x160] sm:$0xff]
    %v2793 = vld [vmem:[#allocation7 + $0x168] sm:$0xff]
    %v2794 = vld [vmem:[#allocation7 + $0x170] sm:$0xff]
    %v2795 = vld [vmem:[#allocation7 + $0x178] sm:$0xff]
    %v2796 = vld [vmem:[#allocation7 + $0x180] sm:$0xff]
    %v2797 = vld [vmem:[#allocation7 + $0x188] sm:$0xff]
    %v2798 = vld [vmem:[#allocation7 + $0x190] sm:$0xff]
    %v2799 = vld [vmem:[#allocation7 + $0x198] sm:$0xff]
    %v2800 = vld [vmem:[#allocation7 + $0x1a0] sm:$0xff]
    %v2801 = vld [vmem:[#allocation7 + $0x1a8] sm:$0xff]
    %v2802 = vld [vmem:[#allocation7 + $0x1b0] sm:$0xff]
    %v2803 = vld [vmem:[#allocation7 + $0x1b8] sm:$0xff]
    %v2804 = vld [vmem:[#allocation7 + $0x1c0] sm:$0xff]
    %v2805 = vld [vmem:[#allocation7 + $0x1c8] sm:$0xff]
    %v2806 = vld [vmem:[#allocation7 + $0x1d0] sm:$0xff]
    %v2807 = vld [vmem:[#allocation7 + $0x1d8] sm:$0xff]
    %v2808 = vld [vmem:[#allocation7 + $0x1e0] sm:$0xff]
    %v2809 = vld [vmem:[#allocation7 + $0x1e8] sm:$0xff]
    %v2810 = vld [vmem:[#allocation7 + $0x1f0] sm:$0xff]
    %v2811 = vld [vmem:[#allocation7 + $0x1f8] sm:$0xff]
    %v2812 = vld [vmem:[#allocation7 + $0x200] sm:$0xff]
    %v2813 = vld [vmem:[#allocation7 + $0x208] sm:$0xff]
    %v2814 = vld [vmem:[#allocation7 + $0x210] sm:$0xff]
    %v2815 = vld [vmem:[#allocation7 + $0x218] sm:$0xff]
    %v2816 = vld [vmem:[#allocation7 + $0x220] sm:$0xff]
    %v2817 = vld [vmem:[#allocation7 + $0x228] sm:$0xff]
    %v2818 = vld [vmem:[#allocation7 + $0x230] sm:$0xff]
    %v2819 = vld [vmem:[#allocation7 + $0x238] sm:$0xff]
    %v2820 = vld [vmem:[#allocation7 + $0x240] sm:$0xff]
    %v2821 = vld [vmem:[#allocation7 + $0x248] sm:$0xff]
    %v2822 = vld [vmem:[#allocation7 + $0x250] sm:$0xff]
    %v2823 = vld [vmem:[#allocation7 + $0x258] sm:$0xff]
    %v2824 = vld [vmem:[#allocation7 + $0x260] sm:$0xff]
    %v2825 = vld [vmem:[#allocation7 + $0x268] sm:$0xff]
    %v2826 = vld [vmem:[#allocation7 + $0x270] sm:$0xff]
    %v2827 = vld [vmem:[#allocation7 + $0x278] sm:$0xff]
    %v2828 = vld [vmem:[#allocation7 + $0x280] sm:$0xff]
    %v2829 = vld [vmem:[#allocation7 + $0x288] sm:$0xff]
    %v2830 = vld [vmem:[#allocation7 + $0x290] sm:$0xff]
    %v2831 = vld [vmem:[#allocation7 + $0x298] sm:$0xff]
    %v2832 = vld [vmem:[#allocation7 + $0x2a0] sm:$0xff]
    %v2833 = vld [vmem:[#allocation7 + $0x2a8] sm:$0xff]
    %v2834 = vld [vmem:[#allocation7 + $0x2b0] sm:$0xff]
    %v2835 = vld [vmem:[#allocation7 + $0x2b8] sm:$0xff]
    %v2836 = vld [vmem:[#allocation7 + $0x2c0] sm:$0xff]
    %v2837 = vld [vmem:[#allocation7 + $0x2c8] sm:$0xff]
    %v2838 = vld [vmem:[#allocation7 + $0x2d0] sm:$0xff]
    %v2839 = vld [vmem:[#allocation7 + $0x2d8] sm:$0xff]
    %v2840 = vld [vmem:[#allocation7 + $0x2e0] sm:$0xff]
    %v2841 = vld [vmem:[#allocation7 + $0x2e8] sm:$0xff]
    %v2842 = vld [vmem:[#allocation7 + $0x2f0] sm:$0xff]
    %v2843 = vld [vmem:[#allocation7 + $0x2f8] sm:$0xff]
    %v2844 = vld [vmem:[#allocation7 + $0x300] sm:$0xff]
    %v2845 = vld [vmem:[#allocation7 + $0x308] sm:$0xff]
    %v2846 = vld [vmem:[#allocation7 + $0x310] sm:$0xff]
    %v2847 = vld [vmem:[#allocation7 + $0x318] sm:$0xff]
    %v2848 = vld [vmem:[#allocation7 + $0x320] sm:$0xff]
    %v2849 = vld [vmem:[#allocation7 + $0x328] sm:$0xff]
    %v2850 = vld [vmem:[#allocation7 + $0x330] sm:$0xff]
    %v2851 = vld [vmem:[#allocation7 + $0x338] sm:$0xff]
    %v2852 = vld [vmem:[#allocation7 + $0x340] sm:$0xff]
    %v2853 = vld [vmem:[#allocation7 + $0x348] sm:$0xff]
    %v2854 = vld [vmem:[#allocation7 + $0x350] sm:$0xff]
    %v2855 = vld [vmem:[#allocation7 + $0x358] sm:$0xff]
    %v2856 = vld [vmem:[#allocation7 + $0x360] sm:$0xff]
    %v2857 = vld [vmem:[#allocation7 + $0x368] sm:$0xff]
    %v2858 = vld [vmem:[#allocation7 + $0x370] sm:$0xff]
    %v2859 = vld [vmem:[#allocation7 + $0x378] sm:$0xff]
    %v2860 = vld [vmem:[#allocation7 + $0x380] sm:$0xff]
    %v2861 = vld [vmem:[#allocation7 + $0x388] sm:$0xff]
    %v2862 = vld [vmem:[#allocation7 + $0x390] sm:$0xff]
    %v2863 = vld [vmem:[#allocation7 + $0x398] sm:$0xff]
    %v2864 = vld [vmem:[#allocation7 + $0x3a0] sm:$0xff]
    %v2865 = vld [vmem:[#allocation7 + $0x3a8] sm:$0xff]
    %v2866 = vld [vmem:[#allocation7 + $0x3b0] sm:$0xff]
    %v2867 = vld [vmem:[#allocation7 + $0x3b8] sm:$0xff]
    %v2868 = vld [vmem:[#allocation7 + $0x3c0] sm:$0xff]
    %v2869 = vld [vmem:[#allocation7 + $0x3c8] sm:$0xff]
    %v2870 = vld [vmem:[#allocation7 + $0x3d0] sm:$0xff]
    %v2871 = vld [vmem:[#allocation7 + $0x3d8] sm:$0xff]
    %v2872 = vld [vmem:[#allocation7 + $0x3e0] sm:$0xff]
    %v2873 = vld [vmem:[#allocation7 + $0x3e8] sm:$0xff]
    %v2874 = vld [vmem:[#allocation7 + $0x3f0] sm:$0xff]
    %v2875 = vld [vmem:[#allocation7 + $0x3f8] sm:$0xff]
    %v2876 = vld [vmem:[#allocation2 + $0x40] sm:$0xff]
    %v2877 = vld [vmem:[#allocation2 + $0x48] sm:$0xff]
    %v2878 = vld [vmem:[%s1143] sm:$0xff]
    %v2879 = vld [vmem:[%s1143 + $0x8] sm:$0xff]
    %v2880 = vld [vmem:[%s1143 + $0x10] sm:$0xff]
    %v2881 = vld [vmem:[%s1143 + $0x18] sm:$0xff]
    %v2882 = vld [vmem:[%s1143 + $0x20] sm:$0xff]
    %v2883 = vld [vmem:[%s1143 + $0x28] sm:$0xff]
    %v2884 = vld [vmem:[%s1143 + $0x30] sm:$0xff]
    %v2885 = vld [vmem:[%s1143 + $0x38] sm:$0xff]
    %v2886 = vld [vmem:[%s1143 + $0x40] sm:$0xff]
    %v2887 = vld [vmem:[%s1143 + $0x48] sm:$0xff]
    %v2888 = vld [vmem:[%s1143 + $0x50] sm:$0xff]
    %v2889 = vld [vmem:[%s1143 + $0x58] sm:$0xff]
    %v2890 = vld [vmem:[%s1143 + $0x60] sm:$0xff]
    %v2891 = vld [vmem:[%s1143 + $0x68] sm:$0xff]
    %v2892 = vld [vmem:[%s1143 + $0x70] sm:$0xff]
    %v2893 = vld [vmem:[%s1143 + $0x78] sm:$0xff]
    %v2894 = vld [vmem:[%s1143 + $0x80] sm:$0xff]
    %v2895 = vld [vmem:[%s1143 + $0x88] sm:$0xff]
    %v2896 = vld [vmem:[%s1143 + $0x90] sm:$0xff]
    %v2897 = vld [vmem:[%s1143 + $0x98] sm:$0xff]
    %v2898 = vld [vmem:[%s1143 + $0xa0] sm:$0xff]
    %v2899 = vld [vmem:[%s1143 + $0xa8] sm:$0xff]
    %v2900 = vld [vmem:[%s1143 + $0xb0] sm:$0xff]
    %v2901 = vld [vmem:[%s1143 + $0xb8] sm:$0xff]
    %v2902 = vld [vmem:[%s1143 + $0xc0] sm:$0xff]
    %v2903 = vld [vmem:[%s1143 + $0xc8] sm:$0xff]
    %v2904 = vld [vmem:[%s1143 + $0xd0] sm:$0xff]
    %v2905 = vld [vmem:[%s1143 + $0xd8] sm:$0xff]
    %v2906 = vld [vmem:[%s1143 + $0xe0] sm:$0xff]
    %v2907 = vld [vmem:[%s1143 + $0xe8] sm:$0xff]
    %v2908 = vld [vmem:[%s1143 + $0xf0] sm:$0xff]
    %v2909 = vld [vmem:[%s1143 + $0xf8] sm:$0xff]
    %v2910 = vld [vmem:[%s1143 + $0x100] sm:$0xff]
    %v2911 = vld [vmem:[%s1143 + $0x108] sm:$0xff]
    %v2912 = vld [vmem:[%s1143 + $0x110] sm:$0xff]
    %v2913 = vld [vmem:[%s1143 + $0x118] sm:$0xff]
    %v2914 = vld [vmem:[%s1143 + $0x120] sm:$0xff]
    %v2915 = vld [vmem:[%s1143 + $0x128] sm:$0xff]
    %v2916 = vld [vmem:[%s1143 + $0x130] sm:$0xff]
    %v2917 = vld [vmem:[%s1143 + $0x138] sm:$0xff]
    %v2918 = vld [vmem:[%s1143 + $0x140] sm:$0xff]
    %v2919 = vld [vmem:[%s1143 + $0x148] sm:$0xff]
    %v2920 = vld [vmem:[%s1143 + $0x150] sm:$0xff]
    %v2921 = vld [vmem:[%s1143 + $0x158] sm:$0xff]
    %v2922 = vld [vmem:[%s1143 + $0x160] sm:$0xff]
    %v2923 = vld [vmem:[%s1143 + $0x168] sm:$0xff]
    %v2924 = vld [vmem:[%s1143 + $0x170] sm:$0xff]
    %v2925 = vld [vmem:[%s1143 + $0x178] sm:$0xff]
    %v2926 = vld [vmem:[%s1143 + $0x180] sm:$0xff]
    %v2927 = vld [vmem:[%s1143 + $0x188] sm:$0xff]
    %v2928 = vld [vmem:[%s1143 + $0x190] sm:$0xff]
    %v2929 = vld [vmem:[%s1143 + $0x198] sm:$0xff]
    %v2930 = vld [vmem:[%s1143 + $0x1a0] sm:$0xff]
    %v2931 = vld [vmem:[%s1143 + $0x1a8] sm:$0xff]
    %v2932 = vld [vmem:[%s1143 + $0x1b0] sm:$0xff]
    %v2933 = vld [vmem:[%s1143 + $0x1b8] sm:$0xff]
    %v2934 = vld [vmem:[%s1143 + $0x1c0] sm:$0xff]
    %v2935 = vld [vmem:[%s1143 + $0x1c8] sm:$0xff]
    %v2936 = vld [vmem:[%s1143 + $0x1d0] sm:$0xff]
    %v2937 = vld [vmem:[%s1143 + $0x1d8] sm:$0xff]
    %v2938 = vld [vmem:[%s1143 + $0x1e0] sm:$0xff]
    %v2939 = vld [vmem:[%s1143 + $0x1e8] sm:$0xff]
    %v2940 = vld [vmem:[%s1143 + $0x1f0] sm:$0xff]
    %v2941 = vld [vmem:[%s1143 + $0x1f8] sm:$0xff]
    %v2942 = vld [vmem:[%s1143 + $0x200] sm:$0xff]
    %v2943 = vld [vmem:[%s1143 + $0x208] sm:$0xff]
    %v2944 = vld [vmem:[%s1143 + $0x210] sm:$0xff]
    %v2945 = vld [vmem:[%s1143 + $0x218] sm:$0xff]
    %v2946 = vld [vmem:[%s1143 + $0x220] sm:$0xff]
    %v2947 = vld [vmem:[%s1143 + $0x228] sm:$0xff]
    %v2948 = vld [vmem:[%s1143 + $0x230] sm:$0xff]
    %v2949 = vld [vmem:[%s1143 + $0x238] sm:$0xff]
    %v2950 = vld [vmem:[%s1143 + $0x240] sm:$0xff]
    %v2951 = vld [vmem:[%s1143 + $0x248] sm:$0xff]
    %v2952 = vld [vmem:[%s1143 + $0x250] sm:$0xff]
    %v2953 = vld [vmem:[%s1143 + $0x258] sm:$0xff]
    %v2954 = vld [vmem:[%s1143 + $0x260] sm:$0xff]
    %v2955 = vld [vmem:[%s1143 + $0x268] sm:$0xff]
    %v2956 = vld [vmem:[%s1143 + $0x270] sm:$0xff]
    %v2957 = vld [vmem:[%s1143 + $0x278] sm:$0xff]
    %v2958 = vld [vmem:[%s1143 + $0x280] sm:$0xff]
    %v2959 = vld [vmem:[%s1143 + $0x288] sm:$0xff]
    %v2960 = vld [vmem:[%s1143 + $0x290] sm:$0xff]
    %v2961 = vld [vmem:[%s1143 + $0x298] sm:$0xff]
    %v2962 = vld [vmem:[%s1143 + $0x2a0] sm:$0xff]
    %v2963 = vld [vmem:[%s1143 + $0x2a8] sm:$0xff]
    %v2964 = vld [vmem:[%s1143 + $0x2b0] sm:$0xff]
    %v2965 = vld [vmem:[%s1143 + $0x2b8] sm:$0xff]
    %v2966 = vld [vmem:[%s1143 + $0x2c0] sm:$0xff]
    %v2967 = vld [vmem:[%s1143 + $0x2c8] sm:$0xff]
    %v2968 = vld [vmem:[%s1143 + $0x2d0] sm:$0xff]
    %v2969 = vld [vmem:[%s1143 + $0x2d8] sm:$0xff]
    %v2970 = vld [vmem:[%s1143 + $0x2e0] sm:$0xff]
    %v2971 = vld [vmem:[%s1143 + $0x2e8] sm:$0xff]
    %v2972 = vld [vmem:[%s1143 + $0x2f0] sm:$0xff]
    %v2973 = vld [vmem:[%s1143 + $0x2f8] sm:$0xff]
    %v2974 = vld [vmem:[%s1143 + $0x300] sm:$0xff]
    %v2975 = vld [vmem:[%s1143 + $0x308] sm:$0xff]
    %v2976 = vld [vmem:[%s1143 + $0x310] sm:$0xff]
    %v2977 = vld [vmem:[%s1143 + $0x318] sm:$0xff]
    %v2978 = vld [vmem:[%s1143 + $0x320] sm:$0xff]
    %v2979 = vld [vmem:[%s1143 + $0x328] sm:$0xff]
    %v2980 = vld [vmem:[%s1143 + $0x330] sm:$0xff]
    %v2981 = vld [vmem:[%s1143 + $0x338] sm:$0xff]
    %v2982 = vld [vmem:[%s1143 + $0x340] sm:$0xff]
    %v2983 = vld [vmem:[%s1143 + $0x348] sm:$0xff]
    %v2984 = vld [vmem:[%s1143 + $0x350] sm:$0xff]
    %v2985 = vld [vmem:[%s1143 + $0x358] sm:$0xff]
    %v2986 = vld [vmem:[%s1143 + $0x360] sm:$0xff]
    %v2987 = vld [vmem:[%s1143 + $0x368] sm:$0xff]
    %v2988 = vld [vmem:[%s1143 + $0x370] sm:$0xff]
    %v2989 = vld [vmem:[%s1143 + $0x378] sm:$0xff]
    %v2990 = vld [vmem:[%s1143 + $0x380] sm:$0xff]
    %v2991 = vld [vmem:[%s1143 + $0x388] sm:$0xff]
    %v2992 = vld [vmem:[%s1143 + $0x390] sm:$0xff]
    %v2993 = vld [vmem:[%s1143 + $0x398] sm:$0xff]
    %v2994 = vld [vmem:[%s1143 + $0x3a0] sm:$0xff]
    %v2995 = vld [vmem:[%s1143 + $0x3a8] sm:$0xff]
    %v2996 = vld [vmem:[%s1143 + $0x3b0] sm:$0xff]
    %v2997 = vld [vmem:[%s1143 + $0x3b8] sm:$0xff]
    %v2998 = vld [vmem:[%s1143 + $0x3c0] sm:$0xff]
    %v2999 = vld [vmem:[%s1143 + $0x3c8] sm:$0xff]
    %v3000 = vld [vmem:[%s1143 + $0x3d0] sm:$0xff]
    %v3001 = vld [vmem:[%s1143 + $0x3d8] sm:$0xff]
    %v3002 = vld [vmem:[%s1143 + $0x3e0] sm:$0xff]
    %v3003 = vld [vmem:[%s1143 + $0x3e8] sm:$0xff]
    %v3004 = vld [vmem:[%s1143 + $0x3f0] sm:$0xff]
    %v3005 = vld [vmem:[%s1143 + $0x3f8] sm:$0xff]
    %3006 = vmatprep.subr.mxu0 %v2879
    %3007 = vmatpush1.msra.mxu0 %v2878
    %3008 = vmatprep.subr.mxu0 %v2883
    %3009 = vmatpush1.msra.mxu0 %v2882
    %3010 = vmatprep.subr.mxu0 %v2887
    %3011 = vmatpush1.msra.mxu0 %v2886
    %3012 = vmatprep.subr.mxu0 %v2891
    %3013 = vmatpush1.msra.mxu0 %v2890
    %3014 = vmatprep.subr.mxu0 %v2895
    %3015 = vmatpush1.msra.mxu0 %v2894
    %3016 = vmatprep.subr.mxu0 %v2899
    %3017 = vmatpush1.msra.mxu0 %v2898
    %3018 = vmatprep.subr.mxu0 %v2903
    %3019 = vmatpush1.msra.mxu0 %v2902
    %3020 = vmatprep.subr.mxu0 %v2907
    %3021 = vmatpush1.msra.mxu0 %v2906
    %3022 = vmatprep.subr.mxu0 %v2911
    %3023 = vmatpush1.msra.mxu0 %v2910
    %3024 = vmatprep.subr.mxu0 %v2915
    %3025 = vmatpush1.msra.mxu0 %v2914
    %3026 = vmatprep.subr.mxu0 %v2919
    %3027 = vmatpush1.msra.mxu0 %v2918
    %3028 = vmatprep.subr.mxu0 %v2923
    %3029 = vmatpush1.msra.mxu0 %v2922
    %3030 = vmatprep.subr.mxu0 %v2927
    %3031 = vmatpush1.msra.mxu0 %v2926
    %3032 = vmatprep.subr.mxu0 %v2931
    %3033 = vmatpush1.msra.mxu0 %v2930
    %3034 = vmatprep.subr.mxu0 %v2935
    %3035 = vmatpush1.msra.mxu0 %v2934
    %3036 = vmatprep.subr.mxu0 %v2939
    %3037 = vmatpush1.msra.mxu0 %v2938
    %3038 = vmatprep.subr.mxu0 %v2943
    %3039 = vmatpush1.msra.mxu0 %v2942
    %3040 = vmatprep.subr.mxu0 %v2947
    %3041 = vmatpush1.msra.mxu0 %v2946
    %3042 = vmatprep.subr.mxu0 %v2951
    %3043 = vmatpush1.msra.mxu0 %v2950
    %3044 = vmatprep.subr.mxu0 %v2955
    %3045 = vmatpush1.msra.mxu0 %v2954
    %3046 = vmatprep.subr.mxu0 %v2959
    %3047 = vmatpush1.msra.mxu0 %v2958
    %3048 = vmatprep.subr.mxu0 %v2963
    %3049 = vmatpush1.msra.mxu0 %v2962
    %3050 = vmatprep.subr.mxu0 %v2967
    %3051 = vmatpush1.msra.mxu0 %v2966
    %3052 = vmatprep.subr.mxu0 %v2971
    %3053 = vmatpush1.msra.mxu0 %v2970
    %3054 = vmatprep.subr.mxu0 %v2975
    %3055 = vmatpush1.msra.mxu0 %v2974
    %3056 = vmatprep.subr.mxu0 %v2979
    %3057 = vmatpush1.msra.mxu0 %v2978
    %3058 = vmatprep.subr.mxu0 %v2983
    %3059 = vmatpush1.msra.mxu0 %v2982
    %3060 = vmatprep.subr.mxu0 %v2987
    %3061 = vmatpush1.msra.mxu0 %v2986
    %3062 = vmatprep.subr.mxu0 %v2991
    %3063 = vmatpush1.msra.mxu0 %v2990
    %3064 = vmatprep.subr.mxu0 %v2995
    %3065 = vmatpush1.msra.mxu0 %v2994
    %3066 = vmatprep.subr.mxu0 %v2999
    %3067 = vmatpush1.msra.mxu0 %v2998
    %3068 = vmatprep.subr.mxu0 %v3003
    %3069 = vmatpush1.msra.mxu0 %v3002
    %3070 = vmatprep.mubr.f32.mxu0 %v2877
    %3071 = vmatmul.mubr.f32.gmra.mrb[0].mxu0 %v2876
    %v3072 = vpop.f32.mrb[0].mxu0
    %v3073 = vadd.f32 0.0, %v3072
    %v3074 = vpop.f32.mrb[0].mxu0
    %v3075 = vadd.f32 0.0, %v3074
    %3076 = vdwg.mxu0
    %3077 = vmatprep.subr.mxu0 %v2881
    %3078 = vmatpush1.msra.mxu0 %v2880
    %3079 = vmatprep.subr.mxu0 %v2885
    %3080 = vmatpush1.msra.mxu0 %v2884
    %3081 = vmatprep.subr.mxu0 %v2889
    %3082 = vmatpush1.msra.mxu0 %v2888
    %3083 = vmatprep.subr.mxu0 %v2893
    %3084 = vmatpush1.msra.mxu0 %v2892
    %3085 = vmatprep.subr.mxu0 %v2897
    %3086 = vmatpush1.msra.mxu0 %v2896
    %3087 = vmatprep.subr.mxu0 %v2901
    %3088 = vmatpush1.msra.mxu0 %v2900
    %3089 = vmatprep.subr.mxu0 %v2905
    %3090 = vmatpush1.msra.mxu0 %v2904
    %3091 = vmatprep.subr.mxu0 %v2909
    %3092 = vmatpush1.msra.mxu0 %v2908
    %3093 = vmatprep.subr.mxu0 %v2913
    %3094 = vmatpush1.msra.mxu0 %v2912
    %3095 = vmatprep.subr.mxu0 %v2917
    %3096 = vmatpush1.msra.mxu0 %v2916
    %3097 = vmatprep.subr.mxu0 %v2921
    %3098 = vmatpush1.msra.mxu0 %v2920
    %3099 = vmatprep.subr.mxu0 %v2925
    %3100 = vmatpush1.msra.mxu0 %v2924
    %3101 = vmatprep.subr.mxu0 %v2929
    %3102 = vmatpush1.msra.mxu0 %v2928
    %3103 = vmatprep.subr.mxu0 %v2933
    %3104 = vmatpush1.msra.mxu0 %v2932
    %3105 = vmatprep.subr.mxu0 %v2937
    %3106 = vmatpush1.msra.mxu0 %v2936
    %3107 = vmatprep.subr.mxu0 %v2941
    %3108 = vmatpush1.msra.mxu0 %v2940
    %3109 = vmatprep.subr.mxu0 %v2945
    %3110 = vmatpush1.msra.mxu0 %v2944
    %3111 = vmatprep.subr.mxu0 %v2949
    %3112 = vmatpush1.msra.mxu0 %v2948
    %3113 = vmatprep.subr.mxu0 %v2953
    %3114 = vmatpush1.msra.mxu0 %v2952
    %3115 = vmatprep.subr.mxu0 %v2957
    %3116 = vmatpush1.msra.mxu0 %v2956
    %3117 = vmatprep.subr.mxu0 %v2961
    %3118 = vmatpush1.msra.mxu0 %v2960
    %3119 = vmatprep.subr.mxu0 %v2965
    %3120 = vmatpush1.msra.mxu0 %v2964
    %3121 = vmatprep.subr.mxu0 %v2969
    %3122 = vmatpush1.msra.mxu0 %v2968
    %3123 = vmatprep.subr.mxu0 %v2973
    %3124 = vmatpush1.msra.mxu0 %v2972
    %3125 = vmatprep.subr.mxu0 %v2977
    %3126 = vmatpush1.msra.mxu0 %v2976
    %3127 = vmatprep.subr.mxu0 %v2981
    %3128 = vmatpush1.msra.mxu0 %v2980
    %3129 = vmatprep.subr.mxu0 %v2985
    %3130 = vmatpush1.msra.mxu0 %v2984
    %3131 = vmatprep.subr.mxu0 %v2989
    %3132 = vmatpush1.msra.mxu0 %v2988
    %3133 = vmatprep.subr.mxu0 %v2993
    %3134 = vmatpush1.msra.mxu0 %v2992
    %3135 = vmatprep.subr.mxu0 %v2997
    %3136 = vmatpush1.msra.mxu0 %v2996
    %3137 = vmatprep.subr.mxu0 %v3001
    %3138 = vmatpush1.msra.mxu0 %v3000
    %3139 = vmatprep.subr.mxu0 %v3005
    %3140 = vmatpush1.msra.mxu0 %v3004
    %3141 = vmatprep.mubr.f32.mxu0 %v2877
    %3142 = vmatmul.mubr.f32.gmra.mrb[0].mxu0 %v2876
    %v3143 = vpop.f32.mrb[0].mxu0
    %v3144 = vadd.f32 0.0, %v3143
    %v3145 = vpop.f32.mrb[0].mxu0
    %v3146 = vadd.f32 0.0, %v3145
    %3147 = vdwg.mxu0
    %3148 = vmatprep.subr.mxu0 %v2749
    %3149 = vmatpush1.msra.mxu0 %v2748
    %3150 = vmatprep.subr.mxu0 %v2753
    %3151 = vmatpush1.msra.mxu0 %v2752
    %3152 = vmatprep.subr.mxu0 %v2757
    %3153 = vmatpush1.msra.mxu0 %v2756
    %3154 = vmatprep.subr.mxu0 %v2761
    %3155 = vmatpush1.msra.mxu0 %v2760
    %3156 = vmatprep.subr.mxu0 %v2765
    %3157 = vmatpush1.msra.mxu0 %v2764
    %3158 = vmatprep.subr.mxu0 %v2769
    %3159 = vmatpush1.msra.mxu0 %v2768
    %3160 = vmatprep.subr.mxu0 %v2773
    %3161 = vmatpush1.msra.mxu0 %v2772
    %3162 = vmatprep.subr.mxu0 %v2777
    %3163 = vmatpush1.msra.mxu0 %v2776
    %3164 = vmatprep.subr.mxu0 %v2781
    %3165 = vmatpush1.msra.mxu0 %v2780
    %3166 = vmatprep.subr.mxu0 %v2785
    %3167 = vmatpush1.msra.mxu0 %v2784
    %3168 = vmatprep.subr.mxu0 %v2789
    %3169 = vmatpush1.msra.mxu0 %v2788
    %3170 = vmatprep.subr.mxu0 %v2793
    %3171 = vmatpush1.msra.mxu0 %v2792
    %3172 = vmatprep.subr.mxu0 %v2797
    %3173 = vmatpush1.msra.mxu0 %v2796
    %3174 = vmatprep.subr.mxu0 %v2801
    %3175 = vmatpush1.msra.mxu0 %v2800
    %3176 = vmatprep.subr.mxu0 %v2805
    %3177 = vmatpush1.msra.mxu0 %v2804
    %3178 = vmatprep.subr.mxu0 %v2809
    %3179 = vmatpush1.msra.mxu0 %v2808
    %3180 = vmatprep.subr.mxu0 %v2813
    %3181 = vmatpush1.msra.mxu0 %v2812
    %3182 = vmatprep.subr.mxu0 %v2817
    %3183 = vmatpush1.msra.mxu0 %v2816
    %3184 = vmatprep.subr.mxu0 %v2821
    %3185 = vmatpush1.msra.mxu0 %v2820
    %3186 = vmatprep.subr.mxu0 %v2825
    %3187 = vmatpush1.msra.mxu0 %v2824
    %3188 = vmatprep.subr.mxu0 %v2829
    %3189 = vmatpush1.msra.mxu0 %v2828
    %3190 = vmatprep.subr.mxu0 %v2833
    %3191 = vmatpush1.msra.mxu0 %v2832
    %3192 = vmatprep.subr.mxu0 %v2837
    %3193 = vmatpush1.msra.mxu0 %v2836
    %3194 = vmatprep.subr.mxu0 %v2841
    %3195 = vmatpush1.msra.mxu0 %v2840
    %3196 = vmatprep.subr.mxu0 %v2845
    %3197 = vmatpush1.msra.mxu0 %v2844
    %3198 = vmatprep.subr.mxu0 %v2849
    %3199 = vmatpush1.msra.mxu0 %v2848
    %3200 = vmatprep.subr.mxu0 %v2853
    %3201 = vmatpush1.msra.mxu0 %v2852
    %3202 = vmatprep.subr.mxu0 %v2857
    %3203 = vmatpush1.msra.mxu0 %v2856
    %3204 = vmatprep.subr.mxu0 %v2861
    %3205 = vmatpush1.msra.mxu0 %v2860
    %3206 = vmatprep.subr.mxu0 %v2865
    %3207 = vmatpush1.msra.mxu0 %v2864
    %3208 = vmatprep.subr.mxu0 %v2869
    %3209 = vmatpush1.msra.mxu0 %v2868
    %3210 = vmatprep.subr.mxu0 %v2873
    %3211 = vmatpush1.msra.mxu0 %v2872
    %3212 = vmatprep.mubr.f32.mxu0 %v2747
    %3213 = vmatmul.mubr.f32.gmra.mrb[0].mxu0 %v2746
    %v3214 = vpop.f32.mrb[0].mxu0
    %v3215 = vadd.f32 %v3073, %v3214
    %v3216 = vpop.f32.mrb[0].mxu0
    %v3217 = vadd.f32 %v3075, %v3216
    %3218 = vdwg.mxu0
    %3219 = vmatprep.subr.mxu0 %v2751
    %3220 = vmatpush1.msra.mxu0 %v2750
    %3221 = vmatprep.subr.mxu0 %v2755
    %3222 = vmatpush1.msra.mxu0 %v2754
    %3223 = vmatprep.subr.mxu0 %v2759
    %3224 = vmatpush1.msra.mxu0 %v2758
    %3225 = vmatprep.subr.mxu0 %v2763
    %3226 = vmatpush1.msra.mxu0 %v2762
    %3227 = vmatprep.subr.mxu0 %v2767
    %3228 = vmatpush1.msra.mxu0 %v2766
    %3229 = vmatprep.subr.mxu0 %v2771
    %3230 = vmatpush1.msra.mxu0 %v2770
    %3231 = vmatprep.subr.mxu0 %v2775
    %3232 = vmatpush1.msra.mxu0 %v2774
    %3233 = vmatprep.subr.mxu0 %v2779
    %3234 = vmatpush1.msra.mxu0 %v2778
    %3235 = vmatprep.subr.mxu0 %v2783
    %3236 = vmatpush1.msra.mxu0 %v2782
    %3237 = vmatprep.subr.mxu0 %v2787
    %3238 = vmatpush1.msra.mxu0 %v2786
    %3239 = vmatprep.subr.mxu0 %v2791
    %3240 = vmatpush1.msra.mxu0 %v2790
    %3241 = vmatprep.subr.mxu0 %v2795
    %3242 = vmatpush1.msra.mxu0 %v2794
    %3243 = vmatprep.subr.mxu0 %v2799
    %3244 = vmatpush1.msra.mxu0 %v2798
    %3245 = vmatprep.subr.mxu0 %v2803
    %3246 = vmatpush1.msra.mxu0 %v2802
    %3247 = vmatprep.subr.mxu0 %v2807
    %3248 = vmatpush1.msra.mxu0 %v2806
    %3249 = vmatprep.subr.mxu0 %v2811
    %3250 = vmatpush1.msra.mxu0 %v2810
    %3251 = vmatprep.subr.mxu0 %v2815
    %3252 = vmatpush1.msra.mxu0 %v2814
    %3253 = vmatprep.subr.mxu0 %v2819
    %3254 = vmatpush1.msra.mxu0 %v2818
    %3255 = vmatprep.subr.mxu0 %v2823
    %3256 = vmatpush1.msra.mxu0 %v2822
    %3257 = vmatprep.subr.mxu0 %v2827
    %3258 = vmatpush1.msra.mxu0 %v2826
    %3259 = vmatprep.subr.mxu0 %v2831
    %3260 = vmatpush1.msra.mxu0 %v2830
    %3261 = vmatprep.subr.mxu0 %v2835
    %3262 = vmatpush1.msra.mxu0 %v2834
    %3263 = vmatprep.subr.mxu0 %v2839
    %3264 = vmatpush1.msra.mxu0 %v2838
    %3265 = vmatprep.subr.mxu0 %v2843
    %3266 = vmatpush1.msra.mxu0 %v2842
    %3267 = vmatprep.subr.mxu0 %v2847
    %3268 = vmatpush1.msra.mxu0 %v2846
    %3269 = vmatprep.subr.mxu0 %v2851
    %3270 = vmatpush1.msra.mxu0 %v2850
    %3271 = vmatprep.subr.mxu0 %v2855
    %3272 = vmatpush1.msra.mxu0 %v2854
    %3273 = vmatprep.subr.mxu0 %v2859
    %3274 = vmatpush1.msra.mxu0 %v2858
    %3275 = vmatprep.subr.mxu0 %v2863
    %3276 = vmatpush1.msra.mxu0 %v2862
    %3277 = vmatprep.subr.mxu0 %v2867
    %3278 = vmatpush1.msra.mxu0 %v2866
    %3279 = vmatprep.subr.mxu0 %v2871
    %3280 = vmatpush1.msra.mxu0 %v2870
    %3281 = vmatprep.subr.mxu0 %v2875
    %3282 = vmatpush1.msra.mxu0 %v2874
    %3283 = vmatprep.mubr.f32.mxu0 %v2747
    %3284 = vmatmul.mubr.f32.gmra.mrb[0].mxu0 %v2746
    %v3285 = vpop.f32.mrb[0].mxu0
    %v3286 = vadd.f32 %v3144, %v3285
    %v3287 = vpop.f32.mrb[0].mxu0
    %v3288 = vadd.f32 %v3146, %v3287
    %3289 = vdwg.mxu0
    %v3290 = vld [vmem:[#allocation9] sm:$0xf]
    %v3292 = vlaneseq
    %v3293 = vshrl.u32 %v3292, 7
    %v3294 = vsub.s32 0, %v3293
    %v3295 = vrot.slane %v3290, %v3294
    %v3296 = vlaneseq
    %v3297 = vshrl.u32 %v3296, 7
    %v3298 = vsub.s32 1, %v3297
    %v3299 = vrot.slane %v3290, %v3298
    %v3300 = vlaneseq
    %v3301 = vshrl.u32 %v3300, 7
    %v3302 = vsub.s32 2, %v3301
    %v3303 = vrot.slane %v3290, %v3302
    %v3304 = vlaneseq
    %v3305 = vshrl.u32 %v3304, 7
    %v3306 = vsub.s32 3, %v3305
    %v3307 = vrot.slane %v3290, %v3306
    %v3312 = vadd.f32 %v3215, %v3295
    %v3313 = vadd.f32 %v3217, %v3299
    %v3314 = vadd.f32 %v3286, %v3303
    %v3315 = vadd.f32 %v3288, %v3307
    %v3316 = vmax.f32 %v3312, 0.0
    %v3317 = vmax.f32 %v3313, 0.0
    %v3318 = vmax.f32 %v3314, 0.0
    %v3319 = vmax.f32 %v3315, 0.0
    %3320 = vst [vmem:[#allocation3 + $0x60] sm:$0xff] %v3316
    %3321 = vst [vmem:[#allocation3 + $0x68] sm:$0xff] %v3317
    %3322 = vst [vmem:[#allocation3 + $0x70] sm:$0xff] %v3318
    %3323 = vst [vmem:[#allocation3 + $0x78] sm:$0xff] %v3319
    %v3324 = vld [vmem:[#allocation2 + $0x40] sm:$0xff]
    %v3325 = vld [vmem:[#allocation2 + $0x48] sm:$0xff]
    %v3326 = vld [vmem:[#allocation7] sm:$0xff]
    %v3327 = vld [vmem:[#allocation7 + $0x8] sm:$0xff]
    %v3328 = vld [vmem:[#allocation7 + $0x10] sm:$0xff]
    %v3329 = vld [vmem:[#allocation7 + $0x18] sm:$0xff]
    %v3330 = vld [vmem:[#allocation7 + $0x20] sm:$0xff]
    %v3331 = vld [vmem:[#allocation7 + $0x28] sm:$0xff]
    %v3332 = vld [vmem:[#allocation7 + $0x30] sm:$0xff]
    %v3333 = vld [vmem:[#allocation7 + $0x38] sm:$0xff]
    %v3334 = vld [vmem:[#allocation7 + $0x40] sm:$0xff]
    %v3335 = vld [vmem:[#allocation7 + $0x48] sm:$0xff]
    %v3336 = vld [vmem:[#allocation7 + $0x50] sm:$0xff]
    %v3337 = vld [vmem:[#allocation7 + $0x58] sm:$0xff]
    %v3338 = vld [vmem:[#allocation7 + $0x60] sm:$0xff]
    %v3339 = vld [vmem:[#allocation7 + $0x68] sm:$0xff]
    %v3340 = vld [vmem:[#allocation7 + $0x70] sm:$0xff]
    %v3341 = vld [vmem:[#allocation7 + $0x78] sm:$0xff]
    %v3342 = vld [vmem:[#allocation7 + $0x80] sm:$0xff]
    %v3343 = vld [vmem:[#allocation7 + $0x88] sm:$0xff]
    %v3344 = vld [vmem:[#allocation7 + $0x90] sm:$0xff]
    %v3345 = vld [vmem:[#allocation7 + $0x98] sm:$0xff]
    %v3346 = vld [vmem:[#allocation7 + $0xa0] sm:$0xff]
    %v3347 = vld [vmem:[#allocation7 + $0xa8] sm:$0xff]
    %v3348 = vld [vmem:[#allocation7 + $0xb0] sm:$0xff]
    %v3349 = vld [vmem:[#allocation7 + $0xb8] sm:$0xff]
    %v3350 = vld [vmem:[#allocation7 + $0xc0] sm:$0xff]
    %v3351 = vld [vmem:[#allocation7 + $0xc8] sm:$0xff]
    %v3352 = vld [vmem:[#allocation7 + $0xd0] sm:$0xff]
    %v3353 = vld [vmem:[#allocation7 + $0xd8] sm:$0xff]
    %v3354 = vld [vmem:[#allocation7 + $0xe0] sm:$0xff]
    %v3355 = vld [vmem:[#allocation7 + $0xe8] sm:$0xff]
    %v3356 = vld [vmem:[#allocation7 + $0xf0] sm:$0xff]
    %v3357 = vld [vmem:[#allocation7 + $0xf8] sm:$0xff]
    %v3358 = vld [vmem:[#allocation7 + $0x100] sm:$0xff]
    %v3359 = vld [vmem:[#allocation7 + $0x108] sm:$0xff]
    %v3360 = vld [vmem:[#allocation7 + $0x110] sm:$0xff]
    %v3361 = vld [vmem:[#allocation7 + $0x118] sm:$0xff]
    %v3362 = vld [vmem:[#allocation7 + $0x120] sm:$0xff]
    %v3363 = vld [vmem:[#allocation7 + $0x128] sm:$0xff]
    %v3364 = vld [vmem:[#allocation7 + $0x130] sm:$0xff]
    %v3365 = vld [vmem:[#allocation7 + $0x138] sm:$0xff]
    %v3366 = vld [vmem:[#allocation7 + $0x140] sm:$0xff]
    %v3367 = vld [vmem:[#allocation7 + $0x148] sm:$0xff]
    %v3368 = vld [vmem:[#allocation7 + $0x150] sm:$0xff]
    %v3369 = vld [vmem:[#allocation7 + $0x158] sm:$0xff]
    %v3370 = vld [vmem:[#allocation7 + $0x160] sm:$0xff]
    %v3371 = vld [vmem:[#allocation7 + $0x168] sm:$0xff]
    %v3372 = vld [vmem:[#allocation7 + $0x170] sm:$0xff]
    %v3373 = vld [vmem:[#allocation7 + $0x178] sm:$0xff]
    %v3374 = vld [vmem:[#allocation7 + $0x180] sm:$0xff]
    %v3375 = vld [vmem:[#allocation7 + $0x188] sm:$0xff]
    %v3376 = vld [vmem:[#allocation7 + $0x190] sm:$0xff]
    %v3377 = vld [vmem:[#allocation7 + $0x198] sm:$0xff]
    %v3378 = vld [vmem:[#allocation7 + $0x1a0] sm:$0xff]
    %v3379 = vld [vmem:[#allocation7 + $0x1a8] sm:$0xff]
    %v3380 = vld [vmem:[#allocation7 + $0x1b0] sm:$0xff]
    %v3381 = vld [vmem:[#allocation7 + $0x1b8] sm:$0xff]
    %v3382 = vld [vmem:[#allocation7 + $0x1c0] sm:$0xff]
    %v3383 = vld [vmem:[#allocation7 + $0x1c8] sm:$0xff]
    %v3384 = vld [vmem:[#allocation7 + $0x1d0] sm:$0xff]
    %v3385 = vld [vmem:[#allocation7 + $0x1d8] sm:$0xff]
    %v3386 = vld [vmem:[#allocation7 + $0x1e0] sm:$0xff]
    %v3387 = vld [vmem:[#allocation7 + $0x1e8] sm:$0xff]
    %v3388 = vld [vmem:[#allocation7 + $0x1f0] sm:$0xff]
    %v3389 = vld [vmem:[#allocation7 + $0x1f8] sm:$0xff]
    %v3390 = vld [vmem:[#allocation7 + $0x200] sm:$0xff]
    %v3391 = vld [vmem:[#allocation7 + $0x208] sm:$0xff]
    %v3392 = vld [vmem:[#allocation7 + $0x210] sm:$0xff]
    %v3393 = vld [vmem:[#allocation7 + $0x218] sm:$0xff]
    %v3394 = vld [vmem:[#allocation7 + $0x220] sm:$0xff]
    %v3395 = vld [vmem:[#allocation7 + $0x228] sm:$0xff]
    %v3396 = vld [vmem:[#allocation7 + $0x230] sm:$0xff]
    %v3397 = vld [vmem:[#allocation7 + $0x238] sm:$0xff]
    %v3398 = vld [vmem:[#allocation7 + $0x240] sm:$0xff]
    %v3399 = vld [vmem:[#allocation7 + $0x248] sm:$0xff]
    %v3400 = vld [vmem:[#allocation7 + $0x250] sm:$0xff]
    %v3401 = vld [vmem:[#allocation7 + $0x258] sm:$0xff]
    %v3402 = vld [vmem:[#allocation7 + $0x260] sm:$0xff]
    %v3403 = vld [vmem:[#allocation7 + $0x268] sm:$0xff]
    %v3404 = vld [vmem:[#allocation7 + $0x270] sm:$0xff]
    %v3405 = vld [vmem:[#allocation7 + $0x278] sm:$0xff]
    %v3406 = vld [vmem:[#allocation7 + $0x280] sm:$0xff]
    %v3407 = vld [vmem:[#allocation7 + $0x288] sm:$0xff]
    %v3408 = vld [vmem:[#allocation7 + $0x290] sm:$0xff]
    %v3409 = vld [vmem:[#allocation7 + $0x298] sm:$0xff]
    %v3410 = vld [vmem:[#allocation7 + $0x2a0] sm:$0xff]
    %v3411 = vld [vmem:[#allocation7 + $0x2a8] sm:$0xff]
    %v3412 = vld [vmem:[#allocation7 + $0x2b0] sm:$0xff]
    %v3413 = vld [vmem:[#allocation7 + $0x2b8] sm:$0xff]
    %v3414 = vld [vmem:[#allocation7 + $0x2c0] sm:$0xff]
    %v3415 = vld [vmem:[#allocation7 + $0x2c8] sm:$0xff]
    %v3416 = vld [vmem:[#allocation7 + $0x2d0] sm:$0xff]
    %v3417 = vld [vmem:[#allocation7 + $0x2d8] sm:$0xff]
    %v3418 = vld [vmem:[#allocation7 + $0x2e0] sm:$0xff]
    %v3419 = vld [vmem:[#allocation7 + $0x2e8] sm:$0xff]
    %v3420 = vld [vmem:[#allocation7 + $0x2f0] sm:$0xff]
    %v3421 = vld [vmem:[#allocation7 + $0x2f8] sm:$0xff]
    %v3422 = vld [vmem:[#allocation7 + $0x300] sm:$0xff]
    %v3423 = vld [vmem:[#allocation7 + $0x308] sm:$0xff]
    %v3424 = vld [vmem:[#allocation7 + $0x310] sm:$0xff]
    %v3425 = vld [vmem:[#allocation7 + $0x318] sm:$0xff]
    %v3426 = vld [vmem:[#allocation7 + $0x320] sm:$0xff]
    %v3427 = vld [vmem:[#allocation7 + $0x328] sm:$0xff]
    %v3428 = vld [vmem:[#allocation7 + $0x330] sm:$0xff]
    %v3429 = vld [vmem:[#allocation7 + $0x338] sm:$0xff]
    %v3430 = vld [vmem:[#allocation7 + $0x340] sm:$0xff]
    %v3431 = vld [vmem:[#allocation7 + $0x348] sm:$0xff]
    %v3432 = vld [vmem:[#allocation7 + $0x350] sm:$0xff]
    %v3433 = vld [vmem:[#allocation7 + $0x358] sm:$0xff]
    %v3434 = vld [vmem:[#allocation7 + $0x360] sm:$0xff]
    %v3435 = vld [vmem:[#allocation7 + $0x368] sm:$0xff]
    %v3436 = vld [vmem:[#allocation7 + $0x370] sm:$0xff]
    %v3437 = vld [vmem:[#allocation7 + $0x378] sm:$0xff]
    %v3438 = vld [vmem:[#allocation7 + $0x380] sm:$0xff]
    %v3439 = vld [vmem:[#allocation7 + $0x388] sm:$0xff]
    %v3440 = vld [vmem:[#allocation7 + $0x390] sm:$0xff]
    %v3441 = vld [vmem:[#allocation7 + $0x398] sm:$0xff]
    %v3442 = vld [vmem:[#allocation7 + $0x3a0] sm:$0xff]
    %v3443 = vld [vmem:[#allocation7 + $0x3a8] sm:$0xff]
    %v3444 = vld [vmem:[#allocation7 + $0x3b0] sm:$0xff]
    %v3445 = vld [vmem:[#allocation7 + $0x3b8] sm:$0xff]
    %v3446 = vld [vmem:[#allocation7 + $0x3c0] sm:$0xff]
    %v3447 = vld [vmem:[#allocation7 + $0x3c8] sm:$0xff]
    %v3448 = vld [vmem:[#allocation7 + $0x3d0] sm:$0xff]
    %v3449 = vld [vmem:[#allocation7 + $0x3d8] sm:$0xff]
    %v3450 = vld [vmem:[#allocation7 + $0x3e0] sm:$0xff]
    %v3451 = vld [vmem:[#allocation7 + $0x3e8] sm:$0xff]
    %v3452 = vld [vmem:[#allocation7 + $0x3f0] sm:$0xff]
    %v3453 = vld [vmem:[#allocation7 + $0x3f8] sm:$0xff]
    %v3454 = vld [vmem:[#allocation2 + $0x50] sm:$0xff]
    %v3455 = vld [vmem:[#allocation2 + $0x58] sm:$0xff]
    %v3456 = vld [vmem:[%s1143] sm:$0xff]
    %v3457 = vld [vmem:[%s1143 + $0x8] sm:$0xff]
    %v3458 = vld [vmem:[%s1143 + $0x10] sm:$0xff]
    %v3459 = vld [vmem:[%s1143 + $0x18] sm:$0xff]
    %v3460 = vld [vmem:[%s1143 + $0x20] sm:$0xff]
    %v3461 = vld [vmem:[%s1143 + $0x28] sm:$0xff]
    %v3462 = vld [vmem:[%s1143 + $0x30] sm:$0xff]
    %v3463 = vld [vmem:[%s1143 + $0x38] sm:$0xff]
    %v3464 = vld [vmem:[%s1143 + $0x40] sm:$0xff]
    %v3465 = vld [vmem:[%s1143 + $0x48] sm:$0xff]
    %v3466 = vld [vmem:[%s1143 + $0x50] sm:$0xff]
    %v3467 = vld [vmem:[%s1143 + $0x58] sm:$0xff]
    %v3468 = vld [vmem:[%s1143 + $0x60] sm:$0xff]
    %v3469 = vld [vmem:[%s1143 + $0x68] sm:$0xff]
    %v3470 = vld [vmem:[%s1143 + $0x70] sm:$0xff]
    %v3471 = vld [vmem:[%s1143 + $0x78] sm:$0xff]
    %v3472 = vld [vmem:[%s1143 + $0x80] sm:$0xff]
    %v3473 = vld [vmem:[%s1143 + $0x88] sm:$0xff]
    %v3474 = vld [vmem:[%s1143 + $0x90] sm:$0xff]
    %v3475 = vld [vmem:[%s1143 + $0x98] sm:$0xff]
    %v3476 = vld [vmem:[%s1143 + $0xa0] sm:$0xff]
    %v3477 = vld [vmem:[%s1143 + $0xa8] sm:$0xff]
    %v3478 = vld [vmem:[%s1143 + $0xb0] sm:$0xff]
    %v3479 = vld [vmem:[%s1143 + $0xb8] sm:$0xff]
    %v3480 = vld [vmem:[%s1143 + $0xc0] sm:$0xff]
    %v3481 = vld [vmem:[%s1143 + $0xc8] sm:$0xff]
    %v3482 = vld [vmem:[%s1143 + $0xd0] sm:$0xff]
    %v3483 = vld [vmem:[%s1143 + $0xd8] sm:$0xff]
    %v3484 = vld [vmem:[%s1143 + $0xe0] sm:$0xff]
    %v3485 = vld [vmem:[%s1143 + $0xe8] sm:$0xff]
    %v3486 = vld [vmem:[%s1143 + $0xf0] sm:$0xff]
    %v3487 = vld [vmem:[%s1143 + $0xf8] sm:$0xff]
    %v3488 = vld [vmem:[%s1143 + $0x100] sm:$0xff]
    %v3489 = vld [vmem:[%s1143 + $0x108] sm:$0xff]
    %v3490 = vld [vmem:[%s1143 + $0x110] sm:$0xff]
    %v3491 = vld [vmem:[%s1143 + $0x118] sm:$0xff]
    %v3492 = vld [vmem:[%s1143 + $0x120] sm:$0xff]
    %v3493 = vld [vmem:[%s1143 + $0x128] sm:$0xff]
    %v3494 = vld [vmem:[%s1143 + $0x130] sm:$0xff]
    %v3495 = vld [vmem:[%s1143 + $0x138] sm:$0xff]
    %v3496 = vld [vmem:[%s1143 + $0x140] sm:$0xff]
    %v3497 = vld [vmem:[%s1143 + $0x148] sm:$0xff]
    %v3498 = vld [vmem:[%s1143 + $0x150] sm:$0xff]
    %v3499 = vld [vmem:[%s1143 + $0x158] sm:$0xff]
    %v3500 = vld [vmem:[%s1143 + $0x160] sm:$0xff]
    %v3501 = vld [vmem:[%s1143 + $0x168] sm:$0xff]
    %v3502 = vld [vmem:[%s1143 + $0x170] sm:$0xff]
    %v3503 = vld [vmem:[%s1143 + $0x178] sm:$0xff]
    %v3504 = vld [vmem:[%s1143 + $0x180] sm:$0xff]
    %v3505 = vld [vmem:[%s1143 + $0x188] sm:$0xff]
    %v3506 = vld [vmem:[%s1143 + $0x190] sm:$0xff]
    %v3507 = vld [vmem:[%s1143 + $0x198] sm:$0xff]
    %v3508 = vld [vmem:[%s1143 + $0x1a0] sm:$0xff]
    %v3509 = vld [vmem:[%s1143 + $0x1a8] sm:$0xff]
    %v3510 = vld [vmem:[%s1143 + $0x1b0] sm:$0xff]
    %v3511 = vld [vmem:[%s1143 + $0x1b8] sm:$0xff]
    %v3512 = vld [vmem:[%s1143 + $0x1c0] sm:$0xff]
    %v3513 = vld [vmem:[%s1143 + $0x1c8] sm:$0xff]
    %v3514 = vld [vmem:[%s1143 + $0x1d0] sm:$0xff]
    %v3515 = vld [vmem:[%s1143 + $0x1d8] sm:$0xff]
    %v3516 = vld [vmem:[%s1143 + $0x1e0] sm:$0xff]
    %v3517 = vld [vmem:[%s1143 + $0x1e8] sm:$0xff]
    %v3518 = vld [vmem:[%s1143 + $0x1f0] sm:$0xff]
    %v3519 = vld [vmem:[%s1143 + $0x1f8] sm:$0xff]
    %v3520 = vld [vmem:[%s1143 + $0x200] sm:$0xff]
    %v3521 = vld [vmem:[%s1143 + $0x208] sm:$0xff]
    %v3522 = vld [vmem:[%s1143 + $0x210] sm:$0xff]
    %v3523 = vld [vmem:[%s1143 + $0x218] sm:$0xff]
    %v3524 = vld [vmem:[%s1143 + $0x220] sm:$0xff]
    %v3525 = vld [vmem:[%s1143 + $0x228] sm:$0xff]
    %v3526 = vld [vmem:[%s1143 + $0x230] sm:$0xff]
    %v3527 = vld [vmem:[%s1143 + $0x238] sm:$0xff]
    %v3528 = vld [vmem:[%s1143 + $0x240] sm:$0xff]
    %v3529 = vld [vmem:[%s1143 + $0x248] sm:$0xff]
    %v3530 = vld [vmem:[%s1143 + $0x250] sm:$0xff]
    %v3531 = vld [vmem:[%s1143 + $0x258] sm:$0xff]
    %v3532 = vld [vmem:[%s1143 + $0x260] sm:$0xff]
    %v3533 = vld [vmem:[%s1143 + $0x268] sm:$0xff]
    %v3534 = vld [vmem:[%s1143 + $0x270] sm:$0xff]
    %v3535 = vld [vmem:[%s1143 + $0x278] sm:$0xff]
    %v3536 = vld [vmem:[%s1143 + $0x280] sm:$0xff]
    %v3537 = vld [vmem:[%s1143 + $0x288] sm:$0xff]
    %v3538 = vld [vmem:[%s1143 + $0x290] sm:$0xff]
    %v3539 = vld [vmem:[%s1143 + $0x298] sm:$0xff]
    %v3540 = vld [vmem:[%s1143 + $0x2a0] sm:$0xff]
    %v3541 = vld [vmem:[%s1143 + $0x2a8] sm:$0xff]
    %v3542 = vld [vmem:[%s1143 + $0x2b0] sm:$0xff]
    %v3543 = vld [vmem:[%s1143 + $0x2b8] sm:$0xff]
    %v3544 = vld [vmem:[%s1143 + $0x2c0] sm:$0xff]
    %v3545 = vld [vmem:[%s1143 + $0x2c8] sm:$0xff]
    %v3546 = vld [vmem:[%s1143 + $0x2d0] sm:$0xff]
    %v3547 = vld [vmem:[%s1143 + $0x2d8] sm:$0xff]
    %v3548 = vld [vmem:[%s1143 + $0x2e0] sm:$0xff]
    %v3549 = vld [vmem:[%s1143 + $0x2e8] sm:$0xff]
    %v3550 = vld [vmem:[%s1143 + $0x2f0] sm:$0xff]
    %v3551 = vld [vmem:[%s1143 + $0x2f8] sm:$0xff]
    %v3552 = vld [vmem:[%s1143 + $0x300] sm:$0xff]
    %v3553 = vld [vmem:[%s1143 + $0x308] sm:$0xff]
    %v3554 = vld [vmem:[%s1143 + $0x310] sm:$0xff]
    %v3555 = vld [vmem:[%s1143 + $0x318] sm:$0xff]
    %v3556 = vld [vmem:[%s1143 + $0x320] sm:$0xff]
    %v3557 = vld [vmem:[%s1143 + $0x328] sm:$0xff]
    %v3558 = vld [vmem:[%s1143 + $0x330] sm:$0xff]
    %v3559 = vld [vmem:[%s1143 + $0x338] sm:$0xff]
    %v3560 = vld [vmem:[%s1143 + $0x340] sm:$0xff]
    %v3561 = vld [vmem:[%s1143 + $0x348] sm:$0xff]
    %v3562 = vld [vmem:[%s1143 + $0x350] sm:$0xff]
    %v3563 = vld [vmem:[%s1143 + $0x358] sm:$0xff]
    %v3564 = vld [vmem:[%s1143 + $0x360] sm:$0xff]
    %v3565 = vld [vmem:[%s1143 + $0x368] sm:$0xff]
    %v3566 = vld [vmem:[%s1143 + $0x370] sm:$0xff]
    %v3567 = vld [vmem:[%s1143 + $0x378] sm:$0xff]
    %v3568 = vld [vmem:[%s1143 + $0x380] sm:$0xff]
    %v3569 = vld [vmem:[%s1143 + $0x388] sm:$0xff]
    %v3570 = vld [vmem:[%s1143 + $0x390] sm:$0xff]
    %v3571 = vld [vmem:[%s1143 + $0x398] sm:$0xff]
    %v3572 = vld [vmem:[%s1143 + $0x3a0] sm:$0xff]
    %v3573 = vld [vmem:[%s1143 + $0x3a8] sm:$0xff]
    %v3574 = vld [vmem:[%s1143 + $0x3b0] sm:$0xff]
    %v3575 = vld [vmem:[%s1143 + $0x3b8] sm:$0xff]
    %v3576 = vld [vmem:[%s1143 + $0x3c0] sm:$0xff]
    %v3577 = vld [vmem:[%s1143 + $0x3c8] sm:$0xff]
    %v3578 = vld [vmem:[%s1143 + $0x3d0] sm:$0xff]
    %v3579 = vld [vmem:[%s1143 + $0x3d8] sm:$0xff]
    %v3580 = vld [vmem:[%s1143 + $0x3e0] sm:$0xff]
    %v3581 = vld [vmem:[%s1143 + $0x3e8] sm:$0xff]
    %v3582 = vld [vmem:[%s1143 + $0x3f0] sm:$0xff]
    %v3583 = vld [vmem:[%s1143 + $0x3f8] sm:$0xff]
    %3584 = vmatprep.subr.mxu0 %v3457
    %3585 = vmatpush1.msra.mxu0 %v3456
    %3586 = vmatprep.subr.mxu0 %v3461
    %3587 = vmatpush1.msra.mxu0 %v3460
    %3588 = vmatprep.subr.mxu0 %v3465
    %3589 = vmatpush1.msra.mxu0 %v3464
    %3590 = vmatprep.subr.mxu0 %v3469
    %3591 = vmatpush1.msra.mxu0 %v3468
    %3592 = vmatprep.subr.mxu0 %v3473
    %3593 = vmatpush1.msra.mxu0 %v3472
    %3594 = vmatprep.subr.mxu0 %v3477
    %3595 = vmatpush1.msra.mxu0 %v3476
    %3596 = vmatprep.subr.mxu0 %v3481
    %3597 = vmatpush1.msra.mxu0 %v3480
    %3598 = vmatprep.subr.mxu0 %v3485
    %3599 = vmatpush1.msra.mxu0 %v3484
    %3600 = vmatprep.subr.mxu0 %v3489
    %3601 = vmatpush1.msra.mxu0 %v3488
    %3602 = vmatprep.subr.mxu0 %v3493
    %3603 = vmatpush1.msra.mxu0 %v3492
    %3604 = vmatprep.subr.mxu0 %v3497
    %3605 = vmatpush1.msra.mxu0 %v3496
    %3606 = vmatprep.subr.mxu0 %v3501
    %3607 = vmatpush1.msra.mxu0 %v3500
    %3608 = vmatprep.subr.mxu0 %v3505
    %3609 = vmatpush1.msra.mxu0 %v3504
    %3610 = vmatprep.subr.mxu0 %v3509
    %3611 = vmatpush1.msra.mxu0 %v3508
    %3612 = vmatprep.subr.mxu0 %v3513
    %3613 = vmatpush1.msra.mxu0 %v3512
    %3614 = vmatprep.subr.mxu0 %v3517
    %3615 = vmatpush1.msra.mxu0 %v3516
    %3616 = vmatprep.subr.mxu0 %v3521
    %3617 = vmatpush1.msra.mxu0 %v3520
    %3618 = vmatprep.subr.mxu0 %v3525
    %3619 = vmatpush1.msra.mxu0 %v3524
    %3620 = vmatprep.subr.mxu0 %v3529
    %3621 = vmatpush1.msra.mxu0 %v3528
    %3622 = vmatprep.subr.mxu0 %v3533
    %3623 = vmatpush1.msra.mxu0 %v3532
    %3624 = vmatprep.subr.mxu0 %v3537
    %3625 = vmatpush1.msra.mxu0 %v3536
    %3626 = vmatprep.subr.mxu0 %v3541
    %3627 = vmatpush1.msra.mxu0 %v3540
    %3628 = vmatprep.subr.mxu0 %v3545
    %3629 = vmatpush1.msra.mxu0 %v3544
    %3630 = vmatprep.subr.mxu0 %v3549
    %3631 = vmatpush1.msra.mxu0 %v3548
    %3632 = vmatprep.subr.mxu0 %v3553
    %3633 = vmatpush1.msra.mxu0 %v3552
    %3634 = vmatprep.subr.mxu0 %v3557
    %3635 = vmatpush1.msra.mxu0 %v3556
    %3636 = vmatprep.subr.mxu0 %v3561
    %3637 = vmatpush1.msra.mxu0 %v3560
    %3638 = vmatprep.subr.mxu0 %v3565
    %3639 = vmatpush1.msra.mxu0 %v3564
    %3640 = vmatprep.subr.mxu0 %v3569
    %3641 = vmatpush1.msra.mxu0 %v3568
    %3642 = vmatprep.subr.mxu0 %v3573
    %3643 = vmatpush1.msra.mxu0 %v3572
    %3644 = vmatprep.subr.mxu0 %v3577
    %3645 = vmatpush1.msra.mxu0 %v3576
    %3646 = vmatprep.subr.mxu0 %v3581
    %3647 = vmatpush1.msra.mxu0 %v3580
    %3648 = vmatprep.mubr.f32.mxu0 %v3455
    %3649 = vmatmul.mubr.f32.gmra.mrb[0].mxu0 %v3454
    %v3650 = vpop.f32.mrb[0].mxu0
    %v3651 = vadd.f32 0.0, %v3650
    %v3652 = vpop.f32.mrb[0].mxu0
    %v3653 = vadd.f32 0.0, %v3652
    %3654 = vdwg.mxu0
    %3655 = vmatprep.subr.mxu0 %v3459
    %3656 = vmatpush1.msra.mxu0 %v3458
    %3657 = vmatprep.subr.mxu0 %v3463
    %3658 = vmatpush1.msra.mxu0 %v3462
    %3659 = vmatprep.subr.mxu0 %v3467
    %3660 = vmatpush1.msra.mxu0 %v3466
    %3661 = vmatprep.subr.mxu0 %v3471
    %3662 = vmatpush1.msra.mxu0 %v3470
    %3663 = vmatprep.subr.mxu0 %v3475
    %3664 = vmatpush1.msra.mxu0 %v3474
    %3665 = vmatprep.subr.mxu0 %v3479
    %3666 = vmatpush1.msra.mxu0 %v3478
    %3667 = vmatprep.subr.mxu0 %v3483
    %3668 = vmatpush1.msra.mxu0 %v3482
    %3669 = vmatprep.subr.mxu0 %v3487
    %3670 = vmatpush1.msra.mxu0 %v3486
    %3671 = vmatprep.subr.mxu0 %v3491
    %3672 = vmatpush1.msra.mxu0 %v3490
    %3673 = vmatprep.subr.mxu0 %v3495
    %3674 = vmatpush1.msra.mxu0 %v3494
    %3675 = vmatprep.subr.mxu0 %v3499
    %3676 = vmatpush1.msra.mxu0 %v3498
    %3677 = vmatprep.subr.mxu0 %v3503
    %3678 = vmatpush1.msra.mxu0 %v3502
    %3679 = vmatprep.subr.mxu0 %v3507
    %3680 = vmatpush1.msra.mxu0 %v3506
    %3681 = vmatprep.subr.mxu0 %v3511
    %3682 = vmatpush1.msra.mxu0 %v3510
    %3683 = vmatprep.subr.mxu0 %v3515
    %3684 = vmatpush1.msra.mxu0 %v3514
    %3685 = vmatprep.subr.mxu0 %v3519
    %3686 = vmatpush1.msra.mxu0 %v3518
    %3687 = vmatprep.subr.mxu0 %v3523
    %3688 = vmatpush1.msra.mxu0 %v3522
    %3689 = vmatprep.subr.mxu0 %v3527
    %3690 = vmatpush1.msra.mxu0 %v3526
    %3691 = vmatprep.subr.mxu0 %v3531
    %3692 = vmatpush1.msra.mxu0 %v3530
    %3693 = vmatprep.subr.mxu0 %v3535
    %3694 = vmatpush1.msra.mxu0 %v3534
    %3695 = vmatprep.subr.mxu0 %v3539
    %3696 = vmatpush1.msra.mxu0 %v3538
    %3697 = vmatprep.subr.mxu0 %v3543
    %3698 = vmatpush1.msra.mxu0 %v3542
    %3699 = vmatprep.subr.mxu0 %v3547
    %3700 = vmatpush1.msra.mxu0 %v3546
    %3701 = vmatprep.subr.mxu0 %v3551
    %3702 = vmatpush1.msra.mxu0 %v3550
    %3703 = vmatprep.subr.mxu0 %v3555
    %3704 = vmatpush1.msra.mxu0 %v3554
    %3705 = vmatprep.subr.mxu0 %v3559
    %3706 = vmatpush1.msra.mxu0 %v3558
    %3707 = vmatprep.subr.mxu0 %v3563
    %3708 = vmatpush1.msra.mxu0 %v3562
    %3709 = vmatprep.subr.mxu0 %v3567
    %3710 = vmatpush1.msra.mxu0 %v3566
    %3711 = vmatprep.subr.mxu0 %v3571
    %3712 = vmatpush1.msra.mxu0 %v3570
    %3713 = vmatprep.subr.mxu0 %v3575
    %3714 = vmatpush1.msra.mxu0 %v3574
    %3715 = vmatprep.subr.mxu0 %v3579
    %3716 = vmatpush1.msra.mxu0 %v3578
    %3717 = vmatprep.subr.mxu0 %v3583
    %3718 = vmatpush1.msra.mxu0 %v3582
    %3719 = vmatprep.mubr.f32.mxu0 %v3455
    %3720 = vmatmul.mubr.f32.gmra.mrb[0].mxu0 %v3454
    %v3721 = vpop.f32.mrb[0].mxu0
    %v3722 = vadd.f32 0.0, %v3721
    %v3723 = vpop.f32.mrb[0].mxu0
    %v3724 = vadd.f32 0.0, %v3723
    %3725 = vdwg.mxu0
    %3726 = vmatprep.subr.mxu0 %v3327
    %3727 = vmatpush1.msra.mxu0 %v3326
    %3728 = vmatprep.subr.mxu0 %v3331
    %3729 = vmatpush1.msra.mxu0 %v3330
    %3730 = vmatprep.subr.mxu0 %v3335
    %3731 = vmatpush1.msra.mxu0 %v3334
    %3732 = vmatprep.subr.mxu0 %v3339
    %3733 = vmatpush1.msra.mxu0 %v3338
    %3734 = vmatprep.subr.mxu0 %v3343
    %3735 = vmatpush1.msra.mxu0 %v3342
    %3736 = vmatprep.subr.mxu0 %v3347
    %3737 = vmatpush1.msra.mxu0 %v3346
    %3738 = vmatprep.subr.mxu0 %v3351
    %3739 = vmatpush1.msra.mxu0 %v3350
    %3740 = vmatprep.subr.mxu0 %v3355
    %3741 = vmatpush1.msra.mxu0 %v3354
    %3742 = vmatprep.subr.mxu0 %v3359
    %3743 = vmatpush1.msra.mxu0 %v3358
    %3744 = vmatprep.subr.mxu0 %v3363
    %3745 = vmatpush1.msra.mxu0 %v3362
    %3746 = vmatprep.subr.mxu0 %v3367
    %3747 = vmatpush1.msra.mxu0 %v3366
    %3748 = vmatprep.subr.mxu0 %v3371
    %3749 = vmatpush1.msra.mxu0 %v3370
    %3750 = vmatprep.subr.mxu0 %v3375
    %3751 = vmatpush1.msra.mxu0 %v3374
    %3752 = vmatprep.subr.mxu0 %v3379
    %3753 = vmatpush1.msra.mxu0 %v3378
    %3754 = vmatprep.subr.mxu0 %v3383
    %3755 = vmatpush1.msra.mxu0 %v3382
    %3756 = vmatprep.subr.mxu0 %v3387
    %3757 = vmatpush1.msra.mxu0 %v3386
    %3758 = vmatprep.subr.mxu0 %v3391
    %3759 = vmatpush1.msra.mxu0 %v3390
    %3760 = vmatprep.subr.mxu0 %v3395
    %3761 = vmatpush1.msra.mxu0 %v3394
    %3762 = vmatprep.subr.mxu0 %v3399
    %3763 = vmatpush1.msra.mxu0 %v3398
    %3764 = vmatprep.subr.mxu0 %v3403
    %3765 = vmatpush1.msra.mxu0 %v3402
    %3766 = vmatprep.subr.mxu0 %v3407
    %3767 = vmatpush1.msra.mxu0 %v3406
    %3768 = vmatprep.subr.mxu0 %v3411
    %3769 = vmatpush1.msra.mxu0 %v3410
    %3770 = vmatprep.subr.mxu0 %v3415
    %3771 = vmatpush1.msra.mxu0 %v3414
    %3772 = vmatprep.subr.mxu0 %v3419
    %3773 = vmatpush1.msra.mxu0 %v3418
    %3774 = vmatprep.subr.mxu0 %v3423
    %3775 = vmatpush1.msra.mxu0 %v3422
    %3776 = vmatprep.subr.mxu0 %v3427
    %3777 = vmatpush1.msra.mxu0 %v3426
    %3778 = vmatprep.subr.mxu0 %v3431
    %3779 = vmatpush1.msra.mxu0 %v3430
    %3780 = vmatprep.subr.mxu0 %v3435
    %3781 = vmatpush1.msra.mxu0 %v3434
    %3782 = vmatprep.subr.mxu0 %v3439
    %3783 = vmatpush1.msra.mxu0 %v3438
    %3784 = vmatprep.subr.mxu0 %v3443
    %3785 = vmatpush1.msra.mxu0 %v3442
    %3786 = vmatprep.subr.mxu0 %v3447
    %3787 = vmatpush1.msra.mxu0 %v3446
    %3788 = vmatprep.subr.mxu0 %v3451
    %3789 = vmatpush1.msra.mxu0 %v3450
    %3790 = vmatprep.mubr.f32.mxu0 %v3325
    %3791 = vmatmul.mubr.f32.gmra.mrb[0].mxu0 %v3324
    %v3792 = vpop.f32.mrb[0].mxu0
    %v3793 = vadd.f32 %v3651, %v3792
    %v3794 = vpop.f32.mrb[0].mxu0
    %v3795 = vadd.f32 %v3653, %v3794
    %3796 = vdwg.mxu0
    %3797 = vmatprep.subr.mxu0 %v3329
    %3798 = vmatpush1.msra.mxu0 %v3328
    %3799 = vmatprep.subr.mxu0 %v3333
    %3800 = vmatpush1.msra.mxu0 %v3332
    %3801 = vmatprep.subr.mxu0 %v3337
    %3802 = vmatpush1.msra.mxu0 %v3336
    %3803 = vmatprep.subr.mxu0 %v3341
    %3804 = vmatpush1.msra.mxu0 %v3340
    %3805 = vmatprep.subr.mxu0 %v3345
    %3806 = vmatpush1.msra.mxu0 %v3344
    %3807 = vmatprep.subr.mxu0 %v3349
    %3808 = vmatpush1.msra.mxu0 %v3348
    %3809 = vmatprep.subr.mxu0 %v3353
    %3810 = vmatpush1.msra.mxu0 %v3352
    %3811 = vmatprep.subr.mxu0 %v3357
    %3812 = vmatpush1.msra.mxu0 %v3356
    %3813 = vmatprep.subr.mxu0 %v3361
    %3814 = vmatpush1.msra.mxu0 %v3360
    %3815 = vmatprep.subr.mxu0 %v3365
    %3816 = vmatpush1.msra.mxu0 %v3364
    %3817 = vmatprep.subr.mxu0 %v3369
    %3818 = vmatpush1.msra.mxu0 %v3368
    %3819 = vmatprep.subr.mxu0 %v3373
    %3820 = vmatpush1.msra.mxu0 %v3372
    %3821 = vmatprep.subr.mxu0 %v3377
    %3822 = vmatpush1.msra.mxu0 %v3376
    %3823 = vmatprep.subr.mxu0 %v3381
    %3824 = vmatpush1.msra.mxu0 %v3380
    %3825 = vmatprep.subr.mxu0 %v3385
    %3826 = vmatpush1.msra.mxu0 %v3384
    %3827 = vmatprep.subr.mxu0 %v3389
    %3828 = vmatpush1.msra.mxu0 %v3388
    %3829 = vmatprep.subr.mxu0 %v3393
    %3830 = vmatpush1.msra.mxu0 %v3392
    %3831 = vmatprep.subr.mxu0 %v3397
    %3832 = vmatpush1.msra.mxu0 %v3396
    %3833 = vmatprep.subr.mxu0 %v3401
    %3834 = vmatpush1.msra.mxu0 %v3400
    %3835 = vmatprep.subr.mxu0 %v3405
    %3836 = vmatpush1.msra.mxu0 %v3404
    %3837 = vmatprep.subr.mxu0 %v3409
    %3838 = vmatpush1.msra.mxu0 %v3408
    %3839 = vmatprep.subr.mxu0 %v3413
    %3840 = vmatpush1.msra.mxu0 %v3412
    %3841 = vmatprep.subr.mxu0 %v3417
    %3842 = vmatpush1.msra.mxu0 %v3416
    %3843 = vmatprep.subr.mxu0 %v3421
    %3844 = vmatpush1.msra.mxu0 %v3420
    %3845 = vmatprep.subr.mxu0 %v3425
    %3846 = vmatpush1.msra.mxu0 %v3424
    %3847 = vmatprep.subr.mxu0 %v3429
    %3848 = vmatpush1.msra.mxu0 %v3428
    %3849 = vmatprep.subr.mxu0 %v3433
    %3850 = vmatpush1.msra.mxu0 %v3432
    %3851 = vmatprep.subr.mxu0 %v3437
    %3852 = vmatpush1.msra.mxu0 %v3436
    %3853 = vmatprep.subr.mxu0 %v3441
    %3854 = vmatpush1.msra.mxu0 %v3440
    %3855 = vmatprep.subr.mxu0 %v3445
    %3856 = vmatpush1.msra.mxu0 %v3444
    %3857 = vmatprep.subr.mxu0 %v3449
    %3858 = vmatpush1.msra.mxu0 %v3448
    %3859 = vmatprep.subr.mxu0 %v3453
    %3860 = vmatpush1.msra.mxu0 %v3452
    %3861 = vmatprep.mubr.f32.mxu0 %v3325
    %3862 = vmatmul.mubr.f32.gmra.mrb[0].mxu0 %v3324
    %v3863 = vpop.f32.mrb[0].mxu0
    %v3864 = vadd.f32 %v3722, %v3863
    %v3865 = vpop.f32.mrb[0].mxu0
    %v3866 = vadd.f32 %v3724, %v3865
    %3867 = vdwg.mxu0
    %v3868 = vld [vmem:[#allocation9] sm:$0xf]
    %v3870 = vlaneseq
    %v3871 = vshrl.u32 %v3870, 7
    %v3872 = vsub.s32 0, %v3871
    %v3873 = vrot.slane %v3868, %v3872
    %v3874 = vlaneseq
    %v3875 = vshrl.u32 %v3874, 7
    %v3876 = vsub.s32 1, %v3875
    %v3877 = vrot.slane %v3868, %v3876
    %v3878 = vlaneseq
    %v3879 = vshrl.u32 %v3878, 7
    %v3880 = vsub.s32 2, %v3879
    %v3881 = vrot.slane %v3868, %v3880
    %v3882 = vlaneseq
    %v3883 = vshrl.u32 %v3882, 7
    %v3884 = vsub.s32 3, %v3883
    %v3885 = vrot.slane %v3868, %v3884
    %v3890 = vadd.f32 %v3793, %v3873
    %v3891 = vadd.f32 %v3795, %v3877
    %v3892 = vadd.f32 %v3864, %v3881
    %v3893 = vadd.f32 %v3866, %v3885
    %v3894 = vmax.f32 %v3890, 0.0
    %v3895 = vmax.f32 %v3891, 0.0
    %v3896 = vmax.f32 %v3892, 0.0
    %v3897 = vmax.f32 %v3893, 0.0
    %3898 = vst [vmem:[#allocation3 + $0x80] sm:$0xff] %v3894
    %3899 = vst [vmem:[#allocation3 + $0x88] sm:$0xff] %v3895
    %3900 = vst [vmem:[#allocation3 + $0x90] sm:$0xff] %v3896
    %3901 = vst [vmem:[#allocation3 + $0x98] sm:$0xff] %v3897
    %v3902 = vld [vmem:[#allocation2 + $0x50] sm:$0xff]
    %v3903 = vld [vmem:[#allocation2 + $0x58] sm:$0xff]
    %v3904 = vld [vmem:[#allocation7] sm:$0xff]
    %v3905 = vld [vmem:[#allocation7 + $0x8] sm:$0xff]
    %v3906 = vld [vmem:[#allocation7 + $0x10] sm:$0xff]
    %v3907 = vld [vmem:[#allocation7 + $0x18] sm:$0xff]
    %v3908 = vld [vmem:[#allocation7 + $0x20] sm:$0xff]
    %v3909 = vld [vmem:[#allocation7 + $0x28] sm:$0xff]
    %v3910 = vld [vmem:[#allocation7 + $0x30] sm:$0xff]
    %v3911 = vld [vmem:[#allocation7 + $0x38] sm:$0xff]
    %v3912 = vld [vmem:[#allocation7 + $0x40] sm:$0xff]
    %v3913 = vld [vmem:[#allocation7 + $0x48] sm:$0xff]
    %v3914 = vld [vmem:[#allocation7 + $0x50] sm:$0xff]
    %v3915 = vld [vmem:[#allocation7 + $0x58] sm:$0xff]
    %v3916 = vld [vmem:[#allocation7 + $0x60] sm:$0xff]
    %v3917 = vld [vmem:[#allocation7 + $0x68] sm:$0xff]
    %v3918 = vld [vmem:[#allocation7 + $0x70] sm:$0xff]
    %v3919 = vld [vmem:[#allocation7 + $0x78] sm:$0xff]
    %v3920 = vld [vmem:[#allocation7 + $0x80] sm:$0xff]
    %v3921 = vld [vmem:[#allocation7 + $0x88] sm:$0xff]
    %v3922 = vld [vmem:[#allocation7 + $0x90] sm:$0xff]
    %v3923 = vld [vmem:[#allocation7 + $0x98] sm:$0xff]
    %v3924 = vld [vmem:[#allocation7 + $0xa0] sm:$0xff]
    %v3925 = vld [vmem:[#allocation7 + $0xa8] sm:$0xff]
    %v3926 = vld [vmem:[#allocation7 + $0xb0] sm:$0xff]
    %v3927 = vld [vmem:[#allocation7 + $0xb8] sm:$0xff]
    %v3928 = vld [vmem:[#allocation7 + $0xc0] sm:$0xff]
    %v3929 = vld [vmem:[#allocation7 + $0xc8] sm:$0xff]
    %v3930 = vld [vmem:[#allocation7 + $0xd0] sm:$0xff]
    %v3931 = vld [vmem:[#allocation7 + $0xd8] sm:$0xff]
    %v3932 = vld [vmem:[#allocation7 + $0xe0] sm:$0xff]
    %v3933 = vld [vmem:[#allocation7 + $0xe8] sm:$0xff]
    %v3934 = vld [vmem:[#allocation7 + $0xf0] sm:$0xff]
    %v3935 = vld [vmem:[#allocation7 + $0xf8] sm:$0xff]
    %v3936 = vld [vmem:[#allocation7 + $0x100] sm:$0xff]
    %v3937 = vld [vmem:[#allocation7 + $0x108] sm:$0xff]
    %v3938 = vld [vmem:[#allocation7 + $0x110] sm:$0xff]
    %v3939 = vld [vmem:[#allocation7 + $0x118] sm:$0xff]
    %v3940 = vld [vmem:[#allocation7 + $0x120] sm:$0xff]
    %v3941 = vld [vmem:[#allocation7 + $0x128] sm:$0xff]
    %v3942 = vld [vmem:[#allocation7 + $0x130] sm:$0xff]
    %v3943 = vld [vmem:[#allocation7 + $0x138] sm:$0xff]
    %v3944 = vld [vmem:[#allocation7 + $0x140] sm:$0xff]
    %v3945 = vld [vmem:[#allocation7 + $0x148] sm:$0xff]
    %v3946 = vld [vmem:[#allocation7 + $0x150] sm:$0xff]
    %v3947 = vld [vmem:[#allocation7 + $0x158] sm:$0xff]
    %v3948 = vld [vmem:[#allocation7 + $0x160] sm:$0xff]
    %v3949 = vld [vmem:[#allocation7 + $0x168] sm:$0xff]
    %v3950 = vld [vmem:[#allocation7 + $0x170] sm:$0xff]
    %v3951 = vld [vmem:[#allocation7 + $0x178] sm:$0xff]
    %v3952 = vld [vmem:[#allocation7 + $0x180] sm:$0xff]
    %v3953 = vld [vmem:[#allocation7 + $0x188] sm:$0xff]
    %v3954 = vld [vmem:[#allocation7 + $0x190] sm:$0xff]
    %v3955 = vld [vmem:[#allocation7 + $0x198] sm:$0xff]
    %v3956 = vld [vmem:[#allocation7 + $0x1a0] sm:$0xff]
    %v3957 = vld [vmem:[#allocation7 + $0x1a8] sm:$0xff]
    %v3958 = vld [vmem:[#allocation7 + $0x1b0] sm:$0xff]
    %v3959 = vld [vmem:[#allocation7 + $0x1b8] sm:$0xff]
    %v3960 = vld [vmem:[#allocation7 + $0x1c0] sm:$0xff]
    %v3961 = vld [vmem:[#allocation7 + $0x1c8] sm:$0xff]
    %v3962 = vld [vmem:[#allocation7 + $0x1d0] sm:$0xff]
    %v3963 = vld [vmem:[#allocation7 + $0x1d8] sm:$0xff]
    %v3964 = vld [vmem:[#allocation7 + $0x1e0] sm:$0xff]
    %v3965 = vld [vmem:[#allocation7 + $0x1e8] sm:$0xff]
    %v3966 = vld [vmem:[#allocation7 + $0x1f0] sm:$0xff]
    %v3967 = vld [vmem:[#allocation7 + $0x1f8] sm:$0xff]
    %v3968 = vld [vmem:[#allocation7 + $0x200] sm:$0xff]
    %v3969 = vld [vmem:[#allocation7 + $0x208] sm:$0xff]
    %v3970 = vld [vmem:[#allocation7 + $0x210] sm:$0xff]
    %v3971 = vld [vmem:[#allocation7 + $0x218] sm:$0xff]
    %v3972 = vld [vmem:[#allocation7 + $0x220] sm:$0xff]
    %v3973 = vld [vmem:[#allocation7 + $0x228] sm:$0xff]
    %v3974 = vld [vmem:[#allocation7 + $0x230] sm:$0xff]
    %v3975 = vld [vmem:[#allocation7 + $0x238] sm:$0xff]
    %v3976 = vld [vmem:[#allocation7 + $0x240] sm:$0xff]
    %v3977 = vld [vmem:[#allocation7 + $0x248] sm:$0xff]
    %v3978 = vld [vmem:[#allocation7 + $0x250] sm:$0xff]
    %v3979 = vld [vmem:[#allocation7 + $0x258] sm:$0xff]
    %v3980 = vld [vmem:[#allocation7 + $0x260] sm:$0xff]
    %v3981 = vld [vmem:[#allocation7 + $0x268] sm:$0xff]
    %v3982 = vld [vmem:[#allocation7 + $0x270] sm:$0xff]
    %v3983 = vld [vmem:[#allocation7 + $0x278] sm:$0xff]
    %v3984 = vld [vmem:[#allocation7 + $0x280] sm:$0xff]
    %v3985 = vld [vmem:[#allocation7 + $0x288] sm:$0xff]
    %v3986 = vld [vmem:[#allocation7 + $0x290] sm:$0xff]
    %v3987 = vld [vmem:[#allocation7 + $0x298] sm:$0xff]
    %v3988 = vld [vmem:[#allocation7 + $0x2a0] sm:$0xff]
    %v3989 = vld [vmem:[#allocation7 + $0x2a8] sm:$0xff]
    %v3990 = vld [vmem:[#allocation7 + $0x2b0] sm:$0xff]
    %v3991 = vld [vmem:[#allocation7 + $0x2b8] sm:$0xff]
    %v3992 = vld [vmem:[#allocation7 + $0x2c0] sm:$0xff]
    %v3993 = vld [vmem:[#allocation7 + $0x2c8] sm:$0xff]
    %v3994 = vld [vmem:[#allocation7 + $0x2d0] sm:$0xff]
    %v3995 = vld [vmem:[#allocation7 + $0x2d8] sm:$0xff]
    %v3996 = vld [vmem:[#allocation7 + $0x2e0] sm:$0xff]
    %v3997 = vld [vmem:[#allocation7 + $0x2e8] sm:$0xff]
    %v3998 = vld [vmem:[#allocation7 + $0x2f0] sm:$0xff]
    %v3999 = vld [vmem:[#allocation7 + $0x2f8] sm:$0xff]
    %v4000 = vld [vmem:[#allocation7 + $0x300] sm:$0xff]
    %v4001 = vld [vmem:[#allocation7 + $0x308] sm:$0xff]
    %v4002 = vld [vmem:[#allocation7 + $0x310] sm:$0xff]
    %v4003 = vld [vmem:[#allocation7 + $0x318] sm:$0xff]
    %v4004 = vld [vmem:[#allocation7 + $0x320] sm:$0xff]
    %v4005 = vld [vmem:[#allocation7 + $0x328] sm:$0xff]
    %v4006 = vld [vmem:[#allocation7 + $0x330] sm:$0xff]
    %v4007 = vld [vmem:[#allocation7 + $0x338] sm:$0xff]
    %v4008 = vld [vmem:[#allocation7 + $0x340] sm:$0xff]
    %v4009 = vld [vmem:[#allocation7 + $0x348] sm:$0xff]
    %v4010 = vld [vmem:[#allocation7 + $0x350] sm:$0xff]
    %v4011 = vld [vmem:[#allocation7 + $0x358] sm:$0xff]
    %v4012 = vld [vmem:[#allocation7 + $0x360] sm:$0xff]
    %v4013 = vld [vmem:[#allocation7 + $0x368] sm:$0xff]
    %v4014 = vld [vmem:[#allocation7 + $0x370] sm:$0xff]
    %v4015 = vld [vmem:[#allocation7 + $0x378] sm:$0xff]
    %v4016 = vld [vmem:[#allocation7 + $0x380] sm:$0xff]
    %v4017 = vld [vmem:[#allocation7 + $0x388] sm:$0xff]
    %v4018 = vld [vmem:[#allocation7 + $0x390] sm:$0xff]
    %v4019 = vld [vmem:[#allocation7 + $0x398] sm:$0xff]
    %v4020 = vld [vmem:[#allocation7 + $0x3a0] sm:$0xff]
    %v4021 = vld [vmem:[#allocation7 + $0x3a8] sm:$0xff]
    %v4022 = vld [vmem:[#allocation7 + $0x3b0] sm:$0xff]
    %v4023 = vld [vmem:[#allocation7 + $0x3b8] sm:$0xff]
    %v4024 = vld [vmem:[#allocation7 + $0x3c0] sm:$0xff]
    %v4025 = vld [vmem:[#allocation7 + $0x3c8] sm:$0xff]
    %v4026 = vld [vmem:[#allocation7 + $0x3d0] sm:$0xff]
    %v4027 = vld [vmem:[#allocation7 + $0x3d8] sm:$0xff]
    %v4028 = vld [vmem:[#allocation7 + $0x3e0] sm:$0xff]
    %v4029 = vld [vmem:[#allocation7 + $0x3e8] sm:$0xff]
    %v4030 = vld [vmem:[#allocation7 + $0x3f0] sm:$0xff]
    %v4031 = vld [vmem:[#allocation7 + $0x3f8] sm:$0xff]
    %v4032 = vld [vmem:[#allocation2 + $0x60] sm:$0xff]
    %v4033 = vld [vmem:[#allocation2 + $0x68] sm:$0xff]
    %v4034 = vld [vmem:[%s1143] sm:$0xff]
    %v4035 = vld [vmem:[%s1143 + $0x8] sm:$0xff]
    %v4036 = vld [vmem:[%s1143 + $0x10] sm:$0xff]
    %v4037 = vld [vmem:[%s1143 + $0x18] sm:$0xff]
    %v4038 = vld [vmem:[%s1143 + $0x20] sm:$0xff]
    %v4039 = vld [vmem:[%s1143 + $0x28] sm:$0xff]
    %v4040 = vld [vmem:[%s1143 + $0x30] sm:$0xff]
    %v4041 = vld [vmem:[%s1143 + $0x38] sm:$0xff]
    %v4042 = vld [vmem:[%s1143 + $0x40] sm:$0xff]
    %v4043 = vld [vmem:[%s1143 + $0x48] sm:$0xff]
    %v4044 = vld [vmem:[%s1143 + $0x50] sm:$0xff]
    %v4045 = vld [vmem:[%s1143 + $0x58] sm:$0xff]
    %v4046 = vld [vmem:[%s1143 + $0x60] sm:$0xff]
    %v4047 = vld [vmem:[%s1143 + $0x68] sm:$0xff]
    %v4048 = vld [vmem:[%s1143 + $0x70] sm:$0xff]
    %v4049 = vld [vmem:[%s1143 + $0x78] sm:$0xff]
    %v4050 = vld [vmem:[%s1143 + $0x80] sm:$0xff]
    %v4051 = vld [vmem:[%s1143 + $0x88] sm:$0xff]
    %v4052 = vld [vmem:[%s1143 + $0x90] sm:$0xff]
    %v4053 = vld [vmem:[%s1143 + $0x98] sm:$0xff]
    %v4054 = vld [vmem:[%s1143 + $0xa0] sm:$0xff]
    %v4055 = vld [vmem:[%s1143 + $0xa8] sm:$0xff]
    %v4056 = vld [vmem:[%s1143 + $0xb0] sm:$0xff]
    %v4057 = vld [vmem:[%s1143 + $0xb8] sm:$0xff]
    %v4058 = vld [vmem:[%s1143 + $0xc0] sm:$0xff]
    %v4059 = vld [vmem:[%s1143 + $0xc8] sm:$0xff]
    %v4060 = vld [vmem:[%s1143 + $0xd0] sm:$0xff]
    %v4061 = vld [vmem:[%s1143 + $0xd8] sm:$0xff]
    %v4062 = vld [vmem:[%s1143 + $0xe0] sm:$0xff]
    %v4063 = vld [vmem:[%s1143 + $0xe8] sm:$0xff]
    %v4064 = vld [vmem:[%s1143 + $0xf0] sm:$0xff]
    %v4065 = vld [vmem:[%s1143 + $0xf8] sm:$0xff]
    %v4066 = vld [vmem:[%s1143 + $0x100] sm:$0xff]
    %v4067 = vld [vmem:[%s1143 + $0x108] sm:$0xff]
    %v4068 = vld [vmem:[%s1143 + $0x110] sm:$0xff]
    %v4069 = vld [vmem:[%s1143 + $0x118] sm:$0xff]
    %v4070 = vld [vmem:[%s1143 + $0x120] sm:$0xff]
    %v4071 = vld [vmem:[%s1143 + $0x128] sm:$0xff]
    %v4072 = vld [vmem:[%s1143 + $0x130] sm:$0xff]
    %v4073 = vld [vmem:[%s1143 + $0x138] sm:$0xff]
    %v4074 = vld [vmem:[%s1143 + $0x140] sm:$0xff]
    %v4075 = vld [vmem:[%s1143 + $0x148] sm:$0xff]
    %v4076 = vld [vmem:[%s1143 + $0x150] sm:$0xff]
    %v4077 = vld [vmem:[%s1143 + $0x158] sm:$0xff]
    %v4078 = vld [vmem:[%s1143 + $0x160] sm:$0xff]
    %v4079 = vld [vmem:[%s1143 + $0x168] sm:$0xff]
    %v4080 = vld [vmem:[%s1143 + $0x170] sm:$0xff]
    %v4081 = vld [vmem:[%s1143 + $0x178] sm:$0xff]
    %v4082 = vld [vmem:[%s1143 + $0x180] sm:$0xff]
    %v4083 = vld [vmem:[%s1143 + $0x188] sm:$0xff]
    %v4084 = vld [vmem:[%s1143 + $0x190] sm:$0xff]
    %v4085 = vld [vmem:[%s1143 + $0x198] sm:$0xff]
    %v4086 = vld [vmem:[%s1143 + $0x1a0] sm:$0xff]
    %v4087 = vld [vmem:[%s1143 + $0x1a8] sm:$0xff]
    %v4088 = vld [vmem:[%s1143 + $0x1b0] sm:$0xff]
    %v4089 = vld [vmem:[%s1143 + $0x1b8] sm:$0xff]
    %v4090 = vld [vmem:[%s1143 + $0x1c0] sm:$0xff]
    %v4091 = vld [vmem:[%s1143 + $0x1c8] sm:$0xff]
    %v4092 = vld [vmem:[%s1143 + $0x1d0] sm:$0xff]
    %v4093 = vld [vmem:[%s1143 + $0x1d8] sm:$0xff]
    %v4094 = vld [vmem:[%s1143 + $0x1e0] sm:$0xff]
    %v4095 = vld [vmem:[%s1143 + $0x1e8] sm:$0xff]
    %v4096 = vld [vmem:[%s1143 + $0x1f0] sm:$0xff]
    %v4097 = vld [vmem:[%s1143 + $0x1f8] sm:$0xff]
    %v4098 = vld [vmem:[%s1143 + $0x200] sm:$0xff]
    %v4099 = vld [vmem:[%s1143 + $0x208] sm:$0xff]
    %v4100 = vld [vmem:[%s1143 + $0x210] sm:$0xff]
    %v4101 = vld [vmem:[%s1143 + $0x218] sm:$0xff]
    %v4102 = vld [vmem:[%s1143 + $0x220] sm:$0xff]
    %v4103 = vld [vmem:[%s1143 + $0x228] sm:$0xff]
    %v4104 = vld [vmem:[%s1143 + $0x230] sm:$0xff]
    %v4105 = vld [vmem:[%s1143 + $0x238] sm:$0xff]
    %v4106 = vld [vmem:[%s1143 + $0x240] sm:$0xff]
    %v4107 = vld [vmem:[%s1143 + $0x248] sm:$0xff]
    %v4108 = vld [vmem:[%s1143 + $0x250] sm:$0xff]
    %v4109 = vld [vmem:[%s1143 + $0x258] sm:$0xff]
    %v4110 = vld [vmem:[%s1143 + $0x260] sm:$0xff]
    %v4111 = vld [vmem:[%s1143 + $0x268] sm:$0xff]
    %v4112 = vld [vmem:[%s1143 + $0x270] sm:$0xff]
    %v4113 = vld [vmem:[%s1143 + $0x278] sm:$0xff]
    %v4114 = vld [vmem:[%s1143 + $0x280] sm:$0xff]
    %v4115 = vld [vmem:[%s1143 + $0x288] sm:$0xff]
    %v4116 = vld [vmem:[%s1143 + $0x290] sm:$0xff]
    %v4117 = vld [vmem:[%s1143 + $0x298] sm:$0xff]
    %v4118 = vld [vmem:[%s1143 + $0x2a0] sm:$0xff]
    %v4119 = vld [vmem:[%s1143 + $0x2a8] sm:$0xff]
    %v4120 = vld [vmem:[%s1143 + $0x2b0] sm:$0xff]
    %v4121 = vld [vmem:[%s1143 + $0x2b8] sm:$0xff]
    %v4122 = vld [vmem:[%s1143 + $0x2c0] sm:$0xff]
    %v4123 = vld [vmem:[%s1143 + $0x2c8] sm:$0xff]
    %v4124 = vld [vmem:[%s1143 + $0x2d0] sm:$0xff]
    %v4125 = vld [vmem:[%s1143 + $0x2d8] sm:$0xff]
    %v4126 = vld [vmem:[%s1143 + $0x2e0] sm:$0xff]
    %v4127 = vld [vmem:[%s1143 + $0x2e8] sm:$0xff]
    %v4128 = vld [vmem:[%s1143 + $0x2f0] sm:$0xff]
    %v4129 = vld [vmem:[%s1143 + $0x2f8] sm:$0xff]
    %v4130 = vld [vmem:[%s1143 + $0x300] sm:$0xff]
    %v4131 = vld [vmem:[%s1143 + $0x308] sm:$0xff]
    %v4132 = vld [vmem:[%s1143 + $0x310] sm:$0xff]
    %v4133 = vld [vmem:[%s1143 + $0x318] sm:$0xff]
    %v4134 = vld [vmem:[%s1143 + $0x320] sm:$0xff]
    %v4135 = vld [vmem:[%s1143 + $0x328] sm:$0xff]
    %v4136 = vld [vmem:[%s1143 + $0x330] sm:$0xff]
    %v4137 = vld [vmem:[%s1143 + $0x338] sm:$0xff]
    %v4138 = vld [vmem:[%s1143 + $0x340] sm:$0xff]
    %v4139 = vld [vmem:[%s1143 + $0x348] sm:$0xff]
    %v4140 = vld [vmem:[%s1143 + $0x350] sm:$0xff]
    %v4141 = vld [vmem:[%s1143 + $0x358] sm:$0xff]
    %v4142 = vld [vmem:[%s1143 + $0x360] sm:$0xff]
    %v4143 = vld [vmem:[%s1143 + $0x368] sm:$0xff]
    %v4144 = vld [vmem:[%s1143 + $0x370] sm:$0xff]
    %v4145 = vld [vmem:[%s1143 + $0x378] sm:$0xff]
    %v4146 = vld [vmem:[%s1143 + $0x380] sm:$0xff]
    %v4147 = vld [vmem:[%s1143 + $0x388] sm:$0xff]
    %v4148 = vld [vmem:[%s1143 + $0x390] sm:$0xff]
    %v4149 = vld [vmem:[%s1143 + $0x398] sm:$0xff]
    %v4150 = vld [vmem:[%s1143 + $0x3a0] sm:$0xff]
    %v4151 = vld [vmem:[%s1143 + $0x3a8] sm:$0xff]
    %v4152 = vld [vmem:[%s1143 + $0x3b0] sm:$0xff]
    %v4153 = vld [vmem:[%s1143 + $0x3b8] sm:$0xff]
    %v4154 = vld [vmem:[%s1143 + $0x3c0] sm:$0xff]
    %v4155 = vld [vmem:[%s1143 + $0x3c8] sm:$0xff]
    %v4156 = vld [vmem:[%s1143 + $0x3d0] sm:$0xff]
    %v4157 = vld [vmem:[%s1143 + $0x3d8] sm:$0xff]
    %v4158 = vld [vmem:[%s1143 + $0x3e0] sm:$0xff]
    %v4159 = vld [vmem:[%s1143 + $0x3e8] sm:$0xff]
    %v4160 = vld [vmem:[%s1143 + $0x3f0] sm:$0xff]
    %v4161 = vld [vmem:[%s1143 + $0x3f8] sm:$0xff]
    %4162 = vmatprep.subr.mxu0 %v4035
    %4163 = vmatpush1.msra.mxu0 %v4034
    %4164 = vmatprep.subr.mxu0 %v4039
    %4165 = vmatpush1.msra.mxu0 %v4038
    %4166 = vmatprep.subr.mxu0 %v4043
    %4167 = vmatpush1.msra.mxu0 %v4042
    %4168 = vmatprep.subr.mxu0 %v4047
    %4169 = vmatpush1.msra.mxu0 %v4046
    %4170 = vmatprep.subr.mxu0 %v4051
    %4171 = vmatpush1.msra.mxu0 %v4050
    %4172 = vmatprep.subr.mxu0 %v4055
    %4173 = vmatpush1.msra.mxu0 %v4054
    %4174 = vmatprep.subr.mxu0 %v4059
    %4175 = vmatpush1.msra.mxu0 %v4058
    %4176 = vmatprep.subr.mxu0 %v4063
    %4177 = vmatpush1.msra.mxu0 %v4062
    %4178 = vmatprep.subr.mxu0 %v4067
    %4179 = vmatpush1.msra.mxu0 %v4066
    %4180 = vmatprep.subr.mxu0 %v4071
    %4181 = vmatpush1.msra.mxu0 %v4070
    %4182 = vmatprep.subr.mxu0 %v4075
    %4183 = vmatpush1.msra.mxu0 %v4074
    %4184 = vmatprep.subr.mxu0 %v4079
    %4185 = vmatpush1.msra.mxu0 %v4078
    %4186 = vmatprep.subr.mxu0 %v4083
    %4187 = vmatpush1.msra.mxu0 %v4082
    %4188 = vmatprep.subr.mxu0 %v4087
    %4189 = vmatpush1.msra.mxu0 %v4086
    %4190 = vmatprep.subr.mxu0 %v4091
    %4191 = vmatpush1.msra.mxu0 %v4090
    %4192 = vmatprep.subr.mxu0 %v4095
    %4193 = vmatpush1.msra.mxu0 %v4094
    %4194 = vmatprep.subr.mxu0 %v4099
    %4195 = vmatpush1.msra.mxu0 %v4098
    %4196 = vmatprep.subr.mxu0 %v4103
    %4197 = vmatpush1.msra.mxu0 %v4102
    %4198 = vmatprep.subr.mxu0 %v4107
    %4199 = vmatpush1.msra.mxu0 %v4106
    %4200 = vmatprep.subr.mxu0 %v4111
    %4201 = vmatpush1.msra.mxu0 %v4110
    %4202 = vmatprep.subr.mxu0 %v4115
    %4203 = vmatpush1.msra.mxu0 %v4114
    %4204 = vmatprep.subr.mxu0 %v4119
    %4205 = vmatpush1.msra.mxu0 %v4118
    %4206 = vmatprep.subr.mxu0 %v4123
    %4207 = vmatpush1.msra.mxu0 %v4122
    %4208 = vmatprep.subr.mxu0 %v4127
    %4209 = vmatpush1.msra.mxu0 %v4126
    %4210 = vmatprep.subr.mxu0 %v4131
    %4211 = vmatpush1.msra.mxu0 %v4130
    %4212 = vmatprep.subr.mxu0 %v4135
    %4213 = vmatpush1.msra.mxu0 %v4134
    %4214 = vmatprep.subr.mxu0 %v4139
    %4215 = vmatpush1.msra.mxu0 %v4138
    %4216 = vmatprep.subr.mxu0 %v4143
    %4217 = vmatpush1.msra.mxu0 %v4142
    %4218 = vmatprep.subr.mxu0 %v4147
    %4219 = vmatpush1.msra.mxu0 %v4146
    %4220 = vmatprep.subr.mxu0 %v4151
    %4221 = vmatpush1.msra.mxu0 %v4150
    %4222 = vmatprep.subr.mxu0 %v4155
    %4223 = vmatpush1.msra.mxu0 %v4154
    %4224 = vmatprep.subr.mxu0 %v4159
    %4225 = vmatpush1.msra.mxu0 %v4158
    %4226 = vmatprep.mubr.f32.mxu0 %v4033
    %4227 = vmatmul.mubr.f32.gmra.mrb[0].mxu0 %v4032
    %v4228 = vpop.f32.mrb[0].mxu0
    %v4229 = vadd.f32 0.0, %v4228
    %v4230 = vpop.f32.mrb[0].mxu0
    %v4231 = vadd.f32 0.0, %v4230
    %4232 = vdwg.mxu0
    %4233 = vmatprep.subr.mxu0 %v4037
    %4234 = vmatpush1.msra.mxu0 %v4036
    %4235 = vmatprep.subr.mxu0 %v4041
    %4236 = vmatpush1.msra.mxu0 %v4040
    %4237 = vmatprep.subr.mxu0 %v4045
    %4238 = vmatpush1.msra.mxu0 %v4044
    %4239 = vmatprep.subr.mxu0 %v4049
    %4240 = vmatpush1.msra.mxu0 %v4048
    %4241 = vmatprep.subr.mxu0 %v4053
    %4242 = vmatpush1.msra.mxu0 %v4052
    %4243 = vmatprep.subr.mxu0 %v4057
    %4244 = vmatpush1.msra.mxu0 %v4056
    %4245 = vmatprep.subr.mxu0 %v4061
    %4246 = vmatpush1.msra.mxu0 %v4060
    %4247 = vmatprep.subr.mxu0 %v4065
    %4248 = vmatpush1.msra.mxu0 %v4064
    %4249 = vmatprep.subr.mxu0 %v4069
    %4250 = vmatpush1.msra.mxu0 %v4068
    %4251 = vmatprep.subr.mxu0 %v4073
    %4252 = vmatpush1.msra.mxu0 %v4072
    %4253 = vmatprep.subr.mxu0 %v4077
    %4254 = vmatpush1.msra.mxu0 %v4076
    %4255 = vmatprep.subr.mxu0 %v4081
    %4256 = vmatpush1.msra.mxu0 %v4080
    %4257 = vmatprep.subr.mxu0 %v4085
    %4258 = vmatpush1.msra.mxu0 %v4084
    %4259 = vmatprep.subr.mxu0 %v4089
    %4260 = vmatpush1.msra.mxu0 %v4088
    %4261 = vmatprep.subr.mxu0 %v4093
    %4262 = vmatpush1.msra.mxu0 %v4092
    %4263 = vmatprep.subr.mxu0 %v4097
    %4264 = vmatpush1.msra.mxu0 %v4096
    %4265 = vmatprep.subr.mxu0 %v4101
    %4266 = vmatpush1.msra.mxu0 %v4100
    %4267 = vmatprep.subr.mxu0 %v4105
    %4268 = vmatpush1.msra.mxu0 %v4104
    %4269 = vmatprep.subr.mxu0 %v4109
    %4270 = vmatpush1.msra.mxu0 %v4108
    %4271 = vmatprep.subr.mxu0 %v4113
    %4272 = vmatpush1.msra.mxu0 %v4112
    %4273 = vmatprep.subr.mxu0 %v4117
    %4274 = vmatpush1.msra.mxu0 %v4116
    %4275 = vmatprep.subr.mxu0 %v4121
    %4276 = vmatpush1.msra.mxu0 %v4120
    %4277 = vmatprep.subr.mxu0 %v4125
    %4278 = vmatpush1.msra.mxu0 %v4124
    %4279 = vmatprep.subr.mxu0 %v4129
    %4280 = vmatpush1.msra.mxu0 %v4128
    %4281 = vmatprep.subr.mxu0 %v4133
    %4282 = vmatpush1.msra.mxu0 %v4132
    %4283 = vmatprep.subr.mxu0 %v4137
    %4284 = vmatpush1.msra.mxu0 %v4136
    %4285 = vmatprep.subr.mxu0 %v4141
    %4286 = vmatpush1.msra.mxu0 %v4140
    %4287 = vmatprep.subr.mxu0 %v4145
    %4288 = vmatpush1.msra.mxu0 %v4144
    %4289 = vmatprep.subr.mxu0 %v4149
    %4290 = vmatpush1.msra.mxu0 %v4148
    %4291 = vmatprep.subr.mxu0 %v4153
    %4292 = vmatpush1.msra.mxu0 %v4152
    %4293 = vmatprep.subr.mxu0 %v4157
    %4294 = vmatpush1.msra.mxu0 %v4156
    %4295 = vmatprep.subr.mxu0 %v4161
    %4296 = vmatpush1.msra.mxu0 %v4160
    %4297 = vmatprep.mubr.f32.mxu0 %v4033
    %4298 = vmatmul.mubr.f32.gmra.mrb[0].mxu0 %v4032
    %v4299 = vpop.f32.mrb[0].mxu0
    %v4300 = vadd.f32 0.0, %v4299
    %v4301 = vpop.f32.mrb[0].mxu0
    %v4302 = vadd.f32 0.0, %v4301
    %4303 = vdwg.mxu0
    %4304 = vmatprep.subr.mxu0 %v3905
    %4305 = vmatpush1.msra.mxu0 %v3904
    %4306 = vmatprep.subr.mxu0 %v3909
    %4307 = vmatpush1.msra.mxu0 %v3908
    %4308 = vmatprep.subr.mxu0 %v3913
    %4309 = vmatpush1.msra.mxu0 %v3912
    %4310 = vmatprep.subr.mxu0 %v3917
    %4311 = vmatpush1.msra.mxu0 %v3916
    %4312 = vmatprep.subr.mxu0 %v3921
    %4313 = vmatpush1.msra.mxu0 %v3920
    %4314 = vmatprep.subr.mxu0 %v3925
    %4315 = vmatpush1.msra.mxu0 %v3924
    %4316 = vmatprep.subr.mxu0 %v3929
    %4317 = vmatpush1.msra.mxu0 %v3928
    %4318 = vmatprep.subr.mxu0 %v3933
    %4319 = vmatpush1.msra.mxu0 %v3932
    %4320 = vmatprep.subr.mxu0 %v3937
    %4321 = vmatpush1.msra.mxu0 %v3936
    %4322 = vmatprep.subr.mxu0 %v3941
    %4323 = vmatpush1.msra.mxu0 %v3940
    %4324 = vmatprep.subr.mxu0 %v3945
    %4325 = vmatpush1.msra.mxu0 %v3944
    %4326 = vmatprep.subr.mxu0 %v3949
    %4327 = vmatpush1.msra.mxu0 %v3948
    %4328 = vmatprep.subr.mxu0 %v3953
    %4329 = vmatpush1.msra.mxu0 %v3952
    %4330 = vmatprep.subr.mxu0 %v3957
    %4331 = vmatpush1.msra.mxu0 %v3956
    %4332 = vmatprep.subr.mxu0 %v3961
    %4333 = vmatpush1.msra.mxu0 %v3960
    %4334 = vmatprep.subr.mxu0 %v3965
    %4335 = vmatpush1.msra.mxu0 %v3964
    %4336 = vmatprep.subr.mxu0 %v3969
    %4337 = vmatpush1.msra.mxu0 %v3968
    %4338 = vmatprep.subr.mxu0 %v3973
    %4339 = vmatpush1.msra.mxu0 %v3972
    %4340 = vmatprep.subr.mxu0 %v3977
    %4341 = vmatpush1.msra.mxu0 %v3976
    %4342 = vmatprep.subr.mxu0 %v3981
    %4343 = vmatpush1.msra.mxu0 %v3980
    %4344 = vmatprep.subr.mxu0 %v3985
    %4345 = vmatpush1.msra.mxu0 %v3984
    %4346 = vmatprep.subr.mxu0 %v3989
    %4347 = vmatpush1.msra.mxu0 %v3988
    %4348 = vmatprep.subr.mxu0 %v3993
    %4349 = vmatpush1.msra.mxu0 %v3992
    %4350 = vmatprep.subr.mxu0 %v3997
    %4351 = vmatpush1.msra.mxu0 %v3996
    %4352 = vmatprep.subr.mxu0 %v4001
    %4353 = vmatpush1.msra.mxu0 %v4000
    %4354 = vmatprep.subr.mxu0 %v4005
    %4355 = vmatpush1.msra.mxu0 %v4004
    %4356 = vmatprep.subr.mxu0 %v4009
    %4357 = vmatpush1.msra.mxu0 %v4008
    %4358 = vmatprep.subr.mxu0 %v4013
    %4359 = vmatpush1.msra.mxu0 %v4012
    %4360 = vmatprep.subr.mxu0 %v4017
    %4361 = vmatpush1.msra.mxu0 %v4016
    %4362 = vmatprep.subr.mxu0 %v4021
    %4363 = vmatpush1.msra.mxu0 %v4020
    %4364 = vmatprep.subr.mxu0 %v4025
    %4365 = vmatpush1.msra.mxu0 %v4024
    %4366 = vmatprep.subr.mxu0 %v4029
    %4367 = vmatpush1.msra.mxu0 %v4028
    %4368 = vmatprep.mubr.f32.mxu0 %v3903
    %4369 = vmatmul.mubr.f32.gmra.mrb[0].mxu0 %v3902
    %v4370 = vpop.f32.mrb[0].mxu0
    %v4371 = vadd.f32 %v4229, %v4370
    %v4372 = vpop.f32.mrb[0].mxu0
    %v4373 = vadd.f32 %v4231, %v4372
    %4374 = vdwg.mxu0
    %4375 = vmatprep.subr.mxu0 %v3907
    %4376 = vmatpush1.msra.mxu0 %v3906
    %4377 = vmatprep.subr.mxu0 %v3911
    %4378 = vmatpush1.msra.mxu0 %v3910
    %4379 = vmatprep.subr.mxu0 %v3915
    %4380 = vmatpush1.msra.mxu0 %v3914
    %4381 = vmatprep.subr.mxu0 %v3919
    %4382 = vmatpush1.msra.mxu0 %v3918
    %4383 = vmatprep.subr.mxu0 %v3923
    %4384 = vmatpush1.msra.mxu0 %v3922
    %4385 = vmatprep.subr.mxu0 %v3927
    %4386 = vmatpush1.msra.mxu0 %v3926
    %4387 = vmatprep.subr.mxu0 %v3931
    %4388 = vmatpush1.msra.mxu0 %v3930
    %4389 = vmatprep.subr.mxu0 %v3935
    %4390 = vmatpush1.msra.mxu0 %v3934
    %4391 = vmatprep.subr.mxu0 %v3939
    %4392 = vmatpush1.msra.mxu0 %v3938
    %4393 = vmatprep.subr.mxu0 %v3943
    %4394 = vmatpush1.msra.mxu0 %v3942
    %4395 = vmatprep.subr.mxu0 %v3947
    %4396 = vmatpush1.msra.mxu0 %v3946
    %4397 = vmatprep.subr.mxu0 %v3951
    %4398 = vmatpush1.msra.mxu0 %v3950
    %4399 = vmatprep.subr.mxu0 %v3955
    %4400 = vmatpush1.msra.mxu0 %v3954
    %4401 = vmatprep.subr.mxu0 %v3959
    %4402 = vmatpush1.msra.mxu0 %v3958
    %4403 = vmatprep.subr.mxu0 %v3963
    %4404 = vmatpush1.msra.mxu0 %v3962
    %4405 = vmatprep.subr.mxu0 %v3967
    %4406 = vmatpush1.msra.mxu0 %v3966
    %4407 = vmatprep.subr.mxu0 %v3971
    %4408 = vmatpush1.msra.mxu0 %v3970
    %4409 = vmatprep.subr.mxu0 %v3975
    %4410 = vmatpush1.msra.mxu0 %v3974
    %4411 = vmatprep.subr.mxu0 %v3979
    %4412 = vmatpush1.msra.mxu0 %v3978
    %4413 = vmatprep.subr.mxu0 %v3983
    %4414 = vmatpush1.msra.mxu0 %v3982
    %4415 = vmatprep.subr.mxu0 %v3987
    %4416 = vmatpush1.msra.mxu0 %v3986
    %4417 = vmatprep.subr.mxu0 %v3991
    %4418 = vmatpush1.msra.mxu0 %v3990
    %4419 = vmatprep.subr.mxu0 %v3995
    %4420 = vmatpush1.msra.mxu0 %v3994
    %4421 = vmatprep.subr.mxu0 %v3999
    %4422 = vmatpush1.msra.mxu0 %v3998
    %4423 = vmatprep.subr.mxu0 %v4003
    %4424 = vmatpush1.msra.mxu0 %v4002
    %4425 = vmatprep.subr.mxu0 %v4007
    %4426 = vmatpush1.msra.mxu0 %v4006
    %4427 = vmatprep.subr.mxu0 %v4011
    %4428 = vmatpush1.msra.mxu0 %v4010
    %4429 = vmatprep.subr.mxu0 %v4015
    %4430 = vmatpush1.msra.mxu0 %v4014
    %4431 = vmatprep.subr.mxu0 %v4019
    %4432 = vmatpush1.msra.mxu0 %v4018
    %4433 = vmatprep.subr.mxu0 %v4023
    %4434 = vmatpush1.msra.mxu0 %v4022
    %4435 = vmatprep.subr.mxu0 %v4027
    %4436 = vmatpush1.msra.mxu0 %v4026
    %4437 = vmatprep.subr.mxu0 %v4031
    %4438 = vmatpush1.msra.mxu0 %v4030
    %4439 = vmatprep.mubr.f32.mxu0 %v3903
    %4440 = vmatmul.mubr.f32.gmra.mrb[0].mxu0 %v3902
    %v4441 = vpop.f32.mrb[0].mxu0
    %v4442 = vadd.f32 %v4300, %v4441
    %v4443 = vpop.f32.mrb[0].mxu0
    %v4444 = vadd.f32 %v4302, %v4443
    %4445 = vdwg.mxu0
    %v4446 = vld [vmem:[#allocation9] sm:$0xf]
    %v4448 = vlaneseq
    %v4449 = vshrl.u32 %v4448, 7
    %v4450 = vsub.s32 0, %v4449
    %v4451 = vrot.slane %v4446, %v4450
    %v4452 = vlaneseq
    %v4453 = vshrl.u32 %v4452, 7
    %v4454 = vsub.s32 1, %v4453
    %v4455 = vrot.slane %v4446, %v4454
    %v4456 = vlaneseq
    %v4457 = vshrl.u32 %v4456, 7
    %v4458 = vsub.s32 2, %v4457
    %v4459 = vrot.slane %v4446, %v4458
    %v4460 = vlaneseq
    %v4461 = vshrl.u32 %v4460, 7
    %v4462 = vsub.s32 3, %v4461
    %v4463 = vrot.slane %v4446, %v4462
    %v4468 = vadd.f32 %v4371, %v4451
    %v4469 = vadd.f32 %v4373, %v4455
    %v4470 = vadd.f32 %v4442, %v4459
    %v4471 = vadd.f32 %v4444, %v4463
    %v4472 = vmax.f32 %v4468, 0.0
    %v4473 = vmax.f32 %v4469, 0.0
    %v4474 = vmax.f32 %v4470, 0.0
    %v4475 = vmax.f32 %v4471, 0.0
    %4476 = vst [vmem:[#allocation3 + $0xa0] sm:$0xff] %v4472
    %4477 = vst [vmem:[#allocation3 + $0xa8] sm:$0xff] %v4473
    %4478 = vst [vmem:[#allocation3 + $0xb0] sm:$0xff] %v4474
    %4479 = vst [vmem:[#allocation3 + $0xb8] sm:$0xff] %v4475
    %v4480 = vld [vmem:[#allocation2 + $0x60] sm:$0xff]
    %v4481 = vld [vmem:[#allocation2 + $0x68] sm:$0xff]
    %v4482 = vld [vmem:[#allocation7] sm:$0xff]
    %v4483 = vld [vmem:[#allocation7 + $0x8] sm:$0xff]
    %v4484 = vld [vmem:[#allocation7 + $0x10] sm:$0xff]
    %v4485 = vld [vmem:[#allocation7 + $0x18] sm:$0xff]
    %v4486 = vld [vmem:[#allocation7 + $0x20] sm:$0xff]
    %v4487 = vld [vmem:[#allocation7 + $0x28] sm:$0xff]
    %v4488 = vld [vmem:[#allocation7 + $0x30] sm:$0xff]
    %v4489 = vld [vmem:[#allocation7 + $0x38] sm:$0xff]
    %v4490 = vld [vmem:[#allocation7 + $0x40] sm:$0xff]
    %v4491 = vld [vmem:[#allocation7 + $0x48] sm:$0xff]
    %v4492 = vld [vmem:[#allocation7 + $0x50] sm:$0xff]
    %v4493 = vld [vmem:[#allocation7 + $0x58] sm:$0xff]
    %v4494 = vld [vmem:[#allocation7 + $0x60] sm:$0xff]
    %v4495 = vld [vmem:[#allocation7 + $0x68] sm:$0xff]
    %v4496 = vld [vmem:[#allocation7 + $0x70] sm:$0xff]
    %v4497 = vld [vmem:[#allocation7 + $0x78] sm:$0xff]
    %v4498 = vld [vmem:[#allocation7 + $0x80] sm:$0xff]
    %v4499 = vld [vmem:[#allocation7 + $0x88] sm:$0xff]
    %v4500 = vld [vmem:[#allocation7 + $0x90] sm:$0xff]
    %v4501 = vld [vmem:[#allocation7 + $0x98] sm:$0xff]
    %v4502 = vld [vmem:[#allocation7 + $0xa0] sm:$0xff]
    %v4503 = vld [vmem:[#allocation7 + $0xa8] sm:$0xff]
    %v4504 = vld [vmem:[#allocation7 + $0xb0] sm:$0xff]
    %v4505 = vld [vmem:[#allocation7 + $0xb8] sm:$0xff]
    %v4506 = vld [vmem:[#allocation7 + $0xc0] sm:$0xff]
    %v4507 = vld [vmem:[#allocation7 + $0xc8] sm:$0xff]
    %v4508 = vld [vmem:[#allocation7 + $0xd0] sm:$0xff]
    %v4509 = vld [vmem:[#allocation7 + $0xd8] sm:$0xff]
    %v4510 = vld [vmem:[#allocation7 + $0xe0] sm:$0xff]
    %v4511 = vld [vmem:[#allocation7 + $0xe8] sm:$0xff]
    %v4512 = vld [vmem:[#allocation7 + $0xf0] sm:$0xff]
    %v4513 = vld [vmem:[#allocation7 + $0xf8] sm:$0xff]
    %v4514 = vld [vmem:[#allocation7 + $0x100] sm:$0xff]
    %v4515 = vld [vmem:[#allocation7 + $0x108] sm:$0xff]
    %v4516 = vld [vmem:[#allocation7 + $0x110] sm:$0xff]
    %v4517 = vld [vmem:[#allocation7 + $0x118] sm:$0xff]
    %v4518 = vld [vmem:[#allocation7 + $0x120] sm:$0xff]
    %v4519 = vld [vmem:[#allocation7 + $0x128] sm:$0xff]
    %v4520 = vld [vmem:[#allocation7 + $0x130] sm:$0xff]
    %v4521 = vld [vmem:[#allocation7 + $0x138] sm:$0xff]
    %v4522 = vld [vmem:[#allocation7 + $0x140] sm:$0xff]
    %v4523 = vld [vmem:[#allocation7 + $0x148] sm:$0xff]
    %v4524 = vld [vmem:[#allocation7 + $0x150] sm:$0xff]
    %v4525 = vld [vmem:[#allocation7 + $0x158] sm:$0xff]
    %v4526 = vld [vmem:[#allocation7 + $0x160] sm:$0xff]
    %v4527 = vld [vmem:[#allocation7 + $0x168] sm:$0xff]
    %v4528 = vld [vmem:[#allocation7 + $0x170] sm:$0xff]
    %v4529 = vld [vmem:[#allocation7 + $0x178] sm:$0xff]
    %v4530 = vld [vmem:[#allocation7 + $0x180] sm:$0xff]
    %v4531 = vld [vmem:[#allocation7 + $0x188] sm:$0xff]
    %v4532 = vld [vmem:[#allocation7 + $0x190] sm:$0xff]
    %v4533 = vld [vmem:[#allocation7 + $0x198] sm:$0xff]
    %v4534 = vld [vmem:[#allocation7 + $0x1a0] sm:$0xff]
    %v4535 = vld [vmem:[#allocation7 + $0x1a8] sm:$0xff]
    %v4536 = vld [vmem:[#allocation7 + $0x1b0] sm:$0xff]
    %v4537 = vld [vmem:[#allocation7 + $0x1b8] sm:$0xff]
    %v4538 = vld [vmem:[#allocation7 + $0x1c0] sm:$0xff]
    %v4539 = vld [vmem:[#allocation7 + $0x1c8] sm:$0xff]
    %v4540 = vld [vmem:[#allocation7 + $0x1d0] sm:$0xff]
    %v4541 = vld [vmem:[#allocation7 + $0x1d8] sm:$0xff]
    %v4542 = vld [vmem:[#allocation7 + $0x1e0] sm:$0xff]
    %v4543 = vld [vmem:[#allocation7 + $0x1e8] sm:$0xff]
    %v4544 = vld [vmem:[#allocation7 + $0x1f0] sm:$0xff]
    %v4545 = vld [vmem:[#allocation7 + $0x1f8] sm:$0xff]
    %v4546 = vld [vmem:[#allocation7 + $0x200] sm:$0xff]
    %v4547 = vld [vmem:[#allocation7 + $0x208] sm:$0xff]
    %v4548 = vld [vmem:[#allocation7 + $0x210] sm:$0xff]
    %v4549 = vld [vmem:[#allocation7 + $0x218] sm:$0xff]
    %v4550 = vld [vmem:[#allocation7 + $0x220] sm:$0xff]
    %v4551 = vld [vmem:[#allocation7 + $0x228] sm:$0xff]
    %v4552 = vld [vmem:[#allocation7 + $0x230] sm:$0xff]
    %v4553 = vld [vmem:[#allocation7 + $0x238] sm:$0xff]
    %v4554 = vld [vmem:[#allocation7 + $0x240] sm:$0xff]
    %v4555 = vld [vmem:[#allocation7 + $0x248] sm:$0xff]
    %v4556 = vld [vmem:[#allocation7 + $0x250] sm:$0xff]
    %v4557 = vld [vmem:[#allocation7 + $0x258] sm:$0xff]
    %v4558 = vld [vmem:[#allocation7 + $0x260] sm:$0xff]
    %v4559 = vld [vmem:[#allocation7 + $0x268] sm:$0xff]
    %v4560 = vld [vmem:[#allocation7 + $0x270] sm:$0xff]
    %v4561 = vld [vmem:[#allocation7 + $0x278] sm:$0xff]
    %v4562 = vld [vmem:[#allocation7 + $0x280] sm:$0xff]
    %v4563 = vld [vmem:[#allocation7 + $0x288] sm:$0xff]
    %v4564 = vld [vmem:[#allocation7 + $0x290] sm:$0xff]
    %v4565 = vld [vmem:[#allocation7 + $0x298] sm:$0xff]
    %v4566 = vld [vmem:[#allocation7 + $0x2a0] sm:$0xff]
    %v4567 = vld [vmem:[#allocation7 + $0x2a8] sm:$0xff]
    %v4568 = vld [vmem:[#allocation7 + $0x2b0] sm:$0xff]
    %v4569 = vld [vmem:[#allocation7 + $0x2b8] sm:$0xff]
    %v4570 = vld [vmem:[#allocation7 + $0x2c0] sm:$0xff]
    %v4571 = vld [vmem:[#allocation7 + $0x2c8] sm:$0xff]
    %v4572 = vld [vmem:[#allocation7 + $0x2d0] sm:$0xff]
    %v4573 = vld [vmem:[#allocation7 + $0x2d8] sm:$0xff]
    %v4574 = vld [vmem:[#allocation7 + $0x2e0] sm:$0xff]
    %v4575 = vld [vmem:[#allocation7 + $0x2e8] sm:$0xff]
    %v4576 = vld [vmem:[#allocation7 + $0x2f0] sm:$0xff]
    %v4577 = vld [vmem:[#allocation7 + $0x2f8] sm:$0xff]
    %v4578 = vld [vmem:[#allocation7 + $0x300] sm:$0xff]
    %v4579 = vld [vmem:[#allocation7 + $0x308] sm:$0xff]
    %v4580 = vld [vmem:[#allocation7 + $0x310] sm:$0xff]
    %v4581 = vld [vmem:[#allocation7 + $0x318] sm:$0xff]
    %v4582 = vld [vmem:[#allocation7 + $0x320] sm:$0xff]
    %v4583 = vld [vmem:[#allocation7 + $0x328] sm:$0xff]
    %v4584 = vld [vmem:[#allocation7 + $0x330] sm:$0xff]
    %v4585 = vld [vmem:[#allocation7 + $0x338] sm:$0xff]
    %v4586 = vld [vmem:[#allocation7 + $0x340] sm:$0xff]
    %v4587 = vld [vmem:[#allocation7 + $0x348] sm:$0xff]
    %v4588 = vld [vmem:[#allocation7 + $0x350] sm:$0xff]
    %v4589 = vld [vmem:[#allocation7 + $0x358] sm:$0xff]
    %v4590 = vld [vmem:[#allocation7 + $0x360] sm:$0xff]
    %v4591 = vld [vmem:[#allocation7 + $0x368] sm:$0xff]
    %v4592 = vld [vmem:[#allocation7 + $0x370] sm:$0xff]
    %v4593 = vld [vmem:[#allocation7 + $0x378] sm:$0xff]
    %v4594 = vld [vmem:[#allocation7 + $0x380] sm:$0xff]
    %v4595 = vld [vmem:[#allocation7 + $0x388] sm:$0xff]
    %v4596 = vld [vmem:[#allocation7 + $0x390] sm:$0xff]
    %v4597 = vld [vmem:[#allocation7 + $0x398] sm:$0xff]
    %v4598 = vld [vmem:[#allocation7 + $0x3a0] sm:$0xff]
    %v4599 = vld [vmem:[#allocation7 + $0x3a8] sm:$0xff]
    %v4600 = vld [vmem:[#allocation7 + $0x3b0] sm:$0xff]
    %v4601 = vld [vmem:[#allocation7 + $0x3b8] sm:$0xff]
    %v4602 = vld [vmem:[#allocation7 + $0x3c0] sm:$0xff]
    %v4603 = vld [vmem:[#allocation7 + $0x3c8] sm:$0xff]
    %v4604 = vld [vmem:[#allocation7 + $0x3d0] sm:$0xff]
    %v4605 = vld [vmem:[#allocation7 + $0x3d8] sm:$0xff]
    %v4606 = vld [vmem:[#allocation7 + $0x3e0] sm:$0xff]
    %v4607 = vld [vmem:[#allocation7 + $0x3e8] sm:$0xff]
    %v4608 = vld [vmem:[#allocation7 + $0x3f0] sm:$0xff]
    %v4609 = vld [vmem:[#allocation7 + $0x3f8] sm:$0xff]
    %v4610 = vld [vmem:[#allocation2 + $0x70] sm:$0xff]
    %v4611 = vld [vmem:[#allocation2 + $0x78] sm:$0xff]
    %v4612 = vld [vmem:[%s1143] sm:$0xff]
    %v4613 = vld [vmem:[%s1143 + $0x8] sm:$0xff]
    %v4614 = vld [vmem:[%s1143 + $0x10] sm:$0xff]
    %v4615 = vld [vmem:[%s1143 + $0x18] sm:$0xff]
    %v4616 = vld [vmem:[%s1143 + $0x20] sm:$0xff]
    %v4617 = vld [vmem:[%s1143 + $0x28] sm:$0xff]
    %v4618 = vld [vmem:[%s1143 + $0x30] sm:$0xff]
    %v4619 = vld [vmem:[%s1143 + $0x38] sm:$0xff]
    %v4620 = vld [vmem:[%s1143 + $0x40] sm:$0xff]
    %v4621 = vld [vmem:[%s1143 + $0x48] sm:$0xff]
    %v4622 = vld [vmem:[%s1143 + $0x50] sm:$0xff]
    %v4623 = vld [vmem:[%s1143 + $0x58] sm:$0xff]
    %v4624 = vld [vmem:[%s1143 + $0x60] sm:$0xff]
    %v4625 = vld [vmem:[%s1143 + $0x68] sm:$0xff]
    %v4626 = vld [vmem:[%s1143 + $0x70] sm:$0xff]
    %v4627 = vld [vmem:[%s1143 + $0x78] sm:$0xff]
    %v4628 = vld [vmem:[%s1143 + $0x80] sm:$0xff]
    %v4629 = vld [vmem:[%s1143 + $0x88] sm:$0xff]
    %v4630 = vld [vmem:[%s1143 + $0x90] sm:$0xff]
    %v4631 = vld [vmem:[%s1143 + $0x98] sm:$0xff]
    %v4632 = vld [vmem:[%s1143 + $0xa0] sm:$0xff]
    %v4633 = vld [vmem:[%s1143 + $0xa8] sm:$0xff]
    %v4634 = vld [vmem:[%s1143 + $0xb0] sm:$0xff]
    %v4635 = vld [vmem:[%s1143 + $0xb8] sm:$0xff]
    %v4636 = vld [vmem:[%s1143 + $0xc0] sm:$0xff]
    %v4637 = vld [vmem:[%s1143 + $0xc8] sm:$0xff]
    %v4638 = vld [vmem:[%s1143 + $0xd0] sm:$0xff]
    %v4639 = vld [vmem:[%s1143 + $0xd8] sm:$0xff]
    %v4640 = vld [vmem:[%s1143 + $0xe0] sm:$0xff]
    %v4641 = vld [vmem:[%s1143 + $0xe8] sm:$0xff]
    %v4642 = vld [vmem:[%s1143 + $0xf0] sm:$0xff]
    %v4643 = vld [vmem:[%s1143 + $0xf8] sm:$0xff]
    %v4644 = vld [vmem:[%s1143 + $0x100] sm:$0xff]
    %v4645 = vld [vmem:[%s1143 + $0x108] sm:$0xff]
    %v4646 = vld [vmem:[%s1143 + $0x110] sm:$0xff]
    %v4647 = vld [vmem:[%s1143 + $0x118] sm:$0xff]
    %v4648 = vld [vmem:[%s1143 + $0x120] sm:$0xff]
    %v4649 = vld [vmem:[%s1143 + $0x128] sm:$0xff]
    %v4650 = vld [vmem:[%s1143 + $0x130] sm:$0xff]
    %v4651 = vld [vmem:[%s1143 + $0x138] sm:$0xff]
    %v4652 = vld [vmem:[%s1143 + $0x140] sm:$0xff]
    %v4653 = vld [vmem:[%s1143 + $0x148] sm:$0xff]
    %v4654 = vld [vmem:[%s1143 + $0x150] sm:$0xff]
    %v4655 = vld [vmem:[%s1143 + $0x158] sm:$0xff]
    %v4656 = vld [vmem:[%s1143 + $0x160] sm:$0xff]
    %v4657 = vld [vmem:[%s1143 + $0x168] sm:$0xff]
    %v4658 = vld [vmem:[%s1143 + $0x170] sm:$0xff]
    %v4659 = vld [vmem:[%s1143 + $0x178] sm:$0xff]
    %v4660 = vld [vmem:[%s1143 + $0x180] sm:$0xff]
    %v4661 = vld [vmem:[%s1143 + $0x188] sm:$0xff]
    %v4662 = vld [vmem:[%s1143 + $0x190] sm:$0xff]
    %v4663 = vld [vmem:[%s1143 + $0x198] sm:$0xff]
    %v4664 = vld [vmem:[%s1143 + $0x1a0] sm:$0xff]
    %v4665 = vld [vmem:[%s1143 + $0x1a8] sm:$0xff]
    %v4666 = vld [vmem:[%s1143 + $0x1b0] sm:$0xff]
    %v4667 = vld [vmem:[%s1143 + $0x1b8] sm:$0xff]
    %v4668 = vld [vmem:[%s1143 + $0x1c0] sm:$0xff]
    %v4669 = vld [vmem:[%s1143 + $0x1c8] sm:$0xff]
    %v4670 = vld [vmem:[%s1143 + $0x1d0] sm:$0xff]
    %v4671 = vld [vmem:[%s1143 + $0x1d8] sm:$0xff]
    %v4672 = vld [vmem:[%s1143 + $0x1e0] sm:$0xff]
    %v4673 = vld [vmem:[%s1143 + $0x1e8] sm:$0xff]
    %v4674 = vld [vmem:[%s1143 + $0x1f0] sm:$0xff]
    %v4675 = vld [vmem:[%s1143 + $0x1f8] sm:$0xff]
    %v4676 = vld [vmem:[%s1143 + $0x200] sm:$0xff]
    %v4677 = vld [vmem:[%s1143 + $0x208] sm:$0xff]
    %v4678 = vld [vmem:[%s1143 + $0x210] sm:$0xff]
    %v4679 = vld [vmem:[%s1143 + $0x218] sm:$0xff]
    %v4680 = vld [vmem:[%s1143 + $0x220] sm:$0xff]
    %v4681 = vld [vmem:[%s1143 + $0x228] sm:$0xff]
    %v4682 = vld [vmem:[%s1143 + $0x230] sm:$0xff]
    %v4683 = vld [vmem:[%s1143 + $0x238] sm:$0xff]
    %v4684 = vld [vmem:[%s1143 + $0x240] sm:$0xff]
    %v4685 = vld [vmem:[%s1143 + $0x248] sm:$0xff]
    %v4686 = vld [vmem:[%s1143 + $0x250] sm:$0xff]
    %v4687 = vld [vmem:[%s1143 + $0x258] sm:$0xff]
    %v4688 = vld [vmem:[%s1143 + $0x260] sm:$0xff]
    %v4689 = vld [vmem:[%s1143 + $0x268] sm:$0xff]
    %v4690 = vld [vmem:[%s1143 + $0x270] sm:$0xff]
    %v4691 = vld [vmem:[%s1143 + $0x278] sm:$0xff]
    %v4692 = vld [vmem:[%s1143 + $0x280] sm:$0xff]
    %v4693 = vld [vmem:[%s1143 + $0x288] sm:$0xff]
    %v4694 = vld [vmem:[%s1143 + $0x290] sm:$0xff]
    %v4695 = vld [vmem:[%s1143 + $0x298] sm:$0xff]
    %v4696 = vld [vmem:[%s1143 + $0x2a0] sm:$0xff]
    %v4697 = vld [vmem:[%s1143 + $0x2a8] sm:$0xff]
    %v4698 = vld [vmem:[%s1143 + $0x2b0] sm:$0xff]
    %v4699 = vld [vmem:[%s1143 + $0x2b8] sm:$0xff]
    %v4700 = vld [vmem:[%s1143 + $0x2c0] sm:$0xff]
    %v4701 = vld [vmem:[%s1143 + $0x2c8] sm:$0xff]
    %v4702 = vld [vmem:[%s1143 + $0x2d0] sm:$0xff]
    %v4703 = vld [vmem:[%s1143 + $0x2d8] sm:$0xff]
    %v4704 = vld [vmem:[%s1143 + $0x2e0] sm:$0xff]
    %v4705 = vld [vmem:[%s1143 + $0x2e8] sm:$0xff]
    %v4706 = vld [vmem:[%s1143 + $0x2f0] sm:$0xff]
    %v4707 = vld [vmem:[%s1143 + $0x2f8] sm:$0xff]
    %v4708 = vld [vmem:[%s1143 + $0x300] sm:$0xff]
    %v4709 = vld [vmem:[%s1143 + $0x308] sm:$0xff]
    %v4710 = vld [vmem:[%s1143 + $0x310] sm:$0xff]
    %v4711 = vld [vmem:[%s1143 + $0x318] sm:$0xff]
    %v4712 = vld [vmem:[%s1143 + $0x320] sm:$0xff]
    %v4713 = vld [vmem:[%s1143 + $0x328] sm:$0xff]
    %v4714 = vld [vmem:[%s1143 + $0x330] sm:$0xff]
    %v4715 = vld [vmem:[%s1143 + $0x338] sm:$0xff]
    %v4716 = vld [vmem:[%s1143 + $0x340] sm:$0xff]
    %v4717 = vld [vmem:[%s1143 + $0x348] sm:$0xff]
    %v4718 = vld [vmem:[%s1143 + $0x350] sm:$0xff]
    %v4719 = vld [vmem:[%s1143 + $0x358] sm:$0xff]
    %v4720 = vld [vmem:[%s1143 + $0x360] sm:$0xff]
    %v4721 = vld [vmem:[%s1143 + $0x368] sm:$0xff]
    %v4722 = vld [vmem:[%s1143 + $0x370] sm:$0xff]
    %v4723 = vld [vmem:[%s1143 + $0x378] sm:$0xff]
    %v4724 = vld [vmem:[%s1143 + $0x380] sm:$0xff]
    %v4725 = vld [vmem:[%s1143 + $0x388] sm:$0xff]
    %v4726 = vld [vmem:[%s1143 + $0x390] sm:$0xff]
    %v4727 = vld [vmem:[%s1143 + $0x398] sm:$0xff]
    %v4728 = vld [vmem:[%s1143 + $0x3a0] sm:$0xff]
    %v4729 = vld [vmem:[%s1143 + $0x3a8] sm:$0xff]
    %v4730 = vld [vmem:[%s1143 + $0x3b0] sm:$0xff]
    %v4731 = vld [vmem:[%s1143 + $0x3b8] sm:$0xff]
    %v4732 = vld [vmem:[%s1143 + $0x3c0] sm:$0xff]
    %v4733 = vld [vmem:[%s1143 + $0x3c8] sm:$0xff]
    %v4734 = vld [vmem:[%s1143 + $0x3d0] sm:$0xff]
    %v4735 = vld [vmem:[%s1143 + $0x3d8] sm:$0xff]
    %v4736 = vld [vmem:[%s1143 + $0x3e0] sm:$0xff]
    %v4737 = vld [vmem:[%s1143 + $0x3e8] sm:$0xff]
    %v4738 = vld [vmem:[%s1143 + $0x3f0] sm:$0xff]
    %v4739 = vld [vmem:[%s1143 + $0x3f8] sm:$0xff]
    %4740 = vmatprep.subr.mxu0 %v4613
    %4741 = vmatpush1.msra.mxu0 %v4612
    %4742 = vmatprep.subr.mxu0 %v4617
    %4743 = vmatpush1.msra.mxu0 %v4616
    %4744 = vmatprep.subr.mxu0 %v4621
    %4745 = vmatpush1.msra.mxu0 %v4620
    %4746 = vmatprep.subr.mxu0 %v4625
    %4747 = vmatpush1.msra.mxu0 %v4624
    %4748 = vmatprep.subr.mxu0 %v4629
    %4749 = vmatpush1.msra.mxu0 %v4628
    %4750 = vmatprep.subr.mxu0 %v4633
    %4751 = vmatpush1.msra.mxu0 %v4632
    %4752 = vmatprep.subr.mxu0 %v4637
    %4753 = vmatpush1.msra.mxu0 %v4636
    %4754 = vmatprep.subr.mxu0 %v4641
    %4755 = vmatpush1.msra.mxu0 %v4640
    %4756 = vmatprep.subr.mxu0 %v4645
    %4757 = vmatpush1.msra.mxu0 %v4644
    %4758 = vmatprep.subr.mxu0 %v4649
    %4759 = vmatpush1.msra.mxu0 %v4648
    %4760 = vmatprep.subr.mxu0 %v4653
    %4761 = vmatpush1.msra.mxu0 %v4652
    %4762 = vmatprep.subr.mxu0 %v4657
    %4763 = vmatpush1.msra.mxu0 %v4656
    %4764 = vmatprep.subr.mxu0 %v4661
    %4765 = vmatpush1.msra.mxu0 %v4660
    %4766 = vmatprep.subr.mxu0 %v4665
    %4767 = vmatpush1.msra.mxu0 %v4664
    %4768 = vmatprep.subr.mxu0 %v4669
    %4769 = vmatpush1.msra.mxu0 %v4668
    %4770 = vmatprep.subr.mxu0 %v4673
    %4771 = vmatpush1.msra.mxu0 %v4672
    %4772 = vmatprep.subr.mxu0 %v4677
    %4773 = vmatpush1.msra.mxu0 %v4676
    %4774 = vmatprep.subr.mxu0 %v4681
    %4775 = vmatpush1.msra.mxu0 %v4680
    %4776 = vmatprep.subr.mxu0 %v4685
    %4777 = vmatpush1.msra.mxu0 %v4684
    %4778 = vmatprep.subr.mxu0 %v4689
    %4779 = vmatpush1.msra.mxu0 %v4688
    %4780 = vmatprep.subr.mxu0 %v4693
    %4781 = vmatpush1.msra.mxu0 %v4692
    %4782 = vmatprep.subr.mxu0 %v4697
    %4783 = vmatpush1.msra.mxu0 %v4696
    %4784 = vmatprep.subr.mxu0 %v4701
    %4785 = vmatpush1.msra.mxu0 %v4700
    %4786 = vmatprep.subr.mxu0 %v4705
    %4787 = vmatpush1.msra.mxu0 %v4704
    %4788 = vmatprep.subr.mxu0 %v4709
    %4789 = vmatpush1.msra.mxu0 %v4708
    %4790 = vmatprep.subr.mxu0 %v4713
    %4791 = vmatpush1.msra.mxu0 %v4712
    %4792 = vmatprep.subr.mxu0 %v4717
    %4793 = vmatpush1.msra.mxu0 %v4716
    %4794 = vmatprep.subr.mxu0 %v4721
    %4795 = vmatpush1.msra.mxu0 %v4720
    %4796 = vmatprep.subr.mxu0 %v4725
    %4797 = vmatpush1.msra.mxu0 %v4724
    %4798 = vmatprep.subr.mxu0 %v4729
    %4799 = vmatpush1.msra.mxu0 %v4728
    %4800 = vmatprep.subr.mxu0 %v4733
    %4801 = vmatpush1.msra.mxu0 %v4732
    %4802 = vmatprep.subr.mxu0 %v4737
    %4803 = vmatpush1.msra.mxu0 %v4736
    %4804 = vmatprep.mubr.f32.mxu0 %v4611
    %4805 = vmatmul.mubr.f32.gmra.mrb[0].mxu0 %v4610
    %v4806 = vpop.f32.mrb[0].mxu0
    %v4807 = vadd.f32 0.0, %v4806
    %v4808 = vpop.f32.mrb[0].mxu0
    %v4809 = vadd.f32 0.0, %v4808
    %4810 = vdwg.mxu0
    %4811 = vmatprep.subr.mxu0 %v4615
    %4812 = vmatpush1.msra.mxu0 %v4614
    %4813 = vmatprep.subr.mxu0 %v4619
    %4814 = vmatpush1.msra.mxu0 %v4618
    %4815 = vmatprep.subr.mxu0 %v4623
    %4816 = vmatpush1.msra.mxu0 %v4622
    %4817 = vmatprep.subr.mxu0 %v4627
    %4818 = vmatpush1.msra.mxu0 %v4626
    %4819 = vmatprep.subr.mxu0 %v4631
    %4820 = vmatpush1.msra.mxu0 %v4630
    %4821 = vmatprep.subr.mxu0 %v4635
    %4822 = vmatpush1.msra.mxu0 %v4634
    %4823 = vmatprep.subr.mxu0 %v4639
    %4824 = vmatpush1.msra.mxu0 %v4638
    %4825 = vmatprep.subr.mxu0 %v4643
    %4826 = vmatpush1.msra.mxu0 %v4642
    %4827 = vmatprep.subr.mxu0 %v4647
    %4828 = vmatpush1.msra.mxu0 %v4646
    %4829 = vmatprep.subr.mxu0 %v4651
    %4830 = vmatpush1.msra.mxu0 %v4650
    %4831 = vmatprep.subr.mxu0 %v4655
    %4832 = vmatpush1.msra.mxu0 %v4654
    %4833 = vmatprep.subr.mxu0 %v4659
    %4834 = vmatpush1.msra.mxu0 %v4658
    %4835 = vmatprep.subr.mxu0 %v4663
    %4836 = vmatpush1.msra.mxu0 %v4662
    %4837 = vmatprep.subr.mxu0 %v4667
    %4838 = vmatpush1.msra.mxu0 %v4666
    %4839 = vmatprep.subr.mxu0 %v4671
    %4840 = vmatpush1.msra.mxu0 %v4670
    %4841 = vmatprep.subr.mxu0 %v4675
    %4842 = vmatpush1.msra.mxu0 %v4674
    %4843 = vmatprep.subr.mxu0 %v4679
    %4844 = vmatpush1.msra.mxu0 %v4678
    %4845 = vmatprep.subr.mxu0 %v4683
    %4846 = vmatpush1.msra.mxu0 %v4682
    %4847 = vmatprep.subr.mxu0 %v4687
    %4848 = vmatpush1.msra.mxu0 %v4686
    %4849 = vmatprep.subr.mxu0 %v4691
    %4850 = vmatpush1.msra.mxu0 %v4690
    %4851 = vmatprep.subr.mxu0 %v4695
    %4852 = vmatpush1.msra.mxu0 %v4694
    %4853 = vmatprep.subr.mxu0 %v4699
    %4854 = vmatpush1.msra.mxu0 %v4698
    %4855 = vmatprep.subr.mxu0 %v4703
    %4856 = vmatpush1.msra.mxu0 %v4702
    %4857 = vmatprep.subr.mxu0 %v4707
    %4858 = vmatpush1.msra.mxu0 %v4706
    %4859 = vmatprep.subr.mxu0 %v4711
    %4860 = vmatpush1.msra.mxu0 %v4710
    %4861 = vmatprep.subr.mxu0 %v4715
    %4862 = vmatpush1.msra.mxu0 %v4714
    %4863 = vmatprep.subr.mxu0 %v4719
    %4864 = vmatpush1.msra.mxu0 %v4718
    %4865 = vmatprep.subr.mxu0 %v4723
    %4866 = vmatpush1.msra.mxu0 %v4722
    %4867 = vmatprep.subr.mxu0 %v4727
    %4868 = vmatpush1.msra.mxu0 %v4726
    %4869 = vmatprep.subr.mxu0 %v4731
    %4870 = vmatpush1.msra.mxu0 %v4730
    %4871 = vmatprep.subr.mxu0 %v4735
    %4872 = vmatpush1.msra.mxu0 %v4734
    %4873 = vmatprep.subr.mxu0 %v4739
    %4874 = vmatpush1.msra.mxu0 %v4738
    %4875 = vmatprep.mubr.f32.mxu0 %v4611
    %4876 = vmatmul.mubr.f32.gmra.mrb[0].mxu0 %v4610
    %v4877 = vpop.f32.mrb[0].mxu0
    %v4878 = vadd.f32 0.0, %v4877
    %v4879 = vpop.f32.mrb[0].mxu0
    %v4880 = vadd.f32 0.0, %v4879
    %4881 = vdwg.mxu0
    %4882 = vmatprep.subr.mxu0 %v4483
    %4883 = vmatpush1.msra.mxu0 %v4482
    %4884 = vmatprep.subr.mxu0 %v4487
    %4885 = vmatpush1.msra.mxu0 %v4486
    %4886 = vmatprep.subr.mxu0 %v4491
    %4887 = vmatpush1.msra.mxu0 %v4490
    %4888 = vmatprep.subr.mxu0 %v4495
    %4889 = vmatpush1.msra.mxu0 %v4494
    %4890 = vmatprep.subr.mxu0 %v4499
    %4891 = vmatpush1.msra.mxu0 %v4498
    %4892 = vmatprep.subr.mxu0 %v4503
    %4893 = vmatpush1.msra.mxu0 %v4502
    %4894 = vmatprep.subr.mxu0 %v4507
    %4895 = vmatpush1.msra.mxu0 %v4506
    %4896 = vmatprep.subr.mxu0 %v4511
    %4897 = vmatpush1.msra.mxu0 %v4510
    %4898 = vmatprep.subr.mxu0 %v4515
    %4899 = vmatpush1.msra.mxu0 %v4514
    %4900 = vmatprep.subr.mxu0 %v4519
    %4901 = vmatpush1.msra.mxu0 %v4518
    %4902 = vmatprep.subr.mxu0 %v4523
    %4903 = vmatpush1.msra.mxu0 %v4522
    %4904 = vmatprep.subr.mxu0 %v4527
    %4905 = vmatpush1.msra.mxu0 %v4526
    %4906 = vmatprep.subr.mxu0 %v4531
    %4907 = vmatpush1.msra.mxu0 %v4530
    %4908 = vmatprep.subr.mxu0 %v4535
    %4909 = vmatpush1.msra.mxu0 %v4534
    %4910 = vmatprep.subr.mxu0 %v4539
    %4911 = vmatpush1.msra.mxu0 %v4538
    %4912 = vmatprep.subr.mxu0 %v4543
    %4913 = vmatpush1.msra.mxu0 %v4542
    %4914 = vmatprep.subr.mxu0 %v4547
    %4915 = vmatpush1.msra.mxu0 %v4546
    %4916 = vmatprep.subr.mxu0 %v4551
    %4917 = vmatpush1.msra.mxu0 %v4550
    %4918 = vmatprep.subr.mxu0 %v4555
    %4919 = vmatpush1.msra.mxu0 %v4554
    %4920 = vmatprep.subr.mxu0 %v4559
    %4921 = vmatpush1.msra.mxu0 %v4558
    %4922 = vmatprep.subr.mxu0 %v4563
    %4923 = vmatpush1.msra.mxu0 %v4562
    %4924 = vmatprep.subr.mxu0 %v4567
    %4925 = vmatpush1.msra.mxu0 %v4566
    %4926 = vmatprep.subr.mxu0 %v4571
    %4927 = vmatpush1.msra.mxu0 %v4570
    %4928 = vmatprep.subr.mxu0 %v4575
    %4929 = vmatpush1.msra.mxu0 %v4574
    %4930 = vmatprep.subr.mxu0 %v4579
    %4931 = vmatpush1.msra.mxu0 %v4578
    %4932 = vmatprep.subr.mxu0 %v4583
    %4933 = vmatpush1.msra.mxu0 %v4582
    %4934 = vmatprep.subr.mxu0 %v4587
    %4935 = vmatpush1.msra.mxu0 %v4586
    %4936 = vmatprep.subr.mxu0 %v4591
    %4937 = vmatpush1.msra.mxu0 %v4590
    %4938 = vmatprep.subr.mxu0 %v4595
    %4939 = vmatpush1.msra.mxu0 %v4594
    %4940 = vmatprep.subr.mxu0 %v4599
    %4941 = vmatpush1.msra.mxu0 %v4598
    %4942 = vmatprep.subr.mxu0 %v4603
    %4943 = vmatpush1.msra.mxu0 %v4602
    %4944 = vmatprep.subr.mxu0 %v4607
    %4945 = vmatpush1.msra.mxu0 %v4606
    %4946 = vmatprep.mubr.f32.mxu0 %v4481
    %4947 = vmatmul.mubr.f32.gmra.mrb[0].mxu0 %v4480
    %v4948 = vpop.f32.mrb[0].mxu0
    %v4949 = vadd.f32 %v4807, %v4948
    %v4950 = vpop.f32.mrb[0].mxu0
    %v4951 = vadd.f32 %v4809, %v4950
    %4952 = vdwg.mxu0
    %4953 = vmatprep.subr.mxu0 %v4485
    %4954 = vmatpush1.msra.mxu0 %v4484
    %4955 = vmatprep.subr.mxu0 %v4489
    %4956 = vmatpush1.msra.mxu0 %v4488
    %4957 = vmatprep.subr.mxu0 %v4493
    %4958 = vmatpush1.msra.mxu0 %v4492
    %4959 = vmatprep.subr.mxu0 %v4497
    %4960 = vmatpush1.msra.mxu0 %v4496
    %4961 = vmatprep.subr.mxu0 %v4501
    %4962 = vmatpush1.msra.mxu0 %v4500
    %4963 = vmatprep.subr.mxu0 %v4505
    %4964 = vmatpush1.msra.mxu0 %v4504
    %4965 = vmatprep.subr.mxu0 %v4509
    %4966 = vmatpush1.msra.mxu0 %v4508
    %4967 = vmatprep.subr.mxu0 %v4513
    %4968 = vmatpush1.msra.mxu0 %v4512
    %4969 = vmatprep.subr.mxu0 %v4517
    %4970 = vmatpush1.msra.mxu0 %v4516
    %4971 = vmatprep.subr.mxu0 %v4521
    %4972 = vmatpush1.msra.mxu0 %v4520
    %4973 = vmatprep.subr.mxu0 %v4525
    %4974 = vmatpush1.msra.mxu0 %v4524
    %4975 = vmatprep.subr.mxu0 %v4529
    %4976 = vmatpush1.msra.mxu0 %v4528
    %4977 = vmatprep.subr.mxu0 %v4533
    %4978 = vmatpush1.msra.mxu0 %v4532
    %4979 = vmatprep.subr.mxu0 %v4537
    %4980 = vmatpush1.msra.mxu0 %v4536
    %4981 = vmatprep.subr.mxu0 %v4541
    %4982 = vmatpush1.msra.mxu0 %v4540
    %4983 = vmatprep.subr.mxu0 %v4545
    %4984 = vmatpush1.msra.mxu0 %v4544
    %4985 = vmatprep.subr.mxu0 %v4549
    %4986 = vmatpush1.msra.mxu0 %v4548
    %4987 = vmatprep.subr.mxu0 %v4553
    %4988 = vmatpush1.msra.mxu0 %v4552
    %4989 = vmatprep.subr.mxu0 %v4557
    %4990 = vmatpush1.msra.mxu0 %v4556
    %4991 = vmatprep.subr.mxu0 %v4561
    %4992 = vmatpush1.msra.mxu0 %v4560
    %4993 = vmatprep.subr.mxu0 %v4565
    %4994 = vmatpush1.msra.mxu0 %v4564
    %4995 = vmatprep.subr.mxu0 %v4569
    %4996 = vmatpush1.msra.mxu0 %v4568
    %4997 = vmatprep.subr.mxu0 %v4573
    %4998 = vmatpush1.msra.mxu0 %v4572
    %4999 = vmatprep.subr.mxu0 %v4577
    %5000 = vmatpush1.msra.mxu0 %v4576
    %5001 = vmatprep.subr.mxu0 %v4581
    %5002 = vmatpush1.msra.mxu0 %v4580
    %5003 = vmatprep.subr.mxu0 %v4585
    %5004 = vmatpush1.msra.mxu0 %v4584
    %5005 = vmatprep.subr.mxu0 %v4589
    %5006 = vmatpush1.msra.mxu0 %v4588
    %5007 = vmatprep.subr.mxu0 %v4593
    %5008 = vmatpush1.msra.mxu0 %v4592
    %5009 = vmatprep.subr.mxu0 %v4597
    %5010 = vmatpush1.msra.mxu0 %v4596
    %5011 = vmatprep.subr.mxu0 %v4601
    %5012 = vmatpush1.msra.mxu0 %v4600
    %5013 = vmatprep.subr.mxu0 %v4605
    %5014 = vmatpush1.msra.mxu0 %v4604
    %5015 = vmatprep.subr.mxu0 %v4609
    %5016 = vmatpush1.msra.mxu0 %v4608
    %5017 = vmatprep.mubr.f32.mxu0 %v4481
    %5018 = vmatmul.mubr.f32.gmra.mrb[0].mxu0 %v4480
    %v5019 = vpop.f32.mrb[0].mxu0
    %v5020 = vadd.f32 %v4878, %v5019
    %v5021 = vpop.f32.mrb[0].mxu0
    %v5022 = vadd.f32 %v4880, %v5021
    %5023 = vdwg.mxu0
    %v5024 = vld [vmem:[#allocation9] sm:$0xf]
    %v5026 = vlaneseq
    %v5027 = vshrl.u32 %v5026, 7
    %v5028 = vsub.s32 0, %v5027
    %v5029 = vrot.slane %v5024, %v5028
    %v5030 = vlaneseq
    %v5031 = vshrl.u32 %v5030, 7
    %v5032 = vsub.s32 1, %v5031
    %v5033 = vrot.slane %v5024, %v5032
    %v5034 = vlaneseq
    %v5035 = vshrl.u32 %v5034, 7
    %v5036 = vsub.s32 2, %v5035
    %v5037 = vrot.slane %v5024, %v5036
    %v5038 = vlaneseq
    %v5039 = vshrl.u32 %v5038, 7
    %v5040 = vsub.s32 3, %v5039
    %v5041 = vrot.slane %v5024, %v5040
    %v5046 = vadd.f32 %v4949, %v5029
    %v5047 = vadd.f32 %v4951, %v5033
    %v5048 = vadd.f32 %v5020, %v5037
    %v5049 = vadd.f32 %v5022, %v5041
    %v5050 = vmax.f32 %v5046, 0.0
    %v5051 = vmax.f32 %v5047, 0.0
    %v5052 = vmax.f32 %v5048, 0.0
    %v5053 = vmax.f32 %v5049, 0.0
    %5054 = vst [vmem:[#allocation3 + $0xc0] sm:$0xff] %v5050
    %5055 = vst [vmem:[#allocation3 + $0xc8] sm:$0xff] %v5051
    %5056 = vst [vmem:[#allocation3 + $0xd0] sm:$0xff] %v5052
    %5057 = vst [vmem:[#allocation3 + $0xd8] sm:$0xff] %v5053
    %v5058 = vld [vmem:[#allocation3] sm:$0xff]
    %v5059 = vld [vmem:[#allocation3 + $0x8] sm:$0xff]
    %v5060 = vld [vmem:[#allocation3 + $0x10] sm:$0xff]
    %v5061 = vld [vmem:[#allocation3 + $0x18] sm:$0xff]
    %v5062 = vld [vmem:[#allocation10] sm:$0xff]
    %v5063 = vld [vmem:[#allocation10 + $0x8] sm:$0xff]
    %v5064 = vld [vmem:[#allocation10 + $0x10] sm:$0xff]
    %v5065 = vld [vmem:[#allocation10 + $0x18] sm:$0xff]
    %v5066 = vld [vmem:[#allocation10 + $0x20] sm:$0xff]
    %v5067 = vld [vmem:[#allocation10 + $0x28] sm:$0xff]
    %v5068 = vld [vmem:[#allocation10 + $0x30] sm:$0xff]
    %v5069 = vld [vmem:[#allocation10 + $0x38] sm:$0xff]
    %v5070 = vld [vmem:[#allocation10 + $0x40] sm:$0xff]
    %v5071 = vld [vmem:[#allocation10 + $0x48] sm:$0xff]
    %v5072 = vld [vmem:[#allocation10 + $0x50] sm:$0xff]
    %v5073 = vld [vmem:[#allocation10 + $0x58] sm:$0xff]
    %v5074 = vld [vmem:[#allocation10 + $0x60] sm:$0xff]
    %v5075 = vld [vmem:[#allocation10 + $0x68] sm:$0xff]
    %v5076 = vld [vmem:[#allocation10 + $0x70] sm:$0xff]
    %v5077 = vld [vmem:[#allocation10 + $0x78] sm:$0xff]
    %v5078 = vld [vmem:[#allocation10 + $0x80] sm:$0xff]
    %v5079 = vld [vmem:[#allocation10 + $0x88] sm:$0xff]
    %v5080 = vld [vmem:[#allocation10 + $0x90] sm:$0xff]
    %v5081 = vld [vmem:[#allocation10 + $0x98] sm:$0xff]
    %v5082 = vld [vmem:[#allocation10 + $0xa0] sm:$0xff]
    %v5083 = vld [vmem:[#allocation10 + $0xa8] sm:$0xff]
    %v5084 = vld [vmem:[#allocation10 + $0xb0] sm:$0xff]
    %v5085 = vld [vmem:[#allocation10 + $0xb8] sm:$0xff]
    %v5086 = vld [vmem:[#allocation10 + $0xc0] sm:$0xff]
    %v5087 = vld [vmem:[#allocation10 + $0xc8] sm:$0xff]
    %v5088 = vld [vmem:[#allocation10 + $0xd0] sm:$0xff]
    %v5089 = vld [vmem:[#allocation10 + $0xd8] sm:$0xff]
    %v5090 = vld [vmem:[#allocation10 + $0xe0] sm:$0xff]
    %v5091 = vld [vmem:[#allocation10 + $0xe8] sm:$0xff]
    %v5092 = vld [vmem:[#allocation10 + $0xf0] sm:$0xff]
    %v5093 = vld [vmem:[#allocation10 + $0xf8] sm:$0xff]
    %v5094 = vld [vmem:[#allocation10 + $0x100] sm:$0xff]
    %v5095 = vld [vmem:[#allocation10 + $0x108] sm:$0xff]
    %v5096 = vld [vmem:[#allocation10 + $0x110] sm:$0xff]
    %v5097 = vld [vmem:[#allocation10 + $0x118] sm:$0xff]
    %v5098 = vld [vmem:[#allocation10 + $0x120] sm:$0xff]
    %v5099 = vld [vmem:[#allocation10 + $0x128] sm:$0xff]
    %v5100 = vld [vmem:[#allocation10 + $0x130] sm:$0xff]
    %v5101 = vld [vmem:[#allocation10 + $0x138] sm:$0xff]
    %v5102 = vld [vmem:[#allocation10 + $0x140] sm:$0xff]
    %v5103 = vld [vmem:[#allocation10 + $0x148] sm:$0xff]
    %v5104 = vld [vmem:[#allocation10 + $0x150] sm:$0xff]
    %v5105 = vld [vmem:[#allocation10 + $0x158] sm:$0xff]
    %v5106 = vld [vmem:[#allocation10 + $0x160] sm:$0xff]
    %v5107 = vld [vmem:[#allocation10 + $0x168] sm:$0xff]
    %v5108 = vld [vmem:[#allocation10 + $0x170] sm:$0xff]
    %v5109 = vld [vmem:[#allocation10 + $0x178] sm:$0xff]
    %v5110 = vld [vmem:[#allocation10 + $0x180] sm:$0xff]
    %v5111 = vld [vmem:[#allocation10 + $0x188] sm:$0xff]
    %v5112 = vld [vmem:[#allocation10 + $0x190] sm:$0xff]
    %v5113 = vld [vmem:[#allocation10 + $0x198] sm:$0xff]
    %v5114 = vld [vmem:[#allocation10 + $0x1a0] sm:$0xff]
    %v5115 = vld [vmem:[#allocation10 + $0x1a8] sm:$0xff]
    %v5116 = vld [vmem:[#allocation10 + $0x1b0] sm:$0xff]
    %v5117 = vld [vmem:[#allocation10 + $0x1b8] sm:$0xff]
    %v5118 = vld [vmem:[#allocation10 + $0x1c0] sm:$0xff]
    %v5119 = vld [vmem:[#allocation10 + $0x1c8] sm:$0xff]
    %v5120 = vld [vmem:[#allocation10 + $0x1d0] sm:$0xff]
    %v5121 = vld [vmem:[#allocation10 + $0x1d8] sm:$0xff]
    %v5122 = vld [vmem:[#allocation10 + $0x1e0] sm:$0xff]
    %v5123 = vld [vmem:[#allocation10 + $0x1e8] sm:$0xff]
    %v5124 = vld [vmem:[#allocation10 + $0x1f0] sm:$0xff]
    %v5125 = vld [vmem:[#allocation10 + $0x1f8] sm:$0xff]
    %v5126 = vld [vmem:[#allocation3 + $0x20] sm:$0xff]
    %v5127 = vld [vmem:[#allocation3 + $0x28] sm:$0xff]
    %v5128 = vld [vmem:[#allocation3 + $0x30] sm:$0xff]
    %v5129 = vld [vmem:[#allocation3 + $0x38] sm:$0xff]
    %s5130 = scalar_lea.vmem [#allocation10], 512
    %v5131 = vld [vmem:[%s5130] sm:$0xff]
    %v5132 = vld [vmem:[%s5130 + $0x8] sm:$0xff]
    %v5133 = vld [vmem:[%s5130 + $0x10] sm:$0xff]
    %v5134 = vld [vmem:[%s5130 + $0x18] sm:$0xff]
    %v5135 = vld [vmem:[%s5130 + $0x20] sm:$0xff]
    %v5136 = vld [vmem:[%s5130 + $0x28] sm:$0xff]
    %v5137 = vld [vmem:[%s5130 + $0x30] sm:$0xff]
    %v5138 = vld [vmem:[%s5130 + $0x38] sm:$0xff]
    %v5139 = vld [vmem:[%s5130 + $0x40] sm:$0xff]
    %v5140 = vld [vmem:[%s5130 + $0x48] sm:$0xff]
    %v5141 = vld [vmem:[%s5130 + $0x50] sm:$0xff]
    %v5142 = vld [vmem:[%s5130 + $0x58] sm:$0xff]
    %v5143 = vld [vmem:[%s5130 + $0x60] sm:$0xff]
    %v5144 = vld [vmem:[%s5130 + $0x68] sm:$0xff]
    %v5145 = vld [vmem:[%s5130 + $0x70] sm:$0xff]
    %v5146 = vld [vmem:[%s5130 + $0x78] sm:$0xff]
    %v5147 = vld [vmem:[%s5130 + $0x80] sm:$0xff]
    %v5148 = vld [vmem:[%s5130 + $0x88] sm:$0xff]
    %v5149 = vld [vmem:[%s5130 + $0x90] sm:$0xff]
    %v5150 = vld [vmem:[%s5130 + $0x98] sm:$0xff]
    %v5151 = vld [vmem:[%s5130 + $0xa0] sm:$0xff]
    %v5152 = vld [vmem:[%s5130 + $0xa8] sm:$0xff]
    %v5153 = vld [vmem:[%s5130 + $0xb0] sm:$0xff]
    %v5154 = vld [vmem:[%s5130 + $0xb8] sm:$0xff]
    %v5155 = vld [vmem:[%s5130 + $0xc0] sm:$0xff]
    %v5156 = vld [vmem:[%s5130 + $0xc8] sm:$0xff]
    %v5157 = vld [vmem:[%s5130 + $0xd0] sm:$0xff]
    %v5158 = vld [vmem:[%s5130 + $0xd8] sm:$0xff]
    %v5159 = vld [vmem:[%s5130 + $0xe0] sm:$0xff]
    %v5160 = vld [vmem:[%s5130 + $0xe8] sm:$0xff]
    %v5161 = vld [vmem:[%s5130 + $0xf0] sm:$0xff]
    %v5162 = vld [vmem:[%s5130 + $0xf8] sm:$0xff]
    %v5163 = vld [vmem:[%s5130 + $0x100] sm:$0xff]
    %v5164 = vld [vmem:[%s5130 + $0x108] sm:$0xff]
    %v5165 = vld [vmem:[%s5130 + $0x110] sm:$0xff]
    %v5166 = vld [vmem:[%s5130 + $0x118] sm:$0xff]
    %v5167 = vld [vmem:[%s5130 + $0x120] sm:$0xff]
    %v5168 = vld [vmem:[%s5130 + $0x128] sm:$0xff]
    %v5169 = vld [vmem:[%s5130 + $0x130] sm:$0xff]
    %v5170 = vld [vmem:[%s5130 + $0x138] sm:$0xff]
    %v5171 = vld [vmem:[%s5130 + $0x140] sm:$0xff]
    %v5172 = vld [vmem:[%s5130 + $0x148] sm:$0xff]
    %v5173 = vld [vmem:[%s5130 + $0x150] sm:$0xff]
    %v5174 = vld [vmem:[%s5130 + $0x158] sm:$0xff]
    %v5175 = vld [vmem:[%s5130 + $0x160] sm:$0xff]
    %v5176 = vld [vmem:[%s5130 + $0x168] sm:$0xff]
    %v5177 = vld [vmem:[%s5130 + $0x170] sm:$0xff]
    %v5178 = vld [vmem:[%s5130 + $0x178] sm:$0xff]
    %v5179 = vld [vmem:[%s5130 + $0x180] sm:$0xff]
    %v5180 = vld [vmem:[%s5130 + $0x188] sm:$0xff]
    %v5181 = vld [vmem:[%s5130 + $0x190] sm:$0xff]
    %v5182 = vld [vmem:[%s5130 + $0x198] sm:$0xff]
    %v5183 = vld [vmem:[%s5130 + $0x1a0] sm:$0xff]
    %v5184 = vld [vmem:[%s5130 + $0x1a8] sm:$0xff]
    %v5185 = vld [vmem:[%s5130 + $0x1b0] sm:$0xff]
    %v5186 = vld [vmem:[%s5130 + $0x1b8] sm:$0xff]
    %v5187 = vld [vmem:[%s5130 + $0x1c0] sm:$0xff]
    %v5188 = vld [vmem:[%s5130 + $0x1c8] sm:$0xff]
    %v5189 = vld [vmem:[%s5130 + $0x1d0] sm:$0xff]
    %v5190 = vld [vmem:[%s5130 + $0x1d8] sm:$0xff]
    %v5191 = vld [vmem:[%s5130 + $0x1e0] sm:$0xff]
    %v5192 = vld [vmem:[%s5130 + $0x1e8] sm:$0xff]
    %v5193 = vld [vmem:[%s5130 + $0x1f0] sm:$0xff]
    %v5194 = vld [vmem:[%s5130 + $0x1f8] sm:$0xff]
    %5195 = vmatprep.subr.mxu0 0.0
    %5196 = vmatpush1.msra.mxu0 %v5131
    %5197 = vmatprep.subr.mxu0 0.0
    %5198 = vmatpush1.msra.mxu0 %v5132
    %5199 = vmatprep.subr.mxu0 0.0
    %5200 = vmatpush1.msra.mxu0 %v5133
    %5201 = vmatprep.subr.mxu0 0.0
    %5202 = vmatpush1.msra.mxu0 %v5134
    %5203 = vmatprep.subr.mxu0 0.0
    %5204 = vmatpush1.msra.mxu0 %v5135
    %5205 = vmatprep.subr.mxu0 0.0
    %5206 = vmatpush1.msra.mxu0 %v5136
    %5207 = vmatprep.subr.mxu0 0.0
    %5208 = vmatpush1.msra.mxu0 %v5137
    %5209 = vmatprep.subr.mxu0 0.0
    %5210 = vmatpush1.msra.mxu0 %v5138
    %5211 = vmatprep.subr.mxu0 0.0
    %5212 = vmatpush1.msra.mxu0 %v5139
    %5213 = vmatprep.subr.mxu0 0.0
    %5214 = vmatpush1.msra.mxu0 %v5140
    %5215 = vmatprep.subr.mxu0 0.0
    %5216 = vmatpush1.msra.mxu0 %v5141
    %5217 = vmatprep.subr.mxu0 0.0
    %5218 = vmatpush1.msra.mxu0 %v5142
    %5219 = vmatprep.subr.mxu0 0.0
    %5220 = vmatpush1.msra.mxu0 %v5143
    %5221 = vmatprep.subr.mxu0 0.0
    %5222 = vmatpush1.msra.mxu0 %v5144
    %5223 = vmatprep.subr.mxu0 0.0
    %5224 = vmatpush1.msra.mxu0 %v5145
    %5225 = vmatprep.subr.mxu0 0.0
    %5226 = vmatpush1.msra.mxu0 %v5146
    %5227 = vmatprep.subr.mxu0 0.0
    %5228 = vmatpush1.msra.mxu0 %v5147
    %5229 = vmatprep.subr.mxu0 0.0
    %5230 = vmatpush1.msra.mxu0 %v5148
    %5231 = vmatprep.subr.mxu0 0.0
    %5232 = vmatpush1.msra.mxu0 %v5149
    %5233 = vmatprep.subr.mxu0 0.0
    %5234 = vmatpush1.msra.mxu0 %v5150
    %5235 = vmatprep.subr.mxu0 0.0
    %5236 = vmatpush1.msra.mxu0 %v5151
    %5237 = vmatprep.subr.mxu0 0.0
    %5238 = vmatpush1.msra.mxu0 %v5152
    %5239 = vmatprep.subr.mxu0 0.0
    %5240 = vmatpush1.msra.mxu0 %v5153
    %5241 = vmatprep.subr.mxu0 0.0
    %5242 = vmatpush1.msra.mxu0 %v5154
    %5243 = vmatprep.subr.mxu0 0.0
    %5244 = vmatpush1.msra.mxu0 %v5155
    %5245 = vmatprep.subr.mxu0 0.0
    %5246 = vmatpush1.msra.mxu0 %v5156
    %5247 = vmatprep.subr.mxu0 0.0
    %5248 = vmatpush1.msra.mxu0 %v5157
    %5249 = vmatprep.subr.mxu0 0.0
    %5250 = vmatpush1.msra.mxu0 %v5158
    %5251 = vmatprep.subr.mxu0 0.0
    %5252 = vmatpush1.msra.mxu0 %v5159
    %5253 = vmatprep.subr.mxu0 0.0
    %5254 = vmatpush1.msra.mxu0 %v5160
    %5255 = vmatprep.subr.mxu0 0.0
    %5256 = vmatpush1.msra.mxu0 %v5161
    %5257 = vmatprep.subr.mxu0 0.0
    %5258 = vmatpush1.msra.mxu0 %v5162
    %5259 = vmatprep.mubr.f32.mxu0 %v5127
    %5260 = vmatmul.mubr.f32.gmra.mrb[0].mxu0 %v5126
    %v5261 = vpop.f32.mrb[0].mxu0
    %v5262 = vadd.f32 0.0, %v5261
    %v5263 = vpop.f32.mrb[0].mxu0
    %5264 = vdwg.mxu0
    %5265 = vmatprep.subr.mxu0 0.0
    %5266 = vmatpush1.msra.mxu0 %v5163
    %5267 = vmatprep.subr.mxu0 0.0
    %5268 = vmatpush1.msra.mxu0 %v5164
    %5269 = vmatprep.subr.mxu0 0.0
    %5270 = vmatpush1.msra.mxu0 %v5165
    %5271 = vmatprep.subr.mxu0 0.0
    %5272 = vmatpush1.msra.mxu0 %v5166
    %5273 = vmatprep.subr.mxu0 0.0
    %5274 = vmatpush1.msra.mxu0 %v5167
    %5275 = vmatprep.subr.mxu0 0.0
    %5276 = vmatpush1.msra.mxu0 %v5168
    %5277 = vmatprep.subr.mxu0 0.0
    %5278 = vmatpush1.msra.mxu0 %v5169
    %5279 = vmatprep.subr.mxu0 0.0
    %5280 = vmatpush1.msra.mxu0 %v5170
    %5281 = vmatprep.subr.mxu0 0.0
    %5282 = vmatpush1.msra.mxu0 %v5171
    %5283 = vmatprep.subr.mxu0 0.0
    %5284 = vmatpush1.msra.mxu0 %v5172
    %5285 = vmatprep.subr.mxu0 0.0
    %5286 = vmatpush1.msra.mxu0 %v5173
    %5287 = vmatprep.subr.mxu0 0.0
    %5288 = vmatpush1.msra.mxu0 %v5174
    %5289 = vmatprep.subr.mxu0 0.0
    %5290 = vmatpush1.msra.mxu0 %v5175
    %5291 = vmatprep.subr.mxu0 0.0
    %5292 = vmatpush1.msra.mxu0 %v5176
    %5293 = vmatprep.subr.mxu0 0.0
    %5294 = vmatpush1.msra.mxu0 %v5177
    %5295 = vmatprep.subr.mxu0 0.0
    %5296 = vmatpush1.msra.mxu0 %v5178
    %5297 = vmatprep.subr.mxu0 0.0
    %5298 = vmatpush1.msra.mxu0 %v5179
    %5299 = vmatprep.subr.mxu0 0.0
    %5300 = vmatpush1.msra.mxu0 %v5180
    %5301 = vmatprep.subr.mxu0 0.0
    %5302 = vmatpush1.msra.mxu0 %v5181
    %5303 = vmatprep.subr.mxu0 0.0
    %5304 = vmatpush1.msra.mxu0 %v5182
    %5305 = vmatprep.subr.mxu0 0.0
    %5306 = vmatpush1.msra.mxu0 %v5183
    %5307 = vmatprep.subr.mxu0 0.0
    %5308 = vmatpush1.msra.mxu0 %v5184
    %5309 = vmatprep.subr.mxu0 0.0
    %5310 = vmatpush1.msra.mxu0 %v5185
    %5311 = vmatprep.subr.mxu0 0.0
    %5312 = vmatpush1.msra.mxu0 %v5186
    %5313 = vmatprep.subr.mxu0 0.0
    %5314 = vmatpush1.msra.mxu0 %v5187
    %5315 = vmatprep.subr.mxu0 0.0
    %5316 = vmatpush1.msra.mxu0 %v5188
    %5317 = vmatprep.subr.mxu0 0.0
    %5318 = vmatpush1.msra.mxu0 %v5189
    %5319 = vmatprep.subr.mxu0 0.0
    %5320 = vmatpush1.msra.mxu0 %v5190
    %5321 = vmatprep.subr.mxu0 0.0
    %5322 = vmatpush1.msra.mxu0 %v5191
    %5323 = vmatprep.subr.mxu0 0.0
    %5324 = vmatpush1.msra.mxu0 %v5192
    %5325 = vmatprep.subr.mxu0 0.0
    %5326 = vmatpush1.msra.mxu0 %v5193
    %5327 = vmatprep.subr.mxu0 0.0
    %5328 = vmatpush1.msra.mxu0 %v5194
    %5329 = vmatprep.mubr.f32.mxu0 %v5129
    %5330 = vmatmul.mubr.f32.gmra.mrb[0].mxu0 %v5128
    %v5331 = vpop.f32.mrb[0].mxu0
    %v5332 = vadd.f32 %v5262, %v5331
    %v5333 = vpop.f32.mrb[0].mxu0
    %5334 = vdwg.mxu0
    %5335 = vmatprep.subr.mxu0 0.0
    %5336 = vmatpush1.msra.mxu0 %v5062
    %5337 = vmatprep.subr.mxu0 0.0
    %5338 = vmatpush1.msra.mxu0 %v5063
    %5339 = vmatprep.subr.mxu0 0.0
    %5340 = vmatpush1.msra.mxu0 %v5064
    %5341 = vmatprep.subr.mxu0 0.0
    %5342 = vmatpush1.msra.mxu0 %v5065
    %5343 = vmatprep.subr.mxu0 0.0
    %5344 = vmatpush1.msra.mxu0 %v5066
    %5345 = vmatprep.subr.mxu0 0.0
    %5346 = vmatpush1.msra.mxu0 %v5067
    %5347 = vmatprep.subr.mxu0 0.0
    %5348 = vmatpush1.msra.mxu0 %v5068
    %5349 = vmatprep.subr.mxu0 0.0
    %5350 = vmatpush1.msra.mxu0 %v5069
    %5351 = vmatprep.subr.mxu0 0.0
    %5352 = vmatpush1.msra.mxu0 %v5070
    %5353 = vmatprep.subr.mxu0 0.0
    %5354 = vmatpush1.msra.mxu0 %v5071
    %5355 = vmatprep.subr.mxu0 0.0
    %5356 = vmatpush1.msra.mxu0 %v5072
    %5357 = vmatprep.subr.mxu0 0.0
    %5358 = vmatpush1.msra.mxu0 %v5073
    %5359 = vmatprep.subr.mxu0 0.0
    %5360 = vmatpush1.msra.mxu0 %v5074
    %5361 = vmatprep.subr.mxu0 0.0
    %5362 = vmatpush1.msra.mxu0 %v5075
    %5363 = vmatprep.subr.mxu0 0.0
    %5364 = vmatpush1.msra.mxu0 %v5076
    %5365 = vmatprep.subr.mxu0 0.0
    %5366 = vmatpush1.msra.mxu0 %v5077
    %5367 = vmatprep.subr.mxu0 0.0
    %5368 = vmatpush1.msra.mxu0 %v5078
    %5369 = vmatprep.subr.mxu0 0.0
    %5370 = vmatpush1.msra.mxu0 %v5079
    %5371 = vmatprep.subr.mxu0 0.0
    %5372 = vmatpush1.msra.mxu0 %v5080
    %5373 = vmatprep.subr.mxu0 0.0
    %5374 = vmatpush1.msra.mxu0 %v5081
    %5375 = vmatprep.subr.mxu0 0.0
    %5376 = vmatpush1.msra.mxu0 %v5082
    %5377 = vmatprep.subr.mxu0 0.0
    %5378 = vmatpush1.msra.mxu0 %v5083
    %5379 = vmatprep.subr.mxu0 0.0
    %5380 = vmatpush1.msra.mxu0 %v5084
    %5381 = vmatprep.subr.mxu0 0.0
    %5382 = vmatpush1.msra.mxu0 %v5085
    %5383 = vmatprep.subr.mxu0 0.0
    %5384 = vmatpush1.msra.mxu0 %v5086
    %5385 = vmatprep.subr.mxu0 0.0
    %5386 = vmatpush1.msra.mxu0 %v5087
    %5387 = vmatprep.subr.mxu0 0.0
    %5388 = vmatpush1.msra.mxu0 %v5088
    %5389 = vmatprep.subr.mxu0 0.0
    %5390 = vmatpush1.msra.mxu0 %v5089
    %5391 = vmatprep.subr.mxu0 0.0
    %5392 = vmatpush1.msra.mxu0 %v5090
    %5393 = vmatprep.subr.mxu0 0.0
    %5394 = vmatpush1.msra.mxu0 %v5091
    %5395 = vmatprep.subr.mxu0 0.0
    %5396 = vmatpush1.msra.mxu0 %v5092
    %5397 = vmatprep.subr.mxu0 0.0
    %5398 = vmatpush1.msra.mxu0 %v5093
    %5399 = vmatprep.mubr.f32.mxu0 %v5059
    %5400 = vmatmul.mubr.f32.gmra.mrb[0].mxu0 %v5058
    %v5401 = vpop.f32.mrb[0].mxu0
    %v5402 = vadd.f32 %v5332, %v5401
    %v5403 = vpop.f32.mrb[0].mxu0
    %5404 = vdwg.mxu0
    %5405 = vmatprep.subr.mxu0 0.0
    %5406 = vmatpush1.msra.mxu0 %v5094
    %5407 = vmatprep.subr.mxu0 0.0
    %5408 = vmatpush1.msra.mxu0 %v5095
    %5409 = vmatprep.subr.mxu0 0.0
    %5410 = vmatpush1.msra.mxu0 %v5096
    %5411 = vmatprep.subr.mxu0 0.0
    %5412 = vmatpush1.msra.mxu0 %v5097
    %5413 = vmatprep.subr.mxu0 0.0
    %5414 = vmatpush1.msra.mxu0 %v5098
    %5415 = vmatprep.subr.mxu0 0.0
    %5416 = vmatpush1.msra.mxu0 %v5099
    %5417 = vmatprep.subr.mxu0 0.0
    %5418 = vmatpush1.msra.mxu0 %v5100
    %5419 = vmatprep.subr.mxu0 0.0
    %5420 = vmatpush1.msra.mxu0 %v5101
    %5421 = vmatprep.subr.mxu0 0.0
    %5422 = vmatpush1.msra.mxu0 %v5102
    %5423 = vmatprep.subr.mxu0 0.0
    %5424 = vmatpush1.msra.mxu0 %v5103
    %5425 = vmatprep.subr.mxu0 0.0
    %5426 = vmatpush1.msra.mxu0 %v5104
    %5427 = vmatprep.subr.mxu0 0.0
    %5428 = vmatpush1.msra.mxu0 %v5105
    %5429 = vmatprep.subr.mxu0 0.0
    %5430 = vmatpush1.msra.mxu0 %v5106
    %5431 = vmatprep.subr.mxu0 0.0
    %5432 = vmatpush1.msra.mxu0 %v5107
    %5433 = vmatprep.subr.mxu0 0.0
    %5434 = vmatpush1.msra.mxu0 %v5108
    %5435 = vmatprep.subr.mxu0 0.0
    %5436 = vmatpush1.msra.mxu0 %v5109
    %5437 = vmatprep.subr.mxu0 0.0
    %5438 = vmatpush1.msra.mxu0 %v5110
    %5439 = vmatprep.subr.mxu0 0.0
    %5440 = vmatpush1.msra.mxu0 %v5111
    %5441 = vmatprep.subr.mxu0 0.0
    %5442 = vmatpush1.msra.mxu0 %v5112
    %5443 = vmatprep.subr.mxu0 0.0
    %5444 = vmatpush1.msra.mxu0 %v5113
    %5445 = vmatprep.subr.mxu0 0.0
    %5446 = vmatpush1.msra.mxu0 %v5114
    %5447 = vmatprep.subr.mxu0 0.0
    %5448 = vmatpush1.msra.mxu0 %v5115
    %5449 = vmatprep.subr.mxu0 0.0
    %5450 = vmatpush1.msra.mxu0 %v5116
    %5451 = vmatprep.subr.mxu0 0.0
    %5452 = vmatpush1.msra.mxu0 %v5117
    %5453 = vmatprep.subr.mxu0 0.0
    %5454 = vmatpush1.msra.mxu0 %v5118
    %5455 = vmatprep.subr.mxu0 0.0
    %5456 = vmatpush1.msra.mxu0 %v5119
    %5457 = vmatprep.subr.mxu0 0.0
    %5458 = vmatpush1.msra.mxu0 %v5120
    %5459 = vmatprep.subr.mxu0 0.0
    %5460 = vmatpush1.msra.mxu0 %v5121
    %5461 = vmatprep.subr.mxu0 0.0
    %5462 = vmatpush1.msra.mxu0 %v5122
    %5463 = vmatprep.subr.mxu0 0.0
    %5464 = vmatpush1.msra.mxu0 %v5123
    %5465 = vmatprep.subr.mxu0 0.0
    %5466 = vmatpush1.msra.mxu0 %v5124
    %5467 = vmatprep.subr.mxu0 0.0
    %5468 = vmatpush1.msra.mxu0 %v5125
    %5469 = vmatprep.mubr.f32.mxu0 %v5061
    %5470 = vmatmul.mubr.f32.gmra.mrb[0].mxu0 %v5060
    %v5471 = vpop.f32.mrb[0].mxu0
    %v5472 = vadd.f32 %v5402, %v5471
    %v5473 = vpop.f32.mrb[0].mxu0
    %5474 = vdwg.mxu0
    %v5475 = vld [vmem:[#allocation4] sm:$0x1]
    %v5477 = vlaneseq
    %v5478 = vshrl.u32 %v5477, 7
    %v5479 = vsub.s32 0, %v5478
    %v5480 = vrot.slane %v5475, %v5479
    %5481 = vset.pattern.permute.xlu0 0
    %5482 = vperm.xlu0 %5481, %v5480
    %v5483 = vpop.permute.xlu0 %5482
    %v5485 = vadd.f32 %v5472, %v5483
    %v5486 = vtanh.pop %v5485
    %5487 = vst [vmem:[%s9] sm:$0xff] %v5486
    %v5488 = vld [vmem:[#allocation3 + $0x20] sm:$0xff]
    %v5489 = vld [vmem:[#allocation3 + $0x28] sm:$0xff]
    %v5490 = vld [vmem:[#allocation3 + $0x30] sm:$0xff]
    %v5491 = vld [vmem:[#allocation3 + $0x38] sm:$0xff]
    %v5492 = vld [vmem:[#allocation10] sm:$0xff]
    %v5493 = vld [vmem:[#allocation10 + $0x8] sm:$0xff]
    %v5494 = vld [vmem:[#allocation10 + $0x10] sm:$0xff]
    %v5495 = vld [vmem:[#allocation10 + $0x18] sm:$0xff]
    %v5496 = vld [vmem:[#allocation10 + $0x20] sm:$0xff]
    %v5497 = vld [vmem:[#allocation10 + $0x28] sm:$0xff]
    %v5498 = vld [vmem:[#allocation10 + $0x30] sm:$0xff]
    %v5499 = vld [vmem:[#allocation10 + $0x38] sm:$0xff]
    %v5500 = vld [vmem:[#allocation10 + $0x40] sm:$0xff]
    %v5501 = vld [vmem:[#allocation10 + $0x48] sm:$0xff]
    %v5502 = vld [vmem:[#allocation10 + $0x50] sm:$0xff]
    %v5503 = vld [vmem:[#allocation10 + $0x58] sm:$0xff]
    %v5504 = vld [vmem:[#allocation10 + $0x60] sm:$0xff]
    %v5505 = vld [vmem:[#allocation10 + $0x68] sm:$0xff]
    %v5506 = vld [vmem:[#allocation10 + $0x70] sm:$0xff]
    %v5507 = vld [vmem:[#allocation10 + $0x78] sm:$0xff]
    %v5508 = vld [vmem:[#allocation10 + $0x80] sm:$0xff]
    %v5509 = vld [vmem:[#allocation10 + $0x88] sm:$0xff]
    %v5510 = vld [vmem:[#allocation10 + $0x90] sm:$0xff]
    %v5511 = vld [vmem:[#allocation10 + $0x98] sm:$0xff]
    %v5512 = vld [vmem:[#allocation10 + $0xa0] sm:$0xff]
    %v5513 = vld [vmem:[#allocation10 + $0xa8] sm:$0xff]
    %v5514 = vld [vmem:[#allocation10 + $0xb0] sm:$0xff]
    %v5515 = vld [vmem:[#allocation10 + $0xb8] sm:$0xff]
    %v5516 = vld [vmem:[#allocation10 + $0xc0] sm:$0xff]
    %v5517 = vld [vmem:[#allocation10 + $0xc8] sm:$0xff]
    %v5518 = vld [vmem:[#allocation10 + $0xd0] sm:$0xff]
    %v5519 = vld [vmem:[#allocation10 + $0xd8] sm:$0xff]
    %v5520 = vld [vmem:[#allocation10 + $0xe0] sm:$0xff]
    %v5521 = vld [vmem:[#allocation10 + $0xe8] sm:$0xff]
    %v5522 = vld [vmem:[#allocation10 + $0xf0] sm:$0xff]
    %v5523 = vld [vmem:[#allocation10 + $0xf8] sm:$0xff]
    %v5524 = vld [vmem:[#allocation10 + $0x100] sm:$0xff]
    %v5525 = vld [vmem:[#allocation10 + $0x108] sm:$0xff]
    %v5526 = vld [vmem:[#allocation10 + $0x110] sm:$0xff]
    %v5527 = vld [vmem:[#allocation10 + $0x118] sm:$0xff]
    %v5528 = vld [vmem:[#allocation10 + $0x120] sm:$0xff]
    %v5529 = vld [vmem:[#allocation10 + $0x128] sm:$0xff]
    %v5530 = vld [vmem:[#allocation10 + $0x130] sm:$0xff]
    %v5531 = vld [vmem:[#allocation10 + $0x138] sm:$0xff]
    %v5532 = vld [vmem:[#allocation10 + $0x140] sm:$0xff]
    %v5533 = vld [vmem:[#allocation10 + $0x148] sm:$0xff]
    %v5534 = vld [vmem:[#allocation10 + $0x150] sm:$0xff]
    %v5535 = vld [vmem:[#allocation10 + $0x158] sm:$0xff]
    %v5536 = vld [vmem:[#allocation10 + $0x160] sm:$0xff]
    %v5537 = vld [vmem:[#allocation10 + $0x168] sm:$0xff]
    %v5538 = vld [vmem:[#allocation10 + $0x170] sm:$0xff]
    %v5539 = vld [vmem:[#allocation10 + $0x178] sm:$0xff]
    %v5540 = vld [vmem:[#allocation10 + $0x180] sm:$0xff]
    %v5541 = vld [vmem:[#allocation10 + $0x188] sm:$0xff]
    %v5542 = vld [vmem:[#allocation10 + $0x190] sm:$0xff]
    %v5543 = vld [vmem:[#allocation10 + $0x198] sm:$0xff]
    %v5544 = vld [vmem:[#allocation10 + $0x1a0] sm:$0xff]
    %v5545 = vld [vmem:[#allocation10 + $0x1a8] sm:$0xff]
    %v5546 = vld [vmem:[#allocation10 + $0x1b0] sm:$0xff]
    %v5547 = vld [vmem:[#allocation10 + $0x1b8] sm:$0xff]
    %v5548 = vld [vmem:[#allocation10 + $0x1c0] sm:$0xff]
    %v5549 = vld [vmem:[#allocation10 + $0x1c8] sm:$0xff]
    %v5550 = vld [vmem:[#allocation10 + $0x1d0] sm:$0xff]
    %v5551 = vld [vmem:[#allocation10 + $0x1d8] sm:$0xff]
    %v5552 = vld [vmem:[#allocation10 + $0x1e0] sm:$0xff]
    %v5553 = vld [vmem:[#allocation10 + $0x1e8] sm:$0xff]
    %v5554 = vld [vmem:[#allocation10 + $0x1f0] sm:$0xff]
    %v5555 = vld [vmem:[#allocation10 + $0x1f8] sm:$0xff]
    %v5556 = vld [vmem:[#allocation3 + $0x40] sm:$0xff]
    %v5557 = vld [vmem:[#allocation3 + $0x48] sm:$0xff]
    %v5558 = vld [vmem:[#allocation3 + $0x50] sm:$0xff]
    %v5559 = vld [vmem:[#allocation3 + $0x58] sm:$0xff]
    %v5560 = vld [vmem:[%s5130] sm:$0xff]
    %v5561 = vld [vmem:[%s5130 + $0x8] sm:$0xff]
    %v5562 = vld [vmem:[%s5130 + $0x10] sm:$0xff]
    %v5563 = vld [vmem:[%s5130 + $0x18] sm:$0xff]
    %v5564 = vld [vmem:[%s5130 + $0x20] sm:$0xff]
    %v5565 = vld [vmem:[%s5130 + $0x28] sm:$0xff]
    %v5566 = vld [vmem:[%s5130 + $0x30] sm:$0xff]
    %v5567 = vld [vmem:[%s5130 + $0x38] sm:$0xff]
    %v5568 = vld [vmem:[%s5130 + $0x40] sm:$0xff]
    %v5569 = vld [vmem:[%s5130 + $0x48] sm:$0xff]
    %v5570 = vld [vmem:[%s5130 + $0x50] sm:$0xff]
    %v5571 = vld [vmem:[%s5130 + $0x58] sm:$0xff]
    %v5572 = vld [vmem:[%s5130 + $0x60] sm:$0xff]
    %v5573 = vld [vmem:[%s5130 + $0x68] sm:$0xff]
    %v5574 = vld [vmem:[%s5130 + $0x70] sm:$0xff]
    %v5575 = vld [vmem:[%s5130 + $0x78] sm:$0xff]
    %v5576 = vld [vmem:[%s5130 + $0x80] sm:$0xff]
    %v5577 = vld [vmem:[%s5130 + $0x88] sm:$0xff]
    %v5578 = vld [vmem:[%s5130 + $0x90] sm:$0xff]
    %v5579 = vld [vmem:[%s5130 + $0x98] sm:$0xff]
    %v5580 = vld [vmem:[%s5130 + $0xa0] sm:$0xff]
    %v5581 = vld [vmem:[%s5130 + $0xa8] sm:$0xff]
    %v5582 = vld [vmem:[%s5130 + $0xb0] sm:$0xff]
    %v5583 = vld [vmem:[%s5130 + $0xb8] sm:$0xff]
    %v5584 = vld [vmem:[%s5130 + $0xc0] sm:$0xff]
    %v5585 = vld [vmem:[%s5130 + $0xc8] sm:$0xff]
    %v5586 = vld [vmem:[%s5130 + $0xd0] sm:$0xff]
    %v5587 = vld [vmem:[%s5130 + $0xd8] sm:$0xff]
    %v5588 = vld [vmem:[%s5130 + $0xe0] sm:$0xff]
    %v5589 = vld [vmem:[%s5130 + $0xe8] sm:$0xff]
    %v5590 = vld [vmem:[%s5130 + $0xf0] sm:$0xff]
    %v5591 = vld [vmem:[%s5130 + $0xf8] sm:$0xff]
    %v5592 = vld [vmem:[%s5130 + $0x100] sm:$0xff]
    %v5593 = vld [vmem:[%s5130 + $0x108] sm:$0xff]
    %v5594 = vld [vmem:[%s5130 + $0x110] sm:$0xff]
    %v5595 = vld [vmem:[%s5130 + $0x118] sm:$0xff]
    %v5596 = vld [vmem:[%s5130 + $0x120] sm:$0xff]
    %v5597 = vld [vmem:[%s5130 + $0x128] sm:$0xff]
    %v5598 = vld [vmem:[%s5130 + $0x130] sm:$0xff]
    %v5599 = vld [vmem:[%s5130 + $0x138] sm:$0xff]
    %v5600 = vld [vmem:[%s5130 + $0x140] sm:$0xff]
    %v5601 = vld [vmem:[%s5130 + $0x148] sm:$0xff]
    %v5602 = vld [vmem:[%s5130 + $0x150] sm:$0xff]
    %v5603 = vld [vmem:[%s5130 + $0x158] sm:$0xff]
    %v5604 = vld [vmem:[%s5130 + $0x160] sm:$0xff]
    %v5605 = vld [vmem:[%s5130 + $0x168] sm:$0xff]
    %v5606 = vld [vmem:[%s5130 + $0x170] sm:$0xff]
    %v5607 = vld [vmem:[%s5130 + $0x178] sm:$0xff]
    %v5608 = vld [vmem:[%s5130 + $0x180] sm:$0xff]
    %v5609 = vld [vmem:[%s5130 + $0x188] sm:$0xff]
    %v5610 = vld [vmem:[%s5130 + $0x190] sm:$0xff]
    %v5611 = vld [vmem:[%s5130 + $0x198] sm:$0xff]
    %v5612 = vld [vmem:[%s5130 + $0x1a0] sm:$0xff]
    %v5613 = vld [vmem:[%s5130 + $0x1a8] sm:$0xff]
    %v5614 = vld [vmem:[%s5130 + $0x1b0] sm:$0xff]
    %v5615 = vld [vmem:[%s5130 + $0x1b8] sm:$0xff]
    %v5616 = vld [vmem:[%s5130 + $0x1c0] sm:$0xff]
    %v5617 = vld [vmem:[%s5130 + $0x1c8] sm:$0xff]
    %v5618 = vld [vmem:[%s5130 + $0x1d0] sm:$0xff]
    %v5619 = vld [vmem:[%s5130 + $0x1d8] sm:$0xff]
    %v5620 = vld [vmem:[%s5130 + $0x1e0] sm:$0xff]
    %v5621 = vld [vmem:[%s5130 + $0x1e8] sm:$0xff]
    %v5622 = vld [vmem:[%s5130 + $0x1f0] sm:$0xff]
    %v5623 = vld [vmem:[%s5130 + $0x1f8] sm:$0xff]
    %5624 = vmatprep.subr.mxu0 0.0
    %5625 = vmatpush1.msra.mxu0 %v5560
    %5626 = vmatprep.subr.mxu0 0.0
    %5627 = vmatpush1.msra.mxu0 %v5561
    %5628 = vmatprep.subr.mxu0 0.0
    %5629 = vmatpush1.msra.mxu0 %v5562
    %5630 = vmatprep.subr.mxu0 0.0
    %5631 = vmatpush1.msra.mxu0 %v5563
    %5632 = vmatprep.subr.mxu0 0.0
    %5633 = vmatpush1.msra.mxu0 %v5564
    %5634 = vmatprep.subr.mxu0 0.0
    %5635 = vmatpush1.msra.mxu0 %v5565
    %5636 = vmatprep.subr.mxu0 0.0
    %5637 = vmatpush1.msra.mxu0 %v5566
    %5638 = vmatprep.subr.mxu0 0.0
    %5639 = vmatpush1.msra.mxu0 %v5567
    %5640 = vmatprep.subr.mxu0 0.0
    %5641 = vmatpush1.msra.mxu0 %v5568
    %5642 = vmatprep.subr.mxu0 0.0
    %5643 = vmatpush1.msra.mxu0 %v5569
    %5644 = vmatprep.subr.mxu0 0.0
    %5645 = vmatpush1.msra.mxu0 %v5570
    %5646 = vmatprep.subr.mxu0 0.0
    %5647 = vmatpush1.msra.mxu0 %v5571
    %5648 = vmatprep.subr.mxu0 0.0
    %5649 = vmatpush1.msra.mxu0 %v5572
    %5650 = vmatprep.subr.mxu0 0.0
    %5651 = vmatpush1.msra.mxu0 %v5573
    %5652 = vmatprep.subr.mxu0 0.0
    %5653 = vmatpush1.msra.mxu0 %v5574
    %5654 = vmatprep.subr.mxu0 0.0
    %5655 = vmatpush1.msra.mxu0 %v5575
    %5656 = vmatprep.subr.mxu0 0.0
    %5657 = vmatpush1.msra.mxu0 %v5576
    %5658 = vmatprep.subr.mxu0 0.0
    %5659 = vmatpush1.msra.mxu0 %v5577
    %5660 = vmatprep.subr.mxu0 0.0
    %5661 = vmatpush1.msra.mxu0 %v5578
    %5662 = vmatprep.subr.mxu0 0.0
    %5663 = vmatpush1.msra.mxu0 %v5579
    %5664 = vmatprep.subr.mxu0 0.0
    %5665 = vmatpush1.msra.mxu0 %v5580
    %5666 = vmatprep.subr.mxu0 0.0
    %5667 = vmatpush1.msra.mxu0 %v5581
    %5668 = vmatprep.subr.mxu0 0.0
    %5669 = vmatpush1.msra.mxu0 %v5582
    %5670 = vmatprep.subr.mxu0 0.0
    %5671 = vmatpush1.msra.mxu0 %v5583
    %5672 = vmatprep.subr.mxu0 0.0
    %5673 = vmatpush1.msra.mxu0 %v5584
    %5674 = vmatprep.subr.mxu0 0.0
    %5675 = vmatpush1.msra.mxu0 %v5585
    %5676 = vmatprep.subr.mxu0 0.0
    %5677 = vmatpush1.msra.mxu0 %v5586
    %5678 = vmatprep.subr.mxu0 0.0
    %5679 = vmatpush1.msra.mxu0 %v5587
    %5680 = vmatprep.subr.mxu0 0.0
    %5681 = vmatpush1.msra.mxu0 %v5588
    %5682 = vmatprep.subr.mxu0 0.0
    %5683 = vmatpush1.msra.mxu0 %v5589
    %5684 = vmatprep.subr.mxu0 0.0
    %5685 = vmatpush1.msra.mxu0 %v5590
    %5686 = vmatprep.subr.mxu0 0.0
    %5687 = vmatpush1.msra.mxu0 %v5591
    %5688 = vmatprep.mubr.f32.mxu0 %v5557
    %5689 = vmatmul.mubr.f32.gmra.mrb[0].mxu0 %v5556
    %v5690 = vpop.f32.mrb[0].mxu0
    %v5691 = vadd.f32 0.0, %v5690
    %v5692 = vpop.f32.mrb[0].mxu0
    %5693 = vdwg.mxu0
    %5694 = vmatprep.subr.mxu0 0.0
    %5695 = vmatpush1.msra.mxu0 %v5592
    %5696 = vmatprep.subr.mxu0 0.0
    %5697 = vmatpush1.msra.mxu0 %v5593
    %5698 = vmatprep.subr.mxu0 0.0
    %5699 = vmatpush1.msra.mxu0 %v5594
    %5700 = vmatprep.subr.mxu0 0.0
    %5701 = vmatpush1.msra.mxu0 %v5595
    %5702 = vmatprep.subr.mxu0 0.0
    %5703 = vmatpush1.msra.mxu0 %v5596
    %5704 = vmatprep.subr.mxu0 0.0
    %5705 = vmatpush1.msra.mxu0 %v5597
    %5706 = vmatprep.subr.mxu0 0.0
    %5707 = vmatpush1.msra.mxu0 %v5598
    %5708 = vmatprep.subr.mxu0 0.0
    %5709 = vmatpush1.msra.mxu0 %v5599
    %5710 = vmatprep.subr.mxu0 0.0
    %5711 = vmatpush1.msra.mxu0 %v5600
    %5712 = vmatprep.subr.mxu0 0.0
    %5713 = vmatpush1.msra.mxu0 %v5601
    %5714 = vmatprep.subr.mxu0 0.0
    %5715 = vmatpush1.msra.mxu0 %v5602
    %5716 = vmatprep.subr.mxu0 0.0
    %5717 = vmatpush1.msra.mxu0 %v5603
    %5718 = vmatprep.subr.mxu0 0.0
    %5719 = vmatpush1.msra.mxu0 %v5604
    %5720 = vmatprep.subr.mxu0 0.0
    %5721 = vmatpush1.msra.mxu0 %v5605
    %5722 = vmatprep.subr.mxu0 0.0
    %5723 = vmatpush1.msra.mxu0 %v5606
    %5724 = vmatprep.subr.mxu0 0.0
    %5725 = vmatpush1.msra.mxu0 %v5607
    %5726 = vmatprep.subr.mxu0 0.0
    %5727 = vmatpush1.msra.mxu0 %v5608
    %5728 = vmatprep.subr.mxu0 0.0
    %5729 = vmatpush1.msra.mxu0 %v5609
    %5730 = vmatprep.subr.mxu0 0.0
    %5731 = vmatpush1.msra.mxu0 %v5610
    %5732 = vmatprep.subr.mxu0 0.0
    %5733 = vmatpush1.msra.mxu0 %v5611
    %5734 = vmatprep.subr.mxu0 0.0
    %5735 = vmatpush1.msra.mxu0 %v5612
    %5736 = vmatprep.subr.mxu0 0.0
    %5737 = vmatpush1.msra.mxu0 %v5613
    %5738 = vmatprep.subr.mxu0 0.0
    %5739 = vmatpush1.msra.mxu0 %v5614
    %5740 = vmatprep.subr.mxu0 0.0
    %5741 = vmatpush1.msra.mxu0 %v5615
    %5742 = vmatprep.subr.mxu0 0.0
    %5743 = vmatpush1.msra.mxu0 %v5616
    %5744 = vmatprep.subr.mxu0 0.0
    %5745 = vmatpush1.msra.mxu0 %v5617
    %5746 = vmatprep.subr.mxu0 0.0
    %5747 = vmatpush1.msra.mxu0 %v5618
    %5748 = vmatprep.subr.mxu0 0.0
    %5749 = vmatpush1.msra.mxu0 %v5619
    %5750 = vmatprep.subr.mxu0 0.0
    %5751 = vmatpush1.msra.mxu0 %v5620
    %5752 = vmatprep.subr.mxu0 0.0
    %5753 = vmatpush1.msra.mxu0 %v5621
    %5754 = vmatprep.subr.mxu0 0.0
    %5755 = vmatpush1.msra.mxu0 %v5622
    %5756 = vmatprep.subr.mxu0 0.0
    %5757 = vmatpush1.msra.mxu0 %v5623
    %5758 = vmatprep.mubr.f32.mxu0 %v5559
    %5759 = vmatmul.mubr.f32.gmra.mrb[0].mxu0 %v5558
    %v5760 = vpop.f32.mrb[0].mxu0
    %v5761 = vadd.f32 %v5691, %v5760
    %v5762 = vpop.f32.mrb[0].mxu0
    %5763 = vdwg.mxu0
    %5764 = vmatprep.subr.mxu0 0.0
    %5765 = vmatpush1.msra.mxu0 %v5492
    %5766 = vmatprep.subr.mxu0 0.0
    %5767 = vmatpush1.msra.mxu0 %v5493
    %5768 = vmatprep.subr.mxu0 0.0
    %5769 = vmatpush1.msra.mxu0 %v5494
    %5770 = vmatprep.subr.mxu0 0.0
    %5771 = vmatpush1.msra.mxu0 %v5495
    %5772 = vmatprep.subr.mxu0 0.0
    %5773 = vmatpush1.msra.mxu0 %v5496
    %5774 = vmatprep.subr.mxu0 0.0
    %5775 = vmatpush1.msra.mxu0 %v5497
    %5776 = vmatprep.subr.mxu0 0.0
    %5777 = vmatpush1.msra.mxu0 %v5498
    %5778 = vmatprep.subr.mxu0 0.0
    %5779 = vmatpush1.msra.mxu0 %v5499
    %5780 = vmatprep.subr.mxu0 0.0
    %5781 = vmatpush1.msra.mxu0 %v5500
    %5782 = vmatprep.subr.mxu0 0.0
    %5783 = vmatpush1.msra.mxu0 %v5501
    %5784 = vmatprep.subr.mxu0 0.0
    %5785 = vmatpush1.msra.mxu0 %v5502
    %5786 = vmatprep.subr.mxu0 0.0
    %5787 = vmatpush1.msra.mxu0 %v5503
    %5788 = vmatprep.subr.mxu0 0.0
    %5789 = vmatpush1.msra.mxu0 %v5504
    %5790 = vmatprep.subr.mxu0 0.0
    %5791 = vmatpush1.msra.mxu0 %v5505
    %5792 = vmatprep.subr.mxu0 0.0
    %5793 = vmatpush1.msra.mxu0 %v5506
    %5794 = vmatprep.subr.mxu0 0.0
    %5795 = vmatpush1.msra.mxu0 %v5507
    %5796 = vmatprep.subr.mxu0 0.0
    %5797 = vmatpush1.msra.mxu0 %v5508
    %5798 = vmatprep.subr.mxu0 0.0
    %5799 = vmatpush1.msra.mxu0 %v5509
    %5800 = vmatprep.subr.mxu0 0.0
    %5801 = vmatpush1.msra.mxu0 %v5510
    %5802 = vmatprep.subr.mxu0 0.0
    %5803 = vmatpush1.msra.mxu0 %v5511
    %5804 = vmatprep.subr.mxu0 0.0
    %5805 = vmatpush1.msra.mxu0 %v5512
    %5806 = vmatprep.subr.mxu0 0.0
    %5807 = vmatpush1.msra.mxu0 %v5513
    %5808 = vmatprep.subr.mxu0 0.0
    %5809 = vmatpush1.msra.mxu0 %v5514
    %5810 = vmatprep.subr.mxu0 0.0
    %5811 = vmatpush1.msra.mxu0 %v5515
    %5812 = vmatprep.subr.mxu0 0.0
    %5813 = vmatpush1.msra.mxu0 %v5516
    %5814 = vmatprep.subr.mxu0 0.0
    %5815 = vmatpush1.msra.mxu0 %v5517
    %5816 = vmatprep.subr.mxu0 0.0
    %5817 = vmatpush1.msra.mxu0 %v5518
    %5818 = vmatprep.subr.mxu0 0.0
    %5819 = vmatpush1.msra.mxu0 %v5519
    %5820 = vmatprep.subr.mxu0 0.0
    %5821 = vmatpush1.msra.mxu0 %v5520
    %5822 = vmatprep.subr.mxu0 0.0
    %5823 = vmatpush1.msra.mxu0 %v5521
    %5824 = vmatprep.subr.mxu0 0.0
    %5825 = vmatpush1.msra.mxu0 %v5522
    %5826 = vmatprep.subr.mxu0 0.0
    %5827 = vmatpush1.msra.mxu0 %v5523
    %5828 = vmatprep.mubr.f32.mxu0 %v5489
    %5829 = vmatmul.mubr.f32.gmra.mrb[0].mxu0 %v5488
    %v5830 = vpop.f32.mrb[0].mxu0
    %v5831 = vadd.f32 %v5761, %v5830
    %v5832 = vpop.f32.mrb[0].mxu0
    %5833 = vdwg.mxu0
    %5834 = vmatprep.subr.mxu0 0.0
    %5835 = vmatpush1.msra.mxu0 %v5524
    %5836 = vmatprep.subr.mxu0 0.0
    %5837 = vmatpush1.msra.mxu0 %v5525
    %5838 = vmatprep.subr.mxu0 0.0
    %5839 = vmatpush1.msra.mxu0 %v5526
    %5840 = vmatprep.subr.mxu0 0.0
    %5841 = vmatpush1.msra.mxu0 %v5527
    %5842 = vmatprep.subr.mxu0 0.0
    %5843 = vmatpush1.msra.mxu0 %v5528
    %5844 = vmatprep.subr.mxu0 0.0
    %5845 = vmatpush1.msra.mxu0 %v5529
    %5846 = vmatprep.subr.mxu0 0.0
    %5847 = vmatpush1.msra.mxu0 %v5530
    %5848 = vmatprep.subr.mxu0 0.0
    %5849 = vmatpush1.msra.mxu0 %v5531
    %5850 = vmatprep.subr.mxu0 0.0
    %5851 = vmatpush1.msra.mxu0 %v5532
    %5852 = vmatprep.subr.mxu0 0.0
    %5853 = vmatpush1.msra.mxu0 %v5533
    %5854 = vmatprep.subr.mxu0 0.0
    %5855 = vmatpush1.msra.mxu0 %v5534
    %5856 = vmatprep.subr.mxu0 0.0
    %5857 = vmatpush1.msra.mxu0 %v5535
    %5858 = vmatprep.subr.mxu0 0.0
    %5859 = vmatpush1.msra.mxu0 %v5536
    %5860 = vmatprep.subr.mxu0 0.0
    %5861 = vmatpush1.msra.mxu0 %v5537
    %5862 = vmatprep.subr.mxu0 0.0
    %5863 = vmatpush1.msra.mxu0 %v5538
    %5864 = vmatprep.subr.mxu0 0.0
    %5865 = vmatpush1.msra.mxu0 %v5539
    %5866 = vmatprep.subr.mxu0 0.0
    %5867 = vmatpush1.msra.mxu0 %v5540
    %5868 = vmatprep.subr.mxu0 0.0
    %5869 = vmatpush1.msra.mxu0 %v5541
    %5870 = vmatprep.subr.mxu0 0.0
    %5871 = vmatpush1.msra.mxu0 %v5542
    %5872 = vmatprep.subr.mxu0 0.0
    %5873 = vmatpush1.msra.mxu0 %v5543
    %5874 = vmatprep.subr.mxu0 0.0
    %5875 = vmatpush1.msra.mxu0 %v5544
    %5876 = vmatprep.subr.mxu0 0.0
    %5877 = vmatpush1.msra.mxu0 %v5545
    %5878 = vmatprep.subr.mxu0 0.0
    %5879 = vmatpush1.msra.mxu0 %v5546
    %5880 = vmatprep.subr.mxu0 0.0
    %5881 = vmatpush1.msra.mxu0 %v5547
    %5882 = vmatprep.subr.mxu0 0.0
    %5883 = vmatpush1.msra.mxu0 %v5548
    %5884 = vmatprep.subr.mxu0 0.0
    %5885 = vmatpush1.msra.mxu0 %v5549
    %5886 = vmatprep.subr.mxu0 0.0
    %5887 = vmatpush1.msra.mxu0 %v5550
    %5888 = vmatprep.subr.mxu0 0.0
    %5889 = vmatpush1.msra.mxu0 %v5551
    %5890 = vmatprep.subr.mxu0 0.0
    %5891 = vmatpush1.msra.mxu0 %v5552
    %5892 = vmatprep.subr.mxu0 0.0
    %5893 = vmatpush1.msra.mxu0 %v5553
    %5894 = vmatprep.subr.mxu0 0.0
    %5895 = vmatpush1.msra.mxu0 %v5554
    %5896 = vmatprep.subr.mxu0 0.0
    %5897 = vmatpush1.msra.mxu0 %v5555
    %5898 = vmatprep.mubr.f32.mxu0 %v5491
    %5899 = vmatmul.mubr.f32.gmra.mrb[0].mxu0 %v5490
    %v5900 = vpop.f32.mrb[0].mxu0
    %v5901 = vadd.f32 %v5831, %v5900
    %v5902 = vpop.f32.mrb[0].mxu0
    %5903 = vdwg.mxu0
    %v5904 = vld [vmem:[#allocation4] sm:$0x1]
    %v5906 = vlaneseq
    %v5907 = vshrl.u32 %v5906, 7
    %v5908 = vsub.s32 0, %v5907
    %v5909 = vrot.slane %v5904, %v5908
    %5910 = vset.pattern.permute.xlu0 0
    %5911 = vperm.xlu0 %5910, %v5909
    %v5912 = vpop.permute.xlu0 %5911
    %v5914 = vadd.f32 %v5901, %v5912
    %v5915 = vtanh.pop %v5914
    %5916 = vst [vmem:[%s9 + $0x8] sm:$0xff] %v5915
    %v5917 = vld [vmem:[#allocation3 + $0x40] sm:$0xff]
    %v5918 = vld [vmem:[#allocation3 + $0x48] sm:$0xff]
    %v5919 = vld [vmem:[#allocation3 + $0x50] sm:$0xff]
    %v5920 = vld [vmem:[#allocation3 + $0x58] sm:$0xff]
    %v5921 = vld [vmem:[#allocation10] sm:$0xff]
    %v5922 = vld [vmem:[#allocation10 + $0x8] sm:$0xff]
    %v5923 = vld [vmem:[#allocation10 + $0x10] sm:$0xff]
    %v5924 = vld [vmem:[#allocation10 + $0x18] sm:$0xff]
    %v5925 = vld [vmem:[#allocation10 + $0x20] sm:$0xff]
    %v5926 = vld [vmem:[#allocation10 + $0x28] sm:$0xff]
    %v5927 = vld [vmem:[#allocation10 + $0x30] sm:$0xff]
    %v5928 = vld [vmem:[#allocation10 + $0x38] sm:$0xff]
    %v5929 = vld [vmem:[#allocation10 + $0x40] sm:$0xff]
    %v5930 = vld [vmem:[#allocation10 + $0x48] sm:$0xff]
    %v5931 = vld [vmem:[#allocation10 + $0x50] sm:$0xff]
    %v5932 = vld [vmem:[#allocation10 + $0x58] sm:$0xff]
    %v5933 = vld [vmem:[#allocation10 + $0x60] sm:$0xff]
    %v5934 = vld [vmem:[#allocation10 + $0x68] sm:$0xff]
    %v5935 = vld [vmem:[#allocation10 + $0x70] sm:$0xff]
    %v5936 = vld [vmem:[#allocation10 + $0x78] sm:$0xff]
    %v5937 = vld [vmem:[#allocation10 + $0x80] sm:$0xff]
    %v5938 = vld [vmem:[#allocation10 + $0x88] sm:$0xff]
    %v5939 = vld [vmem:[#allocation10 + $0x90] sm:$0xff]
    %v5940 = vld [vmem:[#allocation10 + $0x98] sm:$0xff]
    %v5941 = vld [vmem:[#allocation10 + $0xa0] sm:$0xff]
    %v5942 = vld [vmem:[#allocation10 + $0xa8] sm:$0xff]
    %v5943 = vld [vmem:[#allocation10 + $0xb0] sm:$0xff]
    %v5944 = vld [vmem:[#allocation10 + $0xb8] sm:$0xff]
    %v5945 = vld [vmem:[#allocation10 + $0xc0] sm:$0xff]
    %v5946 = vld [vmem:[#allocation10 + $0xc8] sm:$0xff]
    %v5947 = vld [vmem:[#allocation10 + $0xd0] sm:$0xff]
    %v5948 = vld [vmem:[#allocation10 + $0xd8] sm:$0xff]
    %v5949 = vld [vmem:[#allocation10 + $0xe0] sm:$0xff]
    %v5950 = vld [vmem:[#allocation10 + $0xe8] sm:$0xff]
    %v5951 = vld [vmem:[#allocation10 + $0xf0] sm:$0xff]
    %v5952 = vld [vmem:[#allocation10 + $0xf8] sm:$0xff]
    %v5953 = vld [vmem:[#allocation10 + $0x100] sm:$0xff]
    %v5954 = vld [vmem:[#allocation10 + $0x108] sm:$0xff]
    %v5955 = vld [vmem:[#allocation10 + $0x110] sm:$0xff]
    %v5956 = vld [vmem:[#allocation10 + $0x118] sm:$0xff]
    %v5957 = vld [vmem:[#allocation10 + $0x120] sm:$0xff]
    %v5958 = vld [vmem:[#allocation10 + $0x128] sm:$0xff]
    %v5959 = vld [vmem:[#allocation10 + $0x130] sm:$0xff]
    %v5960 = vld [vmem:[#allocation10 + $0x138] sm:$0xff]
    %v5961 = vld [vmem:[#allocation10 + $0x140] sm:$0xff]
    %v5962 = vld [vmem:[#allocation10 + $0x148] sm:$0xff]
    %v5963 = vld [vmem:[#allocation10 + $0x150] sm:$0xff]
    %v5964 = vld [vmem:[#allocation10 + $0x158] sm:$0xff]
    %v5965 = vld [vmem:[#allocation10 + $0x160] sm:$0xff]
    %v5966 = vld [vmem:[#allocation10 + $0x168] sm:$0xff]
    %v5967 = vld [vmem:[#allocation10 + $0x170] sm:$0xff]
    %v5968 = vld [vmem:[#allocation10 + $0x178] sm:$0xff]
    %v5969 = vld [vmem:[#allocation10 + $0x180] sm:$0xff]
    %v5970 = vld [vmem:[#allocation10 + $0x188] sm:$0xff]
    %v5971 = vld [vmem:[#allocation10 + $0x190] sm:$0xff]
    %v5972 = vld [vmem:[#allocation10 + $0x198] sm:$0xff]
    %v5973 = vld [vmem:[#allocation10 + $0x1a0] sm:$0xff]
    %v5974 = vld [vmem:[#allocation10 + $0x1a8] sm:$0xff]
    %v5975 = vld [vmem:[#allocation10 + $0x1b0] sm:$0xff]
    %v5976 = vld [vmem:[#allocation10 + $0x1b8] sm:$0xff]
    %v5977 = vld [vmem:[#allocation10 + $0x1c0] sm:$0xff]
    %v5978 = vld [vmem:[#allocation10 + $0x1c8] sm:$0xff]
    %v5979 = vld [vmem:[#allocation10 + $0x1d0] sm:$0xff]
    %v5980 = vld [vmem:[#allocation10 + $0x1d8] sm:$0xff]
    %v5981 = vld [vmem:[#allocation10 + $0x1e0] sm:$0xff]
    %v5982 = vld [vmem:[#allocation10 + $0x1e8] sm:$0xff]
    %v5983 = vld [vmem:[#allocation10 + $0x1f0] sm:$0xff]
    %v5984 = vld [vmem:[#allocation10 + $0x1f8] sm:$0xff]
    %v5985 = vld [vmem:[#allocation3 + $0x60] sm:$0xff]
    %v5986 = vld [vmem:[#allocation3 + $0x68] sm:$0xff]
    %v5987 = vld [vmem:[#allocation3 + $0x70] sm:$0xff]
    %v5988 = vld [vmem:[#allocation3 + $0x78] sm:$0xff]
    %v5989 = vld [vmem:[%s5130] sm:$0xff]
    %v5990 = vld [vmem:[%s5130 + $0x8] sm:$0xff]
    %v5991 = vld [vmem:[%s5130 + $0x10] sm:$0xff]
    %v5992 = vld [vmem:[%s5130 + $0x18] sm:$0xff]
    %v5993 = vld [vmem:[%s5130 + $0x20] sm:$0xff]
    %v5994 = vld [vmem:[%s5130 + $0x28] sm:$0xff]
    %v5995 = vld [vmem:[%s5130 + $0x30] sm:$0xff]
    %v5996 = vld [vmem:[%s5130 + $0x38] sm:$0xff]
    %v5997 = vld [vmem:[%s5130 + $0x40] sm:$0xff]
    %v5998 = vld [vmem:[%s5130 + $0x48] sm:$0xff]
    %v5999 = vld [vmem:[%s5130 + $0x50] sm:$0xff]
    %v6000 = vld [vmem:[%s5130 + $0x58] sm:$0xff]
    %v6001 = vld [vmem:[%s5130 + $0x60] sm:$0xff]
    %v6002 = vld [vmem:[%s5130 + $0x68] sm:$0xff]
    %v6003 = vld [vmem:[%s5130 + $0x70] sm:$0xff]
    %v6004 = vld [vmem:[%s5130 + $0x78] sm:$0xff]
    %v6005 = vld [vmem:[%s5130 + $0x80] sm:$0xff]
    %v6006 = vld [vmem:[%s5130 + $0x88] sm:$0xff]
    %v6007 = vld [vmem:[%s5130 + $0x90] sm:$0xff]
    %v6008 = vld [vmem:[%s5130 + $0x98] sm:$0xff]
    %v6009 = vld [vmem:[%s5130 + $0xa0] sm:$0xff]
    %v6010 = vld [vmem:[%s5130 + $0xa8] sm:$0xff]
    %v6011 = vld [vmem:[%s5130 + $0xb0] sm:$0xff]
    %v6012 = vld [vmem:[%s5130 + $0xb8] sm:$0xff]
    %v6013 = vld [vmem:[%s5130 + $0xc0] sm:$0xff]
    %v6014 = vld [vmem:[%s5130 + $0xc8] sm:$0xff]
    %v6015 = vld [vmem:[%s5130 + $0xd0] sm:$0xff]
    %v6016 = vld [vmem:[%s5130 + $0xd8] sm:$0xff]
    %v6017 = vld [vmem:[%s5130 + $0xe0] sm:$0xff]
    %v6018 = vld [vmem:[%s5130 + $0xe8] sm:$0xff]
    %v6019 = vld [vmem:[%s5130 + $0xf0] sm:$0xff]
    %v6020 = vld [vmem:[%s5130 + $0xf8] sm:$0xff]
    %v6021 = vld [vmem:[%s5130 + $0x100] sm:$0xff]
    %v6022 = vld [vmem:[%s5130 + $0x108] sm:$0xff]
    %v6023 = vld [vmem:[%s5130 + $0x110] sm:$0xff]
    %v6024 = vld [vmem:[%s5130 + $0x118] sm:$0xff]
    %v6025 = vld [vmem:[%s5130 + $0x120] sm:$0xff]
    %v6026 = vld [vmem:[%s5130 + $0x128] sm:$0xff]
    %v6027 = vld [vmem:[%s5130 + $0x130] sm:$0xff]
    %v6028 = vld [vmem:[%s5130 + $0x138] sm:$0xff]
    %v6029 = vld [vmem:[%s5130 + $0x140] sm:$0xff]
    %v6030 = vld [vmem:[%s5130 + $0x148] sm:$0xff]
    %v6031 = vld [vmem:[%s5130 + $0x150] sm:$0xff]
    %v6032 = vld [vmem:[%s5130 + $0x158] sm:$0xff]
    %v6033 = vld [vmem:[%s5130 + $0x160] sm:$0xff]
    %v6034 = vld [vmem:[%s5130 + $0x168] sm:$0xff]
    %v6035 = vld [vmem:[%s5130 + $0x170] sm:$0xff]
    %v6036 = vld [vmem:[%s5130 + $0x178] sm:$0xff]
    %v6037 = vld [vmem:[%s5130 + $0x180] sm:$0xff]
    %v6038 = vld [vmem:[%s5130 + $0x188] sm:$0xff]
    %v6039 = vld [vmem:[%s5130 + $0x190] sm:$0xff]
    %v6040 = vld [vmem:[%s5130 + $0x198] sm:$0xff]
    %v6041 = vld [vmem:[%s5130 + $0x1a0] sm:$0xff]
    %v6042 = vld [vmem:[%s5130 + $0x1a8] sm:$0xff]
    %v6043 = vld [vmem:[%s5130 + $0x1b0] sm:$0xff]
    %v6044 = vld [vmem:[%s5130 + $0x1b8] sm:$0xff]
    %v6045 = vld [vmem:[%s5130 + $0x1c0] sm:$0xff]
    %v6046 = vld [vmem:[%s5130 + $0x1c8] sm:$0xff]
    %v6047 = vld [vmem:[%s5130 + $0x1d0] sm:$0xff]
    %v6048 = vld [vmem:[%s5130 + $0x1d8] sm:$0xff]
    %v6049 = vld [vmem:[%s5130 + $0x1e0] sm:$0xff]
    %v6050 = vld [vmem:[%s5130 + $0x1e8] sm:$0xff]
    %v6051 = vld [vmem:[%s5130 + $0x1f0] sm:$0xff]
    %v6052 = vld [vmem:[%s5130 + $0x1f8] sm:$0xff]
    %6053 = vmatprep.subr.mxu0 0.0
    %6054 = vmatpush1.msra.mxu0 %v5989
    %6055 = vmatprep.subr.mxu0 0.0
    %6056 = vmatpush1.msra.mxu0 %v5990
    %6057 = vmatprep.subr.mxu0 0.0
    %6058 = vmatpush1.msra.mxu0 %v5991
    %6059 = vmatprep.subr.mxu0 0.0
    %6060 = vmatpush1.msra.mxu0 %v5992
    %6061 = vmatprep.subr.mxu0 0.0
    %6062 = vmatpush1.msra.mxu0 %v5993
    %6063 = vmatprep.subr.mxu0 0.0
    %6064 = vmatpush1.msra.mxu0 %v5994
    %6065 = vmatprep.subr.mxu0 0.0
    %6066 = vmatpush1.msra.mxu0 %v5995
    %6067 = vmatprep.subr.mxu0 0.0
    %6068 = vmatpush1.msra.mxu0 %v5996
    %6069 = vmatprep.subr.mxu0 0.0
    %6070 = vmatpush1.msra.mxu0 %v5997
    %6071 = vmatprep.subr.mxu0 0.0
    %6072 = vmatpush1.msra.mxu0 %v5998
    %6073 = vmatprep.subr.mxu0 0.0
    %6074 = vmatpush1.msra.mxu0 %v5999
    %6075 = vmatprep.subr.mxu0 0.0
    %6076 = vmatpush1.msra.mxu0 %v6000
    %6077 = vmatprep.subr.mxu0 0.0
    %6078 = vmatpush1.msra.mxu0 %v6001
    %6079 = vmatprep.subr.mxu0 0.0
    %6080 = vmatpush1.msra.mxu0 %v6002
    %6081 = vmatprep.subr.mxu0 0.0
    %6082 = vmatpush1.msra.mxu0 %v6003
    %6083 = vmatprep.subr.mxu0 0.0
    %6084 = vmatpush1.msra.mxu0 %v6004
    %6085 = vmatprep.subr.mxu0 0.0
    %6086 = vmatpush1.msra.mxu0 %v6005
    %6087 = vmatprep.subr.mxu0 0.0
    %6088 = vmatpush1.msra.mxu0 %v6006
    %6089 = vmatprep.subr.mxu0 0.0
    %6090 = vmatpush1.msra.mxu0 %v6007
    %6091 = vmatprep.subr.mxu0 0.0
    %6092 = vmatpush1.msra.mxu0 %v6008
    %6093 = vmatprep.subr.mxu0 0.0
    %6094 = vmatpush1.msra.mxu0 %v6009
    %6095 = vmatprep.subr.mxu0 0.0
    %6096 = vmatpush1.msra.mxu0 %v6010
    %6097 = vmatprep.subr.mxu0 0.0
    %6098 = vmatpush1.msra.mxu0 %v6011
    %6099 = vmatprep.subr.mxu0 0.0
    %6100 = vmatpush1.msra.mxu0 %v6012
    %6101 = vmatprep.subr.mxu0 0.0
    %6102 = vmatpush1.msra.mxu0 %v6013
    %6103 = vmatprep.subr.mxu0 0.0
    %6104 = vmatpush1.msra.mxu0 %v6014
    %6105 = vmatprep.subr.mxu0 0.0
    %6106 = vmatpush1.msra.mxu0 %v6015
    %6107 = vmatprep.subr.mxu0 0.0
    %6108 = vmatpush1.msra.mxu0 %v6016
    %6109 = vmatprep.subr.mxu0 0.0
    %6110 = vmatpush1.msra.mxu0 %v6017
    %6111 = vmatprep.subr.mxu0 0.0
    %6112 = vmatpush1.msra.mxu0 %v6018
    %6113 = vmatprep.subr.mxu0 0.0
    %6114 = vmatpush1.msra.mxu0 %v6019
    %6115 = vmatprep.subr.mxu0 0.0
    %6116 = vmatpush1.msra.mxu0 %v6020
    %6117 = vmatprep.mubr.f32.mxu0 %v5986
    %6118 = vmatmul.mubr.f32.gmra.mrb[0].mxu0 %v5985
    %v6119 = vpop.f32.mrb[0].mxu0
    %v6120 = vadd.f32 0.0, %v6119
    %v6121 = vpop.f32.mrb[0].mxu0
    %6122 = vdwg.mxu0
    %6123 = vmatprep.subr.mxu0 0.0
    %6124 = vmatpush1.msra.mxu0 %v6021
    %6125 = vmatprep.subr.mxu0 0.0
    %6126 = vmatpush1.msra.mxu0 %v6022
    %6127 = vmatprep.subr.mxu0 0.0
    %6128 = vmatpush1.msra.mxu0 %v6023
    %6129 = vmatprep.subr.mxu0 0.0
    %6130 = vmatpush1.msra.mxu0 %v6024
    %6131 = vmatprep.subr.mxu0 0.0
    %6132 = vmatpush1.msra.mxu0 %v6025
    %6133 = vmatprep.subr.mxu0 0.0
    %6134 = vmatpush1.msra.mxu0 %v6026
    %6135 = vmatprep.subr.mxu0 0.0
    %6136 = vmatpush1.msra.mxu0 %v6027
    %6137 = vmatprep.subr.mxu0 0.0
    %6138 = vmatpush1.msra.mxu0 %v6028
    %6139 = vmatprep.subr.mxu0 0.0
    %6140 = vmatpush1.msra.mxu0 %v6029
    %6141 = vmatprep.subr.mxu0 0.0
    %6142 = vmatpush1.msra.mxu0 %v6030
    %6143 = vmatprep.subr.mxu0 0.0
    %6144 = vmatpush1.msra.mxu0 %v6031
    %6145 = vmatprep.subr.mxu0 0.0
    %6146 = vmatpush1.msra.mxu0 %v6032
    %6147 = vmatprep.subr.mxu0 0.0
    %6148 = vmatpush1.msra.mxu0 %v6033
    %6149 = vmatprep.subr.mxu0 0.0
    %6150 = vmatpush1.msra.mxu0 %v6034
    %6151 = vmatprep.subr.mxu0 0.0
    %6152 = vmatpush1.msra.mxu0 %v6035
    %6153 = vmatprep.subr.mxu0 0.0
    %6154 = vmatpush1.msra.mxu0 %v6036
    %6155 = vmatprep.subr.mxu0 0.0
    %6156 = vmatpush1.msra.mxu0 %v6037
    %6157 = vmatprep.subr.mxu0 0.0
    %6158 = vmatpush1.msra.mxu0 %v6038
    %6159 = vmatprep.subr.mxu0 0.0
    %6160 = vmatpush1.msra.mxu0 %v6039
    %6161 = vmatprep.subr.mxu0 0.0
    %6162 = vmatpush1.msra.mxu0 %v6040
    %6163 = vmatprep.subr.mxu0 0.0
    %6164 = vmatpush1.msra.mxu0 %v6041
    %6165 = vmatprep.subr.mxu0 0.0
    %6166 = vmatpush1.msra.mxu0 %v6042
    %6167 = vmatprep.subr.mxu0 0.0
    %6168 = vmatpush1.msra.mxu0 %v6043
    %6169 = vmatprep.subr.mxu0 0.0
    %6170 = vmatpush1.msra.mxu0 %v6044
    %6171 = vmatprep.subr.mxu0 0.0
    %6172 = vmatpush1.msra.mxu0 %v6045
    %6173 = vmatprep.subr.mxu0 0.0
    %6174 = vmatpush1.msra.mxu0 %v6046
    %6175 = vmatprep.subr.mxu0 0.0
    %6176 = vmatpush1.msra.mxu0 %v6047
    %6177 = vmatprep.subr.mxu0 0.0
    %6178 = vmatpush1.msra.mxu0 %v6048
    %6179 = vmatprep.subr.mxu0 0.0
    %6180 = vmatpush1.msra.mxu0 %v6049
    %6181 = vmatprep.subr.mxu0 0.0
    %6182 = vmatpush1.msra.mxu0 %v6050
    %6183 = vmatprep.subr.mxu0 0.0
    %6184 = vmatpush1.msra.mxu0 %v6051
    %6185 = vmatprep.subr.mxu0 0.0
    %6186 = vmatpush1.msra.mxu0 %v6052
    %6187 = vmatprep.mubr.f32.mxu0 %v5988
    %6188 = vmatmul.mubr.f32.gmra.mrb[0].mxu0 %v5987
    %v6189 = vpop.f32.mrb[0].mxu0
    %v6190 = vadd.f32 %v6120, %v6189
    %v6191 = vpop.f32.mrb[0].mxu0
    %6192 = vdwg.mxu0
    %6193 = vmatprep.subr.mxu0 0.0
    %6194 = vmatpush1.msra.mxu0 %v5921
    %6195 = vmatprep.subr.mxu0 0.0
    %6196 = vmatpush1.msra.mxu0 %v5922
    %6197 = vmatprep.subr.mxu0 0.0
    %6198 = vmatpush1.msra.mxu0 %v5923
    %6199 = vmatprep.subr.mxu0 0.0
    %6200 = vmatpush1.msra.mxu0 %v5924
    %6201 = vmatprep.subr.mxu0 0.0
    %6202 = vmatpush1.msra.mxu0 %v5925
    %6203 = vmatprep.subr.mxu0 0.0
    %6204 = vmatpush1.msra.mxu0 %v5926
    %6205 = vmatprep.subr.mxu0 0.0
    %6206 = vmatpush1.msra.mxu0 %v5927
    %6207 = vmatprep.subr.mxu0 0.0
    %6208 = vmatpush1.msra.mxu0 %v5928
    %6209 = vmatprep.subr.mxu0 0.0
    %6210 = vmatpush1.msra.mxu0 %v5929
    %6211 = vmatprep.subr.mxu0 0.0
    %6212 = vmatpush1.msra.mxu0 %v5930
    %6213 = vmatprep.subr.mxu0 0.0
    %6214 = vmatpush1.msra.mxu0 %v5931
    %6215 = vmatprep.subr.mxu0 0.0
    %6216 = vmatpush1.msra.mxu0 %v5932
    %6217 = vmatprep.subr.mxu0 0.0
    %6218 = vmatpush1.msra.mxu0 %v5933
    %6219 = vmatprep.subr.mxu0 0.0
    %6220 = vmatpush1.msra.mxu0 %v5934
    %6221 = vmatprep.subr.mxu0 0.0
    %6222 = vmatpush1.msra.mxu0 %v5935
    %6223 = vmatprep.subr.mxu0 0.0
    %6224 = vmatpush1.msra.mxu0 %v5936
    %6225 = vmatprep.subr.mxu0 0.0
    %6226 = vmatpush1.msra.mxu0 %v5937
    %6227 = vmatprep.subr.mxu0 0.0
    %6228 = vmatpush1.msra.mxu0 %v5938
    %6229 = vmatprep.subr.mxu0 0.0
    %6230 = vmatpush1.msra.mxu0 %v5939
    %6231 = vmatprep.subr.mxu0 0.0
    %6232 = vmatpush1.msra.mxu0 %v5940
    %6233 = vmatprep.subr.mxu0 0.0
    %6234 = vmatpush1.msra.mxu0 %v5941
    %6235 = vmatprep.subr.mxu0 0.0
    %6236 = vmatpush1.msra.mxu0 %v5942
    %6237 = vmatprep.subr.mxu0 0.0
    %6238 = vmatpush1.msra.mxu0 %v5943
    %6239 = vmatprep.subr.mxu0 0.0
    %6240 = vmatpush1.msra.mxu0 %v5944
    %6241 = vmatprep.subr.mxu0 0.0
    %6242 = vmatpush1.msra.mxu0 %v5945
    %6243 = vmatprep.subr.mxu0 0.0
    %6244 = vmatpush1.msra.mxu0 %v5946
    %6245 = vmatprep.subr.mxu0 0.0
    %6246 = vmatpush1.msra.mxu0 %v5947
    %6247 = vmatprep.subr.mxu0 0.0
    %6248 = vmatpush1.msra.mxu0 %v5948
    %6249 = vmatprep.subr.mxu0 0.0
    %6250 = vmatpush1.msra.mxu0 %v5949
    %6251 = vmatprep.subr.mxu0 0.0
    %6252 = vmatpush1.msra.mxu0 %v5950
    %6253 = vmatprep.subr.mxu0 0.0
    %6254 = vmatpush1.msra.mxu0 %v5951
    %6255 = vmatprep.subr.mxu0 0.0
    %6256 = vmatpush1.msra.mxu0 %v5952
    %6257 = vmatprep.mubr.f32.mxu0 %v5918
    %6258 = vmatmul.mubr.f32.gmra.mrb[0].mxu0 %v5917
    %v6259 = vpop.f32.mrb[0].mxu0
    %v6260 = vadd.f32 %v6190, %v6259
    %v6261 = vpop.f32.mrb[0].mxu0
    %6262 = vdwg.mxu0
    %6263 = vmatprep.subr.mxu0 0.0
    %6264 = vmatpush1.msra.mxu0 %v5953
    %6265 = vmatprep.subr.mxu0 0.0
    %6266 = vmatpush1.msra.mxu0 %v5954
    %6267 = vmatprep.subr.mxu0 0.0
    %6268 = vmatpush1.msra.mxu0 %v5955
    %6269 = vmatprep.subr.mxu0 0.0
    %6270 = vmatpush1.msra.mxu0 %v5956
    %6271 = vmatprep.subr.mxu0 0.0
    %6272 = vmatpush1.msra.mxu0 %v5957
    %6273 = vmatprep.subr.mxu0 0.0
    %6274 = vmatpush1.msra.mxu0 %v5958
    %6275 = vmatprep.subr.mxu0 0.0
    %6276 = vmatpush1.msra.mxu0 %v5959
    %6277 = vmatprep.subr.mxu0 0.0
    %6278 = vmatpush1.msra.mxu0 %v5960
    %6279 = vmatprep.subr.mxu0 0.0
    %6280 = vmatpush1.msra.mxu0 %v5961
    %6281 = vmatprep.subr.mxu0 0.0
    %6282 = vmatpush1.msra.mxu0 %v5962
    %6283 = vmatprep.subr.mxu0 0.0
    %6284 = vmatpush1.msra.mxu0 %v5963
    %6285 = vmatprep.subr.mxu0 0.0
    %6286 = vmatpush1.msra.mxu0 %v5964
    %6287 = vmatprep.subr.mxu0 0.0
    %6288 = vmatpush1.msra.mxu0 %v5965
    %6289 = vmatprep.subr.mxu0 0.0
    %6290 = vmatpush1.msra.mxu0 %v5966
    %6291 = vmatprep.subr.mxu0 0.0
    %6292 = vmatpush1.msra.mxu0 %v5967
    %6293 = vmatprep.subr.mxu0 0.0
    %6294 = vmatpush1.msra.mxu0 %v5968
    %6295 = vmatprep.subr.mxu0 0.0
    %6296 = vmatpush1.msra.mxu0 %v5969
    %6297 = vmatprep.subr.mxu0 0.0
    %6298 = vmatpush1.msra.mxu0 %v5970
    %6299 = vmatprep.subr.mxu0 0.0
    %6300 = vmatpush1.msra.mxu0 %v5971
    %6301 = vmatprep.subr.mxu0 0.0
    %6302 = vmatpush1.msra.mxu0 %v5972
    %6303 = vmatprep.subr.mxu0 0.0
    %6304 = vmatpush1.msra.mxu0 %v5973
    %6305 = vmatprep.subr.mxu0 0.0
    %6306 = vmatpush1.msra.mxu0 %v5974
    %6307 = vmatprep.subr.mxu0 0.0
    %6308 = vmatpush1.msra.mxu0 %v5975
    %6309 = vmatprep.subr.mxu0 0.0
    %6310 = vmatpush1.msra.mxu0 %v5976
    %6311 = vmatprep.subr.mxu0 0.0
    %6312 = vmatpush1.msra.mxu0 %v5977
    %6313 = vmatprep.subr.mxu0 0.0
    %6314 = vmatpush1.msra.mxu0 %v5978
    %6315 = vmatprep.subr.mxu0 0.0
    %6316 = vmatpush1.msra.mxu0 %v5979
    %6317 = vmatprep.subr.mxu0 0.0
    %6318 = vmatpush1.msra.mxu0 %v5980
    %6319 = vmatprep.subr.mxu0 0.0
    %6320 = vmatpush1.msra.mxu0 %v5981
    %6321 = vmatprep.subr.mxu0 0.0
    %6322 = vmatpush1.msra.mxu0 %v5982
    %6323 = vmatprep.subr.mxu0 0.0
    %6324 = vmatpush1.msra.mxu0 %v5983
    %6325 = vmatprep.subr.mxu0 0.0
    %6326 = vmatpush1.msra.mxu0 %v5984
    %6327 = vmatprep.mubr.f32.mxu0 %v5920
    %6328 = vmatmul.mubr.f32.gmra.mrb[0].mxu0 %v5919
    %v6329 = vpop.f32.mrb[0].mxu0
    %v6330 = vadd.f32 %v6260, %v6329
    %v6331 = vpop.f32.mrb[0].mxu0
    %6332 = vdwg.mxu0
    %v6333 = vld [vmem:[#allocation4] sm:$0x1]
    %v6335 = vlaneseq
    %v6336 = vshrl.u32 %v6335, 7
    %v6337 = vsub.s32 0, %v6336
    %v6338 = vrot.slane %v6333, %v6337
    %6339 = vset.pattern.permute.xlu0 0
    %6340 = vperm.xlu0 %6339, %v6338
    %v6341 = vpop.permute.xlu0 %6340
    %v6343 = vadd.f32 %v6330, %v6341
    %v6344 = vtanh.pop %v6343
    %6345 = vst [vmem:[%s9 + $0x10] sm:$0xff] %v6344
    %v6346 = vld [vmem:[#allocation3 + $0x60] sm:$0xff]
    %v6347 = vld [vmem:[#allocation3 + $0x68] sm:$0xff]
    %v6348 = vld [vmem:[#allocation3 + $0x70] sm:$0xff]
    %v6349 = vld [vmem:[#allocation3 + $0x78] sm:$0xff]
    %v6350 = vld [vmem:[#allocation10] sm:$0xff]
    %v6351 = vld [vmem:[#allocation10 + $0x8] sm:$0xff]
    %v6352 = vld [vmem:[#allocation10 + $0x10] sm:$0xff]
    %v6353 = vld [vmem:[#allocation10 + $0x18] sm:$0xff]
    %v6354 = vld [vmem:[#allocation10 + $0x20] sm:$0xff]
    %v6355 = vld [vmem:[#allocation10 + $0x28] sm:$0xff]
    %v6356 = vld [vmem:[#allocation10 + $0x30] sm:$0xff]
    %v6357 = vld [vmem:[#allocation10 + $0x38] sm:$0xff]
    %v6358 = vld [vmem:[#allocation10 + $0x40] sm:$0xff]
    %v6359 = vld [vmem:[#allocation10 + $0x48] sm:$0xff]
    %v6360 = vld [vmem:[#allocation10 + $0x50] sm:$0xff]
    %v6361 = vld [vmem:[#allocation10 + $0x58] sm:$0xff]
    %v6362 = vld [vmem:[#allocation10 + $0x60] sm:$0xff]
    %v6363 = vld [vmem:[#allocation10 + $0x68] sm:$0xff]
    %v6364 = vld [vmem:[#allocation10 + $0x70] sm:$0xff]
    %v6365 = vld [vmem:[#allocation10 + $0x78] sm:$0xff]
    %v6366 = vld [vmem:[#allocation10 + $0x80] sm:$0xff]
    %v6367 = vld [vmem:[#allocation10 + $0x88] sm:$0xff]
    %v6368 = vld [vmem:[#allocation10 + $0x90] sm:$0xff]
    %v6369 = vld [vmem:[#allocation10 + $0x98] sm:$0xff]
    %v6370 = vld [vmem:[#allocation10 + $0xa0] sm:$0xff]
    %v6371 = vld [vmem:[#allocation10 + $0xa8] sm:$0xff]
    %v6372 = vld [vmem:[#allocation10 + $0xb0] sm:$0xff]
    %v6373 = vld [vmem:[#allocation10 + $0xb8] sm:$0xff]
    %v6374 = vld [vmem:[#allocation10 + $0xc0] sm:$0xff]
    %v6375 = vld [vmem:[#allocation10 + $0xc8] sm:$0xff]
    %v6376 = vld [vmem:[#allocation10 + $0xd0] sm:$0xff]
    %v6377 = vld [vmem:[#allocation10 + $0xd8] sm:$0xff]
    %v6378 = vld [vmem:[#allocation10 + $0xe0] sm:$0xff]
    %v6379 = vld [vmem:[#allocation10 + $0xe8] sm:$0xff]
    %v6380 = vld [vmem:[#allocation10 + $0xf0] sm:$0xff]
    %v6381 = vld [vmem:[#allocation10 + $0xf8] sm:$0xff]
    %v6382 = vld [vmem:[#allocation10 + $0x100] sm:$0xff]
    %v6383 = vld [vmem:[#allocation10 + $0x108] sm:$0xff]
    %v6384 = vld [vmem:[#allocation10 + $0x110] sm:$0xff]
    %v6385 = vld [vmem:[#allocation10 + $0x118] sm:$0xff]
    %v6386 = vld [vmem:[#allocation10 + $0x120] sm:$0xff]
    %v6387 = vld [vmem:[#allocation10 + $0x128] sm:$0xff]
    %v6388 = vld [vmem:[#allocation10 + $0x130] sm:$0xff]
    %v6389 = vld [vmem:[#allocation10 + $0x138] sm:$0xff]
    %v6390 = vld [vmem:[#allocation10 + $0x140] sm:$0xff]
    %v6391 = vld [vmem:[#allocation10 + $0x148] sm:$0xff]
    %v6392 = vld [vmem:[#allocation10 + $0x150] sm:$0xff]
    %v6393 = vld [vmem:[#allocation10 + $0x158] sm:$0xff]
    %v6394 = vld [vmem:[#allocation10 + $0x160] sm:$0xff]
    %v6395 = vld [vmem:[#allocation10 + $0x168] sm:$0xff]
    %v6396 = vld [vmem:[#allocation10 + $0x170] sm:$0xff]
    %v6397 = vld [vmem:[#allocation10 + $0x178] sm:$0xff]
    %v6398 = vld [vmem:[#allocation10 + $0x180] sm:$0xff]
    %v6399 = vld [vmem:[#allocation10 + $0x188] sm:$0xff]
    %v6400 = vld [vmem:[#allocation10 + $0x190] sm:$0xff]
    %v6401 = vld [vmem:[#allocation10 + $0x198] sm:$0xff]
    %v6402 = vld [vmem:[#allocation10 + $0x1a0] sm:$0xff]
    %v6403 = vld [vmem:[#allocation10 + $0x1a8] sm:$0xff]
    %v6404 = vld [vmem:[#allocation10 + $0x1b0] sm:$0xff]
    %v6405 = vld [vmem:[#allocation10 + $0x1b8] sm:$0xff]
    %v6406 = vld [vmem:[#allocation10 + $0x1c0] sm:$0xff]
    %v6407 = vld [vmem:[#allocation10 + $0x1c8] sm:$0xff]
    %v6408 = vld [vmem:[#allocation10 + $0x1d0] sm:$0xff]
    %v6409 = vld [vmem:[#allocation10 + $0x1d8] sm:$0xff]
    %v6410 = vld [vmem:[#allocation10 + $0x1e0] sm:$0xff]
    %v6411 = vld [vmem:[#allocation10 + $0x1e8] sm:$0xff]
    %v6412 = vld [vmem:[#allocation10 + $0x1f0] sm:$0xff]
    %v6413 = vld [vmem:[#allocation10 + $0x1f8] sm:$0xff]
    %v6414 = vld [vmem:[#allocation3 + $0x80] sm:$0xff]
    %v6415 = vld [vmem:[#allocation3 + $0x88] sm:$0xff]
    %v6416 = vld [vmem:[#allocation3 + $0x90] sm:$0xff]
    %v6417 = vld [vmem:[#allocation3 + $0x98] sm:$0xff]
    %v6418 = vld [vmem:[%s5130] sm:$0xff]
    %v6419 = vld [vmem:[%s5130 + $0x8] sm:$0xff]
    %v6420 = vld [vmem:[%s5130 + $0x10] sm:$0xff]
    %v6421 = vld [vmem:[%s5130 + $0x18] sm:$0xff]
    %v6422 = vld [vmem:[%s5130 + $0x20] sm:$0xff]
    %v6423 = vld [vmem:[%s5130 + $0x28] sm:$0xff]
    %v6424 = vld [vmem:[%s5130 + $0x30] sm:$0xff]
    %v6425 = vld [vmem:[%s5130 + $0x38] sm:$0xff]
    %v6426 = vld [vmem:[%s5130 + $0x40] sm:$0xff]
    %v6427 = vld [vmem:[%s5130 + $0x48] sm:$0xff]
    %v6428 = vld [vmem:[%s5130 + $0x50] sm:$0xff]
    %v6429 = vld [vmem:[%s5130 + $0x58] sm:$0xff]
    %v6430 = vld [vmem:[%s5130 + $0x60] sm:$0xff]
    %v6431 = vld [vmem:[%s5130 + $0x68] sm:$0xff]
    %v6432 = vld [vmem:[%s5130 + $0x70] sm:$0xff]
    %v6433 = vld [vmem:[%s5130 + $0x78] sm:$0xff]
    %v6434 = vld [vmem:[%s5130 + $0x80] sm:$0xff]
    %v6435 = vld [vmem:[%s5130 + $0x88] sm:$0xff]
    %v6436 = vld [vmem:[%s5130 + $0x90] sm:$0xff]
    %v6437 = vld [vmem:[%s5130 + $0x98] sm:$0xff]
    %v6438 = vld [vmem:[%s5130 + $0xa0] sm:$0xff]
    %v6439 = vld [vmem:[%s5130 + $0xa8] sm:$0xff]
    %v6440 = vld [vmem:[%s5130 + $0xb0] sm:$0xff]
    %v6441 = vld [vmem:[%s5130 + $0xb8] sm:$0xff]
    %v6442 = vld [vmem:[%s5130 + $0xc0] sm:$0xff]
    %v6443 = vld [vmem:[%s5130 + $0xc8] sm:$0xff]
    %v6444 = vld [vmem:[%s5130 + $0xd0] sm:$0xff]
    %v6445 = vld [vmem:[%s5130 + $0xd8] sm:$0xff]
    %v6446 = vld [vmem:[%s5130 + $0xe0] sm:$0xff]
    %v6447 = vld [vmem:[%s5130 + $0xe8] sm:$0xff]
    %v6448 = vld [vmem:[%s5130 + $0xf0] sm:$0xff]
    %v6449 = vld [vmem:[%s5130 + $0xf8] sm:$0xff]
    %v6450 = vld [vmem:[%s5130 + $0x100] sm:$0xff]
    %v6451 = vld [vmem:[%s5130 + $0x108] sm:$0xff]
    %v6452 = vld [vmem:[%s5130 + $0x110] sm:$0xff]
    %v6453 = vld [vmem:[%s5130 + $0x118] sm:$0xff]
    %v6454 = vld [vmem:[%s5130 + $0x120] sm:$0xff]
    %v6455 = vld [vmem:[%s5130 + $0x128] sm:$0xff]
    %v6456 = vld [vmem:[%s5130 + $0x130] sm:$0xff]
    %v6457 = vld [vmem:[%s5130 + $0x138] sm:$0xff]
    %v6458 = vld [vmem:[%s5130 + $0x140] sm:$0xff]
    %v6459 = vld [vmem:[%s5130 + $0x148] sm:$0xff]
    %v6460 = vld [vmem:[%s5130 + $0x150] sm:$0xff]
    %v6461 = vld [vmem:[%s5130 + $0x158] sm:$0xff]
    %v6462 = vld [vmem:[%s5130 + $0x160] sm:$0xff]
    %v6463 = vld [vmem:[%s5130 + $0x168] sm:$0xff]
    %v6464 = vld [vmem:[%s5130 + $0x170] sm:$0xff]
    %v6465 = vld [vmem:[%s5130 + $0x178] sm:$0xff]
    %v6466 = vld [vmem:[%s5130 + $0x180] sm:$0xff]
    %v6467 = vld [vmem:[%s5130 + $0x188] sm:$0xff]
    %v6468 = vld [vmem:[%s5130 + $0x190] sm:$0xff]
    %v6469 = vld [vmem:[%s5130 + $0x198] sm:$0xff]
    %v6470 = vld [vmem:[%s5130 + $0x1a0] sm:$0xff]
    %v6471 = vld [vmem:[%s5130 + $0x1a8] sm:$0xff]
    %v6472 = vld [vmem:[%s5130 + $0x1b0] sm:$0xff]
    %v6473 = vld [vmem:[%s5130 + $0x1b8] sm:$0xff]
    %v6474 = vld [vmem:[%s5130 + $0x1c0] sm:$0xff]
    %v6475 = vld [vmem:[%s5130 + $0x1c8] sm:$0xff]
    %v6476 = vld [vmem:[%s5130 + $0x1d0] sm:$0xff]
    %v6477 = vld [vmem:[%s5130 + $0x1d8] sm:$0xff]
    %v6478 = vld [vmem:[%s5130 + $0x1e0] sm:$0xff]
    %v6479 = vld [vmem:[%s5130 + $0x1e8] sm:$0xff]
    %v6480 = vld [vmem:[%s5130 + $0x1f0] sm:$0xff]
    %v6481 = vld [vmem:[%s5130 + $0x1f8] sm:$0xff]
    %6482 = vmatprep.subr.mxu0 0.0
    %6483 = vmatpush1.msra.mxu0 %v6418
    %6484 = vmatprep.subr.mxu0 0.0
    %6485 = vmatpush1.msra.mxu0 %v6419
    %6486 = vmatprep.subr.mxu0 0.0
    %6487 = vmatpush1.msra.mxu0 %v6420
    %6488 = vmatprep.subr.mxu0 0.0
    %6489 = vmatpush1.msra.mxu0 %v6421
    %6490 = vmatprep.subr.mxu0 0.0
    %6491 = vmatpush1.msra.mxu0 %v6422
    %6492 = vmatprep.subr.mxu0 0.0
    %6493 = vmatpush1.msra.mxu0 %v6423
    %6494 = vmatprep.subr.mxu0 0.0
    %6495 = vmatpush1.msra.mxu0 %v6424
    %6496 = vmatprep.subr.mxu0 0.0
    %6497 = vmatpush1.msra.mxu0 %v6425
    %6498 = vmatprep.subr.mxu0 0.0
    %6499 = vmatpush1.msra.mxu0 %v6426
    %6500 = vmatprep.subr.mxu0 0.0
    %6501 = vmatpush1.msra.mxu0 %v6427
    %6502 = vmatprep.subr.mxu0 0.0
    %6503 = vmatpush1.msra.mxu0 %v6428
    %6504 = vmatprep.subr.mxu0 0.0
    %6505 = vmatpush1.msra.mxu0 %v6429
    %6506 = vmatprep.subr.mxu0 0.0
    %6507 = vmatpush1.msra.mxu0 %v6430
    %6508 = vmatprep.subr.mxu0 0.0
    %6509 = vmatpush1.msra.mxu0 %v6431
    %6510 = vmatprep.subr.mxu0 0.0
    %6511 = vmatpush1.msra.mxu0 %v6432
    %6512 = vmatprep.subr.mxu0 0.0
    %6513 = vmatpush1.msra.mxu0 %v6433
    %6514 = vmatprep.subr.mxu0 0.0
    %6515 = vmatpush1.msra.mxu0 %v6434
    %6516 = vmatprep.subr.mxu0 0.0
    %6517 = vmatpush1.msra.mxu0 %v6435
    %6518 = vmatprep.subr.mxu0 0.0
    %6519 = vmatpush1.msra.mxu0 %v6436
    %6520 = vmatprep.subr.mxu0 0.0
    %6521 = vmatpush1.msra.mxu0 %v6437
    %6522 = vmatprep.subr.mxu0 0.0
    %6523 = vmatpush1.msra.mxu0 %v6438
    %6524 = vmatprep.subr.mxu0 0.0
    %6525 = vmatpush1.msra.mxu0 %v6439
    %6526 = vmatprep.subr.mxu0 0.0
    %6527 = vmatpush1.msra.mxu0 %v6440
    %6528 = vmatprep.subr.mxu0 0.0
    %6529 = vmatpush1.msra.mxu0 %v6441
    %6530 = vmatprep.subr.mxu0 0.0
    %6531 = vmatpush1.msra.mxu0 %v6442
    %6532 = vmatprep.subr.mxu0 0.0
    %6533 = vmatpush1.msra.mxu0 %v6443
    %6534 = vmatprep.subr.mxu0 0.0
    %6535 = vmatpush1.msra.mxu0 %v6444
    %6536 = vmatprep.subr.mxu0 0.0
    %6537 = vmatpush1.msra.mxu0 %v6445
    %6538 = vmatprep.subr.mxu0 0.0
    %6539 = vmatpush1.msra.mxu0 %v6446
    %6540 = vmatprep.subr.mxu0 0.0
    %6541 = vmatpush1.msra.mxu0 %v6447
    %6542 = vmatprep.subr.mxu0 0.0
    %6543 = vmatpush1.msra.mxu0 %v6448
    %6544 = vmatprep.subr.mxu0 0.0
    %6545 = vmatpush1.msra.mxu0 %v6449
    %6546 = vmatprep.mubr.f32.mxu0 %v6415
    %6547 = vmatmul.mubr.f32.gmra.mrb[0].mxu0 %v6414
    %v6548 = vpop.f32.mrb[0].mxu0
    %v6549 = vadd.f32 0.0, %v6548
    %v6550 = vpop.f32.mrb[0].mxu0
    %6551 = vdwg.mxu0
    %6552 = vmatprep.subr.mxu0 0.0
    %6553 = vmatpush1.msra.mxu0 %v6450
    %6554 = vmatprep.subr.mxu0 0.0
    %6555 = vmatpush1.msra.mxu0 %v6451
    %6556 = vmatprep.subr.mxu0 0.0
    %6557 = vmatpush1.msra.mxu0 %v6452
    %6558 = vmatprep.subr.mxu0 0.0
    %6559 = vmatpush1.msra.mxu0 %v6453
    %6560 = vmatprep.subr.mxu0 0.0
    %6561 = vmatpush1.msra.mxu0 %v6454
    %6562 = vmatprep.subr.mxu0 0.0
    %6563 = vmatpush1.msra.mxu0 %v6455
    %6564 = vmatprep.subr.mxu0 0.0
    %6565 = vmatpush1.msra.mxu0 %v6456
    %6566 = vmatprep.subr.mxu0 0.0
    %6567 = vmatpush1.msra.mxu0 %v6457
    %6568 = vmatprep.subr.mxu0 0.0
    %6569 = vmatpush1.msra.mxu0 %v6458
    %6570 = vmatprep.subr.mxu0 0.0
    %6571 = vmatpush1.msra.mxu0 %v6459
    %6572 = vmatprep.subr.mxu0 0.0
    %6573 = vmatpush1.msra.mxu0 %v6460
    %6574 = vmatprep.subr.mxu0 0.0
    %6575 = vmatpush1.msra.mxu0 %v6461
    %6576 = vmatprep.subr.mxu0 0.0
    %6577 = vmatpush1.msra.mxu0 %v6462
    %6578 = vmatprep.subr.mxu0 0.0
    %6579 = vmatpush1.msra.mxu0 %v6463
    %6580 = vmatprep.subr.mxu0 0.0
    %6581 = vmatpush1.msra.mxu0 %v6464
    %6582 = vmatprep.subr.mxu0 0.0
    %6583 = vmatpush1.msra.mxu0 %v6465
    %6584 = vmatprep.subr.mxu0 0.0
    %6585 = vmatpush1.msra.mxu0 %v6466
    %6586 = vmatprep.subr.mxu0 0.0
    %6587 = vmatpush1.msra.mxu0 %v6467
    %6588 = vmatprep.subr.mxu0 0.0
    %6589 = vmatpush1.msra.mxu0 %v6468
    %6590 = vmatprep.subr.mxu0 0.0
    %6591 = vmatpush1.msra.mxu0 %v6469
    %6592 = vmatprep.subr.mxu0 0.0
    %6593 = vmatpush1.msra.mxu0 %v6470
    %6594 = vmatprep.subr.mxu0 0.0
    %6595 = vmatpush1.msra.mxu0 %v6471
    %6596 = vmatprep.subr.mxu0 0.0
    %6597 = vmatpush1.msra.mxu0 %v6472
    %6598 = vmatprep.subr.mxu0 0.0
    %6599 = vmatpush1.msra.mxu0 %v6473
    %6600 = vmatprep.subr.mxu0 0.0
    %6601 = vmatpush1.msra.mxu0 %v6474
    %6602 = vmatprep.subr.mxu0 0.0
    %6603 = vmatpush1.msra.mxu0 %v6475
    %6604 = vmatprep.subr.mxu0 0.0
    %6605 = vmatpush1.msra.mxu0 %v6476
    %6606 = vmatprep.subr.mxu0 0.0
    %6607 = vmatpush1.msra.mxu0 %v6477
    %6608 = vmatprep.subr.mxu0 0.0
    %6609 = vmatpush1.msra.mxu0 %v6478
    %6610 = vmatprep.subr.mxu0 0.0
    %6611 = vmatpush1.msra.mxu0 %v6479
    %6612 = vmatprep.subr.mxu0 0.0
    %6613 = vmatpush1.msra.mxu0 %v6480
    %6614 = vmatprep.subr.mxu0 0.0
    %6615 = vmatpush1.msra.mxu0 %v6481
    %6616 = vmatprep.mubr.f32.mxu0 %v6417
    %6617 = vmatmul.mubr.f32.gmra.mrb[0].mxu0 %v6416
    %v6618 = vpop.f32.mrb[0].mxu0
    %v6619 = vadd.f32 %v6549, %v6618
    %v6620 = vpop.f32.mrb[0].mxu0
    %6621 = vdwg.mxu0
    %6622 = vmatprep.subr.mxu0 0.0
    %6623 = vmatpush1.msra.mxu0 %v6350
    %6624 = vmatprep.subr.mxu0 0.0
    %6625 = vmatpush1.msra.mxu0 %v6351
    %6626 = vmatprep.subr.mxu0 0.0
    %6627 = vmatpush1.msra.mxu0 %v6352
    %6628 = vmatprep.subr.mxu0 0.0
    %6629 = vmatpush1.msra.mxu0 %v6353
    %6630 = vmatprep.subr.mxu0 0.0
    %6631 = vmatpush1.msra.mxu0 %v6354
    %6632 = vmatprep.subr.mxu0 0.0
    %6633 = vmatpush1.msra.mxu0 %v6355
    %6634 = vmatprep.subr.mxu0 0.0
    %6635 = vmatpush1.msra.mxu0 %v6356
    %6636 = vmatprep.subr.mxu0 0.0
    %6637 = vmatpush1.msra.mxu0 %v6357
    %6638 = vmatprep.subr.mxu0 0.0
    %6639 = vmatpush1.msra.mxu0 %v6358
    %6640 = vmatprep.subr.mxu0 0.0
    %6641 = vmatpush1.msra.mxu0 %v6359
    %6642 = vmatprep.subr.mxu0 0.0
    %6643 = vmatpush1.msra.mxu0 %v6360
    %6644 = vmatprep.subr.mxu0 0.0
    %6645 = vmatpush1.msra.mxu0 %v6361
    %6646 = vmatprep.subr.mxu0 0.0
    %6647 = vmatpush1.msra.mxu0 %v6362
    %6648 = vmatprep.subr.mxu0 0.0
    %6649 = vmatpush1.msra.mxu0 %v6363
    %6650 = vmatprep.subr.mxu0 0.0
    %6651 = vmatpush1.msra.mxu0 %v6364
    %6652 = vmatprep.subr.mxu0 0.0
    %6653 = vmatpush1.msra.mxu0 %v6365
    %6654 = vmatprep.subr.mxu0 0.0
    %6655 = vmatpush1.msra.mxu0 %v6366
    %6656 = vmatprep.subr.mxu0 0.0
    %6657 = vmatpush1.msra.mxu0 %v6367
    %6658 = vmatprep.subr.mxu0 0.0
    %6659 = vmatpush1.msra.mxu0 %v6368
    %6660 = vmatprep.subr.mxu0 0.0
    %6661 = vmatpush1.msra.mxu0 %v6369
    %6662 = vmatprep.subr.mxu0 0.0
    %6663 = vmatpush1.msra.mxu0 %v6370
    %6664 = vmatprep.subr.mxu0 0.0
    %6665 = vmatpush1.msra.mxu0 %v6371
    %6666 = vmatprep.subr.mxu0 0.0
    %6667 = vmatpush1.msra.mxu0 %v6372
    %6668 = vmatprep.subr.mxu0 0.0
    %6669 = vmatpush1.msra.mxu0 %v6373
    %6670 = vmatprep.subr.mxu0 0.0
    %6671 = vmatpush1.msra.mxu0 %v6374
    %6672 = vmatprep.subr.mxu0 0.0
    %6673 = vmatpush1.msra.mxu0 %v6375
    %6674 = vmatprep.subr.mxu0 0.0
    %6675 = vmatpush1.msra.mxu0 %v6376
    %6676 = vmatprep.subr.mxu0 0.0
    %6677 = vmatpush1.msra.mxu0 %v6377
    %6678 = vmatprep.subr.mxu0 0.0
    %6679 = vmatpush1.msra.mxu0 %v6378
    %6680 = vmatprep.subr.mxu0 0.0
    %6681 = vmatpush1.msra.mxu0 %v6379
    %6682 = vmatprep.subr.mxu0 0.0
    %6683 = vmatpush1.msra.mxu0 %v6380
    %6684 = vmatprep.subr.mxu0 0.0
    %6685 = vmatpush1.msra.mxu0 %v6381
    %6686 = vmatprep.mubr.f32.mxu0 %v6347
    %6687 = vmatmul.mubr.f32.gmra.mrb[0].mxu0 %v6346
    %v6688 = vpop.f32.mrb[0].mxu0
    %v6689 = vadd.f32 %v6619, %v6688
    %v6690 = vpop.f32.mrb[0].mxu0
    %6691 = vdwg.mxu0
    %6692 = vmatprep.subr.mxu0 0.0
    %6693 = vmatpush1.msra.mxu0 %v6382
    %6694 = vmatprep.subr.mxu0 0.0
    %6695 = vmatpush1.msra.mxu0 %v6383
    %6696 = vmatprep.subr.mxu0 0.0
    %6697 = vmatpush1.msra.mxu0 %v6384
    %6698 = vmatprep.subr.mxu0 0.0
    %6699 = vmatpush1.msra.mxu0 %v6385
    %6700 = vmatprep.subr.mxu0 0.0
    %6701 = vmatpush1.msra.mxu0 %v6386
    %6702 = vmatprep.subr.mxu0 0.0
    %6703 = vmatpush1.msra.mxu0 %v6387
    %6704 = vmatprep.subr.mxu0 0.0
    %6705 = vmatpush1.msra.mxu0 %v6388
    %6706 = vmatprep.subr.mxu0 0.0
    %6707 = vmatpush1.msra.mxu0 %v6389
    %6708 = vmatprep.subr.mxu0 0.0
    %6709 = vmatpush1.msra.mxu0 %v6390
    %6710 = vmatprep.subr.mxu0 0.0
    %6711 = vmatpush1.msra.mxu0 %v6391
    %6712 = vmatprep.subr.mxu0 0.0
    %6713 = vmatpush1.msra.mxu0 %v6392
    %6714 = vmatprep.subr.mxu0 0.0
    %6715 = vmatpush1.msra.mxu0 %v6393
    %6716 = vmatprep.subr.mxu0 0.0
    %6717 = vmatpush1.msra.mxu0 %v6394
    %6718 = vmatprep.subr.mxu0 0.0
    %6719 = vmatpush1.msra.mxu0 %v6395
    %6720 = vmatprep.subr.mxu0 0.0
    %6721 = vmatpush1.msra.mxu0 %v6396
    %6722 = vmatprep.subr.mxu0 0.0
    %6723 = vmatpush1.msra.mxu0 %v6397
    %6724 = vmatprep.subr.mxu0 0.0
    %6725 = vmatpush1.msra.mxu0 %v6398
    %6726 = vmatprep.subr.mxu0 0.0
    %6727 = vmatpush1.msra.mxu0 %v6399
    %6728 = vmatprep.subr.mxu0 0.0
    %6729 = vmatpush1.msra.mxu0 %v6400
    %6730 = vmatprep.subr.mxu0 0.0
    %6731 = vmatpush1.msra.mxu0 %v6401
    %6732 = vmatprep.subr.mxu0 0.0
    %6733 = vmatpush1.msra.mxu0 %v6402
    %6734 = vmatprep.subr.mxu0 0.0
    %6735 = vmatpush1.msra.mxu0 %v6403
    %6736 = vmatprep.subr.mxu0 0.0
    %6737 = vmatpush1.msra.mxu0 %v6404
    %6738 = vmatprep.subr.mxu0 0.0
    %6739 = vmatpush1.msra.mxu0 %v6405
    %6740 = vmatprep.subr.mxu0 0.0
    %6741 = vmatpush1.msra.mxu0 %v6406
    %6742 = vmatprep.subr.mxu0 0.0
    %6743 = vmatpush1.msra.mxu0 %v6407
    %6744 = vmatprep.subr.mxu0 0.0
    %6745 = vmatpush1.msra.mxu0 %v6408
    %6746 = vmatprep.subr.mxu0 0.0
    %6747 = vmatpush1.msra.mxu0 %v6409
    %6748 = vmatprep.subr.mxu0 0.0
    %6749 = vmatpush1.msra.mxu0 %v6410
    %6750 = vmatprep.subr.mxu0 0.0
    %6751 = vmatpush1.msra.mxu0 %v6411
    %6752 = vmatprep.subr.mxu0 0.0
    %6753 = vmatpush1.msra.mxu0 %v6412
    %6754 = vmatprep.subr.mxu0 0.0
    %6755 = vmatpush1.msra.mxu0 %v6413
    %6756 = vmatprep.mubr.f32.mxu0 %v6349
    %6757 = vmatmul.mubr.f32.gmra.mrb[0].mxu0 %v6348
    %v6758 = vpop.f32.mrb[0].mxu0
    %v6759 = vadd.f32 %v6689, %v6758
    %v6760 = vpop.f32.mrb[0].mxu0
    %6761 = vdwg.mxu0
    %v6762 = vld [vmem:[#allocation4] sm:$0x1]
    %v6764 = vlaneseq
    %v6765 = vshrl.u32 %v6764, 7
    %v6766 = vsub.s32 0, %v6765
    %v6767 = vrot.slane %v6762, %v6766
    %6768 = vset.pattern.permute.xlu0 0
    %6769 = vperm.xlu0 %6768, %v6767
    %v6770 = vpop.permute.xlu0 %6769
    %v6772 = vadd.f32 %v6759, %v6770
    %v6773 = vtanh.pop %v6772
    %6774 = vst [vmem:[%s9 + $0x18] sm:$0xff] %v6773
    %v6775 = vld [vmem:[#allocation3 + $0x80] sm:$0xff]
    %v6776 = vld [vmem:[#allocation3 + $0x88] sm:$0xff]
    %v6777 = vld [vmem:[#allocation3 + $0x90] sm:$0xff]
    %v6778 = vld [vmem:[#allocation3 + $0x98] sm:$0xff]
    %v6779 = vld [vmem:[#allocation10] sm:$0xff]
    %v6780 = vld [vmem:[#allocation10 + $0x8] sm:$0xff]
    %v6781 = vld [vmem:[#allocation10 + $0x10] sm:$0xff]
    %v6782 = vld [vmem:[#allocation10 + $0x18] sm:$0xff]
    %v6783 = vld [vmem:[#allocation10 + $0x20] sm:$0xff]
    %v6784 = vld [vmem:[#allocation10 + $0x28] sm:$0xff]
    %v6785 = vld [vmem:[#allocation10 + $0x30] sm:$0xff]
    %v6786 = vld [vmem:[#allocation10 + $0x38] sm:$0xff]
    %v6787 = vld [vmem:[#allocation10 + $0x40] sm:$0xff]
    %v6788 = vld [vmem:[#allocation10 + $0x48] sm:$0xff]
    %v6789 = vld [vmem:[#allocation10 + $0x50] sm:$0xff]
    %v6790 = vld [vmem:[#allocation10 + $0x58] sm:$0xff]
    %v6791 = vld [vmem:[#allocation10 + $0x60] sm:$0xff]
    %v6792 = vld [vmem:[#allocation10 + $0x68] sm:$0xff]
    %v6793 = vld [vmem:[#allocation10 + $0x70] sm:$0xff]
    %v6794 = vld [vmem:[#allocation10 + $0x78] sm:$0xff]
    %v6795 = vld [vmem:[#allocation10 + $0x80] sm:$0xff]
    %v6796 = vld [vmem:[#allocation10 + $0x88] sm:$0xff]
    %v6797 = vld [vmem:[#allocation10 + $0x90] sm:$0xff]
    %v6798 = vld [vmem:[#allocation10 + $0x98] sm:$0xff]
    %v6799 = vld [vmem:[#allocation10 + $0xa0] sm:$0xff]
    %v6800 = vld [vmem:[#allocation10 + $0xa8] sm:$0xff]
    %v6801 = vld [vmem:[#allocation10 + $0xb0] sm:$0xff]
    %v6802 = vld [vmem:[#allocation10 + $0xb8] sm:$0xff]
    %v6803 = vld [vmem:[#allocation10 + $0xc0] sm:$0xff]
    %v6804 = vld [vmem:[#allocation10 + $0xc8] sm:$0xff]
    %v6805 = vld [vmem:[#allocation10 + $0xd0] sm:$0xff]
    %v6806 = vld [vmem:[#allocation10 + $0xd8] sm:$0xff]
    %v6807 = vld [vmem:[#allocation10 + $0xe0] sm:$0xff]
    %v6808 = vld [vmem:[#allocation10 + $0xe8] sm:$0xff]
    %v6809 = vld [vmem:[#allocation10 + $0xf0] sm:$0xff]
    %v6810 = vld [vmem:[#allocation10 + $0xf8] sm:$0xff]
    %v6811 = vld [vmem:[#allocation10 + $0x100] sm:$0xff]
    %v6812 = vld [vmem:[#allocation10 + $0x108] sm:$0xff]
    %v6813 = vld [vmem:[#allocation10 + $0x110] sm:$0xff]
    %v6814 = vld [vmem:[#allocation10 + $0x118] sm:$0xff]
    %v6815 = vld [vmem:[#allocation10 + $0x120] sm:$0xff]
    %v6816 = vld [vmem:[#allocation10 + $0x128] sm:$0xff]
    %v6817 = vld [vmem:[#allocation10 + $0x130] sm:$0xff]
    %v6818 = vld [vmem:[#allocation10 + $0x138] sm:$0xff]
    %v6819 = vld [vmem:[#allocation10 + $0x140] sm:$0xff]
    %v6820 = vld [vmem:[#allocation10 + $0x148] sm:$0xff]
    %v6821 = vld [vmem:[#allocation10 + $0x150] sm:$0xff]
    %v6822 = vld [vmem:[#allocation10 + $0x158] sm:$0xff]
    %v6823 = vld [vmem:[#allocation10 + $0x160] sm:$0xff]
    %v6824 = vld [vmem:[#allocation10 + $0x168] sm:$0xff]
    %v6825 = vld [vmem:[#allocation10 + $0x170] sm:$0xff]
    %v6826 = vld [vmem:[#allocation10 + $0x178] sm:$0xff]
    %v6827 = vld [vmem:[#allocation10 + $0x180] sm:$0xff]
    %v6828 = vld [vmem:[#allocation10 + $0x188] sm:$0xff]
    %v6829 = vld [vmem:[#allocation10 + $0x190] sm:$0xff]
    %v6830 = vld [vmem:[#allocation10 + $0x198] sm:$0xff]
    %v6831 = vld [vmem:[#allocation10 + $0x1a0] sm:$0xff]
    %v6832 = vld [vmem:[#allocation10 + $0x1a8] sm:$0xff]
    %v6833 = vld [vmem:[#allocation10 + $0x1b0] sm:$0xff]
    %v6834 = vld [vmem:[#allocation10 + $0x1b8] sm:$0xff]
    %v6835 = vld [vmem:[#allocation10 + $0x1c0] sm:$0xff]
    %v6836 = vld [vmem:[#allocation10 + $0x1c8] sm:$0xff]
    %v6837 = vld [vmem:[#allocation10 + $0x1d0] sm:$0xff]
    %v6838 = vld [vmem:[#allocation10 + $0x1d8] sm:$0xff]
    %v6839 = vld [vmem:[#allocation10 + $0x1e0] sm:$0xff]
    %v6840 = vld [vmem:[#allocation10 + $0x1e8] sm:$0xff]
    %v6841 = vld [vmem:[#allocation10 + $0x1f0] sm:$0xff]
    %v6842 = vld [vmem:[#allocation10 + $0x1f8] sm:$0xff]
    %v6843 = vld [vmem:[#allocation3 + $0xa0] sm:$0xff]
    %v6844 = vld [vmem:[#allocation3 + $0xa8] sm:$0xff]
    %v6845 = vld [vmem:[#allocation3 + $0xb0] sm:$0xff]
    %v6846 = vld [vmem:[#allocation3 + $0xb8] sm:$0xff]
    %v6847 = vld [vmem:[%s5130] sm:$0xff]
    %v6848 = vld [vmem:[%s5130 + $0x8] sm:$0xff]
    %v6849 = vld [vmem:[%s5130 + $0x10] sm:$0xff]
    %v6850 = vld [vmem:[%s5130 + $0x18] sm:$0xff]
    %v6851 = vld [vmem:[%s5130 + $0x20] sm:$0xff]
    %v6852 = vld [vmem:[%s5130 + $0x28] sm:$0xff]
    %v6853 = vld [vmem:[%s5130 + $0x30] sm:$0xff]
    %v6854 = vld [vmem:[%s5130 + $0x38] sm:$0xff]
    %v6855 = vld [vmem:[%s5130 + $0x40] sm:$0xff]
    %v6856 = vld [vmem:[%s5130 + $0x48] sm:$0xff]
    %v6857 = vld [vmem:[%s5130 + $0x50] sm:$0xff]
    %v6858 = vld [vmem:[%s5130 + $0x58] sm:$0xff]
    %v6859 = vld [vmem:[%s5130 + $0x60] sm:$0xff]
    %v6860 = vld [vmem:[%s5130 + $0x68] sm:$0xff]
    %v6861 = vld [vmem:[%s5130 + $0x70] sm:$0xff]
    %v6862 = vld [vmem:[%s5130 + $0x78] sm:$0xff]
    %v6863 = vld [vmem:[%s5130 + $0x80] sm:$0xff]
    %v6864 = vld [vmem:[%s5130 + $0x88] sm:$0xff]
    %v6865 = vld [vmem:[%s5130 + $0x90] sm:$0xff]
    %v6866 = vld [vmem:[%s5130 + $0x98] sm:$0xff]
    %v6867 = vld [vmem:[%s5130 + $0xa0] sm:$0xff]
    %v6868 = vld [vmem:[%s5130 + $0xa8] sm:$0xff]
    %v6869 = vld [vmem:[%s5130 + $0xb0] sm:$0xff]
    %v6870 = vld [vmem:[%s5130 + $0xb8] sm:$0xff]
    %v6871 = vld [vmem:[%s5130 + $0xc0] sm:$0xff]
    %v6872 = vld [vmem:[%s5130 + $0xc8] sm:$0xff]
    %v6873 = vld [vmem:[%s5130 + $0xd0] sm:$0xff]
    %v6874 = vld [vmem:[%s5130 + $0xd8] sm:$0xff]
    %v6875 = vld [vmem:[%s5130 + $0xe0] sm:$0xff]
    %v6876 = vld [vmem:[%s5130 + $0xe8] sm:$0xff]
    %v6877 = vld [vmem:[%s5130 + $0xf0] sm:$0xff]
    %v6878 = vld [vmem:[%s5130 + $0xf8] sm:$0xff]
    %v6879 = vld [vmem:[%s5130 + $0x100] sm:$0xff]
    %v6880 = vld [vmem:[%s5130 + $0x108] sm:$0xff]
    %v6881 = vld [vmem:[%s5130 + $0x110] sm:$0xff]
    %v6882 = vld [vmem:[%s5130 + $0x118] sm:$0xff]
    %v6883 = vld [vmem:[%s5130 + $0x120] sm:$0xff]
    %v6884 = vld [vmem:[%s5130 + $0x128] sm:$0xff]
    %v6885 = vld [vmem:[%s5130 + $0x130] sm:$0xff]
    %v6886 = vld [vmem:[%s5130 + $0x138] sm:$0xff]
    %v6887 = vld [vmem:[%s5130 + $0x140] sm:$0xff]
    %v6888 = vld [vmem:[%s5130 + $0x148] sm:$0xff]
    %v6889 = vld [vmem:[%s5130 + $0x150] sm:$0xff]
    %v6890 = vld [vmem:[%s5130 + $0x158] sm:$0xff]
    %v6891 = vld [vmem:[%s5130 + $0x160] sm:$0xff]
    %v6892 = vld [vmem:[%s5130 + $0x168] sm:$0xff]
    %v6893 = vld [vmem:[%s5130 + $0x170] sm:$0xff]
    %v6894 = vld [vmem:[%s5130 + $0x178] sm:$0xff]
    %v6895 = vld [vmem:[%s5130 + $0x180] sm:$0xff]
    %v6896 = vld [vmem:[%s5130 + $0x188] sm:$0xff]
    %v6897 = vld [vmem:[%s5130 + $0x190] sm:$0xff]
    %v6898 = vld [vmem:[%s5130 + $0x198] sm:$0xff]
    %v6899 = vld [vmem:[%s5130 + $0x1a0] sm:$0xff]
    %v6900 = vld [vmem:[%s5130 + $0x1a8] sm:$0xff]
    %v6901 = vld [vmem:[%s5130 + $0x1b0] sm:$0xff]
    %v6902 = vld [vmem:[%s5130 + $0x1b8] sm:$0xff]
    %v6903 = vld [vmem:[%s5130 + $0x1c0] sm:$0xff]
    %v6904 = vld [vmem:[%s5130 + $0x1c8] sm:$0xff]
    %v6905 = vld [vmem:[%s5130 + $0x1d0] sm:$0xff]
    %v6906 = vld [vmem:[%s5130 + $0x1d8] sm:$0xff]
    %v6907 = vld [vmem:[%s5130 + $0x1e0] sm:$0xff]
    %v6908 = vld [vmem:[%s5130 + $0x1e8] sm:$0xff]
    %v6909 = vld [vmem:[%s5130 + $0x1f0] sm:$0xff]
    %v6910 = vld [vmem:[%s5130 + $0x1f8] sm:$0xff]
    %6911 = vmatprep.subr.mxu0 0.0
    %6912 = vmatpush1.msra.mxu0 %v6847
    %6913 = vmatprep.subr.mxu0 0.0
    %6914 = vmatpush1.msra.mxu0 %v6848
    %6915 = vmatprep.subr.mxu0 0.0
    %6916 = vmatpush1.msra.mxu0 %v6849
    %6917 = vmatprep.subr.mxu0 0.0
    %6918 = vmatpush1.msra.mxu0 %v6850
    %6919 = vmatprep.subr.mxu0 0.0
    %6920 = vmatpush1.msra.mxu0 %v6851
    %6921 = vmatprep.subr.mxu0 0.0
    %6922 = vmatpush1.msra.mxu0 %v6852
    %6923 = vmatprep.subr.mxu0 0.0
    %6924 = vmatpush1.msra.mxu0 %v6853
    %6925 = vmatprep.subr.mxu0 0.0
    %6926 = vmatpush1.msra.mxu0 %v6854
    %6927 = vmatprep.subr.mxu0 0.0
    %6928 = vmatpush1.msra.mxu0 %v6855
    %6929 = vmatprep.subr.mxu0 0.0
    %6930 = vmatpush1.msra.mxu0 %v6856
    %6931 = vmatprep.subr.mxu0 0.0
    %6932 = vmatpush1.msra.mxu0 %v6857
    %6933 = vmatprep.subr.mxu0 0.0
    %6934 = vmatpush1.msra.mxu0 %v6858
    %6935 = vmatprep.subr.mxu0 0.0
    %6936 = vmatpush1.msra.mxu0 %v6859
    %6937 = vmatprep.subr.mxu0 0.0
    %6938 = vmatpush1.msra.mxu0 %v6860
    %6939 = vmatprep.subr.mxu0 0.0
    %6940 = vmatpush1.msra.mxu0 %v6861
    %6941 = vmatprep.subr.mxu0 0.0
    %6942 = vmatpush1.msra.mxu0 %v6862
    %6943 = vmatprep.subr.mxu0 0.0
    %6944 = vmatpush1.msra.mxu0 %v6863
    %6945 = vmatprep.subr.mxu0 0.0
    %6946 = vmatpush1.msra.mxu0 %v6864
    %6947 = vmatprep.subr.mxu0 0.0
    %6948 = vmatpush1.msra.mxu0 %v6865
    %6949 = vmatprep.subr.mxu0 0.0
    %6950 = vmatpush1.msra.mxu0 %v6866
    %6951 = vmatprep.subr.mxu0 0.0
    %6952 = vmatpush1.msra.mxu0 %v6867
    %6953 = vmatprep.subr.mxu0 0.0
    %6954 = vmatpush1.msra.mxu0 %v6868
    %6955 = vmatprep.subr.mxu0 0.0
    %6956 = vmatpush1.msra.mxu0 %v6869
    %6957 = vmatprep.subr.mxu0 0.0
    %6958 = vmatpush1.msra.mxu0 %v6870
    %6959 = vmatprep.subr.mxu0 0.0
    %6960 = vmatpush1.msra.mxu0 %v6871
    %6961 = vmatprep.subr.mxu0 0.0
    %6962 = vmatpush1.msra.mxu0 %v6872
    %6963 = vmatprep.subr.mxu0 0.0
    %6964 = vmatpush1.msra.mxu0 %v6873
    %6965 = vmatprep.subr.mxu0 0.0
    %6966 = vmatpush1.msra.mxu0 %v6874
    %6967 = vmatprep.subr.mxu0 0.0
    %6968 = vmatpush1.msra.mxu0 %v6875
    %6969 = vmatprep.subr.mxu0 0.0
    %6970 = vmatpush1.msra.mxu0 %v6876
    %6971 = vmatprep.subr.mxu0 0.0
    %6972 = vmatpush1.msra.mxu0 %v6877
    %6973 = vmatprep.subr.mxu0 0.0
    %6974 = vmatpush1.msra.mxu0 %v6878
    %6975 = vmatprep.mubr.f32.mxu0 %v6844
    %6976 = vmatmul.mubr.f32.gmra.mrb[0].mxu0 %v6843
    %v6977 = vpop.f32.mrb[0].mxu0
    %v6978 = vadd.f32 0.0, %v6977
    %v6979 = vpop.f32.mrb[0].mxu0
    %6980 = vdwg.mxu0
    %6981 = vmatprep.subr.mxu0 0.0
    %6982 = vmatpush1.msra.mxu0 %v6879
    %6983 = vmatprep.subr.mxu0 0.0
    %6984 = vmatpush1.msra.mxu0 %v6880
    %6985 = vmatprep.subr.mxu0 0.0
    %6986 = vmatpush1.msra.mxu0 %v6881
    %6987 = vmatprep.subr.mxu0 0.0
    %6988 = vmatpush1.msra.mxu0 %v6882
    %6989 = vmatprep.subr.mxu0 0.0
    %6990 = vmatpush1.msra.mxu0 %v6883
    %6991 = vmatprep.subr.mxu0 0.0
    %6992 = vmatpush1.msra.mxu0 %v6884
    %6993 = vmatprep.subr.mxu0 0.0
    %6994 = vmatpush1.msra.mxu0 %v6885
    %6995 = vmatprep.subr.mxu0 0.0
    %6996 = vmatpush1.msra.mxu0 %v6886
    %6997 = vmatprep.subr.mxu0 0.0
    %6998 = vmatpush1.msra.mxu0 %v6887
    %6999 = vmatprep.subr.mxu0 0.0
    %7000 = vmatpush1.msra.mxu0 %v6888
    %7001 = vmatprep.subr.mxu0 0.0
    %7002 = vmatpush1.msra.mxu0 %v6889
    %7003 = vmatprep.subr.mxu0 0.0
    %7004 = vmatpush1.msra.mxu0 %v6890
    %7005 = vmatprep.subr.mxu0 0.0
    %7006 = vmatpush1.msra.mxu0 %v6891
    %7007 = vmatprep.subr.mxu0 0.0
    %7008 = vmatpush1.msra.mxu0 %v6892
    %7009 = vmatprep.subr.mxu0 0.0
    %7010 = vmatpush1.msra.mxu0 %v6893
    %7011 = vmatprep.subr.mxu0 0.0
    %7012 = vmatpush1.msra.mxu0 %v6894
    %7013 = vmatprep.subr.mxu0 0.0
    %7014 = vmatpush1.msra.mxu0 %v6895
    %7015 = vmatprep.subr.mxu0 0.0
    %7016 = vmatpush1.msra.mxu0 %v6896
    %7017 = vmatprep.subr.mxu0 0.0
    %7018 = vmatpush1.msra.mxu0 %v6897
    %7019 = vmatprep.subr.mxu0 0.0
    %7020 = vmatpush1.msra.mxu0 %v6898
    %7021 = vmatprep.subr.mxu0 0.0
    %7022 = vmatpush1.msra.mxu0 %v6899
    %7023 = vmatprep.subr.mxu0 0.0
    %7024 = vmatpush1.msra.mxu0 %v6900
    %7025 = vmatprep.subr.mxu0 0.0
    %7026 = vmatpush1.msra.mxu0 %v6901
    %7027 = vmatprep.subr.mxu0 0.0
    %7028 = vmatpush1.msra.mxu0 %v6902
    %7029 = vmatprep.subr.mxu0 0.0
    %7030 = vmatpush1.msra.mxu0 %v6903
    %7031 = vmatprep.subr.mxu0 0.0
    %7032 = vmatpush1.msra.mxu0 %v6904
    %7033 = vmatprep.subr.mxu0 0.0
    %7034 = vmatpush1.msra.mxu0 %v6905
    %7035 = vmatprep.subr.mxu0 0.0
    %7036 = vmatpush1.msra.mxu0 %v6906
    %7037 = vmatprep.subr.mxu0 0.0
    %7038 = vmatpush1.msra.mxu0 %v6907
    %7039 = vmatprep.subr.mxu0 0.0
    %7040 = vmatpush1.msra.mxu0 %v6908
    %7041 = vmatprep.subr.mxu0 0.0
    %7042 = vmatpush1.msra.mxu0 %v6909
    %7043 = vmatprep.subr.mxu0 0.0
    %7044 = vmatpush1.msra.mxu0 %v6910
    %7045 = vmatprep.mubr.f32.mxu0 %v6846
    %7046 = vmatmul.mubr.f32.gmra.mrb[0].mxu0 %v6845
    %v7047 = vpop.f32.mrb[0].mxu0
    %v7048 = vadd.f32 %v6978, %v7047
    %v7049 = vpop.f32.mrb[0].mxu0
    %7050 = vdwg.mxu0
    %7051 = vmatprep.subr.mxu0 0.0
    %7052 = vmatpush1.msra.mxu0 %v6779
    %7053 = vmatprep.subr.mxu0 0.0
    %7054 = vmatpush1.msra.mxu0 %v6780
    %7055 = vmatprep.subr.mxu0 0.0
    %7056 = vmatpush1.msra.mxu0 %v6781
    %7057 = vmatprep.subr.mxu0 0.0
    %7058 = vmatpush1.msra.mxu0 %v6782
    %7059 = vmatprep.subr.mxu0 0.0
    %7060 = vmatpush1.msra.mxu0 %v6783
    %7061 = vmatprep.subr.mxu0 0.0
    %7062 = vmatpush1.msra.mxu0 %v6784
    %7063 = vmatprep.subr.mxu0 0.0
    %7064 = vmatpush1.msra.mxu0 %v6785
    %7065 = vmatprep.subr.mxu0 0.0
    %7066 = vmatpush1.msra.mxu0 %v6786
    %7067 = vmatprep.subr.mxu0 0.0
    %7068 = vmatpush1.msra.mxu0 %v6787
    %7069 = vmatprep.subr.mxu0 0.0
    %7070 = vmatpush1.msra.mxu0 %v6788
    %7071 = vmatprep.subr.mxu0 0.0
    %7072 = vmatpush1.msra.mxu0 %v6789
    %7073 = vmatprep.subr.mxu0 0.0
    %7074 = vmatpush1.msra.mxu0 %v6790
    %7075 = vmatprep.subr.mxu0 0.0
    %7076 = vmatpush1.msra.mxu0 %v6791
    %7077 = vmatprep.subr.mxu0 0.0
    %7078 = vmatpush1.msra.mxu0 %v6792
    %7079 = vmatprep.subr.mxu0 0.0
    %7080 = vmatpush1.msra.mxu0 %v6793
    %7081 = vmatprep.subr.mxu0 0.0
    %7082 = vmatpush1.msra.mxu0 %v6794
    %7083 = vmatprep.subr.mxu0 0.0
    %7084 = vmatpush1.msra.mxu0 %v6795
    %7085 = vmatprep.subr.mxu0 0.0
    %7086 = vmatpush1.msra.mxu0 %v6796
    %7087 = vmatprep.subr.mxu0 0.0
    %7088 = vmatpush1.msra.mxu0 %v6797
    %7089 = vmatprep.subr.mxu0 0.0
    %7090 = vmatpush1.msra.mxu0 %v6798
    %7091 = vmatprep.subr.mxu0 0.0
    %7092 = vmatpush1.msra.mxu0 %v6799
    %7093 = vmatprep.subr.mxu0 0.0
    %7094 = vmatpush1.msra.mxu0 %v6800
    %7095 = vmatprep.subr.mxu0 0.0
    %7096 = vmatpush1.msra.mxu0 %v6801
    %7097 = vmatprep.subr.mxu0 0.0
    %7098 = vmatpush1.msra.mxu0 %v6802
    %7099 = vmatprep.subr.mxu0 0.0
    %7100 = vmatpush1.msra.mxu0 %v6803
    %7101 = vmatprep.subr.mxu0 0.0
    %7102 = vmatpush1.msra.mxu0 %v6804
    %7103 = vmatprep.subr.mxu0 0.0
    %7104 = vmatpush1.msra.mxu0 %v6805
    %7105 = vmatprep.subr.mxu0 0.0
    %7106 = vmatpush1.msra.mxu0 %v6806
    %7107 = vmatprep.subr.mxu0 0.0
    %7108 = vmatpush1.msra.mxu0 %v6807
    %7109 = vmatprep.subr.mxu0 0.0
    %7110 = vmatpush1.msra.mxu0 %v6808
    %7111 = vmatprep.subr.mxu0 0.0
    %7112 = vmatpush1.msra.mxu0 %v6809
    %7113 = vmatprep.subr.mxu0 0.0
    %7114 = vmatpush1.msra.mxu0 %v6810
    %7115 = vmatprep.mubr.f32.mxu0 %v6776
    %7116 = vmatmul.mubr.f32.gmra.mrb[0].mxu0 %v6775
    %v7117 = vpop.f32.mrb[0].mxu0
    %v7118 = vadd.f32 %v7048, %v7117
    %v7119 = vpop.f32.mrb[0].mxu0
    %7120 = vdwg.mxu0
    %7121 = vmatprep.subr.mxu0 0.0
    %7122 = vmatpush1.msra.mxu0 %v6811
    %7123 = vmatprep.subr.mxu0 0.0
    %7124 = vmatpush1.msra.mxu0 %v6812
    %7125 = vmatprep.subr.mxu0 0.0
    %7126 = vmatpush1.msra.mxu0 %v6813
    %7127 = vmatprep.subr.mxu0 0.0
    %7128 = vmatpush1.msra.mxu0 %v6814
    %7129 = vmatprep.subr.mxu0 0.0
    %7130 = vmatpush1.msra.mxu0 %v6815
    %7131 = vmatprep.subr.mxu0 0.0
    %7132 = vmatpush1.msra.mxu0 %v6816
    %7133 = vmatprep.subr.mxu0 0.0
    %7134 = vmatpush1.msra.mxu0 %v6817
    %7135 = vmatprep.subr.mxu0 0.0
    %7136 = vmatpush1.msra.mxu0 %v6818
    %7137 = vmatprep.subr.mxu0 0.0
    %7138 = vmatpush1.msra.mxu0 %v6819
    %7139 = vmatprep.subr.mxu0 0.0
    %7140 = vmatpush1.msra.mxu0 %v6820
    %7141 = vmatprep.subr.mxu0 0.0
    %7142 = vmatpush1.msra.mxu0 %v6821
    %7143 = vmatprep.subr.mxu0 0.0
    %7144 = vmatpush1.msra.mxu0 %v6822
    %7145 = vmatprep.subr.mxu0 0.0
    %7146 = vmatpush1.msra.mxu0 %v6823
    %7147 = vmatprep.subr.mxu0 0.0
    %7148 = vmatpush1.msra.mxu0 %v6824
    %7149 = vmatprep.subr.mxu0 0.0
    %7150 = vmatpush1.msra.mxu0 %v6825
    %7151 = vmatprep.subr.mxu0 0.0
    %7152 = vmatpush1.msra.mxu0 %v6826
    %7153 = vmatprep.subr.mxu0 0.0
    %7154 = vmatpush1.msra.mxu0 %v6827
    %7155 = vmatprep.subr.mxu0 0.0
    %7156 = vmatpush1.msra.mxu0 %v6828
    %7157 = vmatprep.subr.mxu0 0.0
    %7158 = vmatpush1.msra.mxu0 %v6829
    %7159 = vmatprep.subr.mxu0 0.0
    %7160 = vmatpush1.msra.mxu0 %v6830
    %7161 = vmatprep.subr.mxu0 0.0
    %7162 = vmatpush1.msra.mxu0 %v6831
    %7163 = vmatprep.subr.mxu0 0.0
    %7164 = vmatpush1.msra.mxu0 %v6832
    %7165 = vmatprep.subr.mxu0 0.0
    %7166 = vmatpush1.msra.mxu0 %v6833
    %7167 = vmatprep.subr.mxu0 0.0
    %7168 = vmatpush1.msra.mxu0 %v6834
    %7169 = vmatprep.subr.mxu0 0.0
    %7170 = vmatpush1.msra.mxu0 %v6835
    %7171 = vmatprep.subr.mxu0 0.0
    %7172 = vmatpush1.msra.mxu0 %v6836
    %7173 = vmatprep.subr.mxu0 0.0
    %7174 = vmatpush1.msra.mxu0 %v6837
    %7175 = vmatprep.subr.mxu0 0.0
    %7176 = vmatpush1.msra.mxu0 %v6838
    %7177 = vmatprep.subr.mxu0 0.0
    %7178 = vmatpush1.msra.mxu0 %v6839
    %7179 = vmatprep.subr.mxu0 0.0
    %7180 = vmatpush1.msra.mxu0 %v6840
    %7181 = vmatprep.subr.mxu0 0.0
    %7182 = vmatpush1.msra.mxu0 %v6841
    %7183 = vmatprep.subr.mxu0 0.0
    %7184 = vmatpush1.msra.mxu0 %v6842
    %7185 = vmatprep.mubr.f32.mxu0 %v6778
    %7186 = vmatmul.mubr.f32.gmra.mrb[0].mxu0 %v6777
    %v7187 = vpop.f32.mrb[0].mxu0
    %v7188 = vadd.f32 %v7118, %v7187
    %v7189 = vpop.f32.mrb[0].mxu0
    %7190 = vdwg.mxu0
    %v7191 = vld [vmem:[#allocation4] sm:$0x1]
    %v7193 = vlaneseq
    %v7194 = vshrl.u32 %v7193, 7
    %v7195 = vsub.s32 0, %v7194
    %v7196 = vrot.slane %v7191, %v7195
    %7197 = vset.pattern.permute.xlu0 0
    %7198 = vperm.xlu0 %7197, %v7196
    %v7199 = vpop.permute.xlu0 %7198
    %v7201 = vadd.f32 %v7188, %v7199
    %v7202 = vtanh.pop %v7201
    %7203 = vst [vmem:[%s9 + $0x20] sm:$0xff] %v7202
    %v7204 = vld [vmem:[#allocation3 + $0xa0] sm:$0xff]
    %v7205 = vld [vmem:[#allocation3 + $0xa8] sm:$0xff]
    %v7206 = vld [vmem:[#allocation3 + $0xb0] sm:$0xff]
    %v7207 = vld [vmem:[#allocation3 + $0xb8] sm:$0xff]
    %v7208 = vld [vmem:[#allocation10] sm:$0xff]
    %v7209 = vld [vmem:[#allocation10 + $0x8] sm:$0xff]
    %v7210 = vld [vmem:[#allocation10 + $0x10] sm:$0xff]
    %v7211 = vld [vmem:[#allocation10 + $0x18] sm:$0xff]
    %v7212 = vld [vmem:[#allocation10 + $0x20] sm:$0xff]
    %v7213 = vld [vmem:[#allocation10 + $0x28] sm:$0xff]
    %v7214 = vld [vmem:[#allocation10 + $0x30] sm:$0xff]
    %v7215 = vld [vmem:[#allocation10 + $0x38] sm:$0xff]
    %v7216 = vld [vmem:[#allocation10 + $0x40] sm:$0xff]
    %v7217 = vld [vmem:[#allocation10 + $0x48] sm:$0xff]
    %v7218 = vld [vmem:[#allocation10 + $0x50] sm:$0xff]
    %v7219 = vld [vmem:[#allocation10 + $0x58] sm:$0xff]
    %v7220 = vld [vmem:[#allocation10 + $0x60] sm:$0xff]
    %v7221 = vld [vmem:[#allocation10 + $0x68] sm:$0xff]
    %v7222 = vld [vmem:[#allocation10 + $0x70] sm:$0xff]
    %v7223 = vld [vmem:[#allocation10 + $0x78] sm:$0xff]
    %v7224 = vld [vmem:[#allocation10 + $0x80] sm:$0xff]
    %v7225 = vld [vmem:[#allocation10 + $0x88] sm:$0xff]
    %v7226 = vld [vmem:[#allocation10 + $0x90] sm:$0xff]
    %v7227 = vld [vmem:[#allocation10 + $0x98] sm:$0xff]
    %v7228 = vld [vmem:[#allocation10 + $0xa0] sm:$0xff]
    %v7229 = vld [vmem:[#allocation10 + $0xa8] sm:$0xff]
    %v7230 = vld [vmem:[#allocation10 + $0xb0] sm:$0xff]
    %v7231 = vld [vmem:[#allocation10 + $0xb8] sm:$0xff]
    %v7232 = vld [vmem:[#allocation10 + $0xc0] sm:$0xff]
    %v7233 = vld [vmem:[#allocation10 + $0xc8] sm:$0xff]
    %v7234 = vld [vmem:[#allocation10 + $0xd0] sm:$0xff]
    %v7235 = vld [vmem:[#allocation10 + $0xd8] sm:$0xff]
    %v7236 = vld [vmem:[#allocation10 + $0xe0] sm:$0xff]
    %v7237 = vld [vmem:[#allocation10 + $0xe8] sm:$0xff]
    %v7238 = vld [vmem:[#allocation10 + $0xf0] sm:$0xff]
    %v7239 = vld [vmem:[#allocation10 + $0xf8] sm:$0xff]
    %v7240 = vld [vmem:[#allocation10 + $0x100] sm:$0xff]
    %v7241 = vld [vmem:[#allocation10 + $0x108] sm:$0xff]
    %v7242 = vld [vmem:[#allocation10 + $0x110] sm:$0xff]
    %v7243 = vld [vmem:[#allocation10 + $0x118] sm:$0xff]
    %v7244 = vld [vmem:[#allocation10 + $0x120] sm:$0xff]
    %v7245 = vld [vmem:[#allocation10 + $0x128] sm:$0xff]
    %v7246 = vld [vmem:[#allocation10 + $0x130] sm:$0xff]
    %v7247 = vld [vmem:[#allocation10 + $0x138] sm:$0xff]
    %v7248 = vld [vmem:[#allocation10 + $0x140] sm:$0xff]
    %v7249 = vld [vmem:[#allocation10 + $0x148] sm:$0xff]
    %v7250 = vld [vmem:[#allocation10 + $0x150] sm:$0xff]
    %v7251 = vld [vmem:[#allocation10 + $0x158] sm:$0xff]
    %v7252 = vld [vmem:[#allocation10 + $0x160] sm:$0xff]
    %v7253 = vld [vmem:[#allocation10 + $0x168] sm:$0xff]
    %v7254 = vld [vmem:[#allocation10 + $0x170] sm:$0xff]
    %v7255 = vld [vmem:[#allocation10 + $0x178] sm:$0xff]
    %v7256 = vld [vmem:[#allocation10 + $0x180] sm:$0xff]
    %v7257 = vld [vmem:[#allocation10 + $0x188] sm:$0xff]
    %v7258 = vld [vmem:[#allocation10 + $0x190] sm:$0xff]
    %v7259 = vld [vmem:[#allocation10 + $0x198] sm:$0xff]
    %v7260 = vld [vmem:[#allocation10 + $0x1a0] sm:$0xff]
    %v7261 = vld [vmem:[#allocation10 + $0x1a8] sm:$0xff]
    %v7262 = vld [vmem:[#allocation10 + $0x1b0] sm:$0xff]
    %v7263 = vld [vmem:[#allocation10 + $0x1b8] sm:$0xff]
    %v7264 = vld [vmem:[#allocation10 + $0x1c0] sm:$0xff]
    %v7265 = vld [vmem:[#allocation10 + $0x1c8] sm:$0xff]
    %v7266 = vld [vmem:[#allocation10 + $0x1d0] sm:$0xff]
    %v7267 = vld [vmem:[#allocation10 + $0x1d8] sm:$0xff]
    %v7268 = vld [vmem:[#allocation10 + $0x1e0] sm:$0xff]
    %v7269 = vld [vmem:[#allocation10 + $0x1e8] sm:$0xff]
    %v7270 = vld [vmem:[#allocation10 + $0x1f0] sm:$0xff]
    %v7271 = vld [vmem:[#allocation10 + $0x1f8] sm:$0xff]
    %v7272 = vld [vmem:[#allocation3 + $0xc0] sm:$0xff]
    %v7273 = vld [vmem:[#allocation3 + $0xc8] sm:$0xff]
    %v7274 = vld [vmem:[#allocation3 + $0xd0] sm:$0xff]
    %v7275 = vld [vmem:[#allocation3 + $0xd8] sm:$0xff]
    %v7276 = vld [vmem:[%s5130] sm:$0xff]
    %v7277 = vld [vmem:[%s5130 + $0x8] sm:$0xff]
    %v7278 = vld [vmem:[%s5130 + $0x10] sm:$0xff]
    %v7279 = vld [vmem:[%s5130 + $0x18] sm:$0xff]
    %v7280 = vld [vmem:[%s5130 + $0x20] sm:$0xff]
    %v7281 = vld [vmem:[%s5130 + $0x28] sm:$0xff]
    %v7282 = vld [vmem:[%s5130 + $0x30] sm:$0xff]
    %v7283 = vld [vmem:[%s5130 + $0x38] sm:$0xff]
    %v7284 = vld [vmem:[%s5130 + $0x40] sm:$0xff]
    %v7285 = vld [vmem:[%s5130 + $0x48] sm:$0xff]
    %v7286 = vld [vmem:[%s5130 + $0x50] sm:$0xff]
    %v7287 = vld [vmem:[%s5130 + $0x58] sm:$0xff]
    %v7288 = vld [vmem:[%s5130 + $0x60] sm:$0xff]
    %v7289 = vld [vmem:[%s5130 + $0x68] sm:$0xff]
    %v7290 = vld [vmem:[%s5130 + $0x70] sm:$0xff]
    %v7291 = vld [vmem:[%s5130 + $0x78] sm:$0xff]
    %v7292 = vld [vmem:[%s5130 + $0x80] sm:$0xff]
    %v7293 = vld [vmem:[%s5130 + $0x88] sm:$0xff]
    %v7294 = vld [vmem:[%s5130 + $0x90] sm:$0xff]
    %v7295 = vld [vmem:[%s5130 + $0x98] sm:$0xff]
    %v7296 = vld [vmem:[%s5130 + $0xa0] sm:$0xff]
    %v7297 = vld [vmem:[%s5130 + $0xa8] sm:$0xff]
    %v7298 = vld [vmem:[%s5130 + $0xb0] sm:$0xff]
    %v7299 = vld [vmem:[%s5130 + $0xb8] sm:$0xff]
    %v7300 = vld [vmem:[%s5130 + $0xc0] sm:$0xff]
    %v7301 = vld [vmem:[%s5130 + $0xc8] sm:$0xff]
    %v7302 = vld [vmem:[%s5130 + $0xd0] sm:$0xff]
    %v7303 = vld [vmem:[%s5130 + $0xd8] sm:$0xff]
    %v7304 = vld [vmem:[%s5130 + $0xe0] sm:$0xff]
    %v7305 = vld [vmem:[%s5130 + $0xe8] sm:$0xff]
    %v7306 = vld [vmem:[%s5130 + $0xf0] sm:$0xff]
    %v7307 = vld [vmem:[%s5130 + $0xf8] sm:$0xff]
    %v7308 = vld [vmem:[%s5130 + $0x100] sm:$0xff]
    %v7309 = vld [vmem:[%s5130 + $0x108] sm:$0xff]
    %v7310 = vld [vmem:[%s5130 + $0x110] sm:$0xff]
    %v7311 = vld [vmem:[%s5130 + $0x118] sm:$0xff]
    %v7312 = vld [vmem:[%s5130 + $0x120] sm:$0xff]
    %v7313 = vld [vmem:[%s5130 + $0x128] sm:$0xff]
    %v7314 = vld [vmem:[%s5130 + $0x130] sm:$0xff]
    %v7315 = vld [vmem:[%s5130 + $0x138] sm:$0xff]
    %v7316 = vld [vmem:[%s5130 + $0x140] sm:$0xff]
    %v7317 = vld [vmem:[%s5130 + $0x148] sm:$0xff]
    %v7318 = vld [vmem:[%s5130 + $0x150] sm:$0xff]
    %v7319 = vld [vmem:[%s5130 + $0x158] sm:$0xff]
    %v7320 = vld [vmem:[%s5130 + $0x160] sm:$0xff]
    %v7321 = vld [vmem:[%s5130 + $0x168] sm:$0xff]
    %v7322 = vld [vmem:[%s5130 + $0x170] sm:$0xff]
    %v7323 = vld [vmem:[%s5130 + $0x178] sm:$0xff]
    %v7324 = vld [vmem:[%s5130 + $0x180] sm:$0xff]
    %v7325 = vld [vmem:[%s5130 + $0x188] sm:$0xff]
    %v7326 = vld [vmem:[%s5130 + $0x190] sm:$0xff]
    %v7327 = vld [vmem:[%s5130 + $0x198] sm:$0xff]
    %v7328 = vld [vmem:[%s5130 + $0x1a0] sm:$0xff]
    %v7329 = vld [vmem:[%s5130 + $0x1a8] sm:$0xff]
    %v7330 = vld [vmem:[%s5130 + $0x1b0] sm:$0xff]
    %v7331 = vld [vmem:[%s5130 + $0x1b8] sm:$0xff]
    %v7332 = vld [vmem:[%s5130 + $0x1c0] sm:$0xff]
    %v7333 = vld [vmem:[%s5130 + $0x1c8] sm:$0xff]
    %v7334 = vld [vmem:[%s5130 + $0x1d0] sm:$0xff]
    %v7335 = vld [vmem:[%s5130 + $0x1d8] sm:$0xff]
    %v7336 = vld [vmem:[%s5130 + $0x1e0] sm:$0xff]
    %v7337 = vld [vmem:[%s5130 + $0x1e8] sm:$0xff]
    %v7338 = vld [vmem:[%s5130 + $0x1f0] sm:$0xff]
    %v7339 = vld [vmem:[%s5130 + $0x1f8] sm:$0xff]
    %7340 = vmatprep.subr.mxu0 0.0
    %7341 = vmatpush1.msra.mxu0 %v7276
    %7342 = vmatprep.subr.mxu0 0.0
    %7343 = vmatpush1.msra.mxu0 %v7277
    %7344 = vmatprep.subr.mxu0 0.0
    %7345 = vmatpush1.msra.mxu0 %v7278
    %7346 = vmatprep.subr.mxu0 0.0
    %7347 = vmatpush1.msra.mxu0 %v7279
    %7348 = vmatprep.subr.mxu0 0.0
    %7349 = vmatpush1.msra.mxu0 %v7280
    %7350 = vmatprep.subr.mxu0 0.0
    %7351 = vmatpush1.msra.mxu0 %v7281
    %7352 = vmatprep.subr.mxu0 0.0
    %7353 = vmatpush1.msra.mxu0 %v7282
    %7354 = vmatprep.subr.mxu0 0.0
    %7355 = vmatpush1.msra.mxu0 %v7283
    %7356 = vmatprep.subr.mxu0 0.0
    %7357 = vmatpush1.msra.mxu0 %v7284
    %7358 = vmatprep.subr.mxu0 0.0
    %7359 = vmatpush1.msra.mxu0 %v7285
    %7360 = vmatprep.subr.mxu0 0.0
    %7361 = vmatpush1.msra.mxu0 %v7286
    %7362 = vmatprep.subr.mxu0 0.0
    %7363 = vmatpush1.msra.mxu0 %v7287
    %7364 = vmatprep.subr.mxu0 0.0
    %7365 = vmatpush1.msra.mxu0 %v7288
    %7366 = vmatprep.subr.mxu0 0.0
    %7367 = vmatpush1.msra.mxu0 %v7289
    %7368 = vmatprep.subr.mxu0 0.0
    %7369 = vmatpush1.msra.mxu0 %v7290
    %7370 = vmatprep.subr.mxu0 0.0
    %7371 = vmatpush1.msra.mxu0 %v7291
    %7372 = vmatprep.subr.mxu0 0.0
    %7373 = vmatpush1.msra.mxu0 %v7292
    %7374 = vmatprep.subr.mxu0 0.0
    %7375 = vmatpush1.msra.mxu0 %v7293
    %7376 = vmatprep.subr.mxu0 0.0
    %7377 = vmatpush1.msra.mxu0 %v7294
    %7378 = vmatprep.subr.mxu0 0.0
    %7379 = vmatpush1.msra.mxu0 %v7295
    %7380 = vmatprep.subr.mxu0 0.0
    %7381 = vmatpush1.msra.mxu0 %v7296
    %7382 = vmatprep.subr.mxu0 0.0
    %7383 = vmatpush1.msra.mxu0 %v7297
    %7384 = vmatprep.subr.mxu0 0.0
    %7385 = vmatpush1.msra.mxu0 %v7298
    %7386 = vmatprep.subr.mxu0 0.0
    %7387 = vmatpush1.msra.mxu0 %v7299
    %7388 = vmatprep.subr.mxu0 0.0
    %7389 = vmatpush1.msra.mxu0 %v7300
    %7390 = vmatprep.subr.mxu0 0.0
    %7391 = vmatpush1.msra.mxu0 %v7301
    %7392 = vmatprep.subr.mxu0 0.0
    %7393 = vmatpush1.msra.mxu0 %v7302
    %7394 = vmatprep.subr.mxu0 0.0
    %7395 = vmatpush1.msra.mxu0 %v7303
    %7396 = vmatprep.subr.mxu0 0.0
    %7397 = vmatpush1.msra.mxu0 %v7304
    %7398 = vmatprep.subr.mxu0 0.0
    %7399 = vmatpush1.msra.mxu0 %v7305
    %7400 = vmatprep.subr.mxu0 0.0
    %7401 = vmatpush1.msra.mxu0 %v7306
    %7402 = vmatprep.subr.mxu0 0.0
    %7403 = vmatpush1.msra.mxu0 %v7307
    %7404 = vmatprep.mubr.f32.mxu0 %v7273
    %7405 = vmatmul.mubr.f32.gmra.mrb[0].mxu0 %v7272
    %v7406 = vpop.f32.mrb[0].mxu0
    %v7407 = vadd.f32 0.0, %v7406
    %v7408 = vpop.f32.mrb[0].mxu0
    %7409 = vdwg.mxu0
    %7410 = vmatprep.subr.mxu0 0.0
    %7411 = vmatpush1.msra.mxu0 %v7308
    %7412 = vmatprep.subr.mxu0 0.0
    %7413 = vmatpush1.msra.mxu0 %v7309
    %7414 = vmatprep.subr.mxu0 0.0
    %7415 = vmatpush1.msra.mxu0 %v7310
    %7416 = vmatprep.subr.mxu0 0.0
    %7417 = vmatpush1.msra.mxu0 %v7311
    %7418 = vmatprep.subr.mxu0 0.0
    %7419 = vmatpush1.msra.mxu0 %v7312
    %7420 = vmatprep.subr.mxu0 0.0
    %7421 = vmatpush1.msra.mxu0 %v7313
    %7422 = vmatprep.subr.mxu0 0.0
    %7423 = vmatpush1.msra.mxu0 %v7314
    %7424 = vmatprep.subr.mxu0 0.0
    %7425 = vmatpush1.msra.mxu0 %v7315
    %7426 = vmatprep.subr.mxu0 0.0
    %7427 = vmatpush1.msra.mxu0 %v7316
    %7428 = vmatprep.subr.mxu0 0.0
    %7429 = vmatpush1.msra.mxu0 %v7317
    %7430 = vmatprep.subr.mxu0 0.0
    %7431 = vmatpush1.msra.mxu0 %v7318
    %7432 = vmatprep.subr.mxu0 0.0
    %7433 = vmatpush1.msra.mxu0 %v7319
    %7434 = vmatprep.subr.mxu0 0.0
    %7435 = vmatpush1.msra.mxu0 %v7320
    %7436 = vmatprep.subr.mxu0 0.0
    %7437 = vmatpush1.msra.mxu0 %v7321
    %7438 = vmatprep.subr.mxu0 0.0
    %7439 = vmatpush1.msra.mxu0 %v7322
    %7440 = vmatprep.subr.mxu0 0.0
    %7441 = vmatpush1.msra.mxu0 %v7323
    %7442 = vmatprep.subr.mxu0 0.0
    %7443 = vmatpush1.msra.mxu0 %v7324
    %7444 = vmatprep.subr.mxu0 0.0
    %7445 = vmatpush1.msra.mxu0 %v7325
    %7446 = vmatprep.subr.mxu0 0.0
    %7447 = vmatpush1.msra.mxu0 %v7326
    %7448 = vmatprep.subr.mxu0 0.0
    %7449 = vmatpush1.msra.mxu0 %v7327
    %7450 = vmatprep.subr.mxu0 0.0
    %7451 = vmatpush1.msra.mxu0 %v7328
    %7452 = vmatprep.subr.mxu0 0.0
    %7453 = vmatpush1.msra.mxu0 %v7329
    %7454 = vmatprep.subr.mxu0 0.0
    %7455 = vmatpush1.msra.mxu0 %v7330
    %7456 = vmatprep.subr.mxu0 0.0
    %7457 = vmatpush1.msra.mxu0 %v7331
    %7458 = vmatprep.subr.mxu0 0.0
    %7459 = vmatpush1.msra.mxu0 %v7332
    %7460 = vmatprep.subr.mxu0 0.0
    %7461 = vmatpush1.msra.mxu0 %v7333
    %7462 = vmatprep.subr.mxu0 0.0
    %7463 = vmatpush1.msra.mxu0 %v7334
    %7464 = vmatprep.subr.mxu0 0.0
    %7465 = vmatpush1.msra.mxu0 %v7335
    %7466 = vmatprep.subr.mxu0 0.0
    %7467 = vmatpush1.msra.mxu0 %v7336
    %7468 = vmatprep.subr.mxu0 0.0
    %7469 = vmatpush1.msra.mxu0 %v7337
    %7470 = vmatprep.subr.mxu0 0.0
    %7471 = vmatpush1.msra.mxu0 %v7338
    %7472 = vmatprep.subr.mxu0 0.0
    %7473 = vmatpush1.msra.mxu0 %v7339
    %7474 = vmatprep.mubr.f32.mxu0 %v7275
    %7475 = vmatmul.mubr.f32.gmra.mrb[0].mxu0 %v7274
    %v7476 = vpop.f32.mrb[0].mxu0
    %v7477 = vadd.f32 %v7407, %v7476
    %v7478 = vpop.f32.mrb[0].mxu0
    %7479 = vdwg.mxu0
    %7480 = vmatprep.subr.mxu0 0.0
    %7481 = vmatpush1.msra.mxu0 %v7208
    %7482 = vmatprep.subr.mxu0 0.0
    %7483 = vmatpush1.msra.mxu0 %v7209
    %7484 = vmatprep.subr.mxu0 0.0
    %7485 = vmatpush1.msra.mxu0 %v7210
    %7486 = vmatprep.subr.mxu0 0.0
    %7487 = vmatpush1.msra.mxu0 %v7211
    %7488 = vmatprep.subr.mxu0 0.0
    %7489 = vmatpush1.msra.mxu0 %v7212
    %7490 = vmatprep.subr.mxu0 0.0
    %7491 = vmatpush1.msra.mxu0 %v7213
    %7492 = vmatprep.subr.mxu0 0.0
    %7493 = vmatpush1.msra.mxu0 %v7214
    %7494 = vmatprep.subr.mxu0 0.0
    %7495 = vmatpush1.msra.mxu0 %v7215
    %7496 = vmatprep.subr.mxu0 0.0
    %7497 = vmatpush1.msra.mxu0 %v7216
    %7498 = vmatprep.subr.mxu0 0.0
    %7499 = vmatpush1.msra.mxu0 %v7217
    %7500 = vmatprep.subr.mxu0 0.0
    %7501 = vmatpush1.msra.mxu0 %v7218
    %7502 = vmatprep.subr.mxu0 0.0
    %7503 = vmatpush1.msra.mxu0 %v7219
    %7504 = vmatprep.subr.mxu0 0.0
    %7505 = vmatpush1.msra.mxu0 %v7220
    %7506 = vmatprep.subr.mxu0 0.0
    %7507 = vmatpush1.msra.mxu0 %v7221
    %7508 = vmatprep.subr.mxu0 0.0
    %7509 = vmatpush1.msra.mxu0 %v7222
    %7510 = vmatprep.subr.mxu0 0.0
    %7511 = vmatpush1.msra.mxu0 %v7223
    %7512 = vmatprep.subr.mxu0 0.0
    %7513 = vmatpush1.msra.mxu0 %v7224
    %7514 = vmatprep.subr.mxu0 0.0
    %7515 = vmatpush1.msra.mxu0 %v7225
    %7516 = vmatprep.subr.mxu0 0.0
    %7517 = vmatpush1.msra.mxu0 %v7226
    %7518 = vmatprep.subr.mxu0 0.0
    %7519 = vmatpush1.msra.mxu0 %v7227
    %7520 = vmatprep.subr.mxu0 0.0
    %7521 = vmatpush1.msra.mxu0 %v7228
    %7522 = vmatprep.subr.mxu0 0.0
    %7523 = vmatpush1.msra.mxu0 %v7229
    %7524 = vmatprep.subr.mxu0 0.0
    %7525 = vmatpush1.msra.mxu0 %v7230
    %7526 = vmatprep.subr.mxu0 0.0
    %7527 = vmatpush1.msra.mxu0 %v7231
    %7528 = vmatprep.subr.mxu0 0.0
    %7529 = vmatpush1.msra.mxu0 %v7232
    %7530 = vmatprep.subr.mxu0 0.0
    %7531 = vmatpush1.msra.mxu0 %v7233
    %7532 = vmatprep.subr.mxu0 0.0
    %7533 = vmatpush1.msra.mxu0 %v7234
    %7534 = vmatprep.subr.mxu0 0.0
    %7535 = vmatpush1.msra.mxu0 %v7235
    %7536 = vmatprep.subr.mxu0 0.0
    %7537 = vmatpush1.msra.mxu0 %v7236
    %7538 = vmatprep.subr.mxu0 0.0
    %7539 = vmatpush1.msra.mxu0 %v7237
    %7540 = vmatprep.subr.mxu0 0.0
    %7541 = vmatpush1.msra.mxu0 %v7238
    %7542 = vmatprep.subr.mxu0 0.0
    %7543 = vmatpush1.msra.mxu0 %v7239
    %7544 = vmatprep.mubr.f32.mxu0 %v7205
    %7545 = vmatmul.mubr.f32.gmra.mrb[0].mxu0 %v7204
    %v7546 = vpop.f32.mrb[0].mxu0
    %v7547 = vadd.f32 %v7477, %v7546
    %v7548 = vpop.f32.mrb[0].mxu0
    %7549 = vdwg.mxu0
    %7550 = vmatprep.subr.mxu0 0.0
    %7551 = vmatpush1.msra.mxu0 %v7240
    %7552 = vmatprep.subr.mxu0 0.0
    %7553 = vmatpush1.msra.mxu0 %v7241
    %7554 = vmatprep.subr.mxu0 0.0
    %7555 = vmatpush1.msra.mxu0 %v7242
    %7556 = vmatprep.subr.mxu0 0.0
    %7557 = vmatpush1.msra.mxu0 %v7243
    %7558 = vmatprep.subr.mxu0 0.0
    %7559 = vmatpush1.msra.mxu0 %v7244
    %7560 = vmatprep.subr.mxu0 0.0
    %7561 = vmatpush1.msra.mxu0 %v7245
    %7562 = vmatprep.subr.mxu0 0.0
    %7563 = vmatpush1.msra.mxu0 %v7246
    %7564 = vmatprep.subr.mxu0 0.0
    %7565 = vmatpush1.msra.mxu0 %v7247
    %7566 = vmatprep.subr.mxu0 0.0
    %7567 = vmatpush1.msra.mxu0 %v7248
    %7568 = vmatprep.subr.mxu0 0.0
    %7569 = vmatpush1.msra.mxu0 %v7249
    %7570 = vmatprep.subr.mxu0 0.0
    %7571 = vmatpush1.msra.mxu0 %v7250
    %7572 = vmatprep.subr.mxu0 0.0
    %7573 = vmatpush1.msra.mxu0 %v7251
    %7574 = vmatprep.subr.mxu0 0.0
    %7575 = vmatpush1.msra.mxu0 %v7252
    %7576 = vmatprep.subr.mxu0 0.0
    %7577 = vmatpush1.msra.mxu0 %v7253
    %7578 = vmatprep.subr.mxu0 0.0
    %7579 = vmatpush1.msra.mxu0 %v7254
    %7580 = vmatprep.subr.mxu0 0.0
    %7581 = vmatpush1.msra.mxu0 %v7255
    %7582 = vmatprep.subr.mxu0 0.0
    %7583 = vmatpush1.msra.mxu0 %v7256
    %7584 = vmatprep.subr.mxu0 0.0
    %7585 = vmatpush1.msra.mxu0 %v7257
    %7586 = vmatprep.subr.mxu0 0.0
    %7587 = vmatpush1.msra.mxu0 %v7258
    %7588 = vmatprep.subr.mxu0 0.0
    %7589 = vmatpush1.msra.mxu0 %v7259
    %7590 = vmatprep.subr.mxu0 0.0
    %7591 = vmatpush1.msra.mxu0 %v7260
    %7592 = vmatprep.subr.mxu0 0.0
    %7593 = vmatpush1.msra.mxu0 %v7261
    %7594 = vmatprep.subr.mxu0 0.0
    %7595 = vmatpush1.msra.mxu0 %v7262
    %7596 = vmatprep.subr.mxu0 0.0
    %7597 = vmatpush1.msra.mxu0 %v7263
    %7598 = vmatprep.subr.mxu0 0.0
    %7599 = vmatpush1.msra.mxu0 %v7264
    %7600 = vmatprep.subr.mxu0 0.0
    %7601 = vmatpush1.msra.mxu0 %v7265
    %7602 = vmatprep.subr.mxu0 0.0
    %7603 = vmatpush1.msra.mxu0 %v7266
    %7604 = vmatprep.subr.mxu0 0.0
    %7605 = vmatpush1.msra.mxu0 %v7267
    %7606 = vmatprep.subr.mxu0 0.0
    %7607 = vmatpush1.msra.mxu0 %v7268
    %7608 = vmatprep.subr.mxu0 0.0
    %7609 = vmatpush1.msra.mxu0 %v7269
    %7610 = vmatprep.subr.mxu0 0.0
    %7611 = vmatpush1.msra.mxu0 %v7270
    %7612 = vmatprep.subr.mxu0 0.0
    %7613 = vmatpush1.msra.mxu0 %v7271
    %7614 = vmatprep.mubr.f32.mxu0 %v7207
    %7615 = vmatmul.mubr.f32.gmra.mrb[0].mxu0 %v7206
    %v7616 = vpop.f32.mrb[0].mxu0
    %v7617 = vadd.f32 %v7547, %v7616
    %v7618 = vpop.f32.mrb[0].mxu0
    %7619 = vdwg.mxu0
    %v7620 = vld [vmem:[#allocation4] sm:$0x1]
    %v7622 = vlaneseq
    %v7623 = vshrl.u32 %v7622, 7
    %v7624 = vsub.s32 0, %v7623
    %v7625 = vrot.slane %v7620, %v7624
    %7626 = vset.pattern.permute.xlu0 0
    %7627 = vperm.xlu0 %7626, %v7625
    %v7628 = vpop.permute.xlu0 %7627
    %v7630 = vadd.f32 %v7617, %v7628
    %v7631 = vtanh.pop %v7630
    %7632 = vst [vmem:[%s9 + $0x28] sm:$0xff] %v7631
    %v7633 = vld [vmem:[#allocation3 + $0xc0] sm:$0xff]
    %v7634 = vld [vmem:[#allocation3 + $0xc8] sm:$0xff]
    %v7635 = vld [vmem:[#allocation3 + $0xd0] sm:$0xff]
    %v7636 = vld [vmem:[#allocation3 + $0xd8] sm:$0xff]
    %v7637 = vld [vmem:[#allocation10] sm:$0xff]
    %v7638 = vld [vmem:[#allocation10 + $0x8] sm:$0xff]
    %v7639 = vld [vmem:[#allocation10 + $0x10] sm:$0xff]
    %v7640 = vld [vmem:[#allocation10 + $0x18] sm:$0xff]
    %v7641 = vld [vmem:[#allocation10 + $0x20] sm:$0xff]
    %v7642 = vld [vmem:[#allocation10 + $0x28] sm:$0xff]
    %v7643 = vld [vmem:[#allocation10 + $0x30] sm:$0xff]
    %v7644 = vld [vmem:[#allocation10 + $0x38] sm:$0xff]
    %v7645 = vld [vmem:[#allocation10 + $0x40] sm:$0xff]
    %v7646 = vld [vmem:[#allocation10 + $0x48] sm:$0xff]
    %v7647 = vld [vmem:[#allocation10 + $0x50] sm:$0xff]
    %v7648 = vld [vmem:[#allocation10 + $0x58] sm:$0xff]
    %v7649 = vld [vmem:[#allocation10 + $0x60] sm:$0xff]
    %v7650 = vld [vmem:[#allocation10 + $0x68] sm:$0xff]
    %v7651 = vld [vmem:[#allocation10 + $0x70] sm:$0xff]
    %v7652 = vld [vmem:[#allocation10 + $0x78] sm:$0xff]
    %v7653 = vld [vmem:[#allocation10 + $0x80] sm:$0xff]
    %v7654 = vld [vmem:[#allocation10 + $0x88] sm:$0xff]
    %v7655 = vld [vmem:[#allocation10 + $0x90] sm:$0xff]
    %v7656 = vld [vmem:[#allocation10 + $0x98] sm:$0xff]
    %v7657 = vld [vmem:[#allocation10 + $0xa0] sm:$0xff]
    %v7658 = vld [vmem:[#allocation10 + $0xa8] sm:$0xff]
    %v7659 = vld [vmem:[#allocation10 + $0xb0] sm:$0xff]
    %v7660 = vld [vmem:[#allocation10 + $0xb8] sm:$0xff]
    %v7661 = vld [vmem:[#allocation10 + $0xc0] sm:$0xff]
    %v7662 = vld [vmem:[#allocation10 + $0xc8] sm:$0xff]
    %v7663 = vld [vmem:[#allocation10 + $0xd0] sm:$0xff]
    %v7664 = vld [vmem:[#allocation10 + $0xd8] sm:$0xff]
    %v7665 = vld [vmem:[#allocation10 + $0xe0] sm:$0xff]
    %v7666 = vld [vmem:[#allocation10 + $0xe8] sm:$0xff]
    %v7667 = vld [vmem:[#allocation10 + $0xf0] sm:$0xff]
    %v7668 = vld [vmem:[#allocation10 + $0xf8] sm:$0xff]
    %v7669 = vld [vmem:[#allocation10 + $0x100] sm:$0xff]
    %v7670 = vld [vmem:[#allocation10 + $0x108] sm:$0xff]
    %v7671 = vld [vmem:[#allocation10 + $0x110] sm:$0xff]
    %v7672 = vld [vmem:[#allocation10 + $0x118] sm:$0xff]
    %v7673 = vld [vmem:[#allocation10 + $0x120] sm:$0xff]
    %v7674 = vld [vmem:[#allocation10 + $0x128] sm:$0xff]
    %v7675 = vld [vmem:[#allocation10 + $0x130] sm:$0xff]
    %v7676 = vld [vmem:[#allocation10 + $0x138] sm:$0xff]
    %v7677 = vld [vmem:[#allocation10 + $0x140] sm:$0xff]
    %v7678 = vld [vmem:[#allocation10 + $0x148] sm:$0xff]
    %v7679 = vld [vmem:[#allocation10 + $0x150] sm:$0xff]
    %v7680 = vld [vmem:[#allocation10 + $0x158] sm:$0xff]
    %v7681 = vld [vmem:[#allocation10 + $0x160] sm:$0xff]
    %v7682 = vld [vmem:[#allocation10 + $0x168] sm:$0xff]
    %v7683 = vld [vmem:[#allocation10 + $0x170] sm:$0xff]
    %v7684 = vld [vmem:[#allocation10 + $0x178] sm:$0xff]
    %v7685 = vld [vmem:[#allocation10 + $0x180] sm:$0xff]
    %v7686 = vld [vmem:[#allocation10 + $0x188] sm:$0xff]
    %v7687 = vld [vmem:[#allocation10 + $0x190] sm:$0xff]
    %v7688 = vld [vmem:[#allocation10 + $0x198] sm:$0xff]
    %v7689 = vld [vmem:[#allocation10 + $0x1a0] sm:$0xff]
    %v7690 = vld [vmem:[#allocation10 + $0x1a8] sm:$0xff]
    %v7691 = vld [vmem:[#allocation10 + $0x1b0] sm:$0xff]
    %v7692 = vld [vmem:[#allocation10 + $0x1b8] sm:$0xff]
    %v7693 = vld [vmem:[#allocation10 + $0x1c0] sm:$0xff]
    %v7694 = vld [vmem:[#allocation10 + $0x1c8] sm:$0xff]
    %v7695 = vld [vmem:[#allocation10 + $0x1d0] sm:$0xff]
    %v7696 = vld [vmem:[#allocation10 + $0x1d8] sm:$0xff]
    %v7697 = vld [vmem:[#allocation10 + $0x1e0] sm:$0xff]
    %v7698 = vld [vmem:[#allocation10 + $0x1e8] sm:$0xff]
    %v7699 = vld [vmem:[#allocation10 + $0x1f0] sm:$0xff]
    %v7700 = vld [vmem:[#allocation10 + $0x1f8] sm:$0xff]
    %v7701 = vld [vmem:[#allocation3 + $0xe0] sm:$0xff]
    %v7702 = vld [vmem:[#allocation3 + $0xe8] sm:$0xff]
    %v7703 = vld [vmem:[#allocation3 + $0xf0] sm:$0xff]
    %v7704 = vld [vmem:[#allocation3 + $0xf8] sm:$0xff]
    %v7705 = vld [vmem:[%s5130] sm:$0xff]
    %v7706 = vld [vmem:[%s5130 + $0x8] sm:$0xff]
    %v7707 = vld [vmem:[%s5130 + $0x10] sm:$0xff]
    %v7708 = vld [vmem:[%s5130 + $0x18] sm:$0xff]
    %v7709 = vld [vmem:[%s5130 + $0x20] sm:$0xff]
    %v7710 = vld [vmem:[%s5130 + $0x28] sm:$0xff]
    %v7711 = vld [vmem:[%s5130 + $0x30] sm:$0xff]
    %v7712 = vld [vmem:[%s5130 + $0x38] sm:$0xff]
    %v7713 = vld [vmem:[%s5130 + $0x40] sm:$0xff]
    %v7714 = vld [vmem:[%s5130 + $0x48] sm:$0xff]
    %v7715 = vld [vmem:[%s5130 + $0x50] sm:$0xff]
    %v7716 = vld [vmem:[%s5130 + $0x58] sm:$0xff]
    %v7717 = vld [vmem:[%s5130 + $0x60] sm:$0xff]
    %v7718 = vld [vmem:[%s5130 + $0x68] sm:$0xff]
    %v7719 = vld [vmem:[%s5130 + $0x70] sm:$0xff]
    %v7720 = vld [vmem:[%s5130 + $0x78] sm:$0xff]
    %v7721 = vld [vmem:[%s5130 + $0x80] sm:$0xff]
    %v7722 = vld [vmem:[%s5130 + $0x88] sm:$0xff]
    %v7723 = vld [vmem:[%s5130 + $0x90] sm:$0xff]
    %v7724 = vld [vmem:[%s5130 + $0x98] sm:$0xff]
    %v7725 = vld [vmem:[%s5130 + $0xa0] sm:$0xff]
    %v7726 = vld [vmem:[%s5130 + $0xa8] sm:$0xff]
    %v7727 = vld [vmem:[%s5130 + $0xb0] sm:$0xff]
    %v7728 = vld [vmem:[%s5130 + $0xb8] sm:$0xff]
    %v7729 = vld [vmem:[%s5130 + $0xc0] sm:$0xff]
    %v7730 = vld [vmem:[%s5130 + $0xc8] sm:$0xff]
    %v7731 = vld [vmem:[%s5130 + $0xd0] sm:$0xff]
    %v7732 = vld [vmem:[%s5130 + $0xd8] sm:$0xff]
    %v7733 = vld [vmem:[%s5130 + $0xe0] sm:$0xff]
    %v7734 = vld [vmem:[%s5130 + $0xe8] sm:$0xff]
    %v7735 = vld [vmem:[%s5130 + $0xf0] sm:$0xff]
    %v7736 = vld [vmem:[%s5130 + $0xf8] sm:$0xff]
    %v7737 = vld [vmem:[%s5130 + $0x100] sm:$0xff]
    %v7738 = vld [vmem:[%s5130 + $0x108] sm:$0xff]
    %v7739 = vld [vmem:[%s5130 + $0x110] sm:$0xff]
    %v7740 = vld [vmem:[%s5130 + $0x118] sm:$0xff]
    %v7741 = vld [vmem:[%s5130 + $0x120] sm:$0xff]
    %v7742 = vld [vmem:[%s5130 + $0x128] sm:$0xff]
    %v7743 = vld [vmem:[%s5130 + $0x130] sm:$0xff]
    %v7744 = vld [vmem:[%s5130 + $0x138] sm:$0xff]
    %v7745 = vld [vmem:[%s5130 + $0x140] sm:$0xff]
    %v7746 = vld [vmem:[%s5130 + $0x148] sm:$0xff]
    %v7747 = vld [vmem:[%s5130 + $0x150] sm:$0xff]
    %v7748 = vld [vmem:[%s5130 + $0x158] sm:$0xff]
    %v7749 = vld [vmem:[%s5130 + $0x160] sm:$0xff]
    %v7750 = vld [vmem:[%s5130 + $0x168] sm:$0xff]
    %v7751 = vld [vmem:[%s5130 + $0x170] sm:$0xff]
    %v7752 = vld [vmem:[%s5130 + $0x178] sm:$0xff]
    %v7753 = vld [vmem:[%s5130 + $0x180] sm:$0xff]
    %v7754 = vld [vmem:[%s5130 + $0x188] sm:$0xff]
    %v7755 = vld [vmem:[%s5130 + $0x190] sm:$0xff]
    %v7756 = vld [vmem:[%s5130 + $0x198] sm:$0xff]
    %v7757 = vld [vmem:[%s5130 + $0x1a0] sm:$0xff]
    %v7758 = vld [vmem:[%s5130 + $0x1a8] sm:$0xff]
    %v7759 = vld [vmem:[%s5130 + $0x1b0] sm:$0xff]
    %v7760 = vld [vmem:[%s5130 + $0x1b8] sm:$0xff]
    %v7761 = vld [vmem:[%s5130 + $0x1c0] sm:$0xff]
    %v7762 = vld [vmem:[%s5130 + $0x1c8] sm:$0xff]
    %v7763 = vld [vmem:[%s5130 + $0x1d0] sm:$0xff]
    %v7764 = vld [vmem:[%s5130 + $0x1d8] sm:$0xff]
    %v7765 = vld [vmem:[%s5130 + $0x1e0] sm:$0xff]
    %v7766 = vld [vmem:[%s5130 + $0x1e8] sm:$0xff]
    %v7767 = vld [vmem:[%s5130 + $0x1f0] sm:$0xff]
    %v7768 = vld [vmem:[%s5130 + $0x1f8] sm:$0xff]
    %7769 = vmatprep.subr.mxu0 0.0
    %7770 = vmatpush1.msra.mxu0 %v7705
    %7771 = vmatprep.subr.mxu0 0.0
    %7772 = vmatpush1.msra.mxu0 %v7706
    %7773 = vmatprep.subr.mxu0 0.0
    %7774 = vmatpush1.msra.mxu0 %v7707
    %7775 = vmatprep.subr.mxu0 0.0
    %7776 = vmatpush1.msra.mxu0 %v7708
    %7777 = vmatprep.subr.mxu0 0.0
    %7778 = vmatpush1.msra.mxu0 %v7709
    %7779 = vmatprep.subr.mxu0 0.0
    %7780 = vmatpush1.msra.mxu0 %v7710
    %7781 = vmatprep.subr.mxu0 0.0
    %7782 = vmatpush1.msra.mxu0 %v7711
    %7783 = vmatprep.subr.mxu0 0.0
    %7784 = vmatpush1.msra.mxu0 %v7712
    %7785 = vmatprep.subr.mxu0 0.0
    %7786 = vmatpush1.msra.mxu0 %v7713
    %7787 = vmatprep.subr.mxu0 0.0
    %7788 = vmatpush1.msra.mxu0 %v7714
    %7789 = vmatprep.subr.mxu0 0.0
    %7790 = vmatpush1.msra.mxu0 %v7715
    %7791 = vmatprep.subr.mxu0 0.0
    %7792 = vmatpush1.msra.mxu0 %v7716
    %7793 = vmatprep.subr.mxu0 0.0
    %7794 = vmatpush1.msra.mxu0 %v7717
    %7795 = vmatprep.subr.mxu0 0.0
    %7796 = vmatpush1.msra.mxu0 %v7718
    %7797 = vmatprep.subr.mxu0 0.0
    %7798 = vmatpush1.msra.mxu0 %v7719
    %7799 = vmatprep.subr.mxu0 0.0
    %7800 = vmatpush1.msra.mxu0 %v7720
    %7801 = vmatprep.subr.mxu0 0.0
    %7802 = vmatpush1.msra.mxu0 %v7721
    %7803 = vmatprep.subr.mxu0 0.0
    %7804 = vmatpush1.msra.mxu0 %v7722
    %7805 = vmatprep.subr.mxu0 0.0
    %7806 = vmatpush1.msra.mxu0 %v7723
    %7807 = vmatprep.subr.mxu0 0.0
    %7808 = vmatpush1.msra.mxu0 %v7724
    %7809 = vmatprep.subr.mxu0 0.0
    %7810 = vmatpush1.msra.mxu0 %v7725
    %7811 = vmatprep.subr.mxu0 0.0
    %7812 = vmatpush1.msra.mxu0 %v7726
    %7813 = vmatprep.subr.mxu0 0.0
    %7814 = vmatpush1.msra.mxu0 %v7727
    %7815 = vmatprep.subr.mxu0 0.0
    %7816 = vmatpush1.msra.mxu0 %v7728
    %7817 = vmatprep.subr.mxu0 0.0
    %7818 = vmatpush1.msra.mxu0 %v7729
    %7819 = vmatprep.subr.mxu0 0.0
    %7820 = vmatpush1.msra.mxu0 %v7730
    %7821 = vmatprep.subr.mxu0 0.0
    %7822 = vmatpush1.msra.mxu0 %v7731
    %7823 = vmatprep.subr.mxu0 0.0
    %7824 = vmatpush1.msra.mxu0 %v7732
    %7825 = vmatprep.subr.mxu0 0.0
    %7826 = vmatpush1.msra.mxu0 %v7733
    %7827 = vmatprep.subr.mxu0 0.0
    %7828 = vmatpush1.msra.mxu0 %v7734
    %7829 = vmatprep.subr.mxu0 0.0
    %7830 = vmatpush1.msra.mxu0 %v7735
    %7831 = vmatprep.subr.mxu0 0.0
    %7832 = vmatpush1.msra.mxu0 %v7736
    %7833 = vmatprep.mubr.f32.mxu0 %v7702
    %7834 = vmatmul.mubr.f32.gmra.mrb[0].mxu0 %v7701
    %v7835 = vpop.f32.mrb[0].mxu0
    %v7836 = vadd.f32 0.0, %v7835
    %v7837 = vpop.f32.mrb[0].mxu0
    %7838 = vdwg.mxu0
    %7839 = vmatprep.subr.mxu0 0.0
    %7840 = vmatpush1.msra.mxu0 %v7737
    %7841 = vmatprep.subr.mxu0 0.0
    %7842 = vmatpush1.msra.mxu0 %v7738
    %7843 = vmatprep.subr.mxu0 0.0
    %7844 = vmatpush1.msra.mxu0 %v7739
    %7845 = vmatprep.subr.mxu0 0.0
    %7846 = vmatpush1.msra.mxu0 %v7740
    %7847 = vmatprep.subr.mxu0 0.0
    %7848 = vmatpush1.msra.mxu0 %v7741
    %7849 = vmatprep.subr.mxu0 0.0
    %7850 = vmatpush1.msra.mxu0 %v7742
    %7851 = vmatprep.subr.mxu0 0.0
    %7852 = vmatpush1.msra.mxu0 %v7743
    %7853 = vmatprep.subr.mxu0 0.0
    %7854 = vmatpush1.msra.mxu0 %v7744
    %7855 = vmatprep.subr.mxu0 0.0
    %7856 = vmatpush1.msra.mxu0 %v7745
    %7857 = vmatprep.subr.mxu0 0.0
    %7858 = vmatpush1.msra.mxu0 %v7746
    %7859 = vmatprep.subr.mxu0 0.0
    %7860 = vmatpush1.msra.mxu0 %v7747
    %7861 = vmatprep.subr.mxu0 0.0
    %7862 = vmatpush1.msra.mxu0 %v7748
    %7863 = vmatprep.subr.mxu0 0.0
    %7864 = vmatpush1.msra.mxu0 %v7749
    %7865 = vmatprep.subr.mxu0 0.0
    %7866 = vmatpush1.msra.mxu0 %v7750
    %7867 = vmatprep.subr.mxu0 0.0
    %7868 = vmatpush1.msra.mxu0 %v7751
    %7869 = vmatprep.subr.mxu0 0.0
    %7870 = vmatpush1.msra.mxu0 %v7752
    %7871 = vmatprep.subr.mxu0 0.0
    %7872 = vmatpush1.msra.mxu0 %v7753
    %7873 = vmatprep.subr.mxu0 0.0
    %7874 = vmatpush1.msra.mxu0 %v7754
    %7875 = vmatprep.subr.mxu0 0.0
    %7876 = vmatpush1.msra.mxu0 %v7755
    %7877 = vmatprep.subr.mxu0 0.0
    %7878 = vmatpush1.msra.mxu0 %v7756
    %7879 = vmatprep.subr.mxu0 0.0
    %7880 = vmatpush1.msra.mxu0 %v7757
    %7881 = vmatprep.subr.mxu0 0.0
    %7882 = vmatpush1.msra.mxu0 %v7758
    %7883 = vmatprep.subr.mxu0 0.0
    %7884 = vmatpush1.msra.mxu0 %v7759
    %7885 = vmatprep.subr.mxu0 0.0
    %7886 = vmatpush1.msra.mxu0 %v7760
    %7887 = vmatprep.subr.mxu0 0.0
    %7888 = vmatpush1.msra.mxu0 %v7761
    %7889 = vmatprep.subr.mxu0 0.0
    %7890 = vmatpush1.msra.mxu0 %v7762
    %7891 = vmatprep.subr.mxu0 0.0
    %7892 = vmatpush1.msra.mxu0 %v7763
    %7893 = vmatprep.subr.mxu0 0.0
    %7894 = vmatpush1.msra.mxu0 %v7764
    %7895 = vmatprep.subr.mxu0 0.0
    %7896 = vmatpush1.msra.mxu0 %v7765
    %7897 = vmatprep.subr.mxu0 0.0
    %7898 = vmatpush1.msra.mxu0 %v7766
    %7899 = vmatprep.subr.mxu0 0.0
    %7900 = vmatpush1.msra.mxu0 %v7767
    %7901 = vmatprep.subr.mxu0 0.0
    %7902 = vmatpush1.msra.mxu0 %v7768
    %7903 = vmatprep.mubr.f32.mxu0 %v7704
    %7904 = vmatmul.mubr.f32.gmra.mrb[0].mxu0 %v7703
    %v7905 = vpop.f32.mrb[0].mxu0
    %v7906 = vadd.f32 %v7836, %v7905
    %v7907 = vpop.f32.mrb[0].mxu0
    %7908 = vdwg.mxu0
    %7909 = vmatprep.subr.mxu0 0.0
    %7910 = vmatpush1.msra.mxu0 %v7637
    %7911 = vmatprep.subr.mxu0 0.0
    %7912 = vmatpush1.msra.mxu0 %v7638
    %7913 = vmatprep.subr.mxu0 0.0
    %7914 = vmatpush1.msra.mxu0 %v7639
    %7915 = vmatprep.subr.mxu0 0.0
    %7916 = vmatpush1.msra.mxu0 %v7640
    %7917 = vmatprep.subr.mxu0 0.0
    %7918 = vmatpush1.msra.mxu0 %v7641
    %7919 = vmatprep.subr.mxu0 0.0
    %7920 = vmatpush1.msra.mxu0 %v7642
    %7921 = vmatprep.subr.mxu0 0.0
    %7922 = vmatpush1.msra.mxu0 %v7643
    %7923 = vmatprep.subr.mxu0 0.0
    %7924 = vmatpush1.msra.mxu0 %v7644
    %7925 = vmatprep.subr.mxu0 0.0
    %7926 = vmatpush1.msra.mxu0 %v7645
    %7927 = vmatprep.subr.mxu0 0.0
    %7928 = vmatpush1.msra.mxu0 %v7646
    %7929 = vmatprep.subr.mxu0 0.0
    %7930 = vmatpush1.msra.mxu0 %v7647
    %7931 = vmatprep.subr.mxu0 0.0
    %7932 = vmatpush1.msra.mxu0 %v7648
    %7933 = vmatprep.subr.mxu0 0.0
    %7934 = vmatpush1.msra.mxu0 %v7649
    %7935 = vmatprep.subr.mxu0 0.0
    %7936 = vmatpush1.msra.mxu0 %v7650
    %7937 = vmatprep.subr.mxu0 0.0
    %7938 = vmatpush1.msra.mxu0 %v7651
    %7939 = vmatprep.subr.mxu0 0.0
    %7940 = vmatpush1.msra.mxu0 %v7652
    %7941 = vmatprep.subr.mxu0 0.0
    %7942 = vmatpush1.msra.mxu0 %v7653
    %7943 = vmatprep.subr.mxu0 0.0
    %7944 = vmatpush1.msra.mxu0 %v7654
    %7945 = vmatprep.subr.mxu0 0.0
    %7946 = vmatpush1.msra.mxu0 %v7655
    %7947 = vmatprep.subr.mxu0 0.0
    %7948 = vmatpush1.msra.mxu0 %v7656
    %7949 = vmatprep.subr.mxu0 0.0
    %7950 = vmatpush1.msra.mxu0 %v7657
    %7951 = vmatprep.subr.mxu0 0.0
    %7952 = vmatpush1.msra.mxu0 %v7658
    %7953 = vmatprep.subr.mxu0 0.0
    %7954 = vmatpush1.msra.mxu0 %v7659
    %7955 = vmatprep.subr.mxu0 0.0
    %7956 = vmatpush1.msra.mxu0 %v7660
    %7957 = vmatprep.subr.mxu0 0.0
    %7958 = vmatpush1.msra.mxu0 %v7661
    %7959 = vmatprep.subr.mxu0 0.0
    %7960 = vmatpush1.msra.mxu0 %v7662
    %7961 = vmatprep.subr.mxu0 0.0
    %7962 = vmatpush1.msra.mxu0 %v7663
    %7963 = vmatprep.subr.mxu0 0.0
    %7964 = vmatpush1.msra.mxu0 %v7664
    %7965 = vmatprep.subr.mxu0 0.0
    %7966 = vmatpush1.msra.mxu0 %v7665
    %7967 = vmatprep.subr.mxu0 0.0
    %7968 = vmatpush1.msra.mxu0 %v7666
    %7969 = vmatprep.subr.mxu0 0.0
    %7970 = vmatpush1.msra.mxu0 %v7667
    %7971 = vmatprep.subr.mxu0 0.0
    %7972 = vmatpush1.msra.mxu0 %v7668
    %7973 = vmatprep.mubr.f32.mxu0 %v7634
    %7974 = vmatmul.mubr.f32.gmra.mrb[0].mxu0 %v7633
    %v7975 = vpop.f32.mrb[0].mxu0
    %v7976 = vadd.f32 %v7906, %v7975
    %v7977 = vpop.f32.mrb[0].mxu0
    %7978 = vdwg.mxu0
    %7979 = vmatprep.subr.mxu0 0.0
    %7980 = vmatpush1.msra.mxu0 %v7669
    %7981 = vmatprep.subr.mxu0 0.0
    %7982 = vmatpush1.msra.mxu0 %v7670
    %7983 = vmatprep.subr.mxu0 0.0
    %7984 = vmatpush1.msra.mxu0 %v7671
    %7985 = vmatprep.subr.mxu0 0.0
    %7986 = vmatpush1.msra.mxu0 %v7672
    %7987 = vmatprep.subr.mxu0 0.0
    %7988 = vmatpush1.msra.mxu0 %v7673
    %7989 = vmatprep.subr.mxu0 0.0
    %7990 = vmatpush1.msra.mxu0 %v7674
    %7991 = vmatprep.subr.mxu0 0.0
    %7992 = vmatpush1.msra.mxu0 %v7675
    %7993 = vmatprep.subr.mxu0 0.0
    %7994 = vmatpush1.msra.mxu0 %v7676
    %7995 = vmatprep.subr.mxu0 0.0
    %7996 = vmatpush1.msra.mxu0 %v7677
    %7997 = vmatprep.subr.mxu0 0.0
    %7998 = vmatpush1.msra.mxu0 %v7678
    %7999 = vmatprep.subr.mxu0 0.0
    %8000 = vmatpush1.msra.mxu0 %v7679
    %8001 = vmatprep.subr.mxu0 0.0
    %8002 = vmatpush1.msra.mxu0 %v7680
    %8003 = vmatprep.subr.mxu0 0.0
    %8004 = vmatpush1.msra.mxu0 %v7681
    %8005 = vmatprep.subr.mxu0 0.0
    %8006 = vmatpush1.msra.mxu0 %v7682
    %8007 = vmatprep.subr.mxu0 0.0
    %8008 = vmatpush1.msra.mxu0 %v7683
    %8009 = vmatprep.subr.mxu0 0.0
    %8010 = vmatpush1.msra.mxu0 %v7684
    %8011 = vmatprep.subr.mxu0 0.0
    %8012 = vmatpush1.msra.mxu0 %v7685
    %8013 = vmatprep.subr.mxu0 0.0
    %8014 = vmatpush1.msra.mxu0 %v7686
    %8015 = vmatprep.subr.mxu0 0.0
    %8016 = vmatpush1.msra.mxu0 %v7687
    %8017 = vmatprep.subr.mxu0 0.0
    %8018 = vmatpush1.msra.mxu0 %v7688
    %8019 = vmatprep.subr.mxu0 0.0
    %8020 = vmatpush1.msra.mxu0 %v7689
    %8021 = vmatprep.subr.mxu0 0.0
    %8022 = vmatpush1.msra.mxu0 %v7690
    %8023 = vmatprep.subr.mxu0 0.0
    %8024 = vmatpush1.msra.mxu0 %v7691
    %8025 = vmatprep.subr.mxu0 0.0
    %8026 = vmatpush1.msra.mxu0 %v7692
    %8027 = vmatprep.subr.mxu0 0.0
    %8028 = vmatpush1.msra.mxu0 %v7693
    %8029 = vmatprep.subr.mxu0 0.0
    %8030 = vmatpush1.msra.mxu0 %v7694
    %8031 = vmatprep.subr.mxu0 0.0
    %8032 = vmatpush1.msra.mxu0 %v7695
    %8033 = vmatprep.subr.mxu0 0.0
    %8034 = vmatpush1.msra.mxu0 %v7696
    %8035 = vmatprep.subr.mxu0 0.0
    %8036 = vmatpush1.msra.mxu0 %v7697
    %8037 = vmatprep.subr.mxu0 0.0
    %8038 = vmatpush1.msra.mxu0 %v7698
    %8039 = vmatprep.subr.mxu0 0.0
    %8040 = vmatpush1.msra.mxu0 %v7699
    %8041 = vmatprep.subr.mxu0 0.0
    %8042 = vmatpush1.msra.mxu0 %v7700
    %8043 = vmatprep.mubr.f32.mxu0 %v7636
    %8044 = vmatmul.mubr.f32.gmra.mrb[0].mxu0 %v7635
    %v8045 = vpop.f32.mrb[0].mxu0
    %v8046 = vadd.f32 %v7976, %v8045
    %v8047 = vpop.f32.mrb[0].mxu0
    %8048 = vdwg.mxu0
    %v8049 = vld [vmem:[#allocation4] sm:$0x1]
    %v8051 = vlaneseq
    %v8052 = vshrl.u32 %v8051, 7
    %v8053 = vsub.s32 0, %v8052
    %v8054 = vrot.slane %v8049, %v8053
    %8055 = vset.pattern.permute.xlu0 0
    %8056 = vperm.xlu0 %8055, %v8054
    %v8057 = vpop.permute.xlu0 %8056
    %v8059 = vadd.f32 %v8046, %v8057
    %v8060 = vtanh.pop %v8059
    %8061 = vst [vmem:[%s9 + $0x30] sm:$0xff] %v8060
    // Predicated region
    $region54: #{decoder_forward.1} parent=1 // pred_check
      _
    $region55: #{decoder_forward.1} parent=1 // pred_check_branch
      %8063 = sbr.rel (0) target = $region57
    $region56: #{decoder_forward.1} parent=1 // pred_region
      _
    $region57: #{decoder_forward.1} parent=1 // pred_fallthru
      _
    // Predicated region
    $region58: #{decoder_forward.1} parent=1 // pred_check
      _
    $region59: #{decoder_forward.1} parent=1 // pred_check_branch
      %8065 = sbr.rel (0) target = $region61
    $region60: #{decoder_forward.1} parent=1 // pred_region
      _
    $region61: #{decoder_forward.1} parent=1 // pred_fallthru
      _
    %8066 = vsyncpa [#allocation6], 1
    %8067 = vsyncpa [#allocation8], 1
    %8068 = vsyncpa [#allocation11], 1

</llo_original>
